<compile_context>
chip_gen: v6e
topology: v6e:2x2x1
jax: 0.10.0
libtpu: 0.0.40
codegen_flags: <defaults>
</compile_context>

<pallas_src>
import functools

import jax
import jax.numpy as jnp
from jax.experimental import pallas as pl
from jax.experimental.pallas import tpu as pltpu

K = 5             # ConvTranspose2d kernel size
NEG_SLOPE = 0.01  # PyTorch LeakyReLU default negative slope


# ---------------------------------------------------------------------------
# Pallas kernels
# ---------------------------------------------------------------------------
def _linear_kernel(x_ref, w_ref, b_ref, o_ref):
    # o = LeakyReLU(x @ w + b); bf16 MXU operands, f32 accumulate/epilogue.
    acc = jnp.dot(x_ref[...], w_ref[...], preferred_element_type=jnp.float32)
    acc = acc + b_ref[...]
    o_ref[...] = jnp.where(acc >= 0, acc, NEG_SLOPE * acc).astype(o_ref.dtype)


def _convt_kernel(x_ref, w_ref, b_ref, o_ref, *, OH, act_leaky):
    """ConvTranspose2d(k=5, s=2, p=2, op=1) for one image as 5 banded GEMMs.

    x_ref: (1, Hp, Wp*Ci)       zero-stuffed + padded input, NHWC, (W,C) on lanes
    w_ref: (K, Wp*Ci, OW*Co)    banded per-row-tap weights (bf16)
    b_ref: (1, OW*Co)           bias tiled across OW (f32)
    o_ref: (1, OH, OW*Co)       lane-dense output slab
    """
    n = w_ref.shape[2]                                  # OW * Co
    acc = jnp.broadcast_to(b_ref[...], (OH, n))         # bias folded into init
    for ky in range(K):
        rows = x_ref[0, ky:ky + OH, :]                  # (OH, Wp*Ci), f32
        acc = acc + jnp.dot(rows.astype(jnp.bfloat16), w_ref[ky],
                            preferred_element_type=jnp.float32)
    if act_leaky:
        acc = jnp.where(acc >= 0, acc, NEG_SLOPE * acc)
    o_ref[0] = acc.astype(o_ref.dtype)


def _convt_pool_sigmoid_kernel(x_ref, w_ref, b_ref, pr_ref, pc_ref, o_ref, *,
                               OH):
    """Last ConvTranspose2d fused with AvgPool2d(P, P) + Sigmoid epilogue."""
    n = w_ref.shape[2]
    acc = jnp.broadcast_to(b_ref[...], (OH, n))
    for ky in range(K):
        rows = x_ref[0, ky:ky + OH, :]
        acc = acc + jnp.dot(rows.astype(jnp.bfloat16), w_ref[ky],
                            preferred_element_type=jnp.float32)
    # AvgPool2d(P) = row-pool @ acc @ col-pool (tiny constant matrices).
    pooled = jnp.dot(pr_ref[...], acc, preferred_element_type=jnp.float32)
    pooled = jnp.dot(pooled, pc_ref[...], preferred_element_type=jnp.float32)
    o_ref[0] = jax.nn.sigmoid(pooled).astype(o_ref.dtype)


# ---------------------------------------------------------------------------
# pallas_call wrappers
# ---------------------------------------------------------------------------
def _compiler_params():
    return pltpu.CompilerParams(
        dimension_semantics=("parallel",),          # v7x: shard batch over TCs
        vmem_limit_bytes=32 * 1024 * 1024)          # explicit, generous bound


def linear_leaky(x, w_t, b):
    """LeakyReLU(x @ w_t + b). x:(B,Zin) f32, w_t:(Zin,Dout) bf16, b:(1,Dout)."""
    B, Zin = x.shape
    Dout = w_t.shape[1]
    return pl.pallas_call(
        _linear_kernel,
        out_shape=jax.ShapeDtypeStruct((B, Dout), jnp.float32),
        grid_spec=pltpu.PrefetchScalarGridSpec(
            num_scalar_prefetch=0,
            grid=(1,),
            in_specs=[
                pl.BlockSpec((B, Zin), lambda i: (0, 0)),
                pl.BlockSpec((Zin, Dout), lambda i: (0, 0)),
                pl.BlockSpec((1, Dout), lambda i: (0, 0)),
            ],
            out_specs=pl.BlockSpec((B, Dout), lambda i: (0, 0)),
        ),
        compiler_params=_compiler_params(),
    )(x.astype(jnp.bfloat16), w_t, b)


def convt_layer(h_nhwc, w_banded, b_tiled, *, act_leaky, pool=None):
    """One ConvTranspose2d(5, 2, 2, 1) layer (+ LeakyReLU, or fused
    AvgPool2d(pool)+Sigmoid). h_nhwc: (B, H, W, Ci) f32."""
    B, H, W, Ci = h_nhwc.shape
    OH, OW = 2 * H, 2 * W
    Hp, Wp = OH + K - 1, OW + K - 1
    Co = w_banded.shape[2] // OW
    assert w_banded.shape[1] == Wp * Ci

    # Stride-2 zero-stuffing + asymmetric pad (top/left=2, bottom/right=3) in
    # XLA glue (~1.06x of the output volume). The 25x im2col blow-up and the
    # NCHW<->NHWC transposes of the previous version are gone.
    up = jnp.zeros((B, 2 * H - 1, 2 * W - 1, Ci), jnp.float32)
    up = up.at[:, ::2, ::2, :].set(h_nhwc.astype(jnp.float32))
    xp = jnp.pad(up, ((0, 0), (2, 3), (2, 3), (0, 0)))
    xp = xp.reshape(B, Hp, Wp * Ci)           # (W, C) folded onto the lane axis

    in_specs = [
        pl.BlockSpec((1, Hp, Wp * Ci), lambda bi: (bi, 0, 0)),
        pl.BlockSpec((K, Wp * Ci, OW * Co), lambda bi: (0, 0, 0)),
        pl.BlockSpec((1, OW * Co), lambda bi: (0, 0)),
    ]
    args = [xp, w_banded, b_tiled]

    if pool is None:
        kernel = functools.partial(_convt_kernel, OH=OH, act_leaky=act_leaky)
        out_shape = jax.ShapeDtypeStruct((B, OH, OW * Co), jnp.float32)
        out_spec = pl.BlockSpec((1, OH, OW * Co), lambda bi: (bi, 0, 0))
    else:
        P = pool
        assert OH % P == 0 and OW % P == 0
        oh, ow = OH // P, OW // P
        # Constant pooling matrices (built in XLA, loaded once per call).
        pr = ((jnp.arange(OH)[None, :] // P) ==
              jnp.arange(oh)[:, None]).astype(jnp.float32) / float(P * P)
        pc_sp = ((jnp.arange(OW)[:, None] // P) ==
                 jnp.arange(ow)[None, :]).astype(jnp.float32)
        pc = jnp.kron(pc_sp, jnp.eye(Co, dtype=jnp.float32))
        in_specs += [
            pl.BlockSpec((oh, OH), lambda bi: (0, 0)),
            pl.BlockSpec((OW * Co, ow * Co), lambda bi: (0, 0)),
        ]
        args += [pr, pc]
        kernel = functools.partial(_convt_pool_sigmoid_kernel, OH=OH)
        out_shape = jax.ShapeDtypeStruct((B, oh, ow * Co), jnp.float32)
        out_spec = pl.BlockSpec((1, oh, ow * Co), lambda bi: (bi, 0, 0))

    return pl.pallas_call(
        kernel,
        out_shape=out_shape,
        grid_spec=pltpu.PrefetchScalarGridSpec(
            num_scalar_prefetch=0,
            grid=(B,),
            in_specs=in_specs,
            out_specs=out_spec,
        ),
        compiler_params=_compiler_params(),
    )(*args)


# ---------------------------------------------------------------------------
# Parameters (PyTorch layout) and kernel-ready preparation
# ---------------------------------------------------------------------------
def init_params(key, num_z, num_cat, width, height, num_image_channel):
    """Matches nn.init.normal_(w, 0, 0.02) / nn.init.constant_(b, 0)."""
    c0 = num_image_channel * 32
    h0, w0 = int(height * 0.5), int(width * 0.5)
    lin_out = c0 * h0 * w0
    keys = jax.random.split(key, 5)
    params = {
        "lin_w": 0.02 * jax.random.normal(keys[0], (lin_out, num_z + num_cat),
                                          jnp.float32),
        "lin_b": jnp.zeros((lin_out,), jnp.float32),
    }
    cin, cout = c0, c0 // 2
    for i in range(3):
        params[f"conv{i}_w"] = 0.02 * jax.random.normal(
            keys[1 + i], (cin, cout, K, K), jnp.float32)
        params[f"conv{i}_b"] = jnp.zeros((cout,), jnp.float32)
        cin, cout = cout, cout // 2
    params["conv3_w"] = 0.02 * jax.random.normal(
        keys[4], (cin, num_image_channel, K, K), jnp.float32)
    params["conv3_b"] = jnp.zeros((num_image_channel,), jnp.float32)
    return params


def prepare_params(params, *, num_image_channel, h0, w0):
    """Convert PyTorch-layout parameters into kernel-ready (bf16) layouts."""
    c0 = num_image_channel * 32
    zin = params["lin_w"].shape[1]
    prep = {}

    # Linear: permute output rows NCHW->NHWC so the kernel emits NHWC directly.
    lw = params["lin_w"].reshape(c0, h0, w0, zin).transpose(1, 2, 0, 3)
    prep["lin_wt"] = lw.reshape(h0 * w0 * c0, zin).T.astype(jnp.bfloat16)
    prep["lin_b"] = params["lin_b"].reshape(c0, h0, w0).transpose(
        1, 2, 0).reshape(1, -1).astype(jnp.float32)

    w_in = w0
    for i in range(4):
        w_pt = params[f"conv{i}_w"]                      # (Ci, Co, K, K)
        ci, co = w_pt.shape[0], w_pt.shape[1]
        ow = 2 * w_in
        wp = ow + K - 1
        # Equivalent forward-conv taps: flip spatially + swap in/out channels.
        taps = jnp.flip(w_pt, axis=(2, 3)).transpose(2, 3, 0, 1)  # (K,K,Ci,Co)
        # Banded weight per vertical tap ky: W[ky][i*Ci+ci, ox*Co+co] =
        #   taps[ky, i-ox, ci, co] if 0 <= i-ox < K else 0,
        # so the layer is 5 lane-dense dots (OH, Wp*Ci) @ (Wp*Ci, OW*Co).
        kx_idx = jnp.arange(wp)[:, None] - jnp.arange(ow)[None, :]   # (Wp, OW)
        valid = (kx_idx >= 0) & (kx_idx < K)
        gathered = taps[:, jnp.clip(kx_idx, 0, K - 1)]   # (K, Wp, OW, Ci, Co)
        banded = jnp.where(valid[None, :, :, None, None], gathered, 0.0)
        banded = banded.transpose(0, 1, 3, 2, 4).reshape(K, wp * ci, ow * co)
        prep[f"conv{i}_w"] = banded.astype(jnp.bfloat16)
        prep[f"conv{i}_b"] = jnp.tile(params[f"conv{i}_b"], ow).reshape(
            1, ow * co).astype(jnp.float32)
        w_in = ow
    return prep


# ---------------------------------------------------------------------------
# Generator forward (mirrors the PyTorch module)
# ---------------------------------------------------------------------------
def make_generator_forward(num_z, num_cat, width, height, num_image_channel):
    c0 = num_image_channel * 32
    h0, w0 = int(height * 0.5), int(width * 0.5)
    pool = int(0.5 * 2 ** 4)                 # AvgPool2d kernel/stride = 8

    def forward(x, params):
        B = x.shape[0]
        p = prepare_params(params, num_image_channel=num_image_channel,
                           h0=h0, w0=w0)

        # Linear + LeakyReLU, already in NHWC order.
        h = linear_leaky(x, p["lin_wt"], p["lin_b"]).reshape(B, h0, w0, c0)

        # 3 x (ConvTranspose2d + LeakyReLU), NHWC activations end-to-end.
        for i in range(3):
            OH, OW = 2 * h.shape[1], 2 * h.shape[2]
            co = p[f"conv{i}_w"].shape[2] // OW
            out = convt_layer(h, p[f"conv{i}_w"], p[f"conv{i}_b"],
                              act_leaky=True)
            h = out.reshape(B, OH, OW, co)

        # Last ConvTranspose2d fused with AvgPool2d(8) + Sigmoid.
        pooled = convt_layer(h, p["conv3_w"], p["conv3_b"],
                             act_leaky=False, pool=pool)
        oh, ow = (2 * h.shape[1]) // pool, (2 * h.shape[2]) // pool
        out = pooled.reshape(B, oh, ow, num_image_channel)
        # Module boundary only: NCHW flatten, matching PyTorch `.view(B, -1)`.
        return out.transpose(0, 3, 1, 2).reshape(B, -1)

    return jax.jit(forward)


if __name__ == "__main__":
    # Small, consistent config: num_z=8, num_cat=4, 8x8 images, 1 channel.
    num_z, num_cat, width, height, num_image_channel = 8, 4, 8, 8, 1
    batch = 2

    key = jax.random.PRNGKey(0)
    kp, kx = jax.random.split(key)
    params = init_params(kp, num_z, num_cat, width, height, num_image_channel)
    x = jax.random.normal(kx, (batch, num_z + num_cat), jnp.float32)

    fwd = make_generator_forward(num_z, num_cat, width, height,
                                 num_image_channel)
    out = jax.block_until_ready(fwd(x, params))

    assert out.shape == (batch, num_image_channel * height * width), out.shape
    assert bool(jnp.all(jnp.isfinite(out)))
    assert bool(jnp.all((out >= 0.0) & (out <= 1.0)))  # post-sigmoid range
    print("KERNEL_OK")
</pallas_src>

<mosaic_0001>
module attributes {stable_mosaic.version = 11 : i64} {
  func.func @_linear_kernel(%arg0: i32, %arg1: memref<2x12xbf16, #tpu.memory_space<vmem>>, %arg2: memref<12x512xbf16, #tpu.memory_space<vmem>>, %arg3: memref<1x512xf32, #tpu.memory_space<vmem>>, %arg4: memref<2x512xf32, #tpu.memory_space<vmem>>) attributes {dimension_semantics = [#tpu.dimension_semantics<parallel>], iteration_bounds = array<i64: 1>, scalar_prefetch = 0 : i64, scratch_operands = 0 : i64, tpu.core_type = #tpu.core_type<tc>, window_params = [{pipeline_mode = #tpu.pipeline_mode<synchronous>, transform_indices = @transform_0, window_bounds = array<i64: 2, 12>}, {pipeline_mode = #tpu.pipeline_mode<synchronous>, transform_indices = @transform_1, window_bounds = array<i64: 12, 512>}, {pipeline_mode = #tpu.pipeline_mode<synchronous>, transform_indices = @transform_2, window_bounds = array<i64: 1, 512>}, {pipeline_mode = #tpu.pipeline_mode<synchronous>, transform_indices = @transform_3, window_bounds = array<i64: 2, 512>}]} {
    %c0 = arith.constant 0 : index
    %c0_0 = arith.constant 0 : index
    %0 = vector.load %arg1[%c0, %c0_0] : memref<2x12xbf16, #tpu.memory_space<vmem>>, vector<2x12xbf16>
    %c0_1 = arith.constant 0 : index
    %c0_2 = arith.constant 0 : index
    %1 = vector.load %arg2[%c0_1, %c0_2] : memref<12x512xbf16, #tpu.memory_space<vmem>>, vector<12x512xbf16>
    %cst = arith.constant dense<0.000000e+00> : vector<2x512xf32>
    %2 = tpu.matmul %0, %1, %cst {dimension_numbers = #tpu.dot_dimension_numbers<[1], [0], [0], [1], [0, 0, 1, 1], [], []>} : vector<2x12xbf16>, vector<12x512xbf16>, vector<2x512xf32> -> vector<2x512xf32>
    %c0_3 = arith.constant 0 : index
    %c0_4 = arith.constant 0 : index
    %3 = vector.load %arg3[%c0_3, %c0_4] : memref<1x512xf32, #tpu.memory_space<vmem>>, vector<1x512xf32>
    %4 = vector.broadcast %3 : vector<1x512xf32> to vector<2x512xf32>
    %5 = arith.addf %2, %4 : vector<2x512xf32>
    %cst_5 = arith.constant 0.000000e+00 : f32
    %6 = vector.broadcast %cst_5 : f32 to vector<2x512xf32>
    %7 = arith.cmpf oge, %5, %6 : vector<2x512xf32>
    %cst_6 = arith.constant 0.00999999977 : f32
    %8 = vector.broadcast %cst_6 : f32 to vector<2x512xf32>
    %9 = arith.mulf %8, %5 : vector<2x512xf32>
    %10 = arith.select %7, %5, %9 : vector<2x512xi1>, vector<2x512xf32>
    %c0_7 = arith.constant 0 : index
    %c0_8 = arith.constant 0 : index
    %11 = vector.load %arg4[%c0_7, %c0_8] : memref<2x512xf32, #tpu.memory_space<vmem>>, vector<2x512xf32>
    tpu.vector_store %arg4[%c0_7, %c0_8], %10 {strides = array<i32>} : memref<2x512xf32, #tpu.memory_space<vmem>>, vector<2x512xf32>,
    return
  }
  func.func @transform_0(%arg0: i32) -> (i32, i32) {
    %c0_i32 = arith.constant 0 : i32
    %c0_i32_0 = arith.constant 0 : i32
    %c0_i32_1 = arith.constant 0 : i32
    return %c0_i32, %c0_i32_0 : i32, i32
  }
  func.func @transform_1(%arg0: i32) -> (i32, i32) {
    %c0_i32 = arith.constant 0 : i32
    %c0_i32_0 = arith.constant 0 : i32
    %c0_i32_1 = arith.constant 0 : i32
    return %c0_i32, %c0_i32_0 : i32, i32
  }
  func.func @transform_2(%arg0: i32) -> (i32, i32) {
    %c0_i32 = arith.constant 0 : i32
    %c0_i32_0 = arith.constant 0 : i32
    %c0_i32_1 = arith.constant 0 : i32
    return %c0_i32, %c0_i32_0 : i32, i32
  }
  func.func @transform_3(%arg0: i32) -> (i32, i32) {
    %c0_i32 = arith.constant 0 : i32
    %c0_i32_0 = arith.constant 0 : i32
    %c0_i32_1 = arith.constant 0 : i32
    return %c0_i32, %c0_i32_0 : i32, i32
  }
}

module attributes {stable_mosaic.version = 11 : i64} {
  func.func @_convt_kernel(%arg0: i32, %arg1: memref<1x12x384xf32, #tpu.memory_space<vmem>>, %arg2: memref<5x384x128xbf16, #tpu.memory_space<vmem>>, %arg3: memref<1x128xf32, #tpu.memory_space<vmem>>, %arg4: memref<1x8x128xf32, #tpu.memory_space<vmem>>) attributes {dimension_semantics = [#tpu.dimension_semantics<parallel>], iteration_bounds = array<i64: 2>, scalar_prefetch = 0 : i64, scratch_operands = 0 : i64, tpu.core_type = #tpu.core_type<tc>, window_params = [{transform_indices = @transform_0, window_bounds = array<i64: 1, 12, 384>}, {pipeline_mode = #tpu.pipeline_mode<synchronous>, transform_indices = @transform_1, window_bounds = array<i64: 5, 384, 128>}, {pipeline_mode = #tpu.pipeline_mode<synchronous>, transform_indices = @transform_2, window_bounds = array<i64: 1, 128>}, {transform_indices = @transform_3, window_bounds = array<i64: 1, 8, 128>}]} {
    %c0 = arith.constant 0 : index
    %c0_0 = arith.constant 0 : index
    %0 = vector.load %arg3[%c0, %c0_0] : memref<1x128xf32, #tpu.memory_space<vmem>>, vector<1x128xf32>
    %1 = vector.shape_cast %0 : vector<1x128xf32> to vector<1x128xf32>
    %2 = vector.broadcast %1 : vector<1x128xf32> to vector<8x128xf32>
    %c0_1 = arith.constant 0 : index
    %c0_2 = arith.constant 0 : index
    %c0_3 = arith.constant 0 : index
    %3 = vector.load %arg1[%c0_1, %c0_2, %c0_3] : memref<1x12x384xf32, #tpu.memory_space<vmem>>, vector<1x8x384xf32>
    %4 = vector.shape_cast %3 : vector<1x8x384xf32> to vector<8x384xf32>
    %5 = arith.truncf %4 : vector<8x384xf32> to vector<8x384xbf16>
    %c0_4 = arith.constant 0 : index
    %c0_5 = arith.constant 0 : index
    %c0_6 = arith.constant 0 : index
    %6 = vector.load %arg2[%c0_4, %c0_5, %c0_6] : memref<5x384x128xbf16, #tpu.memory_space<vmem>>, vector<1x384x128xbf16>
    %7 = vector.shape_cast %6 : vector<1x384x128xbf16> to vector<384x128xbf16>
    %cst = arith.constant dense<0.000000e+00> : vector<8x128xf32>
    %8 = tpu.matmul %5, %7, %cst {dimension_numbers = #tpu.dot_dimension_numbers<[1], [0], [0], [1], [0, 0, 1, 1], [], []>} : vector<8x384xbf16>, vector<384x128xbf16>, vector<8x128xf32> -> vector<8x128xf32>
    %9 = arith.addf %2, %8 : vector<8x128xf32>
    %c0_7 = arith.constant 0 : index
    %c1 = arith.constant 1 : index
    %c0_8 = arith.constant 0 : index
    %10 = vector.load %arg1[%c0_7, %c1, %c0_8] : memref<1x12x384xf32, #tpu.memory_space<vmem>>, vector<1x8x384xf32>
    %11 = vector.shape_cast %10 : vector<1x8x384xf32> to vector<8x384xf32>
    %12 = arith.truncf %11 : vector<8x384xf32> to vector<8x384xbf16>
    %c1_9 = arith.constant 1 : index
    %c0_10 = arith.constant 0 : index
    %c0_11 = arith.constant 0 : index
    %13 = vector.load %arg2[%c1_9, %c0_10, %c0_11] : memref<5x384x128xbf16, #tpu.memory_space<vmem>>, vector<1x384x128xbf16>
    %14 = vector.shape_cast %13 : vector<1x384x128xbf16> to vector<384x128xbf16>
    %cst_12 = arith.constant dense<0.000000e+00> : vector<8x128xf32>
    %15 = tpu.matmul %12, %14, %cst_12 {dimension_numbers = #tpu.dot_dimension_numbers<[1], [0], [0], [1], [0, 0, 1, 1], [], []>} : vector<8x384xbf16>, vector<384x128xbf16>, vector<8x128xf32> -> vector<8x128xf32>
    %16 = arith.addf %9, %15 : vector<8x128xf32>
    %c0_13 = arith.constant 0 : index
    %c2 = arith.constant 2 : index
    %c0_14 = arith.constant 0 : index
    %17 = vector.load %arg1[%c0_13, %c2, %c0_14] : memref<1x12x384xf32, #tpu.memory_space<vmem>>, vector<1x8x384xf32>
    %18 = vector.shape_cast %17 : vector<1x8x384xf32> to vector<8x384xf32>
    %19 = arith.truncf %18 : vector<8x384xf32> to vector<8x384xbf16>
    %c2_15 = arith.constant 2 : index
    %c0_16 = arith.constant 0 : index
    %c0_17 = arith.constant 0 : index
    %20 = vector.load %arg2[%c2_15, %c0_16, %c0_17] : memref<5x384x128xbf16, #tpu.memory_space<vmem>>, vector<1x384x128xbf16>
    %21 = vector.shape_cast %20 : vector<1x384x128xbf16> to vector<384x128xbf16>
    %cst_18 = arith.constant dense<0.000000e+00> : vector<8x128xf32>
    %22 = tpu.matmul %19, %21, %cst_18 {dimension_numbers = #tpu.dot_dimension_numbers<[1], [0], [0], [1], [0, 0, 1, 1], [], []>} : vector<8x384xbf16>, vector<384x128xbf16>, vector<8x128xf32> -> vector<8x128xf32>
    %23 = arith.addf %16, %22 : vector<8x128xf32>
    %c0_19 = arith.constant 0 : index
    %c3 = arith.constant 3 : index
    %c0_20 = arith.constant 0 : index
    %24 = vector.load %arg1[%c0_19, %c3, %c0_20] : memref<1x12x384xf32, #tpu.memory_space<vmem>>, vector<1x8x384xf32>
    %25 = vector.shape_cast %24 : vector<1x8x384xf32> to vector<8x384xf32>
    %26 = arith.truncf %25 : vector<8x384xf32> to vector<8x384xbf16>
    %c3_21 = arith.constant 3 : index
    %c0_22 = arith.constant 0 : index
    %c0_23 = arith.constant 0 : index
    %27 = vector.load %arg2[%c3_21, %c0_22, %c0_23] : memref<5x384x128xbf16, #tpu.memory_space<vmem>>, vector<1x384x128xbf16>
    %28 = vector.shape_cast %27 : vector<1x384x128xbf16> to vector<384x128xbf16>
    %cst_24 = arith.constant dense<0.000000e+00> : vector<8x128xf32>
    %29 = tpu.matmul %26, %28, %cst_24 {dimension_numbers = #tpu.dot_dimension_numbers<[1], [0], [0], [1], [0, 0, 1, 1], [], []>} : vector<8x384xbf16>, vector<384x128xbf16>, vector<8x128xf32> -> vector<8x128xf32>
    %30 = arith.addf %23, %29 : vector<8x128xf32>
    %c0_25 = arith.constant 0 : index
    %c4 = arith.constant 4 : index
    %c0_26 = arith.constant 0 : index
    %31 = vector.load %arg1[%c0_25, %c4, %c0_26] : memref<1x12x384xf32, #tpu.memory_space<vmem>>, vector<1x8x384xf32>
    %32 = vector.shape_cast %31 : vector<1x8x384xf32> to vector<8x384xf32>
    %33 = arith.truncf %32 : vector<8x384xf32> to vector<8x384xbf16>
    %c4_27 = arith.constant 4 : index
    %c0_28 = arith.constant 0 : index
    %c0_29 = arith.constant 0 : index
    %34 = vector.load %arg2[%c4_27, %c0_28, %c0_29] : memref<5x384x128xbf16, #tpu.memory_space<vmem>>, vector<1x384x128xbf16>
    %35 = vector.shape_cast %34 : vector<1x384x128xbf16> to vector<384x128xbf16>
    %cst_30 = arith.constant dense<0.000000e+00> : vector<8x128xf32>
    %36 = tpu.matmul %33, %35, %cst_30 {dimension_numbers = #tpu.dot_dimension_numbers<[1], [0], [0], [1], [0, 0, 1, 1], [], []>} : vector<8x384xbf16>, vector<384x128xbf16>, vector<8x128xf32> -> vector<8x128xf32>
    %37 = arith.addf %30, %36 : vector<8x128xf32>
    %cst_31 = arith.constant 0.000000e+00 : f32
    %38 = vector.broadcast %cst_31 : f32 to vector<8x128xf32>
    %39 = arith.cmpf oge, %37, %38 : vector<8x128xf32>
    %cst_32 = arith.constant 0.00999999977 : f32
    %40 = vector.broadcast %cst_32 : f32 to vector<8x128xf32>
    %41 = arith.mulf %40, %37 : vector<8x128xf32>
    %42 = arith.select %39, %37, %41 : vector<8x128xi1>, vector<8x128xf32>
    %c0_33 = arith.constant 0 : index
    %c0_34 = arith.constant 0 : index
    %c0_35 = arith.constant 0 : index
    %43 = vector.load %arg4[%c0_33, %c0_34, %c0_35] : memref<1x8x128xf32, #tpu.memory_space<vmem>>, vector<1x8x128xf32>
    %44 = vector.shape_cast %43 : vector<1x8x128xf32> to vector<8x128xf32>
    %45 = vector.shape_cast %42 : vector<8x128xf32> to vector<1x8x128xf32>
    tpu.vector_store %arg4[%c0_33, %c0_34, %c0_35], %45 {strides = array<i32>} : memref<1x8x128xf32, #tpu.memory_space<vmem>>, vector<1x8x128xf32>,
    return
  }
  func.func @transform_0(%arg0: i32) -> (i32, i32, i32) {
    %c0_i32 = arith.constant 0 : i32
    %c0_i32_0 = arith.constant 0 : i32
    %c0_i32_1 = arith.constant 0 : i32
    return %arg0, %c0_i32, %c0_i32_0 : i32, i32, i32
  }
  func.func @transform_1(%arg0: i32) -> (i32, i32, i32) {
    %c0_i32 = arith.constant 0 : i32
    %c0_i32_0 = arith.constant 0 : i32
    %c0_i32_1 = arith.constant 0 : i32
    %c0_i32_2 = arith.constant 0 : i32
    return %c0_i32, %c0_i32_0, %c0_i32_1 : i32, i32, i32
  }
  func.func @transform_2(%arg0: i32) -> (i32, i32) {
    %c0_i32 = arith.constant 0 : i32
    %c0_i32_0 = arith.constant 0 : i32
    %c0_i32_1 = arith.constant 0 : i32
    return %c0_i32, %c0_i32_0 : i32, i32
  }
  func.func @transform_3(%arg0: i32) -> (i32, i32, i32) {
    %c0_i32 = arith.constant 0 : i32
    %c0_i32_0 = arith.constant 0 : i32
    %c0_i32_1 = arith.constant 0 : i32
    return %arg0, %c0_i32, %c0_i32_0 : i32, i32, i32
  }
}

module attributes {stable_mosaic.version = 11 : i64} {
  func.func @_convt_kernel(%arg0: i32, %arg1: memref<1x20x320xf32, #tpu.memory_space<vmem>>, %arg2: memref<5x320x128xbf16, #tpu.memory_space<vmem>>, %arg3: memref<1x128xf32, #tpu.memory_space<vmem>>, %arg4: memref<1x16x128xf32, #tpu.memory_space<vmem>>) attributes {dimension_semantics = [#tpu.dimension_semantics<parallel>], iteration_bounds = array<i64: 2>, scalar_prefetch = 0 : i64, scratch_operands = 0 : i64, tpu.core_type = #tpu.core_type<tc>, window_params = [{transform_indices = @transform_0, window_bounds = array<i64: 1, 20, 320>}, {pipeline_mode = #tpu.pipeline_mode<synchronous>, transform_indices = @transform_1, window_bounds = array<i64: 5, 320, 128>}, {pipeline_mode = #tpu.pipeline_mode<synchronous>, transform_indices = @transform_2, window_bounds = array<i64: 1, 128>}, {transform_indices = @transform_3, window_bounds = array<i64: 1, 16, 128>}]} {
    %c0 = arith.constant 0 : index
    %c0_0 = arith.constant 0 : index
    %0 = vector.load %arg3[%c0, %c0_0] : memref<1x128xf32, #tpu.memory_space<vmem>>, vector<1x128xf32>
    %1 = vector.shape_cast %0 : vector<1x128xf32> to vector<1x128xf32>
    %2 = vector.broadcast %1 : vector<1x128xf32> to vector<16x128xf32>
    %c0_1 = arith.constant 0 : index
    %c0_2 = arith.constant 0 : index
    %c0_3 = arith.constant 0 : index
    %3 = vector.load %arg1[%c0_1, %c0_2, %c0_3] : memref<1x20x320xf32, #tpu.memory_space<vmem>>, vector<1x16x320xf32>
    %4 = vector.shape_cast %3 : vector<1x16x320xf32> to vector<16x320xf32>
    %5 = arith.truncf %4 : vector<16x320xf32> to vector<16x320xbf16>
    %c0_4 = arith.constant 0 : index
    %c0_5 = arith.constant 0 : index
    %c0_6 = arith.constant 0 : index
    %6 = vector.load %arg2[%c0_4, %c0_5, %c0_6] : memref<5x320x128xbf16, #tpu.memory_space<vmem>>, vector<1x320x128xbf16>
    %7 = vector.shape_cast %6 : vector<1x320x128xbf16> to vector<320x128xbf16>
    %cst = arith.constant dense<0.000000e+00> : vector<16x128xf32>
    %8 = tpu.matmul %5, %7, %cst {dimension_numbers = #tpu.dot_dimension_numbers<[1], [0], [0], [1], [0, 0, 1, 1], [], []>} : vector<16x320xbf16>, vector<320x128xbf16>, vector<16x128xf32> -> vector<16x128xf32>
    %9 = arith.addf %2, %8 : vector<16x128xf32>
    %c0_7 = arith.constant 0 : index
    %c1 = arith.constant 1 : index
    %c0_8 = arith.constant 0 : index
    %10 = vector.load %arg1[%c0_7, %c1, %c0_8] : memref<1x20x320xf32, #tpu.memory_space<vmem>>, vector<1x16x320xf32>
    %11 = vector.shape_cast %10 : vector<1x16x320xf32> to vector<16x320xf32>
    %12 = arith.truncf %11 : vector<16x320xf32> to vector<16x320xbf16>
    %c1_9 = arith.constant 1 : index
    %c0_10 = arith.constant 0 : index
    %c0_11 = arith.constant 0 : index
    %13 = vector.load %arg2[%c1_9, %c0_10, %c0_11] : memref<5x320x128xbf16, #tpu.memory_space<vmem>>, vector<1x320x128xbf16>
    %14 = vector.shape_cast %13 : vector<1x320x128xbf16> to vector<320x128xbf16>
    %cst_12 = arith.constant dense<0.000000e+00> : vector<16x128xf32>
    %15 = tpu.matmul %12, %14, %cst_12 {dimension_numbers = #tpu.dot_dimension_numbers<[1], [0], [0], [1], [0, 0, 1, 1], [], []>} : vector<16x320xbf16>, vector<320x128xbf16>, vector<16x128xf32> -> vector<16x128xf32>
    %16 = arith.addf %9, %15 : vector<16x128xf32>
    %c0_13 = arith.constant 0 : index
    %c2 = arith.constant 2 : index
    %c0_14 = arith.constant 0 : index
    %17 = vector.load %arg1[%c0_13, %c2, %c0_14] : memref<1x20x320xf32, #tpu.memory_space<vmem>>, vector<1x16x320xf32>
    %18 = vector.shape_cast %17 : vector<1x16x320xf32> to vector<16x320xf32>
    %19 = arith.truncf %18 : vector<16x320xf32> to vector<16x320xbf16>
    %c2_15 = arith.constant 2 : index
    %c0_16 = arith.constant 0 : index
    %c0_17 = arith.constant 0 : index
    %20 = vector.load %arg2[%c2_15, %c0_16, %c0_17] : memref<5x320x128xbf16, #tpu.memory_space<vmem>>, vector<1x320x128xbf16>
    %21 = vector.shape_cast %20 : vector<1x320x128xbf16> to vector<320x128xbf16>
    %cst_18 = arith.constant dense<0.000000e+00> : vector<16x128xf32>
    %22 = tpu.matmul %19, %21, %cst_18 {dimension_numbers = #tpu.dot_dimension_numbers<[1], [0], [0], [1], [0, 0, 1, 1], [], []>} : vector<16x320xbf16>, vector<320x128xbf16>, vector<16x128xf32> -> vector<16x128xf32>
    %23 = arith.addf %16, %22 : vector<16x128xf32>
    %c0_19 = arith.constant 0 : index
    %c3 = arith.constant 3 : index
    %c0_20 = arith.constant 0 : index
    %24 = vector.load %arg1[%c0_19, %c3, %c0_20] : memref<1x20x320xf32, #tpu.memory_space<vmem>>, vector<1x16x320xf32>
    %25 = vector.shape_cast %24 : vector<1x16x320xf32> to vector<16x320xf32>
    %26 = arith.truncf %25 : vector<16x320xf32> to vector<16x320xbf16>
    %c3_21 = arith.constant 3 : index
    %c0_22 = arith.constant 0 : index
    %c0_23 = arith.constant 0 : index
    %27 = vector.load %arg2[%c3_21, %c0_22, %c0_23] : memref<5x320x128xbf16, #tpu.memory_space<vmem>>, vector<1x320x128xbf16>
    %28 = vector.shape_cast %27 : vector<1x320x128xbf16> to vector<320x128xbf16>
    %cst_24 = arith.constant dense<0.000000e+00> : vector<16x128xf32>
    %29 = tpu.matmul %26, %28, %cst_24 {dimension_numbers = #tpu.dot_dimension_numbers<[1], [0], [0], [1], [0, 0, 1, 1], [], []>} : vector<16x320xbf16>, vector<320x128xbf16>, vector<16x128xf32> -> vector<16x128xf32>
    %30 = arith.addf %23, %29 : vector<16x128xf32>
    %c0_25 = arith.constant 0 : index
    %c4 = arith.constant 4 : index
    %c0_26 = arith.constant 0 : index
    %31 = vector.load %arg1[%c0_25, %c4, %c0_26] : memref<1x20x320xf32, #tpu.memory_space<vmem>>, vector<1x16x320xf32>
    %32 = vector.shape_cast %31 : vector<1x16x320xf32> to vector<16x320xf32>
    %33 = arith.truncf %32 : vector<16x320xf32> to vector<16x320xbf16>
    %c4_27 = arith.constant 4 : index
    %c0_28 = arith.constant 0 : index
    %c0_29 = arith.constant 0 : index
    %34 = vector.load %arg2[%c4_27, %c0_28, %c0_29] : memref<5x320x128xbf16, #tpu.memory_space<vmem>>, vector<1x320x128xbf16>
    %35 = vector.shape_cast %34 : vector<1x320x128xbf16> to vector<320x128xbf16>
    %cst_30 = arith.constant dense<0.000000e+00> : vector<16x128xf32>
    %36 = tpu.matmul %33, %35, %cst_30 {dimension_numbers = #tpu.dot_dimension_numbers<[1], [0], [0], [1], [0, 0, 1, 1], [], []>} : vector<16x320xbf16>, vector<320x128xbf16>, vector<16x128xf32> -> vector<16x128xf32>
    %37 = arith.addf %30, %36 : vector<16x128xf32>
    %cst_31 = arith.constant 0.000000e+00 : f32
    %38 = vector.broadcast %cst_31 : f32 to vector<16x128xf32>
    %39 = arith.cmpf oge, %37, %38 : vector<16x128xf32>
    %cst_32 = arith.constant 0.00999999977 : f32
    %40 = vector.broadcast %cst_32 : f32 to vector<16x128xf32>
    %41 = arith.mulf %40, %37 : vector<16x128xf32>
    %42 = arith.select %39, %37, %41 : vector<16x128xi1>, vector<16x128xf32>
    %c0_33 = arith.constant 0 : index
    %c0_34 = arith.constant 0 : index
    %c0_35 = arith.constant 0 : index
    %43 = vector.load %arg4[%c0_33, %c0_34, %c0_35] : memref<1x16x128xf32, #tpu.memory_space<vmem>>, vector<1x16x128xf32>
    %44 = vector.shape_cast %43 : vector<1x16x128xf32> to vector<16x128xf32>
    %45 = vector.shape_cast %42 : vector<16x128xf32> to vector<1x16x128xf32>
    tpu.vector_store %arg4[%c0_33, %c0_34, %c0_35], %45 {strides = array<i32>} : memref<1x16x128xf32, #tpu.memory_space<vmem>>, vector<1x16x128xf32>,
    return
  }
  func.func @transform_0(%arg0: i32) -> (i32, i32, i32) {
    %c0_i32 = arith.constant 0 : i32
    %c0_i32_0 = arith.constant 0 : i32
    %c0_i32_1 = arith.constant 0 : i32
    return %arg0, %c0_i32, %c0_i32_0 : i32, i32, i32
  }
  func.func @transform_1(%arg0: i32) -> (i32, i32, i32) {
    %c0_i32 = arith.constant 0 : i32
    %c0_i32_0 = arith.constant 0 : i32
    %c0_i32_1 = arith.constant 0 : i32
    %c0_i32_2 = arith.constant 0 : i32
    return %c0_i32, %c0_i32_0, %c0_i32_1 : i32, i32, i32
  }
  func.func @transform_2(%arg0: i32) -> (i32, i32) {
    %c0_i32 = arith.constant 0 : i32
    %c0_i32_0 = arith.constant 0 : i32
    %c0_i32_1 = arith.constant 0 : i32
    return %c0_i32, %c0_i32_0 : i32, i32
  }
  func.func @transform_3(%arg0: i32) -> (i32, i32, i32) {
    %c0_i32 = arith.constant 0 : i32
    %c0_i32_0 = arith.constant 0 : i32
    %c0_i32_1 = arith.constant 0 : i32
    return %arg0, %c0_i32, %c0_i32_0 : i32, i32, i32
  }
}

module attributes {stable_mosaic.version = 11 : i64} {
  func.func @_convt_kernel(%arg0: i32, %arg1: memref<1x36x288xf32, #tpu.memory_space<vmem>>, %arg2: memref<5x288x128xbf16, #tpu.memory_space<vmem>>, %arg3: memref<1x128xf32, #tpu.memory_space<vmem>>, %arg4: memref<1x32x128xf32, #tpu.memory_space<vmem>>) attributes {dimension_semantics = [#tpu.dimension_semantics<parallel>], iteration_bounds = array<i64: 2>, scalar_prefetch = 0 : i64, scratch_operands = 0 : i64, tpu.core_type = #tpu.core_type<tc>, window_params = [{transform_indices = @transform_0, window_bounds = array<i64: 1, 36, 288>}, {pipeline_mode = #tpu.pipeline_mode<synchronous>, transform_indices = @transform_1, window_bounds = array<i64: 5, 288, 128>}, {pipeline_mode = #tpu.pipeline_mode<synchronous>, transform_indices = @transform_2, window_bounds = array<i64: 1, 128>}, {transform_indices = @transform_3, window_bounds = array<i64: 1, 32, 128>}]} {
    %c0 = arith.constant 0 : index
    %c0_0 = arith.constant 0 : index
    %0 = vector.load %arg3[%c0, %c0_0] : memref<1x128xf32, #tpu.memory_space<vmem>>, vector<1x128xf32>
    %1 = vector.shape_cast %0 : vector<1x128xf32> to vector<1x128xf32>
    %2 = vector.broadcast %1 : vector<1x128xf32> to vector<32x128xf32>
    %c0_1 = arith.constant 0 : index
    %c0_2 = arith.constant 0 : index
    %c0_3 = arith.constant 0 : index
    %3 = vector.load %arg1[%c0_1, %c0_2, %c0_3] : memref<1x36x288xf32, #tpu.memory_space<vmem>>, vector<1x32x288xf32>
    %4 = vector.shape_cast %3 : vector<1x32x288xf32> to vector<32x288xf32>
    %5 = arith.truncf %4 : vector<32x288xf32> to vector<32x288xbf16>
    %c0_4 = arith.constant 0 : index
    %c0_5 = arith.constant 0 : index
    %c0_6 = arith.constant 0 : index
    %6 = vector.load %arg2[%c0_4, %c0_5, %c0_6] : memref<5x288x128xbf16, #tpu.memory_space<vmem>>, vector<1x288x128xbf16>
    %7 = vector.shape_cast %6 : vector<1x288x128xbf16> to vector<288x128xbf16>
    %cst = arith.constant dense<0.000000e+00> : vector<32x128xf32>
    %8 = tpu.matmul %5, %7, %cst {dimension_numbers = #tpu.dot_dimension_numbers<[1], [0], [0], [1], [0, 0, 1, 1], [], []>} : vector<32x288xbf16>, vector<288x128xbf16>, vector<32x128xf32> -> vector<32x128xf32>
    %9 = arith.addf %2, %8 : vector<32x128xf32>
    %c0_7 = arith.constant 0 : index
    %c1 = arith.constant 1 : index
    %c0_8 = arith.constant 0 : index
    %10 = vector.load %arg1[%c0_7, %c1, %c0_8] : memref<1x36x288xf32, #tpu.memory_space<vmem>>, vector<1x32x288xf32>
    %11 = vector.shape_cast %10 : vector<1x32x288xf32> to vector<32x288xf32>
    %12 = arith.truncf %11 : vector<32x288xf32> to vector<32x288xbf16>
    %c1_9 = arith.constant 1 : index
    %c0_10 = arith.constant 0 : index
    %c0_11 = arith.constant 0 : index
    %13 = vector.load %arg2[%c1_9, %c0_10, %c0_11] : memref<5x288x128xbf16, #tpu.memory_space<vmem>>, vector<1x288x128xbf16>
    %14 = vector.shape_cast %13 : vector<1x288x128xbf16> to vector<288x128xbf16>
    %cst_12 = arith.constant dense<0.000000e+00> : vector<32x128xf32>
    %15 = tpu.matmul %12, %14, %cst_12 {dimension_numbers = #tpu.dot_dimension_numbers<[1], [0], [0], [1], [0, 0, 1, 1], [], []>} : vector<32x288xbf16>, vector<288x128xbf16>, vector<32x128xf32> -> vector<32x128xf32>
    %16 = arith.addf %9, %15 : vector<32x128xf32>
    %c0_13 = arith.constant 0 : index
    %c2 = arith.constant 2 : index
    %c0_14 = arith.constant 0 : index
    %17 = vector.load %arg1[%c0_13, %c2, %c0_14] : memref<1x36x288xf32, #tpu.memory_space<vmem>>, vector<1x32x288xf32>
    %18 = vector.shape_cast %17 : vector<1x32x288xf32> to vector<32x288xf32>
    %19 = arith.truncf %18 : vector<32x288xf32> to vector<32x288xbf16>
    %c2_15 = arith.constant 2 : index
    %c0_16 = arith.constant 0 : index
    %c0_17 = arith.constant 0 : index
    %20 = vector.load %arg2[%c2_15, %c0_16, %c0_17] : memref<5x288x128xbf16, #tpu.memory_space<vmem>>, vector<1x288x128xbf16>
    %21 = vector.shape_cast %20 : vector<1x288x128xbf16> to vector<288x128xbf16>
    %cst_18 = arith.constant dense<0.000000e+00> : vector<32x128xf32>
    %22 = tpu.matmul %19, %21, %cst_18 {dimension_numbers = #tpu.dot_dimension_numbers<[1], [0], [0], [1], [0, 0, 1, 1], [], []>} : vector<32x288xbf16>, vector<288x128xbf16>, vector<32x128xf32> -> vector<32x128xf32>
    %23 = arith.addf %16, %22 : vector<32x128xf32>
    %c0_19 = arith.constant 0 : index
    %c3 = arith.constant 3 : index
    %c0_20 = arith.constant 0 : index
    %24 = vector.load %arg1[%c0_19, %c3, %c0_20] : memref<1x36x288xf32, #tpu.memory_space<vmem>>, vector<1x32x288xf32>
    %25 = vector.shape_cast %24 : vector<1x32x288xf32> to vector<32x288xf32>
    %26 = arith.truncf %25 : vector<32x288xf32> to vector<32x288xbf16>
    %c3_21 = arith.constant 3 : index
    %c0_22 = arith.constant 0 : index
    %c0_23 = arith.constant 0 : index
    %27 = vector.load %arg2[%c3_21, %c0_22, %c0_23] : memref<5x288x128xbf16, #tpu.memory_space<vmem>>, vector<1x288x128xbf16>
    %28 = vector.shape_cast %27 : vector<1x288x128xbf16> to vector<288x128xbf16>
    %cst_24 = arith.constant dense<0.000000e+00> : vector<32x128xf32>
    %29 = tpu.matmul %26, %28, %cst_24 {dimension_numbers = #tpu.dot_dimension_numbers<[1], [0], [0], [1], [0, 0, 1, 1], [], []>} : vector<32x288xbf16>, vector<288x128xbf16>, vector<32x128xf32> -> vector<32x128xf32>
    %30 = arith.addf %23, %29 : vector<32x128xf32>
    %c0_25 = arith.constant 0 : index
    %c4 = arith.constant 4 : index
    %c0_26 = arith.constant 0 : index
    %31 = vector.load %arg1[%c0_25, %c4, %c0_26] : memref<1x36x288xf32, #tpu.memory_space<vmem>>, vector<1x32x288xf32>
    %32 = vector.shape_cast %31 : vector<1x32x288xf32> to vector<32x288xf32>
    %33 = arith.truncf %32 : vector<32x288xf32> to vector<32x288xbf16>
    %c4_27 = arith.constant 4 : index
    %c0_28 = arith.constant 0 : index
    %c0_29 = arith.constant 0 : index
    %34 = vector.load %arg2[%c4_27, %c0_28, %c0_29] : memref<5x288x128xbf16, #tpu.memory_space<vmem>>, vector<1x288x128xbf16>
    %35 = vector.shape_cast %34 : vector<1x288x128xbf16> to vector<288x128xbf16>
    %cst_30 = arith.constant dense<0.000000e+00> : vector<32x128xf32>
    %36 = tpu.matmul %33, %35, %cst_30 {dimension_numbers = #tpu.dot_dimension_numbers<[1], [0], [0], [1], [0, 0, 1, 1], [], []>} : vector<32x288xbf16>, vector<288x128xbf16>, vector<32x128xf32> -> vector<32x128xf32>
    %37 = arith.addf %30, %36 : vector<32x128xf32>
    %cst_31 = arith.constant 0.000000e+00 : f32
    %38 = vector.broadcast %cst_31 : f32 to vector<32x128xf32>
    %39 = arith.cmpf oge, %37, %38 : vector<32x128xf32>
    %cst_32 = arith.constant 0.00999999977 : f32
    %40 = vector.broadcast %cst_32 : f32 to vector<32x128xf32>
    %41 = arith.mulf %40, %37 : vector<32x128xf32>
    %42 = arith.select %39, %37, %41 : vector<32x128xi1>, vector<32x128xf32>
    %c0_33 = arith.constant 0 : index
    %c0_34 = arith.constant 0 : index
    %c0_35 = arith.constant 0 : index
    %43 = vector.load %arg4[%c0_33, %c0_34, %c0_35] : memref<1x32x128xf32, #tpu.memory_space<vmem>>, vector<1x32x128xf32>
    %44 = vector.shape_cast %43 : vector<1x32x128xf32> to vector<32x128xf32>
    %45 = vector.shape_cast %42 : vector<32x128xf32> to vector<1x32x128xf32>
    tpu.vector_store %arg4[%c0_33, %c0_34, %c0_35], %45 {strides = array<i32>} : memref<1x32x128xf32, #tpu.memory_space<vmem>>, vector<1x32x128xf32>,
    return
  }
  func.func @transform_0(%arg0: i32) -> (i32, i32, i32) {
    %c0_i32 = arith.constant 0 : i32
    %c0_i32_0 = arith.constant 0 : i32
    %c0_i32_1 = arith.constant 0 : i32
    return %arg0, %c0_i32, %c0_i32_0 : i32, i32, i32
  }
  func.func @transform_1(%arg0: i32) -> (i32, i32, i32) {
    %c0_i32 = arith.constant 0 : i32
    %c0_i32_0 = arith.constant 0 : i32
    %c0_i32_1 = arith.constant 0 : i32
    %c0_i32_2 = arith.constant 0 : i32
    return %c0_i32, %c0_i32_0, %c0_i32_1 : i32, i32, i32
  }
  func.func @transform_2(%arg0: i32) -> (i32, i32) {
    %c0_i32 = arith.constant 0 : i32
    %c0_i32_0 = arith.constant 0 : i32
    %c0_i32_1 = arith.constant 0 : i32
    return %c0_i32, %c0_i32_0 : i32, i32
  }
  func.func @transform_3(%arg0: i32) -> (i32, i32, i32) {
    %c0_i32 = arith.constant 0 : i32
    %c0_i32_0 = arith.constant 0 : i32
    %c0_i32_1 = arith.constant 0 : i32
    return %arg0, %c0_i32, %c0_i32_0 : i32, i32, i32
  }
}

module attributes {stable_mosaic.version = 11 : i64} {
  func.func @_convt_pool_sigmoid_kernel(%arg0: i32, %arg1: memref<1x68x272xf32, #tpu.memory_space<vmem>>, %arg2: memref<5x272x64xbf16, #tpu.memory_space<vmem>>, %arg3: memref<1x64xf32, #tpu.memory_space<vmem>>, %arg4: memref<8x64xf32, #tpu.memory_space<vmem>>, %arg5: memref<64x8xf32, #tpu.memory_space<vmem>>, %arg6: memref<1x8x8xf32, #tpu.memory_space<vmem>>) attributes {dimension_semantics = [#tpu.dimension_semantics<parallel>], iteration_bounds = array<i64: 2>, scalar_prefetch = 0 : i64, scratch_operands = 0 : i64, tpu.core_type = #tpu.core_type<tc>, window_params = [{transform_indices = @transform_0, window_bounds = array<i64: 1, 68, 272>}, {pipeline_mode = #tpu.pipeline_mode<synchronous>, transform_indices = @transform_1, window_bounds = array<i64: 5, 272, 64>}, {pipeline_mode = #tpu.pipeline_mode<synchronous>, transform_indices = @transform_2, window_bounds = array<i64: 1, 64>}, {pipeline_mode = #tpu.pipeline_mode<synchronous>, transform_indices = @transform_3, window_bounds = array<i64: 8, 64>}, {pipeline_mode = #tpu.pipeline_mode<synchronous>, transform_indices = @transform_4, window_bounds = array<i64: 64, 8>}, {transform_indices = @transform_5, window_bounds = array<i64: 1, 8, 8>}]} {
    %c0 = arith.constant 0 : index
    %c0_0 = arith.constant 0 : index
    %0 = vector.load %arg3[%c0, %c0_0] : memref<1x64xf32, #tpu.memory_space<vmem>>, vector<1x64xf32>
    %1 = vector.shape_cast %0 : vector<1x64xf32> to vector<1x64xf32>
    %2 = vector.broadcast %1 : vector<1x64xf32> to vector<64x64xf32>
    %c0_1 = arith.constant 0 : index
    %c0_2 = arith.constant 0 : index
    %c0_3 = arith.constant 0 : index
    %3 = vector.load %arg1[%c0_1, %c0_2, %c0_3] : memref<1x68x272xf32, #tpu.memory_space<vmem>>, vector<1x64x272xf32>
    %4 = vector.shape_cast %3 : vector<1x64x272xf32> to vector<64x272xf32>
    %5 = arith.truncf %4 : vector<64x272xf32> to vector<64x272xbf16>
    %c0_4 = arith.constant 0 : index
    %c0_5 = arith.constant 0 : index
    %c0_6 = arith.constant 0 : index
    %6 = vector.load %arg2[%c0_4, %c0_5, %c0_6] : memref<5x272x64xbf16, #tpu.memory_space<vmem>>, vector<1x272x64xbf16>
    %7 = vector.shape_cast %6 : vector<1x272x64xbf16> to vector<272x64xbf16>
    %cst = arith.constant dense<0.000000e+00> : vector<64x64xf32>
    %8 = tpu.matmul %5, %7, %cst {dimension_numbers = #tpu.dot_dimension_numbers<[1], [0], [0], [1], [0, 0, 1, 1], [], []>} : vector<64x272xbf16>, vector<272x64xbf16>, vector<64x64xf32> -> vector<64x64xf32>
    %9 = arith.addf %2, %8 : vector<64x64xf32>
    %c0_7 = arith.constant 0 : index
    %c1 = arith.constant 1 : index
    %c0_8 = arith.constant 0 : index
    %10 = vector.load %arg1[%c0_7, %c1, %c0_8] : memref<1x68x272xf32, #tpu.memory_space<vmem>>, vector<1x64x272xf32>
    %11 = vector.shape_cast %10 : vector<1x64x272xf32> to vector<64x272xf32>
    %12 = arith.truncf %11 : vector<64x272xf32> to vector<64x272xbf16>
    %c1_9 = arith.constant 1 : index
    %c0_10 = arith.constant 0 : index
    %c0_11 = arith.constant 0 : index
    %13 = vector.load %arg2[%c1_9, %c0_10, %c0_11] : memref<5x272x64xbf16, #tpu.memory_space<vmem>>, vector<1x272x64xbf16>
    %14 = vector.shape_cast %13 : vector<1x272x64xbf16> to vector<272x64xbf16>
    %cst_12 = arith.constant dense<0.000000e+00> : vector<64x64xf32>
    %15 = tpu.matmul %12, %14, %cst_12 {dimension_numbers = #tpu.dot_dimension_numbers<[1], [0], [0], [1], [0, 0, 1, 1], [], []>} : vector<64x272xbf16>, vector<272x64xbf16>, vector<64x64xf32> -> vector<64x64xf32>
    %16 = arith.addf %9, %15 : vector<64x64xf32>
    %c0_13 = arith.constant 0 : index
    %c2 = arith.constant 2 : index
    %c0_14 = arith.constant 0 : index
    %17 = vector.load %arg1[%c0_13, %c2, %c0_14] : memref<1x68x272xf32, #tpu.memory_space<vmem>>, vector<1x64x272xf32>
    %18 = vector.shape_cast %17 : vector<1x64x272xf32> to vector<64x272xf32>
    %19 = arith.truncf %18 : vector<64x272xf32> to vector<64x272xbf16>
    %c2_15 = arith.constant 2 : index
    %c0_16 = arith.constant 0 : index
    %c0_17 = arith.constant 0 : index
    %20 = vector.load %arg2[%c2_15, %c0_16, %c0_17] : memref<5x272x64xbf16, #tpu.memory_space<vmem>>, vector<1x272x64xbf16>
    %21 = vector.shape_cast %20 : vector<1x272x64xbf16> to vector<272x64xbf16>
    %cst_18 = arith.constant dense<0.000000e+00> : vector<64x64xf32>
    %22 = tpu.matmul %19, %21, %cst_18 {dimension_numbers = #tpu.dot_dimension_numbers<[1], [0], [0], [1], [0, 0, 1, 1], [], []>} : vector<64x272xbf16>, vector<272x64xbf16>, vector<64x64xf32> -> vector<64x64xf32>
    %23 = arith.addf %16, %22 : vector<64x64xf32>
    %c0_19 = arith.constant 0 : index
    %c3 = arith.constant 3 : index
    %c0_20 = arith.constant 0 : index
    %24 = vector.load %arg1[%c0_19, %c3, %c0_20] : memref<1x68x272xf32, #tpu.memory_space<vmem>>, vector<1x64x272xf32>
    %25 = vector.shape_cast %24 : vector<1x64x272xf32> to vector<64x272xf32>
    %26 = arith.truncf %25 : vector<64x272xf32> to vector<64x272xbf16>
    %c3_21 = arith.constant 3 : index
    %c0_22 = arith.constant 0 : index
    %c0_23 = arith.constant 0 : index
    %27 = vector.load %arg2[%c3_21, %c0_22, %c0_23] : memref<5x272x64xbf16, #tpu.memory_space<vmem>>, vector<1x272x64xbf16>
    %28 = vector.shape_cast %27 : vector<1x272x64xbf16> to vector<272x64xbf16>
    %cst_24 = arith.constant dense<0.000000e+00> : vector<64x64xf32>
    %29 = tpu.matmul %26, %28, %cst_24 {dimension_numbers = #tpu.dot_dimension_numbers<[1], [0], [0], [1], [0, 0, 1, 1], [], []>} : vector<64x272xbf16>, vector<272x64xbf16>, vector<64x64xf32> -> vector<64x64xf32>
    %30 = arith.addf %23, %29 : vector<64x64xf32>
    %c0_25 = arith.constant 0 : index
    %c4 = arith.constant 4 : index
    %c0_26 = arith.constant 0 : index
    %31 = vector.load %arg1[%c0_25, %c4, %c0_26] : memref<1x68x272xf32, #tpu.memory_space<vmem>>, vector<1x64x272xf32>
    %32 = vector.shape_cast %31 : vector<1x64x272xf32> to vector<64x272xf32>
    %33 = arith.truncf %32 : vector<64x272xf32> to vector<64x272xbf16>
    %c4_27 = arith.constant 4 : index
    %c0_28 = arith.constant 0 : index
    %c0_29 = arith.constant 0 : index
    %34 = vector.load %arg2[%c4_27, %c0_28, %c0_29] : memref<5x272x64xbf16, #tpu.memory_space<vmem>>, vector<1x272x64xbf16>
    %35 = vector.shape_cast %34 : vector<1x272x64xbf16> to vector<272x64xbf16>
    %cst_30 = arith.constant dense<0.000000e+00> : vector<64x64xf32>
    %36 = tpu.matmul %33, %35, %cst_30 {dimension_numbers = #tpu.dot_dimension_numbers<[1], [0], [0], [1], [0, 0, 1, 1], [], []>} : vector<64x272xbf16>, vector<272x64xbf16>, vector<64x64xf32> -> vector<64x64xf32>
    %37 = arith.addf %30, %36 : vector<64x64xf32>
    %c0_31 = arith.constant 0 : index
    %c0_32 = arith.constant 0 : index
    %38 = vector.load %arg4[%c0_31, %c0_32] : memref<8x64xf32, #tpu.memory_space<vmem>>, vector<8x64xf32>
    %cst_33 = arith.constant dense<0.000000e+00> : vector<8x64xf32>
    %39 = tpu.matmul %38, %37, %cst_33 {dimension_numbers = #tpu.dot_dimension_numbers<[1], [0], [0], [1], [0, 0, 1, 1], [], []>} : vector<8x64xf32>, vector<64x64xf32>, vector<8x64xf32> -> vector<8x64xf32>
    %c0_34 = arith.constant 0 : index
    %c0_35 = arith.constant 0 : index
    %40 = vector.load %arg5[%c0_34, %c0_35] : memref<64x8xf32, #tpu.memory_space<vmem>>, vector<64x8xf32>
    %cst_36 = arith.constant dense<0.000000e+00> : vector<8x8xf32>
    %41 = tpu.matmul %39, %40, %cst_36 {dimension_numbers = #tpu.dot_dimension_numbers<[1], [0], [0], [1], [0, 0, 1, 1], [], []>} : vector<8x64xf32>, vector<64x8xf32>, vector<8x8xf32> -> vector<8x8xf32>
    %42 = arith.negf %41 : vector<8x8xf32>
    %43 = math.exp %42 : vector<8x8xf32>
    %cst_37 = arith.constant 1.000000e+00 : f32
    %44 = vector.broadcast %cst_37 : f32 to vector<8x8xf32>
    %45 = arith.addf %44, %43 : vector<8x8xf32>
    %46 = arith.divf %44, %45 : vector<8x8xf32>
    %c0_38 = arith.constant 0 : index
    %c0_39 = arith.constant 0 : index
    %c0_40 = arith.constant 0 : index
    %47 = vector.load %arg6[%c0_38, %c0_39, %c0_40] : memref<1x8x8xf32, #tpu.memory_space<vmem>>, vector<1x8x8xf32>
    %48 = vector.shape_cast %47 : vector<1x8x8xf32> to vector<8x8xf32>
    %49 = vector.shape_cast %46 : vector<8x8xf32> to vector<1x8x8xf32>
    tpu.vector_store %arg6[%c0_38, %c0_39, %c0_40], %49 {strides = array<i32>} : memref<1x8x8xf32, #tpu.memory_space<vmem>>, vector<1x8x8xf32>,
    return
  }
  func.func @transform_0(%arg0: i32) -> (i32, i32, i32) {
    %c0_i32 = arith.constant 0 : i32
    %c0_i32_0 = arith.constant 0 : i32
    %c0_i32_1 = arith.constant 0 : i32
    return %arg0, %c0_i32, %c0_i32_0 : i32, i32, i32
  }
  func.func @transform_1(%arg0: i32) -> (i32, i32, i32) {
    %c0_i32 = arith.constant 0 : i32
    %c0_i32_0 = arith.constant 0 : i32
    %c0_i32_1 = arith.constant 0 : i32
    %c0_i32_2 = arith.constant 0 : i32
    return %c0_i32, %c0_i32_0, %c0_i32_1 : i32, i32, i32
  }
  func.func @transform_2(%arg0: i32) -> (i32, i32) {
    %c0_i32 = arith.constant 0 : i32
    %c0_i32_0 = arith.constant 0 : i32
    %c0_i32_1 = arith.constant 0 : i32
    return %c0_i32, %c0_i32_0 : i32, i32
  }
  func.func @transform_3(%arg0: i32) -> (i32, i32) {
    %c0_i32 = arith.constant 0 : i32
    %c0_i32_0 = arith.constant 0 : i32
    %c0_i32_1 = arith.constant 0 : i32
    return %c0_i32, %c0_i32_0 : i32, i32
  }
  func.func @transform_4(%arg0: i32) -> (i32, i32) {
    %c0_i32 = arith.constant 0 : i32
    %c0_i32_0 = arith.constant 0 : i32
    %c0_i32_1 = arith.constant 0 : i32
    return %c0_i32, %c0_i32_0 : i32, i32
  }
  func.func @transform_5(%arg0: i32) -> (i32, i32, i32) {
    %c0_i32 = arith.constant 0 : i32
    %c0_i32_0 = arith.constant 0 : i32
    %c0_i32_1 = arith.constant 0 : i32
    return %arg0, %c0_i32, %c0_i32_0 : i32, i32, i32
  }
}

</mosaic_0001>

<llo_original>
// kernel: forward.5
$region0: #{forward.5}
  #allocation0 [shape = 'u32[]', space=smem, size = 0x4, offset = 0x4, fixed_abs, tag = 'smem constant byte address 0x4 - core index']
  #allocation1 [shape = 'u32[144,128]{1,0:T(1,128)}', space=vmem, size = 0x12000, scoped, tag = 'internal scratch']
  %s0 = inlined_call_operand.vmem [shape: bf16[2,12], index: 0, kind: input, shape index: {}]
  %s1 = inlined_call_operand.vmem [shape: bf16[12,512], index: 1, kind: input, shape index: {}]
  %s2 = inlined_call_operand.vmem [shape: f32[1,512], index: 2, kind: input, shape index: {}]
  %s3 = inlined_call_operand.vmem [shape: f32[2,512], index: 3, kind: output, shape index: {}]
  %s4 = sld [smem:[#allocation0]]
  $region22: #{forward.5} parent=0
    _
  %s6 = ssub.s32 1, %s4
  %s7 = scalar_select 0, %s6, %s4
  // Predicated region
  $region2: #{forward.5} parent=0 // pred_check
    _
  $region3: #{forward.5} parent=0 // pred_check_branch
    %9 = sbr.rel (0) target = $region5
  $region4: #{forward.5} parent=0 // pred_region
    _
  $region5: #{forward.5} parent=0 // pred_fallthru
    _
  // Predicated region
  $region6: #{forward.5} parent=0 // pred_check
    _
  $region7: #{forward.5} parent=0 // pred_check_branch
    %11 = sbr.rel (0) target = $region9
  $region8: #{forward.5} parent=0 // pred_region
    _
  $region9: #{forward.5} parent=0 // pred_fallthru
    _
  // Predicated region
  $region10: #{forward.5} parent=0 // pred_check
    _
  $region11: #{forward.5} parent=0 // pred_check_branch
    %13 = sbr.rel (0) target = $region13
  $region12: #{forward.5} parent=0 // pred_region
    _
  $region13: #{forward.5} parent=0 // pred_fallthru
    _
  %v15 = vld [vmem:[%s0] sm:$0x1]
  %v16 = vld [vmem:[%s1] sm:$0xff]
  %v17 = vld [vmem:[%s1 + $0x8] sm:$0xff]
  %v18 = vld [vmem:[%s1 + $0x10] sm:$0x33]
  %v19 = vld [vmem:[%s1 + $0x18] sm:$0x33]
  %v20 = vld [vmem:[%s2] sm:$0xf]
  %v22 = vlaneseq
  %v23 = vshrl.u32 %v22, 7
  %v24 = vsub.s32 0, %v23
  %v25 = vrot.slane %v20, %v24
  %v26 = vlaneseq
  %v27 = vshrl.u32 %v26, 7
  %v28 = vsub.s32 1, %v27
  %v29 = vrot.slane %v20, %v28
  %v30 = vlaneseq
  %v31 = vshrl.u32 %v30, 7
  %v32 = vsub.s32 2, %v31
  %v33 = vrot.slane %v20, %v32
  %v34 = vlaneseq
  %v35 = vshrl.u32 %v34, 7
  %v36 = vsub.s32 3, %v35
  %v37 = vrot.slane %v20, %v36
  %v46 = vunpack.c.l.b16 %v16
  %v47 = vunpack.c.h.b16 %v16
  %v48 = vunpack.c.l.b16 %v17
  %v49 = vunpack.c.h.b16 %v17
  %v50 = vunpack.c.l.b16 %v18
  %v51 = vunpack.c.h.b16 %v18
  %v52 = vunpack.c.l.b16 %v19
  %v53 = vunpack.c.h.b16 %v19
  %v54 = vpack.c.b16 %v50, %v46
  %v55 = vpack.c.b16 %v51, %v47
  %v56 = vpack.c.b16 %v52, %v48
  %v57 = vpack.c.b16 %v53, %v49
  %vm58 = vcmask 97280
  %v60 = vsel %vm58, %v15, 0
  %vm62 = vcmask 1045504
  %v64 = vsel %vm62, %v54, 0
  %v67 = vsel %vm62, %v55, 0
  %v70 = vsel %vm62, %v56, 0
  %v73 = vsel %vm62, %v57, 0
  %75 = vmatprep.subr.bf16.mxu0 0
  %76 = vmatpush1.bf16.msra.mxu0 0
  %77 = vmatprep.subr.bf16.mxu0 0
  %78 = vmatpush1.bf16.msra.mxu0 0
  %79 = vmatprep.subr.bf16.mxu0 0
  %80 = vmatpush1.bf16.msra.mxu0 0
  %81 = vmatprep.subr.bf16.mxu0 0
  %82 = vmatpush1.bf16.msra.mxu0 0
  %83 = vmatprep.subr.bf16.mxu0 0
  %84 = vmatpush1.bf16.msra.mxu0 0
  %85 = vmatprep.subr.bf16.mxu0 0
  %86 = vmatpush1.bf16.msra.mxu0 0
  %87 = vmatprep.subr.bf16.mxu0 0
  %88 = vmatpush1.bf16.msra.mxu0 0
  %89 = vmatprep.subr.bf16.mxu0 %v67
  %90 = vmatpush1.bf16.msra.mxu0 %v64
  %91 = vmatprep.subr.bf16.mxu0 0
  %92 = vmatpush2.bf16.msra.mxu0 0
  %93 = vmatprep.subr.bf16.mxu0 0
  %94 = vmatpush2.bf16.msra.mxu0 0
  %95 = vmatprep.subr.bf16.mxu0 0
  %96 = vmatpush2.bf16.msra.mxu0 0
  %97 = vmatprep.subr.bf16.mxu0 0
  %98 = vmatpush2.bf16.msra.mxu0 0
  %99 = vmatprep.subr.bf16.mxu0 0
  %100 = vmatpush2.bf16.msra.mxu0 0
  %101 = vmatprep.subr.bf16.mxu0 0
  %102 = vmatpush2.bf16.msra.mxu0 0
  %103 = vmatprep.subr.bf16.mxu0 0
  %104 = vmatpush2.bf16.msra.mxu0 0
  %105 = vmatprep.subr.bf16.mxu0 0
  %106 = vmatpush2.bf16.msra.mxu0 0
  %107 = vmatprep.mubr.bf16.mxu0 0
  %108 = vmatmul.mubr.bf16.gmra.mxu0 %v60
  %v109 = vpop.f32.mrf.mxu0
  %v110 = vadd.f32 %v25, %v109
  %v111 = vpop.f32.mrf.mxu0
  %v112 = vadd.f32 %v29, %v111
  %v113 = vpop.f32.mrf.mxu0
  %v114 = vpop.f32.mrf.mxu0
  %115 = vdwg.mxu0
  %116 = vmatprep.subr.bf16.mxu0 0
  %117 = vmatpush1.bf16.msra.mxu0 0
  %118 = vmatprep.subr.bf16.mxu0 0
  %119 = vmatpush1.bf16.msra.mxu0 0
  %120 = vmatprep.subr.bf16.mxu0 0
  %121 = vmatpush1.bf16.msra.mxu0 0
  %122 = vmatprep.subr.bf16.mxu0 0
  %123 = vmatpush1.bf16.msra.mxu0 0
  %124 = vmatprep.subr.bf16.mxu0 0
  %125 = vmatpush1.bf16.msra.mxu0 0
  %126 = vmatprep.subr.bf16.mxu0 0
  %127 = vmatpush1.bf16.msra.mxu0 0
  %128 = vmatprep.subr.bf16.mxu0 0
  %129 = vmatpush1.bf16.msra.mxu0 0
  %130 = vmatprep.subr.bf16.mxu0 %v73
  %131 = vmatpush1.bf16.msra.mxu0 %v70
  %132 = vmatprep.subr.bf16.mxu0 0
  %133 = vmatpush2.bf16.msra.mxu0 0
  %134 = vmatprep.subr.bf16.mxu0 0
  %135 = vmatpush2.bf16.msra.mxu0 0
  %136 = vmatprep.subr.bf16.mxu0 0
  %137 = vmatpush2.bf16.msra.mxu0 0
  %138 = vmatprep.subr.bf16.mxu0 0
  %139 = vmatpush2.bf16.msra.mxu0 0
  %140 = vmatprep.subr.bf16.mxu0 0
  %141 = vmatpush2.bf16.msra.mxu0 0
  %142 = vmatprep.subr.bf16.mxu0 0
  %143 = vmatpush2.bf16.msra.mxu0 0
  %144 = vmatprep.subr.bf16.mxu0 0
  %145 = vmatpush2.bf16.msra.mxu0 0
  %146 = vmatprep.subr.bf16.mxu0 0
  %147 = vmatpush2.bf16.msra.mxu0 0
  %148 = vmatprep.mubr.bf16.mxu0 0
  %149 = vmatmul.mubr.bf16.gmra.mxu0 %v60
  %v150 = vpop.f32.mrf.mxu0
  %v151 = vadd.f32 %v33, %v150
  %v152 = vpop.f32.mrf.mxu0
  %v153 = vadd.f32 %v37, %v152
  %v154 = vpop.f32.mrf.mxu0
  %v155 = vpop.f32.mrf.mxu0
  %156 = vdwg.mxu0
  %vm157 = vcmp.ge.f32.partialorder %v110, 0.0
  %vm158 = vcmp.ge.f32.partialorder %v112, 0.0
  %vm159 = vcmp.ge.f32.partialorder %v151, 0.0
  %vm160 = vcmp.ge.f32.partialorder %v153, 0.0
  %v161 = vmul.f32 %v110, 0.01
  %v162 = vmul.f32 %v112, 0.01
  %v163 = vmul.f32 %v151, 0.01
  %v164 = vmul.f32 %v153, 0.01
  %v165 = vsel %vm157, %v110, %v161
  %v166 = vsel %vm158, %v112, %v162
  %v167 = vsel %vm159, %v151, %v163
  %v168 = vsel %vm160, %v153, %v164
  %v173 = vcombine.low %v165, %v166
  %v174 = vcombine.low %v167, %v168
  %v176 = vunpack.c.l.s4 1983009808
  %v177 = vunpack.c.0.s8 %v176
  %v178 = vlaneseq
  %v179 = vshrl.u32 %v178, 7
  %v180 = vsub.s32 %v177, %v179
  %v181 = vrot.slane %v173, %v180
  %v183 = vunpack.c.l.s4 1983009808
  %v184 = vunpack.c.0.s8 %v183
  %v185 = vlaneseq
  %v186 = vshrl.u32 %v185, 7
  %v187 = vsub.s32 %v184, %v186
  %v188 = vrot.slane %v174, %v187
  %v189 = vcombine.low %v181, %v188
  %191 = vst [vmem:[%s3] sm:$0xff] %v189
  // Predicated region
  $region14: #{forward.5} parent=0 // pred_check
    _
  $region15: #{forward.5} parent=0 // pred_check_branch
    %193 = sbr.rel (0) target = $region17
  $region16: #{forward.5} parent=0 // pred_region
    _
  $region17: #{forward.5} parent=0 // pred_fallthru
    _
  // Predicated region
  $region18: #{forward.5} parent=0 // pred_check
    _
  $region19: #{forward.5} parent=0 // pred_check_branch
    %195 = sbr.rel (0) target = $region21
  $region20: #{forward.5} parent=0 // pred_region
    _
  $region21: #{forward.5} parent=0 // pred_fallthru
    _

// kernel: tile.23
$region0: #{tile.23}
  #allocation0 [shape = 's32[1]{0}', space=sflag, size = 0x4, scoped, tag = 'scoped memory for tile.23']
  %s0 = inlined_call_operand.vmem [shape: f32[16], index: 0, kind: input, shape index: {}]
  %s1 = inlined_call_operand.vmem [shape: f32[8,16], index: 1, kind: output, shape index: {}]
  // Predicated region
  $region2: #{tile.23} parent=0 // pred_check
    _
  $region3: #{tile.23} parent=0 // pred_check_branch
    %3 = sbr.rel (0) target = $region5
  $region4: #{tile.23} parent=0 // pred_region
    _
  $region5: #{tile.23} parent=0 // pred_fallthru
    _
  %v4 = vld [vmem:[%s0] ss:$0 sm:$0xff]
  %5 = vst [vmem:[%s1] sm:$0xff] %v4

// kernel: tile.24
$region0: #{tile.24}
  %s0 = inlined_call_operand.vmem [shape: f32[8,16], index: 0, kind: input, shape index: {}]
  %s1 = inlined_call_operand.vmem [shape: f32[1,128], index: 1, kind: output, shape index: {}]
  $region1: #{tile.24} parent=0
    #allocation0 [shape = 'u8[4096]{0}', space=vmem, size = 0x1000, scoped, tag = 'scoped mem for output reshape']
    %v2 = vld [vmem:[%s0] sm:$0x1]
    %vm3 = vcmask 130048
    %4 = vst.msk [vmem:[#allocation0] sm:$0x1] %vm3, %v2
    %s5 = scalar_lea.vmem %s0, 7
    %v6 = vld [vmem:[%s5] sm:$0x1]
    %7 = vrot.lane.b32.xlu0 %v6, 112
    %v8 = vpop.permute.xlu0 %7
    %vm9 = vcmask 1048448
    %10 = vst.msk [vmem:[#allocation0] sm:$0x1] %vm9, %v8
    %s11 = scalar_lea.vmem %s0, 6
    %v12 = vld [vmem:[%s11] sm:$0x1]
    %13 = vrot.lane.b32.xlu0 %v12, 96
    %v14 = vpop.permute.xlu0 %13
    %vm15 = vcmask 917248
    %16 = vst.msk [vmem:[#allocation0] sm:$0x1] %vm15, %v14
    %s17 = scalar_lea.vmem %s0, 5
    %v18 = vld [vmem:[%s17] sm:$0x1]
    %19 = vrot.lane.b32.xlu0 %v18, 80
    %v20 = vpop.permute.xlu0 %19
    %vm21 = vcmask 786048
    %22 = vst.msk [vmem:[#allocation0] sm:$0x1] %vm21, %v20
    %s23 = scalar_lea.vmem %s0, 4
    %v24 = vld [vmem:[%s23] sm:$0x1]
    %25 = vrot.lane.b32.xlu0 %v24, 64
    %v26 = vpop.permute.xlu0 %25
    %vm27 = vcmask 654848
    %28 = vst.msk [vmem:[#allocation0] sm:$0x1] %vm27, %v26
    %s29 = scalar_lea.vmem %s0, 3
    %v30 = vld [vmem:[%s29] sm:$0x1]
    %31 = vrot.lane.b32.xlu0 %v30, 48
    %v32 = vpop.permute.xlu0 %31
    %vm33 = vcmask 523648
    %34 = vst.msk [vmem:[#allocation0] sm:$0x1] %vm33, %v32
    %s35 = scalar_lea.vmem %s0, 2
    %v36 = vld [vmem:[%s35] sm:$0x1]
    %37 = vrot.lane.b32.xlu0 %v36, 32
    %v38 = vpop.permute.xlu0 %37
    %vm39 = vcmask 392448
    %40 = vst.msk [vmem:[#allocation0] sm:$0x1] %vm39, %v38
    %s41 = scalar_lea.vmem %s0, 1
    %v42 = vld [vmem:[%s41] sm:$0x1]
    %43 = vrot.lane.b32.xlu0 %v42, 16
    %v44 = vpop.permute.xlu0 %43
    %vm45 = vcmask 261248
    %46 = vst.msk [vmem:[#allocation0] sm:$0x1] %vm45, %v44
    %s48 = sshll.u32 1, 1
    %s49 = ssub.s32 %s48, 1
    %v51 = vld [vmem:[#allocation0] sm:%s49]
    %s52 = sshll.u32 1, 1
    %s53 = ssub.s32 %s52, 1
    %54 = vst [vmem:[%s1] sm:%s53] %v51

// kernel: forward.6
$region0: #{forward.6}
  #allocation0 [shape = 'u32[]', space=smem, size = 0x4, offset = 0x4, fixed_abs, tag = 'smem constant byte address 0x4 - core index']
  #allocation1 [shape = 'u32[144,128]{1,0:T(1,128)}', space=vmem, size = 0x12000, scoped, tag = 'internal scratch']
  %s0 = inlined_call_operand.vmem [shape: f32[2,12,384], index: 0, kind: input, shape index: {}]
  %s1 = inlined_call_operand.vmem [shape: bf16[5,384,128], index: 1, kind: input, shape index: {}]
  %s2 = inlined_call_operand.vmem [shape: f32[1,128], index: 2, kind: input, shape index: {}]
  %s3 = inlined_call_operand.vmem [shape: f32[2,8,128], index: 3, kind: output, shape index: {}]
  %s4 = sld [smem:[#allocation0]]
  $region45: #{forward.6} parent=0
    _
  %s6 = ssub.s32 1, %s4
  %s7 = scalar_select 0, %s6, %s4
  loop: start=0, step=1, limit=4
  $region2: #{forward.6} parent=0 // loop_pre_header
    _
  $region3: #{forward.6} parent=0 // loop_header
    %s9 = sphi 0, %s13
    %p10 = scmp.ge.s32.totalorder %s9, 4
    %s19 = sphi 0, %s21
    %s22 = sphi 0, %s19
    %s23 = sphi 0, %s22
    %s39 = sphi 0, %s23
    %s43 = sphi 0, %s43
    %s45 = sphi 0, %s43
    %s46 = sphi 0, %s45
    %s60 = sphi 0, %s46
    %s64 = sphi 0, %s64
    %s66 = sphi 0, %s64
    %s67 = sphi 0, %s66
    %s81 = sphi 0, %s67
    %s87 = sphi 0, %s89
    %s90 = sphi 0, %s87
    %s91 = sphi 0, %s90
    %s107 = sphi 0, %s91
  $region4: #{forward.6} parent=0 // loop_header_branch
    %12 = sbr.rel (%p10) target = $region8
  $region5: #{forward.6} parent=0 // loop_body
    %s14 = ssub.s32 %s9, 1
    %s15 = ssub.s32 %s9, 2
    %s16 = sadd.s32 %s9, 1
    %s17 = ssub.s32 %s9, %s16
    %p18 = scmp.eq.s32.totalorder %s17, 0
    %s20 = sadd.s32 %s19, 1
    %s21 = scalar_select %p18, %s19, %s20
    %p24 = pneg %p18
    %p25 = scmp.eq.s32.totalorder %s9, 1
    %p26 = por %p24, %p25
    %p27 = scmp.ne.s32.totalorder %s19, %s22
    %p28 = scmp.eq.s32.totalorder %s9, 0
    %p29 = por %p27, %p28
    %p30 = scmp.ne.s32.totalorder %s19, %s22
    %p31 = scmp.eq.s32.totalorder %s14, 1
    %p32 = por %p30, %p31
    %p33 = scmp.ne.s32.totalorder %s22, %s23
    %p34 = scmp.eq.s32.totalorder %s14, 0
    %p35 = por %p33, %p34
    %p36 = scmp.ne.s32.totalorder %s22, %s23
    %p37 = scmp.eq.s32.totalorder %s15, 1
    %p38 = por %p36, %p37
    %p40 = scmp.ne.s32.totalorder %s23, %s39
    %p41 = scmp.eq.s32.totalorder %s15, 0
    %p42 = por %p40, %p41
    %s44 = sadd.s32 %s43, 1
    %p47 = scmp.eq.s32.totalorder %s9, 1
    %p48 = scmp.ne.s32.totalorder %s43, %s45
    %p49 = scmp.eq.s32.totalorder %s9, 0
    %p50 = por %p48, %p49
    %p51 = scmp.ne.s32.totalorder %s43, %s45
    %p52 = scmp.eq.s32.totalorder %s14, 1
    %p53 = por %p51, %p52
    %p54 = scmp.ne.s32.totalorder %s45, %s46
    %p55 = scmp.eq.s32.totalorder %s14, 0
    %p56 = por %p54, %p55
    %p57 = scmp.ne.s32.totalorder %s45, %s46
    %p58 = scmp.eq.s32.totalorder %s15, 1
    %p59 = por %p57, %p58
    %p61 = scmp.ne.s32.totalorder %s46, %s60
    %p62 = scmp.eq.s32.totalorder %s15, 0
    %p63 = por %p61, %p62
    %s65 = sadd.s32 %s64, 1
    %p68 = scmp.eq.s32.totalorder %s9, 1
    %p69 = scmp.ne.s32.totalorder %s64, %s66
    %p70 = scmp.eq.s32.totalorder %s9, 0
    %p71 = por %p69, %p70
    %p72 = scmp.ne.s32.totalorder %s64, %s66
    %p73 = scmp.eq.s32.totalorder %s14, 1
    %p74 = por %p72, %p73
    %p75 = scmp.ne.s32.totalorder %s66, %s67
    %p76 = scmp.eq.s32.totalorder %s14, 0
    %p77 = por %p75, %p76
    %p78 = scmp.ne.s32.totalorder %s66, %s67
    %p79 = scmp.eq.s32.totalorder %s15, 1
    %p80 = por %p78, %p79
    %p82 = scmp.ne.s32.totalorder %s67, %s81
    %p83 = scmp.eq.s32.totalorder %s15, 0
    %p84 = por %p82, %p83
    %s85 = ssub.s32 %s9, %s16
    %p86 = scmp.eq.s32.totalorder %s85, 0
    %s88 = sadd.s32 %s87, 1
    %s89 = scalar_select %p86, %s87, %s88
    %p92 = pneg %p86
    %p93 = scmp.eq.s32.totalorder %s9, 1
    %p94 = por %p92, %p93
    %p95 = scmp.ne.s32.totalorder %s87, %s90
    %p96 = scmp.eq.s32.totalorder %s9, 0
    %p97 = por %p95, %p96
    %p98 = scmp.ne.s32.totalorder %s87, %s90
    %p99 = scmp.eq.s32.totalorder %s14, 1
    %p100 = por %p98, %p99
    %p101 = scmp.ne.s32.totalorder %s90, %s91
    %p102 = scmp.eq.s32.totalorder %s14, 0
    %p103 = por %p101, %p102
    %p104 = scmp.ne.s32.totalorder %s90, %s91
    %p105 = scmp.eq.s32.totalorder %s15, 1
    %p106 = por %p104, %p105
    %p108 = scmp.ne.s32.totalorder %s91, %s107
    %p109 = scmp.eq.s32.totalorder %s15, 0
    %p110 = por %p108, %p109
    %p111 = scmp.le.s32.totalorder 1, %s9
    %p112 = scmp.lt.s32.totalorder %s9, 3
    %p113 = pnand %p111, %p112
    %p114 = pneg %p113
    // Predicated region
    $region9: #{forward.6} parent=5 // pred_check
      _
    $region10: #{forward.6} parent=5 // pred_check_branch
      %116 = sbr.rel (%p113) target = $region12
    $region11: #{forward.6} parent=5 // pred_region
      %s117 = ssub.s32 %s9, 1
      // Predicated region
      $region13: #{forward.6} parent=11 // pred_check
        %p118 = pneg %p56
      $region14: #{forward.6} parent=11 // pred_check_branch
        %120 = sbr.rel (%p118) target = $region16
      $region15: #{forward.6} parent=11 // pred_region
        _
      $region16: #{forward.6} parent=11 // pred_fallthru
        _
      // Predicated region
      $region17: #{forward.6} parent=11 // pred_check
        %p121 = pneg %p77
      $region18: #{forward.6} parent=11 // pred_check_branch
        %123 = sbr.rel (%p121) target = $region20
      $region19: #{forward.6} parent=11 // pred_region
        _
      $region20: #{forward.6} parent=11 // pred_fallthru
        _
    $region12: #{forward.6} parent=5 // pred_fallthru
      _
    %p124 = scmp.lt.s32.totalorder %s9, 2
    // Predicated region
    $region21: #{forward.6} parent=5 // pred_check
      %p125 = pneg %p124
    $region22: #{forward.6} parent=5 // pred_check_branch
      %127 = sbr.rel (%p125) target = $region24
    $region23: #{forward.6} parent=5 // pred_region
      // Predicated region
      $region25: #{forward.6} parent=23 // pred_check
        %p128 = pneg %p29
      $region26: #{forward.6} parent=23 // pred_check_branch
        %130 = sbr.rel (%p128) target = $region28
      $region27: #{forward.6} parent=23 // pred_region
        %p131 = scmp.lt.s32.totalorder %s9, 1
        %s132 = scalar_select %p131, %s9, 1
        %s133 = smul.addr %s132, 6
        %s134 = smul.addr %s133, 8
        %s135 = scalar_lea.vmem %s0, %s134
      $region28: #{forward.6} parent=23 // pred_fallthru
        _
    $region24: #{forward.6} parent=5 // pred_fallthru
      _
    %p136 = scmp.le.s32.totalorder 1, %s9
    %p137 = scmp.lt.s32.totalorder %s9, 3
    %p138 = pnand %p136, %p137
    %p139 = pneg %p138
    // Predicated region
    $region29: #{forward.6} parent=5 // pred_check
      _
    $region30: #{forward.6} parent=5 // pred_check_branch
      %141 = sbr.rel (%p138) target = $region32
    $region31: #{forward.6} parent=5 // pred_region
      %s142 = ssub.s32 %s9, 1
      %p143 = scmp.lt.s32.totalorder %s14, 1
      %s144 = scalar_select %p143, %s14, 1
      %s145 = smul.addr %s144, 6
      %s146 = smul.addr %s145, 8
      %s147 = scalar_lea.vmem %s0, %s146
      %p148 = pneg %p35
      %p149 = pneg %p32
      %p150 = pneg %p56
      %p151 = pneg %p53
      %p152 = pneg %p77
      %p153 = pneg %p74
      %p154 = pneg %p103
      %p155 = pneg %p100
      %p156 = scmp.lt.s32.totalorder %s14, 1
      %s157 = scalar_select %p156, %s14, 1
      %s158 = smul.addr %s157, 8
      %s159 = scalar_lea.vmem %s3, %s158
      %p160 = scmp.lt.s32.totalorder %s14, 1
      %s161 = scalar_select %p160, %s14, 1
      %s162 = smul.addr %s161, 6
      %s163 = smul.addr %s162, 8
      %s164 = scalar_lea.vmem %s0, %s163
      %p165 = scmp.lt.s32.totalorder %s14, 1
      %s166 = scalar_select %p165, %s14, 1
      %s167 = smul.addr %s166, 8
      %s168 = scalar_lea.vmem %s3, %s167
      %v170 = vld [vmem:[%s2] sm:$0x1]
      %v172 = vlaneseq
      %v173 = vshrl.u32 %v172, 7
      %v174 = vsub.s32 0, %v173
      %v175 = vrot.slane %v170, %v174
      %v177 = vld [vmem:[%s164] sm:$0xff]
      %v178 = vld [vmem:[%s164 + $0x8] sm:$0xff]
      %v179 = vld [vmem:[%s164 + $0x10] sm:$0xff]
      %v180 = vpack.c.bf16 %v177, %v177
      %v181 = vpack.c.bf16 %v178, %v178
      %v182 = vpack.c.bf16 %v179, %v179
      %v183 = vld [vmem:[%s1] sm:$0xf]
      %v184 = vld [vmem:[%s1 + $0x4] sm:$0xf]
      %v185 = vld [vmem:[%s1 + $0x8] sm:$0xf]
      %v186 = vld [vmem:[%s1 + $0xc] sm:$0xf]
      %v187 = vld [vmem:[%s1 + $0x10] sm:$0xf]
      %v188 = vld [vmem:[%s1 + $0x14] sm:$0xf]
      %v189 = vld [vmem:[%s1 + $0x18] sm:$0xf]
      %v190 = vld [vmem:[%s1 + $0x1c] sm:$0xf]
      %v191 = vld [vmem:[%s1 + $0x20] sm:$0xf]
      %v192 = vld [vmem:[%s1 + $0x24] sm:$0xf]
      %v193 = vld [vmem:[%s1 + $0x28] sm:$0xf]
      %v194 = vld [vmem:[%s1 + $0x2c] sm:$0xf]
      %v195 = vld [vmem:[%s1 + $0x30] sm:$0xf]
      %v196 = vld [vmem:[%s1 + $0x34] sm:$0xf]
      %v197 = vld [vmem:[%s1 + $0x38] sm:$0xf]
      %v198 = vld [vmem:[%s1 + $0x3c] sm:$0xf]
      %v199 = vld [vmem:[%s1 + $0x40] sm:$0xf]
      %v200 = vld [vmem:[%s1 + $0x44] sm:$0xf]
      %v201 = vld [vmem:[%s1 + $0x48] sm:$0xf]
      %v202 = vld [vmem:[%s1 + $0x4c] sm:$0xf]
      %v203 = vld [vmem:[%s1 + $0x50] sm:$0xf]
      %v204 = vld [vmem:[%s1 + $0x54] sm:$0xf]
      %v205 = vld [vmem:[%s1 + $0x58] sm:$0xf]
      %v206 = vld [vmem:[%s1 + $0x5c] sm:$0xf]
      %v207 = vld [vmem:[%s1 + $0x60] sm:$0xf]
      %v208 = vld [vmem:[%s1 + $0x64] sm:$0xf]
      %v209 = vld [vmem:[%s1 + $0x68] sm:$0xf]
      %v210 = vld [vmem:[%s1 + $0x6c] sm:$0xf]
      %v211 = vld [vmem:[%s1 + $0x70] sm:$0xf]
      %v212 = vld [vmem:[%s1 + $0x74] sm:$0xf]
      %v213 = vld [vmem:[%s1 + $0x78] sm:$0xf]
      %v214 = vld [vmem:[%s1 + $0x7c] sm:$0xf]
      %v215 = vld [vmem:[%s1 + $0x80] sm:$0xf]
      %v216 = vld [vmem:[%s1 + $0x84] sm:$0xf]
      %v217 = vld [vmem:[%s1 + $0x88] sm:$0xf]
      %v218 = vld [vmem:[%s1 + $0x8c] sm:$0xf]
      %v219 = vld [vmem:[%s1 + $0x90] sm:$0xf]
      %v220 = vld [vmem:[%s1 + $0x94] sm:$0xf]
      %v221 = vld [vmem:[%s1 + $0x98] sm:$0xf]
      %v222 = vld [vmem:[%s1 + $0x9c] sm:$0xf]
      %v223 = vld [vmem:[%s1 + $0xa0] sm:$0xf]
      %v224 = vld [vmem:[%s1 + $0xa4] sm:$0xf]
      %v225 = vld [vmem:[%s1 + $0xa8] sm:$0xf]
      %v226 = vld [vmem:[%s1 + $0xac] sm:$0xf]
      %v227 = vld [vmem:[%s1 + $0xb0] sm:$0xf]
      %v228 = vld [vmem:[%s1 + $0xb4] sm:$0xf]
      %v229 = vld [vmem:[%s1 + $0xb8] sm:$0xf]
      %v230 = vld [vmem:[%s1 + $0xbc] sm:$0xf]
      %v279 = vunpack.c.l.b16 %v183
      %v280 = vunpack.c.l.b16 %v184
      %v281 = vunpack.c.l.b16 %v185
      %v282 = vunpack.c.l.b16 %v186
      %v283 = vunpack.c.l.b16 %v187
      %v284 = vunpack.c.l.b16 %v188
      %v285 = vunpack.c.l.b16 %v189
      %v286 = vunpack.c.l.b16 %v190
      %v287 = vunpack.c.l.b16 %v191
      %v288 = vunpack.c.l.b16 %v192
      %v289 = vunpack.c.l.b16 %v193
      %v290 = vunpack.c.l.b16 %v194
      %v291 = vunpack.c.l.b16 %v195
      %v292 = vunpack.c.l.b16 %v196
      %v293 = vunpack.c.l.b16 %v197
      %v294 = vunpack.c.l.b16 %v198
      %v295 = vunpack.c.l.b16 %v199
      %v296 = vunpack.c.l.b16 %v200
      %v297 = vunpack.c.l.b16 %v201
      %v298 = vunpack.c.l.b16 %v202
      %v299 = vunpack.c.l.b16 %v203
      %v300 = vunpack.c.l.b16 %v204
      %v301 = vunpack.c.l.b16 %v205
      %v302 = vunpack.c.l.b16 %v206
      %v303 = vunpack.c.l.b16 %v207
      %v304 = vunpack.c.l.b16 %v208
      %v305 = vunpack.c.l.b16 %v209
      %v306 = vunpack.c.l.b16 %v210
      %v307 = vunpack.c.l.b16 %v211
      %v308 = vunpack.c.l.b16 %v212
      %v309 = vunpack.c.l.b16 %v213
      %v310 = vunpack.c.l.b16 %v214
      %v311 = vunpack.c.l.b16 %v215
      %v312 = vunpack.c.l.b16 %v216
      %v313 = vunpack.c.l.b16 %v217
      %v314 = vunpack.c.l.b16 %v218
      %v315 = vunpack.c.l.b16 %v219
      %v316 = vunpack.c.l.b16 %v220
      %v317 = vunpack.c.l.b16 %v221
      %v318 = vunpack.c.l.b16 %v222
      %v319 = vunpack.c.l.b16 %v223
      %v320 = vunpack.c.l.b16 %v224
      %v321 = vunpack.c.l.b16 %v225
      %v322 = vunpack.c.l.b16 %v226
      %v323 = vunpack.c.l.b16 %v227
      %v324 = vunpack.c.l.b16 %v228
      %v325 = vunpack.c.l.b16 %v229
      %v326 = vunpack.c.l.b16 %v230
      %v327 = vpack.c.b16 %v280, %v279
      %v328 = vpack.c.b16 %v282, %v281
      %v329 = vpack.c.b16 %v284, %v283
      %v330 = vpack.c.b16 %v286, %v285
      %v331 = vpack.c.b16 %v288, %v287
      %v332 = vpack.c.b16 %v290, %v289
      %v333 = vpack.c.b16 %v292, %v291
      %v334 = vpack.c.b16 %v294, %v293
      %v335 = vpack.c.b16 %v296, %v295
      %v336 = vpack.c.b16 %v298, %v297
      %v337 = vpack.c.b16 %v300, %v299
      %v338 = vpack.c.b16 %v302, %v301
      %v339 = vpack.c.b16 %v304, %v303
      %v340 = vpack.c.b16 %v306, %v305
      %v341 = vpack.c.b16 %v308, %v307
      %v342 = vpack.c.b16 %v310, %v309
      %v343 = vpack.c.b16 %v312, %v311
      %v344 = vpack.c.b16 %v314, %v313
      %v345 = vpack.c.b16 %v316, %v315
      %v346 = vpack.c.b16 %v318, %v317
      %v347 = vpack.c.b16 %v320, %v319
      %v348 = vpack.c.b16 %v322, %v321
      %v349 = vpack.c.b16 %v324, %v323
      %v350 = vpack.c.b16 %v326, %v325
      %375 = vmatprep.subr.bf16.mxu0 0
      %376 = vmatpush1.bf16.msra.mxu0 %v334
      %377 = vmatprep.subr.bf16.mxu0 0
      %378 = vmatpush1.bf16.msra.mxu0 %v333
      %379 = vmatprep.subr.bf16.mxu0 0
      %380 = vmatpush1.bf16.msra.mxu0 %v332
      %381 = vmatprep.subr.bf16.mxu0 0
      %382 = vmatpush1.bf16.msra.mxu0 %v331
      %383 = vmatprep.subr.bf16.mxu0 0
      %384 = vmatpush1.bf16.msra.mxu0 %v330
      %385 = vmatprep.subr.bf16.mxu0 0
      %386 = vmatpush1.bf16.msra.mxu0 %v329
      %387 = vmatprep.subr.bf16.mxu0 0
      %388 = vmatpush1.bf16.msra.mxu0 %v328
      %389 = vmatprep.subr.bf16.mxu0 0
      %390 = vmatpush1.bf16.msra.mxu0 %v327
      %391 = vmatprep.subr.bf16.mxu0 0
      %392 = vmatpush2.bf16.msra.mxu0 %v342
      %393 = vmatprep.subr.bf16.mxu0 0
      %394 = vmatpush2.bf16.msra.mxu0 %v341
      %395 = vmatprep.subr.bf16.mxu0 0
      %396 = vmatpush2.bf16.msra.mxu0 %v340
      %397 = vmatprep.subr.bf16.mxu0 0
      %398 = vmatpush2.bf16.msra.mxu0 %v339
      %399 = vmatprep.subr.bf16.mxu0 0
      %400 = vmatpush2.bf16.msra.mxu0 %v338
      %401 = vmatprep.subr.bf16.mxu0 0
      %402 = vmatpush2.bf16.msra.mxu0 %v337
      %403 = vmatprep.subr.bf16.mxu0 0
      %404 = vmatpush2.bf16.msra.mxu0 %v336
      %405 = vmatprep.subr.bf16.mxu0 0
      %406 = vmatpush2.bf16.msra.mxu0 %v335
      %407 = vmatprep.mubr.bf16.mxu0 %v181
      %408 = vmatmul.mubr.bf16.gmra.mxu0 %v180
      %v409 = vpop.f32.mrf.mxu0
      %v410 = vadd.f32 0.0, %v409
      %v411 = vpop.f32.mrf.mxu0
      %v412 = vpop.f32.mrf.mxu0
      %v413 = vpop.f32.mrf.mxu0
      %414 = vdwg.mxu0
      %415 = vmatprep.subr.bf16.mxu0 0
      %416 = vmatpush1.bf16.msra.mxu0 %v350
      %417 = vmatprep.subr.bf16.mxu0 0
      %418 = vmatpush1.bf16.msra.mxu0 %v349
      %419 = vmatprep.subr.bf16.mxu0 0
      %420 = vmatpush1.bf16.msra.mxu0 %v348
      %421 = vmatprep.subr.bf16.mxu0 0
      %422 = vmatpush1.bf16.msra.mxu0 %v347
      %423 = vmatprep.subr.bf16.mxu0 0
      %424 = vmatpush1.bf16.msra.mxu0 %v346
      %425 = vmatprep.subr.bf16.mxu0 0
      %426 = vmatpush1.bf16.msra.mxu0 %v345
      %427 = vmatprep.subr.bf16.mxu0 0
      %428 = vmatpush1.bf16.msra.mxu0 %v344
      %429 = vmatprep.subr.bf16.mxu0 0
      %430 = vmatpush1.bf16.msra.mxu0 %v343
      %431 = vmatprep.subr.bf16.mxu0 0
      %432 = vmatpush2.bf16.msra.mxu0 0
      %433 = vmatprep.subr.bf16.mxu0 0
      %434 = vmatpush2.bf16.msra.mxu0 0
      %435 = vmatprep.subr.bf16.mxu0 0
      %436 = vmatpush2.bf16.msra.mxu0 0
      %437 = vmatprep.subr.bf16.mxu0 0
      %438 = vmatpush2.bf16.msra.mxu0 0
      %439 = vmatprep.subr.bf16.mxu0 0
      %440 = vmatpush2.bf16.msra.mxu0 0
      %441 = vmatprep.subr.bf16.mxu0 0
      %442 = vmatpush2.bf16.msra.mxu0 0
      %443 = vmatprep.subr.bf16.mxu0 0
      %444 = vmatpush2.bf16.msra.mxu0 0
      %445 = vmatprep.subr.bf16.mxu0 0
      %446 = vmatpush2.bf16.msra.mxu0 0
      %447 = vmatprep.mubr.bf16.mxu0 0
      %448 = vmatmul.mubr.bf16.gmra.mxu0 %v182
      %v449 = vpop.f32.mrf.mxu0
      %v450 = vadd.f32 %v410, %v449
      %v451 = vpop.f32.mrf.mxu0
      %v452 = vpop.f32.mrf.mxu0
      %v453 = vpop.f32.mrf.mxu0
      %454 = vdwg.mxu0
      %v455 = vadd.f32 %v175, %v450
      %v456 = vld [vmem:[%s164] sm:$0xfe]
      %v457 = vld [vmem:[%s164 + $0x8] sm:$0xfe]
      %v458 = vld [vmem:[%s164 + $0x10] sm:$0xfe]
      %v459 = vld [vmem:[%s164 + $0x18] sm:$0x1]
      %v460 = vld [vmem:[%s164 + $0x20] sm:$0x1]
      %v461 = vld [vmem:[%s164 + $0x28] sm:$0x1]
      %v462 = vpack.c.bf16 %v459, %v456
      %v463 = vpack.c.bf16 %v460, %v457
      %v464 = vpack.c.bf16 %v461, %v458
      %s465 = scalar_lea.vmem %s1, 192
      %v466 = vld [vmem:[%s465] sm:$0xf]
      %v467 = vld [vmem:[%s465 + $0x4] sm:$0xf]
      %v468 = vld [vmem:[%s465 + $0x8] sm:$0xf]
      %v469 = vld [vmem:[%s465 + $0xc] sm:$0xf]
      %v470 = vld [vmem:[%s465 + $0x10] sm:$0xf]
      %v471 = vld [vmem:[%s465 + $0x14] sm:$0xf]
      %v472 = vld [vmem:[%s465 + $0x18] sm:$0xf]
      %v473 = vld [vmem:[%s465 + $0x1c] sm:$0xf]
      %v474 = vld [vmem:[%s465 + $0x20] sm:$0xf]
      %v475 = vld [vmem:[%s465 + $0x24] sm:$0xf]
      %v476 = vld [vmem:[%s465 + $0x28] sm:$0xf]
      %v477 = vld [vmem:[%s465 + $0x2c] sm:$0xf]
      %v478 = vld [vmem:[%s465 + $0x30] sm:$0xf]
      %v479 = vld [vmem:[%s465 + $0x34] sm:$0xf]
      %v480 = vld [vmem:[%s465 + $0x38] sm:$0xf]
      %v481 = vld [vmem:[%s465 + $0x3c] sm:$0xf]
      %v482 = vld [vmem:[%s465 + $0x40] sm:$0xf]
      %v483 = vld [vmem:[%s465 + $0x44] sm:$0xf]
      %v484 = vld [vmem:[%s465 + $0x48] sm:$0xf]
      %v485 = vld [vmem:[%s465 + $0x4c] sm:$0xf]
      %v486 = vld [vmem:[%s465 + $0x50] sm:$0xf]
      %v487 = vld [vmem:[%s465 + $0x54] sm:$0xf]
      %v488 = vld [vmem:[%s465 + $0x58] sm:$0xf]
      %v489 = vld [vmem:[%s465 + $0x5c] sm:$0xf]
      %v490 = vld [vmem:[%s465 + $0x60] sm:$0xf]
      %v491 = vld [vmem:[%s465 + $0x64] sm:$0xf]
      %v492 = vld [vmem:[%s465 + $0x68] sm:$0xf]
      %v493 = vld [vmem:[%s465 + $0x6c] sm:$0xf]
      %v494 = vld [vmem:[%s465 + $0x70] sm:$0xf]
      %v495 = vld [vmem:[%s465 + $0x74] sm:$0xf]
      %v496 = vld [vmem:[%s465 + $0x78] sm:$0xf]
      %v497 = vld [vmem:[%s465 + $0x7c] sm:$0xf]
      %v498 = vld [vmem:[%s465 + $0x80] sm:$0xf]
      %v499 = vld [vmem:[%s465 + $0x84] sm:$0xf]
      %v500 = vld [vmem:[%s465 + $0x88] sm:$0xf]
      %v501 = vld [vmem:[%s465 + $0x8c] sm:$0xf]
      %v502 = vld [vmem:[%s465 + $0x90] sm:$0xf]
      %v503 = vld [vmem:[%s465 + $0x94] sm:$0xf]
      %v504 = vld [vmem:[%s465 + $0x98] sm:$0xf]
      %v505 = vld [vmem:[%s465 + $0x9c] sm:$0xf]
      %v506 = vld [vmem:[%s465 + $0xa0] sm:$0xf]
      %v507 = vld [vmem:[%s465 + $0xa4] sm:$0xf]
      %v508 = vld [vmem:[%s465 + $0xa8] sm:$0xf]
      %v509 = vld [vmem:[%s465 + $0xac] sm:$0xf]
      %v510 = vld [vmem:[%s465 + $0xb0] sm:$0xf]
      %v511 = vld [vmem:[%s465 + $0xb4] sm:$0xf]
      %v512 = vld [vmem:[%s465 + $0xb8] sm:$0xf]
      %v513 = vld [vmem:[%s465 + $0xbc] sm:$0xf]
      %v515 = vshrl.u32 %v462, 16
      %v517 = vshll.u32 %v462, 16
      %v519 = vrot.slane %v517, 1
      %v520 = vor.u32 %v515, %v519
      %v522 = vshrl.u32 %v463, 16
      %v524 = vshll.u32 %v463, 16
      %v526 = vrot.slane %v524, 1
      %v527 = vor.u32 %v522, %v526
      %v529 = vshrl.u32 %v464, 16
      %v531 = vshll.u32 %v464, 16
      %v533 = vrot.slane %v531, 1
      %v534 = vor.u32 %v529, %v533
      %v586 = vunpack.c.l.b16 %v466
      %v587 = vunpack.c.l.b16 %v467
      %v588 = vunpack.c.l.b16 %v468
      %v589 = vunpack.c.l.b16 %v469
      %v590 = vunpack.c.l.b16 %v470
      %v591 = vunpack.c.l.b16 %v471
      %v592 = vunpack.c.l.b16 %v472
      %v593 = vunpack.c.l.b16 %v473
      %v594 = vunpack.c.l.b16 %v474
      %v595 = vunpack.c.l.b16 %v475
      %v596 = vunpack.c.l.b16 %v476
      %v597 = vunpack.c.l.b16 %v477
      %v598 = vunpack.c.l.b16 %v478
      %v599 = vunpack.c.l.b16 %v479
      %v600 = vunpack.c.l.b16 %v480
      %v601 = vunpack.c.l.b16 %v481
      %v602 = vunpack.c.l.b16 %v482
      %v603 = vunpack.c.l.b16 %v483
      %v604 = vunpack.c.l.b16 %v484
      %v605 = vunpack.c.l.b16 %v485
      %v606 = vunpack.c.l.b16 %v486
      %v607 = vunpack.c.l.b16 %v487
      %v608 = vunpack.c.l.b16 %v488
      %v609 = vunpack.c.l.b16 %v489
      %v610 = vunpack.c.l.b16 %v490
      %v611 = vunpack.c.l.b16 %v491
      %v612 = vunpack.c.l.b16 %v492
      %v613 = vunpack.c.l.b16 %v493
      %v614 = vunpack.c.l.b16 %v494
      %v615 = vunpack.c.l.b16 %v495
      %v616 = vunpack.c.l.b16 %v496
      %v617 = vunpack.c.l.b16 %v497
      %v618 = vunpack.c.l.b16 %v498
      %v619 = vunpack.c.l.b16 %v499
      %v620 = vunpack.c.l.b16 %v500
      %v621 = vunpack.c.l.b16 %v501
      %v622 = vunpack.c.l.b16 %v502
      %v623 = vunpack.c.l.b16 %v503
      %v624 = vunpack.c.l.b16 %v504
      %v625 = vunpack.c.l.b16 %v505
      %v626 = vunpack.c.l.b16 %v506
      %v627 = vunpack.c.l.b16 %v507
      %v628 = vunpack.c.l.b16 %v508
      %v629 = vunpack.c.l.b16 %v509
      %v630 = vunpack.c.l.b16 %v510
      %v631 = vunpack.c.l.b16 %v511
      %v632 = vunpack.c.l.b16 %v512
      %v633 = vunpack.c.l.b16 %v513
      %v634 = vpack.c.b16 %v587, %v586
      %v635 = vpack.c.b16 %v589, %v588
      %v636 = vpack.c.b16 %v591, %v590
      %v637 = vpack.c.b16 %v593, %v592
      %v638 = vpack.c.b16 %v595, %v594
      %v639 = vpack.c.b16 %v597, %v596
      %v640 = vpack.c.b16 %v599, %v598
      %v641 = vpack.c.b16 %v601, %v600
      %v642 = vpack.c.b16 %v603, %v602
      %v643 = vpack.c.b16 %v605, %v604
      %v644 = vpack.c.b16 %v607, %v606
      %v645 = vpack.c.b16 %v609, %v608
      %v646 = vpack.c.b16 %v611, %v610
      %v647 = vpack.c.b16 %v613, %v612
      %v648 = vpack.c.b16 %v615, %v614
      %v649 = vpack.c.b16 %v617, %v616
      %v650 = vpack.c.b16 %v619, %v618
      %v651 = vpack.c.b16 %v621, %v620
      %v652 = vpack.c.b16 %v623, %v622
      %v653 = vpack.c.b16 %v625, %v624
      %v654 = vpack.c.b16 %v627, %v626
      %v655 = vpack.c.b16 %v629, %v628
      %v656 = vpack.c.b16 %v631, %v630
      %v657 = vpack.c.b16 %v633, %v632
      %682 = vmatprep.subr.bf16.mxu0 0
      %683 = vmatpush1.bf16.msra.mxu0 %v641
      %684 = vmatprep.subr.bf16.mxu0 0
      %685 = vmatpush1.bf16.msra.mxu0 %v640
      %686 = vmatprep.subr.bf16.mxu0 0
      %687 = vmatpush1.bf16.msra.mxu0 %v639
      %688 = vmatprep.subr.bf16.mxu0 0
      %689 = vmatpush1.bf16.msra.mxu0 %v638
      %690 = vmatprep.subr.bf16.mxu0 0
      %691 = vmatpush1.bf16.msra.mxu0 %v637
      %692 = vmatprep.subr.bf16.mxu0 0
      %693 = vmatpush1.bf16.msra.mxu0 %v636
      %694 = vmatprep.subr.bf16.mxu0 0
      %695 = vmatpush1.bf16.msra.mxu0 %v635
      %696 = vmatprep.subr.bf16.mxu0 0
      %697 = vmatpush1.bf16.msra.mxu0 %v634
      %698 = vmatprep.subr.bf16.mxu0 0
      %699 = vmatpush2.bf16.msra.mxu0 %v649
      %700 = vmatprep.subr.bf16.mxu0 0
      %701 = vmatpush2.bf16.msra.mxu0 %v648
      %702 = vmatprep.subr.bf16.mxu0 0
      %703 = vmatpush2.bf16.msra.mxu0 %v647
      %704 = vmatprep.subr.bf16.mxu0 0
      %705 = vmatpush2.bf16.msra.mxu0 %v646
      %706 = vmatprep.subr.bf16.mxu0 0
      %707 = vmatpush2.bf16.msra.mxu0 %v645
      %708 = vmatprep.subr.bf16.mxu0 0
      %709 = vmatpush2.bf16.msra.mxu0 %v644
      %710 = vmatprep.subr.bf16.mxu0 0
      %711 = vmatpush2.bf16.msra.mxu0 %v643
      %712 = vmatprep.subr.bf16.mxu0 0
      %713 = vmatpush2.bf16.msra.mxu0 %v642
      %714 = vmatprep.mubr.bf16.mxu0 %v527
      %715 = vmatmul.mubr.bf16.gmra.mxu0 %v520
      %v716 = vpop.f32.mrf.mxu0
      %v717 = vadd.f32 0.0, %v716
      %v718 = vpop.f32.mrf.mxu0
      %v719 = vpop.f32.mrf.mxu0
      %v720 = vpop.f32.mrf.mxu0
      %721 = vdwg.mxu0
      %722 = vmatprep.subr.bf16.mxu0 0
      %723 = vmatpush1.bf16.msra.mxu0 %v657
      %724 = vmatprep.subr.bf16.mxu0 0
      %725 = vmatpush1.bf16.msra.mxu0 %v656
      %726 = vmatprep.subr.bf16.mxu0 0
      %727 = vmatpush1.bf16.msra.mxu0 %v655
      %728 = vmatprep.subr.bf16.mxu0 0
      %729 = vmatpush1.bf16.msra.mxu0 %v654
      %730 = vmatprep.subr.bf16.mxu0 0
      %731 = vmatpush1.bf16.msra.mxu0 %v653
      %732 = vmatprep.subr.bf16.mxu0 0
      %733 = vmatpush1.bf16.msra.mxu0 %v652
      %734 = vmatprep.subr.bf16.mxu0 0
      %735 = vmatpush1.bf16.msra.mxu0 %v651
      %736 = vmatprep.subr.bf16.mxu0 0
      %737 = vmatpush1.bf16.msra.mxu0 %v650
      %738 = vmatprep.subr.bf16.mxu0 0
      %739 = vmatpush2.bf16.msra.mxu0 0
      %740 = vmatprep.subr.bf16.mxu0 0
      %741 = vmatpush2.bf16.msra.mxu0 0
      %742 = vmatprep.subr.bf16.mxu0 0
      %743 = vmatpush2.bf16.msra.mxu0 0
      %744 = vmatprep.subr.bf16.mxu0 0
      %745 = vmatpush2.bf16.msra.mxu0 0
      %746 = vmatprep.subr.bf16.mxu0 0
      %747 = vmatpush2.bf16.msra.mxu0 0
      %748 = vmatprep.subr.bf16.mxu0 0
      %749 = vmatpush2.bf16.msra.mxu0 0
      %750 = vmatprep.subr.bf16.mxu0 0
      %751 = vmatpush2.bf16.msra.mxu0 0
      %752 = vmatprep.subr.bf16.mxu0 0
      %753 = vmatpush2.bf16.msra.mxu0 0
      %754 = vmatprep.mubr.bf16.mxu0 0
      %755 = vmatmul.mubr.bf16.gmra.mxu0 %v534
      %v756 = vpop.f32.mrf.mxu0
      %v757 = vadd.f32 %v717, %v756
      %v758 = vpop.f32.mrf.mxu0
      %v759 = vpop.f32.mrf.mxu0
      %v760 = vpop.f32.mrf.mxu0
      %761 = vdwg.mxu0
      %v762 = vadd.f32 %v455, %v757
      %v763 = vld [vmem:[%s164] sm:$0xfc]
      %v764 = vld [vmem:[%s164 + $0x8] sm:$0xfc]
      %v765 = vld [vmem:[%s164 + $0x10] sm:$0xfc]
      %v766 = vld [vmem:[%s164 + $0x18] sm:$0x3]
      %v767 = vld [vmem:[%s164 + $0x20] sm:$0x3]
      %v768 = vld [vmem:[%s164 + $0x28] sm:$0x3]
      %v769 = vpack.c.bf16 %v766, %v763
      %v770 = vpack.c.bf16 %v767, %v764
      %v771 = vpack.c.bf16 %v768, %v765
      %s772 = scalar_lea.vmem %s1, 384
      %v773 = vld [vmem:[%s772] sm:$0xf]
      %v774 = vld [vmem:[%s772 + $0x4] sm:$0xf]
      %v775 = vld [vmem:[%s772 + $0x8] sm:$0xf]
      %v776 = vld [vmem:[%s772 + $0xc] sm:$0xf]
      %v777 = vld [vmem:[%s772 + $0x10] sm:$0xf]
      %v778 = vld [vmem:[%s772 + $0x14] sm:$0xf]
      %v779 = vld [vmem:[%s772 + $0x18] sm:$0xf]
      %v780 = vld [vmem:[%s772 + $0x1c] sm:$0xf]
      %v781 = vld [vmem:[%s772 + $0x20] sm:$0xf]
      %v782 = vld [vmem:[%s772 + $0x24] sm:$0xf]
      %v783 = vld [vmem:[%s772 + $0x28] sm:$0xf]
      %v784 = vld [vmem:[%s772 + $0x2c] sm:$0xf]
      %v785 = vld [vmem:[%s772 + $0x30] sm:$0xf]
      %v786 = vld [vmem:[%s772 + $0x34] sm:$0xf]
      %v787 = vld [vmem:[%s772 + $0x38] sm:$0xf]
      %v788 = vld [vmem:[%s772 + $0x3c] sm:$0xf]
      %v789 = vld [vmem:[%s772 + $0x40] sm:$0xf]
      %v790 = vld [vmem:[%s772 + $0x44] sm:$0xf]
      %v791 = vld [vmem:[%s772 + $0x48] sm:$0xf]
      %v792 = vld [vmem:[%s772 + $0x4c] sm:$0xf]
      %v793 = vld [vmem:[%s772 + $0x50] sm:$0xf]
      %v794 = vld [vmem:[%s772 + $0x54] sm:$0xf]
      %v795 = vld [vmem:[%s772 + $0x58] sm:$0xf]
      %v796 = vld [vmem:[%s772 + $0x5c] sm:$0xf]
      %v797 = vld [vmem:[%s772 + $0x60] sm:$0xf]
      %v798 = vld [vmem:[%s772 + $0x64] sm:$0xf]
      %v799 = vld [vmem:[%s772 + $0x68] sm:$0xf]
      %v800 = vld [vmem:[%s772 + $0x6c] sm:$0xf]
      %v801 = vld [vmem:[%s772 + $0x70] sm:$0xf]
      %v802 = vld [vmem:[%s772 + $0x74] sm:$0xf]
      %v803 = vld [vmem:[%s772 + $0x78] sm:$0xf]
      %v804 = vld [vmem:[%s772 + $0x7c] sm:$0xf]
      %v805 = vld [vmem:[%s772 + $0x80] sm:$0xf]
      %v806 = vld [vmem:[%s772 + $0x84] sm:$0xf]
      %v807 = vld [vmem:[%s772 + $0x88] sm:$0xf]
      %v808 = vld [vmem:[%s772 + $0x8c] sm:$0xf]
      %v809 = vld [vmem:[%s772 + $0x90] sm:$0xf]
      %v810 = vld [vmem:[%s772 + $0x94] sm:$0xf]
      %v811 = vld [vmem:[%s772 + $0x98] sm:$0xf]
      %v812 = vld [vmem:[%s772 + $0x9c] sm:$0xf]
      %v813 = vld [vmem:[%s772 + $0xa0] sm:$0xf]
      %v814 = vld [vmem:[%s772 + $0xa4] sm:$0xf]
      %v815 = vld [vmem:[%s772 + $0xa8] sm:$0xf]
      %v816 = vld [vmem:[%s772 + $0xac] sm:$0xf]
      %v817 = vld [vmem:[%s772 + $0xb0] sm:$0xf]
      %v818 = vld [vmem:[%s772 + $0xb4] sm:$0xf]
      %v819 = vld [vmem:[%s772 + $0xb8] sm:$0xf]
      %v820 = vld [vmem:[%s772 + $0xbc] sm:$0xf]
      %v824 = vrot.slane %v769, 1
      %v825 = vrot.slane %v770, 1
      %v826 = vrot.slane %v771, 1
      %v878 = vunpack.c.l.b16 %v773
      %v879 = vunpack.c.l.b16 %v774
      %v880 = vunpack.c.l.b16 %v775
      %v881 = vunpack.c.l.b16 %v776
      %v882 = vunpack.c.l.b16 %v777
      %v883 = vunpack.c.l.b16 %v778
      %v884 = vunpack.c.l.b16 %v779
      %v885 = vunpack.c.l.b16 %v780
      %v886 = vunpack.c.l.b16 %v781
      %v887 = vunpack.c.l.b16 %v782
      %v888 = vunpack.c.l.b16 %v783
      %v889 = vunpack.c.l.b16 %v784
      %v890 = vunpack.c.l.b16 %v785
      %v891 = vunpack.c.l.b16 %v786
      %v892 = vunpack.c.l.b16 %v787
      %v893 = vunpack.c.l.b16 %v788
      %v894 = vunpack.c.l.b16 %v789
      %v895 = vunpack.c.l.b16 %v790
      %v896 = vunpack.c.l.b16 %v791
      %v897 = vunpack.c.l.b16 %v792
      %v898 = vunpack.c.l.b16 %v793
      %v899 = vunpack.c.l.b16 %v794
      %v900 = vunpack.c.l.b16 %v795
      %v901 = vunpack.c.l.b16 %v796
      %v902 = vunpack.c.l.b16 %v797
      %v903 = vunpack.c.l.b16 %v798
      %v904 = vunpack.c.l.b16 %v799
      %v905 = vunpack.c.l.b16 %v800
      %v906 = vunpack.c.l.b16 %v801
      %v907 = vunpack.c.l.b16 %v802
      %v908 = vunpack.c.l.b16 %v803
      %v909 = vunpack.c.l.b16 %v804
      %v910 = vunpack.c.l.b16 %v805
      %v911 = vunpack.c.l.b16 %v806
      %v912 = vunpack.c.l.b16 %v807
      %v913 = vunpack.c.l.b16 %v808
      %v914 = vunpack.c.l.b16 %v809
      %v915 = vunpack.c.l.b16 %v810
      %v916 = vunpack.c.l.b16 %v811
      %v917 = vunpack.c.l.b16 %v812
      %v918 = vunpack.c.l.b16 %v813
      %v919 = vunpack.c.l.b16 %v814
      %v920 = vunpack.c.l.b16 %v815
      %v921 = vunpack.c.l.b16 %v816
      %v922 = vunpack.c.l.b16 %v817
      %v923 = vunpack.c.l.b16 %v818
      %v924 = vunpack.c.l.b16 %v819
      %v925 = vunpack.c.l.b16 %v820
      %v926 = vpack.c.b16 %v879, %v878
      %v927 = vpack.c.b16 %v881, %v880
      %v928 = vpack.c.b16 %v883, %v882
      %v929 = vpack.c.b16 %v885, %v884
      %v930 = vpack.c.b16 %v887, %v886
      %v931 = vpack.c.b16 %v889, %v888
      %v932 = vpack.c.b16 %v891, %v890
      %v933 = vpack.c.b16 %v893, %v892
      %v934 = vpack.c.b16 %v895, %v894
      %v935 = vpack.c.b16 %v897, %v896
      %v936 = vpack.c.b16 %v899, %v898
      %v937 = vpack.c.b16 %v901, %v900
      %v938 = vpack.c.b16 %v903, %v902
      %v939 = vpack.c.b16 %v905, %v904
      %v940 = vpack.c.b16 %v907, %v906
      %v941 = vpack.c.b16 %v909, %v908
      %v942 = vpack.c.b16 %v911, %v910
      %v943 = vpack.c.b16 %v913, %v912
      %v944 = vpack.c.b16 %v915, %v914
      %v945 = vpack.c.b16 %v917, %v916
      %v946 = vpack.c.b16 %v919, %v918
      %v947 = vpack.c.b16 %v921, %v920
      %v948 = vpack.c.b16 %v923, %v922
      %v949 = vpack.c.b16 %v925, %v924
      %974 = vmatprep.subr.bf16.mxu0 0
      %975 = vmatpush1.bf16.msra.mxu0 %v933
      %976 = vmatprep.subr.bf16.mxu0 0
      %977 = vmatpush1.bf16.msra.mxu0 %v932
      %978 = vmatprep.subr.bf16.mxu0 0
      %979 = vmatpush1.bf16.msra.mxu0 %v931
      %980 = vmatprep.subr.bf16.mxu0 0
      %981 = vmatpush1.bf16.msra.mxu0 %v930
      %982 = vmatprep.subr.bf16.mxu0 0
      %983 = vmatpush1.bf16.msra.mxu0 %v929
      %984 = vmatprep.subr.bf16.mxu0 0
      %985 = vmatpush1.bf16.msra.mxu0 %v928
      %986 = vmatprep.subr.bf16.mxu0 0
      %987 = vmatpush1.bf16.msra.mxu0 %v927
      %988 = vmatprep.subr.bf16.mxu0 0
      %989 = vmatpush1.bf16.msra.mxu0 %v926
      %990 = vmatprep.subr.bf16.mxu0 0
      %991 = vmatpush2.bf16.msra.mxu0 %v941
      %992 = vmatprep.subr.bf16.mxu0 0
      %993 = vmatpush2.bf16.msra.mxu0 %v940
      %994 = vmatprep.subr.bf16.mxu0 0
      %995 = vmatpush2.bf16.msra.mxu0 %v939
      %996 = vmatprep.subr.bf16.mxu0 0
      %997 = vmatpush2.bf16.msra.mxu0 %v938
      %998 = vmatprep.subr.bf16.mxu0 0
      %999 = vmatpush2.bf16.msra.mxu0 %v937
      %1000 = vmatprep.subr.bf16.mxu0 0
      %1001 = vmatpush2.bf16.msra.mxu0 %v936
      %1002 = vmatprep.subr.bf16.mxu0 0
      %1003 = vmatpush2.bf16.msra.mxu0 %v935
      %1004 = vmatprep.subr.bf16.mxu0 0
      %1005 = vmatpush2.bf16.msra.mxu0 %v934
      %1006 = vmatprep.mubr.bf16.mxu0 %v825
      %1007 = vmatmul.mubr.bf16.gmra.mxu0 %v824
      %v1008 = vpop.f32.mrf.mxu0
      %v1009 = vadd.f32 0.0, %v1008
      %v1010 = vpop.f32.mrf.mxu0
      %v1011 = vpop.f32.mrf.mxu0
      %v1012 = vpop.f32.mrf.mxu0
      %1013 = vdwg.mxu0
      %1014 = vmatprep.subr.bf16.mxu0 0
      %1015 = vmatpush1.bf16.msra.mxu0 %v949
      %1016 = vmatprep.subr.bf16.mxu0 0
      %1017 = vmatpush1.bf16.msra.mxu0 %v948
      %1018 = vmatprep.subr.bf16.mxu0 0
      %1019 = vmatpush1.bf16.msra.mxu0 %v947
      %1020 = vmatprep.subr.bf16.mxu0 0
      %1021 = vmatpush1.bf16.msra.mxu0 %v946
      %1022 = vmatprep.subr.bf16.mxu0 0
      %1023 = vmatpush1.bf16.msra.mxu0 %v945
      %1024 = vmatprep.subr.bf16.mxu0 0
      %1025 = vmatpush1.bf16.msra.mxu0 %v944
      %1026 = vmatprep.subr.bf16.mxu0 0
      %1027 = vmatpush1.bf16.msra.mxu0 %v943
      %1028 = vmatprep.subr.bf16.mxu0 0
      %1029 = vmatpush1.bf16.msra.mxu0 %v942
      %1030 = vmatprep.subr.bf16.mxu0 0
      %1031 = vmatpush2.bf16.msra.mxu0 0
      %1032 = vmatprep.subr.bf16.mxu0 0
      %1033 = vmatpush2.bf16.msra.mxu0 0
      %1034 = vmatprep.subr.bf16.mxu0 0
      %1035 = vmatpush2.bf16.msra.mxu0 0
      %1036 = vmatprep.subr.bf16.mxu0 0
      %1037 = vmatpush2.bf16.msra.mxu0 0
      %1038 = vmatprep.subr.bf16.mxu0 0
      %1039 = vmatpush2.bf16.msra.mxu0 0
      %1040 = vmatprep.subr.bf16.mxu0 0
      %1041 = vmatpush2.bf16.msra.mxu0 0
      %1042 = vmatprep.subr.bf16.mxu0 0
      %1043 = vmatpush2.bf16.msra.mxu0 0
      %1044 = vmatprep.subr.bf16.mxu0 0
      %1045 = vmatpush2.bf16.msra.mxu0 0
      %1046 = vmatprep.mubr.bf16.mxu0 0
      %1047 = vmatmul.mubr.bf16.gmra.mxu0 %v826
      %v1048 = vpop.f32.mrf.mxu0
      %v1049 = vadd.f32 %v1009, %v1048
      %v1050 = vpop.f32.mrf.mxu0
      %v1051 = vpop.f32.mrf.mxu0
      %v1052 = vpop.f32.mrf.mxu0
      %1053 = vdwg.mxu0
      %v1054 = vadd.f32 %v762, %v1049
      %v1055 = vld [vmem:[%s164] sm:$0xf8]
      %v1056 = vld [vmem:[%s164 + $0x8] sm:$0xf8]
      %v1057 = vld [vmem:[%s164 + $0x10] sm:$0xf8]
      %v1058 = vld [vmem:[%s164 + $0x18] sm:$0x7]
      %v1059 = vld [vmem:[%s164 + $0x20] sm:$0x7]
      %v1060 = vld [vmem:[%s164 + $0x28] sm:$0x7]
      %v1061 = vpack.c.bf16 %v1058, %v1055
      %v1062 = vpack.c.bf16 %v1059, %v1056
      %v1063 = vpack.c.bf16 %v1060, %v1057
      %s1064 = scalar_lea.vmem %s1, 576
      %v1065 = vld [vmem:[%s1064] sm:$0xf]
      %v1066 = vld [vmem:[%s1064 + $0x4] sm:$0xf]
      %v1067 = vld [vmem:[%s1064 + $0x8] sm:$0xf]
      %v1068 = vld [vmem:[%s1064 + $0xc] sm:$0xf]
      %v1069 = vld [vmem:[%s1064 + $0x10] sm:$0xf]
      %v1070 = vld [vmem:[%s1064 + $0x14] sm:$0xf]
      %v1071 = vld [vmem:[%s1064 + $0x18] sm:$0xf]
      %v1072 = vld [vmem:[%s1064 + $0x1c] sm:$0xf]
      %v1073 = vld [vmem:[%s1064 + $0x20] sm:$0xf]
      %v1074 = vld [vmem:[%s1064 + $0x24] sm:$0xf]
      %v1075 = vld [vmem:[%s1064 + $0x28] sm:$0xf]
      %v1076 = vld [vmem:[%s1064 + $0x2c] sm:$0xf]
      %v1077 = vld [vmem:[%s1064 + $0x30] sm:$0xf]
      %v1078 = vld [vmem:[%s1064 + $0x34] sm:$0xf]
      %v1079 = vld [vmem:[%s1064 + $0x38] sm:$0xf]
      %v1080 = vld [vmem:[%s1064 + $0x3c] sm:$0xf]
      %v1081 = vld [vmem:[%s1064 + $0x40] sm:$0xf]
      %v1082 = vld [vmem:[%s1064 + $0x44] sm:$0xf]
      %v1083 = vld [vmem:[%s1064 + $0x48] sm:$0xf]
      %v1084 = vld [vmem:[%s1064 + $0x4c] sm:$0xf]
      %v1085 = vld [vmem:[%s1064 + $0x50] sm:$0xf]
      %v1086 = vld [vmem:[%s1064 + $0x54] sm:$0xf]
      %v1087 = vld [vmem:[%s1064 + $0x58] sm:$0xf]
      %v1088 = vld [vmem:[%s1064 + $0x5c] sm:$0xf]
      %v1089 = vld [vmem:[%s1064 + $0x60] sm:$0xf]
      %v1090 = vld [vmem:[%s1064 + $0x64] sm:$0xf]
      %v1091 = vld [vmem:[%s1064 + $0x68] sm:$0xf]
      %v1092 = vld [vmem:[%s1064 + $0x6c] sm:$0xf]
      %v1093 = vld [vmem:[%s1064 + $0x70] sm:$0xf]
      %v1094 = vld [vmem:[%s1064 + $0x74] sm:$0xf]
      %v1095 = vld [vmem:[%s1064 + $0x78] sm:$0xf]
      %v1096 = vld [vmem:[%s1064 + $0x7c] sm:$0xf]
      %v1097 = vld [vmem:[%s1064 + $0x80] sm:$0xf]
      %v1098 = vld [vmem:[%s1064 + $0x84] sm:$0xf]
      %v1099 = vld [vmem:[%s1064 + $0x88] sm:$0xf]
      %v1100 = vld [vmem:[%s1064 + $0x8c] sm:$0xf]
      %v1101 = vld [vmem:[%s1064 + $0x90] sm:$0xf]
      %v1102 = vld [vmem:[%s1064 + $0x94] sm:$0xf]
      %v1103 = vld [vmem:[%s1064 + $0x98] sm:$0xf]
      %v1104 = vld [vmem:[%s1064 + $0x9c] sm:$0xf]
      %v1105 = vld [vmem:[%s1064 + $0xa0] sm:$0xf]
      %v1106 = vld [vmem:[%s1064 + $0xa4] sm:$0xf]
      %v1107 = vld [vmem:[%s1064 + $0xa8] sm:$0xf]
      %v1108 = vld [vmem:[%s1064 + $0xac] sm:$0xf]
      %v1109 = vld [vmem:[%s1064 + $0xb0] sm:$0xf]
      %v1110 = vld [vmem:[%s1064 + $0xb4] sm:$0xf]
      %v1111 = vld [vmem:[%s1064 + $0xb8] sm:$0xf]
      %v1112 = vld [vmem:[%s1064 + $0xbc] sm:$0xf]
      %v1114 = vshrl.u32 %v1061, 16
      %v1116 = vrot.slane %v1114, 1
      %v1117 = vshll.u32 %v1061, 16
      %v1119 = vrot.slane %v1117, 2
      %v1120 = vor.u32 %v1116, %v1119
      %v1122 = vshrl.u32 %v1062, 16
      %v1124 = vrot.slane %v1122, 1
      %v1125 = vshll.u32 %v1062, 16
      %v1127 = vrot.slane %v1125, 2
      %v1128 = vor.u32 %v1124, %v1127
      %v1130 = vshrl.u32 %v1063, 16
      %v1132 = vrot.slane %v1130, 1
      %v1133 = vshll.u32 %v1063, 16
      %v1135 = vrot.slane %v1133, 2
      %v1136 = vor.u32 %v1132, %v1135
      %v1188 = vunpack.c.l.b16 %v1065
      %v1189 = vunpack.c.l.b16 %v1066
      %v1190 = vunpack.c.l.b16 %v1067
      %v1191 = vunpack.c.l.b16 %v1068
      %v1192 = vunpack.c.l.b16 %v1069
      %v1193 = vunpack.c.l.b16 %v1070
      %v1194 = vunpack.c.l.b16 %v1071
      %v1195 = vunpack.c.l.b16 %v1072
      %v1196 = vunpack.c.l.b16 %v1073
      %v1197 = vunpack.c.l.b16 %v1074
      %v1198 = vunpack.c.l.b16 %v1075
      %v1199 = vunpack.c.l.b16 %v1076
      %v1200 = vunpack.c.l.b16 %v1077
      %v1201 = vunpack.c.l.b16 %v1078
      %v1202 = vunpack.c.l.b16 %v1079
      %v1203 = vunpack.c.l.b16 %v1080
      %v1204 = vunpack.c.l.b16 %v1081
      %v1205 = vunpack.c.l.b16 %v1082
      %v1206 = vunpack.c.l.b16 %v1083
      %v1207 = vunpack.c.l.b16 %v1084
      %v1208 = vunpack.c.l.b16 %v1085
      %v1209 = vunpack.c.l.b16 %v1086
      %v1210 = vunpack.c.l.b16 %v1087
      %v1211 = vunpack.c.l.b16 %v1088
      %v1212 = vunpack.c.l.b16 %v1089
      %v1213 = vunpack.c.l.b16 %v1090
      %v1214 = vunpack.c.l.b16 %v1091
      %v1215 = vunpack.c.l.b16 %v1092
      %v1216 = vunpack.c.l.b16 %v1093
      %v1217 = vunpack.c.l.b16 %v1094
      %v1218 = vunpack.c.l.b16 %v1095
      %v1219 = vunpack.c.l.b16 %v1096
      %v1220 = vunpack.c.l.b16 %v1097
      %v1221 = vunpack.c.l.b16 %v1098
      %v1222 = vunpack.c.l.b16 %v1099
      %v1223 = vunpack.c.l.b16 %v1100
      %v1224 = vunpack.c.l.b16 %v1101
      %v1225 = vunpack.c.l.b16 %v1102
      %v1226 = vunpack.c.l.b16 %v1103
      %v1227 = vunpack.c.l.b16 %v1104
      %v1228 = vunpack.c.l.b16 %v1105
      %v1229 = vunpack.c.l.b16 %v1106
      %v1230 = vunpack.c.l.b16 %v1107
      %v1231 = vunpack.c.l.b16 %v1108
      %v1232 = vunpack.c.l.b16 %v1109
      %v1233 = vunpack.c.l.b16 %v1110
      %v1234 = vunpack.c.l.b16 %v1111
      %v1235 = vunpack.c.l.b16 %v1112
      %v1236 = vpack.c.b16 %v1189, %v1188
      %v1237 = vpack.c.b16 %v1191, %v1190
      %v1238 = vpack.c.b16 %v1193, %v1192
      %v1239 = vpack.c.b16 %v1195, %v1194
      %v1240 = vpack.c.b16 %v1197, %v1196
      %v1241 = vpack.c.b16 %v1199, %v1198
      %v1242 = vpack.c.b16 %v1201, %v1200
      %v1243 = vpack.c.b16 %v1203, %v1202
      %v1244 = vpack.c.b16 %v1205, %v1204
      %v1245 = vpack.c.b16 %v1207, %v1206
      %v1246 = vpack.c.b16 %v1209, %v1208
      %v1247 = vpack.c.b16 %v1211, %v1210
      %v1248 = vpack.c.b16 %v1213, %v1212
      %v1249 = vpack.c.b16 %v1215, %v1214
      %v1250 = vpack.c.b16 %v1217, %v1216
      %v1251 = vpack.c.b16 %v1219, %v1218
      %v1252 = vpack.c.b16 %v1221, %v1220
      %v1253 = vpack.c.b16 %v1223, %v1222
      %v1254 = vpack.c.b16 %v1225, %v1224
      %v1255 = vpack.c.b16 %v1227, %v1226
      %v1256 = vpack.c.b16 %v1229, %v1228
      %v1257 = vpack.c.b16 %v1231, %v1230
      %v1258 = vpack.c.b16 %v1233, %v1232
      %v1259 = vpack.c.b16 %v1235, %v1234
      %1284 = vmatprep.subr.bf16.mxu0 0
      %1285 = vmatpush1.bf16.msra.mxu0 %v1243
      %1286 = vmatprep.subr.bf16.mxu0 0
      %1287 = vmatpush1.bf16.msra.mxu0 %v1242
      %1288 = vmatprep.subr.bf16.mxu0 0
      %1289 = vmatpush1.bf16.msra.mxu0 %v1241
      %1290 = vmatprep.subr.bf16.mxu0 0
      %1291 = vmatpush1.bf16.msra.mxu0 %v1240
      %1292 = vmatprep.subr.bf16.mxu0 0
      %1293 = vmatpush1.bf16.msra.mxu0 %v1239
      %1294 = vmatprep.subr.bf16.mxu0 0
      %1295 = vmatpush1.bf16.msra.mxu0 %v1238
      %1296 = vmatprep.subr.bf16.mxu0 0
      %1297 = vmatpush1.bf16.msra.mxu0 %v1237
      %1298 = vmatprep.subr.bf16.mxu0 0
      %1299 = vmatpush1.bf16.msra.mxu0 %v1236
      %1300 = vmatprep.subr.bf16.mxu0 0
      %1301 = vmatpush2.bf16.msra.mxu0 %v1251
      %1302 = vmatprep.subr.bf16.mxu0 0
      %1303 = vmatpush2.bf16.msra.mxu0 %v1250
      %1304 = vmatprep.subr.bf16.mxu0 0
      %1305 = vmatpush2.bf16.msra.mxu0 %v1249
      %1306 = vmatprep.subr.bf16.mxu0 0
      %1307 = vmatpush2.bf16.msra.mxu0 %v1248
      %1308 = vmatprep.subr.bf16.mxu0 0
      %1309 = vmatpush2.bf16.msra.mxu0 %v1247
      %1310 = vmatprep.subr.bf16.mxu0 0
      %1311 = vmatpush2.bf16.msra.mxu0 %v1246
      %1312 = vmatprep.subr.bf16.mxu0 0
      %1313 = vmatpush2.bf16.msra.mxu0 %v1245
      %1314 = vmatprep.subr.bf16.mxu0 0
      %1315 = vmatpush2.bf16.msra.mxu0 %v1244
      %1316 = vmatprep.mubr.bf16.mxu0 %v1128
      %1317 = vmatmul.mubr.bf16.gmra.mxu0 %v1120
      %v1318 = vpop.f32.mrf.mxu0
      %v1319 = vadd.f32 0.0, %v1318
      %v1320 = vpop.f32.mrf.mxu0
      %v1321 = vpop.f32.mrf.mxu0
      %v1322 = vpop.f32.mrf.mxu0
      %1323 = vdwg.mxu0
      %1324 = vmatprep.subr.bf16.mxu0 0
      %1325 = vmatpush1.bf16.msra.mxu0 %v1259
      %1326 = vmatprep.subr.bf16.mxu0 0
      %1327 = vmatpush1.bf16.msra.mxu0 %v1258
      %1328 = vmatprep.subr.bf16.mxu0 0
      %1329 = vmatpush1.bf16.msra.mxu0 %v1257
      %1330 = vmatprep.subr.bf16.mxu0 0
      %1331 = vmatpush1.bf16.msra.mxu0 %v1256
      %1332 = vmatprep.subr.bf16.mxu0 0
      %1333 = vmatpush1.bf16.msra.mxu0 %v1255
      %1334 = vmatprep.subr.bf16.mxu0 0
      %1335 = vmatpush1.bf16.msra.mxu0 %v1254
      %1336 = vmatprep.subr.bf16.mxu0 0
      %1337 = vmatpush1.bf16.msra.mxu0 %v1253
      %1338 = vmatprep.subr.bf16.mxu0 0
      %1339 = vmatpush1.bf16.msra.mxu0 %v1252
      %1340 = vmatprep.subr.bf16.mxu0 0
      %1341 = vmatpush2.bf16.msra.mxu0 0
      %1342 = vmatprep.subr.bf16.mxu0 0
      %1343 = vmatpush2.bf16.msra.mxu0 0
      %1344 = vmatprep.subr.bf16.mxu0 0
      %1345 = vmatpush2.bf16.msra.mxu0 0
      %1346 = vmatprep.subr.bf16.mxu0 0
      %1347 = vmatpush2.bf16.msra.mxu0 0
      %1348 = vmatprep.subr.bf16.mxu0 0
      %1349 = vmatpush2.bf16.msra.mxu0 0
      %1350 = vmatprep.subr.bf16.mxu0 0
      %1351 = vmatpush2.bf16.msra.mxu0 0
      %1352 = vmatprep.subr.bf16.mxu0 0
      %1353 = vmatpush2.bf16.msra.mxu0 0
      %1354 = vmatprep.subr.bf16.mxu0 0
      %1355 = vmatpush2.bf16.msra.mxu0 0
      %1356 = vmatprep.mubr.bf16.mxu0 0
      %1357 = vmatmul.mubr.bf16.gmra.mxu0 %v1136
      %v1358 = vpop.f32.mrf.mxu0
      %v1359 = vadd.f32 %v1319, %v1358
      %v1360 = vpop.f32.mrf.mxu0
      %v1361 = vpop.f32.mrf.mxu0
      %v1362 = vpop.f32.mrf.mxu0
      %1363 = vdwg.mxu0
      %v1364 = vadd.f32 %v1054, %v1359
      %v1365 = vld [vmem:[%s164] sm:$0xf0]
      %v1366 = vld [vmem:[%s164 + $0x8] sm:$0xf0]
      %v1367 = vld [vmem:[%s164 + $0x10] sm:$0xf0]
      %v1368 = vld [vmem:[%s164 + $0x18] sm:$0xf]
      %v1369 = vld [vmem:[%s164 + $0x20] sm:$0xf]
      %v1370 = vld [vmem:[%s164 + $0x28] sm:$0xf]
      %v1371 = vpack.c.bf16 %v1368, %v1365
      %v1372 = vpack.c.bf16 %v1369, %v1366
      %v1373 = vpack.c.bf16 %v1370, %v1367
      %s1374 = scalar_lea.vmem %s1, 768
      %v1375 = vld [vmem:[%s1374] sm:$0xf]
      %v1376 = vld [vmem:[%s1374 + $0x4] sm:$0xf]
      %v1377 = vld [vmem:[%s1374 + $0x8] sm:$0xf]
      %v1378 = vld [vmem:[%s1374 + $0xc] sm:$0xf]
      %v1379 = vld [vmem:[%s1374 + $0x10] sm:$0xf]
      %v1380 = vld [vmem:[%s1374 + $0x14] sm:$0xf]
      %v1381 = vld [vmem:[%s1374 + $0x18] sm:$0xf]
      %v1382 = vld [vmem:[%s1374 + $0x1c] sm:$0xf]
      %v1383 = vld [vmem:[%s1374 + $0x20] sm:$0xf]
      %v1384 = vld [vmem:[%s1374 + $0x24] sm:$0xf]
      %v1385 = vld [vmem:[%s1374 + $0x28] sm:$0xf]
      %v1386 = vld [vmem:[%s1374 + $0x2c] sm:$0xf]
      %v1387 = vld [vmem:[%s1374 + $0x30] sm:$0xf]
      %v1388 = vld [vmem:[%s1374 + $0x34] sm:$0xf]
      %v1389 = vld [vmem:[%s1374 + $0x38] sm:$0xf]
      %v1390 = vld [vmem:[%s1374 + $0x3c] sm:$0xf]
      %v1391 = vld [vmem:[%s1374 + $0x40] sm:$0xf]
      %v1392 = vld [vmem:[%s1374 + $0x44] sm:$0xf]
      %v1393 = vld [vmem:[%s1374 + $0x48] sm:$0xf]
      %v1394 = vld [vmem:[%s1374 + $0x4c] sm:$0xf]
      %v1395 = vld [vmem:[%s1374 + $0x50] sm:$0xf]
      %v1396 = vld [vmem:[%s1374 + $0x54] sm:$0xf]
      %v1397 = vld [vmem:[%s1374 + $0x58] sm:$0xf]
      %v1398 = vld [vmem:[%s1374 + $0x5c] sm:$0xf]
      %v1399 = vld [vmem:[%s1374 + $0x60] sm:$0xf]
      %v1400 = vld [vmem:[%s1374 + $0x64] sm:$0xf]
      %v1401 = vld [vmem:[%s1374 + $0x68] sm:$0xf]
      %v1402 = vld [vmem:[%s1374 + $0x6c] sm:$0xf]
      %v1403 = vld [vmem:[%s1374 + $0x70] sm:$0xf]
      %v1404 = vld [vmem:[%s1374 + $0x74] sm:$0xf]
      %v1405 = vld [vmem:[%s1374 + $0x78] sm:$0xf]
      %v1406 = vld [vmem:[%s1374 + $0x7c] sm:$0xf]
      %v1407 = vld [vmem:[%s1374 + $0x80] sm:$0xf]
      %v1408 = vld [vmem:[%s1374 + $0x84] sm:$0xf]
      %v1409 = vld [vmem:[%s1374 + $0x88] sm:$0xf]
      %v1410 = vld [vmem:[%s1374 + $0x8c] sm:$0xf]
      %v1411 = vld [vmem:[%s1374 + $0x90] sm:$0xf]
      %v1412 = vld [vmem:[%s1374 + $0x94] sm:$0xf]
      %v1413 = vld [vmem:[%s1374 + $0x98] sm:$0xf]
      %v1414 = vld [vmem:[%s1374 + $0x9c] sm:$0xf]
      %v1415 = vld [vmem:[%s1374 + $0xa0] sm:$0xf]
      %v1416 = vld [vmem:[%s1374 + $0xa4] sm:$0xf]
      %v1417 = vld [vmem:[%s1374 + $0xa8] sm:$0xf]
      %v1418 = vld [vmem:[%s1374 + $0xac] sm:$0xf]
      %v1419 = vld [vmem:[%s1374 + $0xb0] sm:$0xf]
      %v1420 = vld [vmem:[%s1374 + $0xb4] sm:$0xf]
      %v1421 = vld [vmem:[%s1374 + $0xb8] sm:$0xf]
      %v1422 = vld [vmem:[%s1374 + $0xbc] sm:$0xf]
      %v1426 = vrot.slane %v1371, 2
      %v1427 = vrot.slane %v1372, 2
      %v1428 = vrot.slane %v1373, 2
      %v1480 = vunpack.c.l.b16 %v1375
      %v1481 = vunpack.c.l.b16 %v1376
      %v1482 = vunpack.c.l.b16 %v1377
      %v1483 = vunpack.c.l.b16 %v1378
      %v1484 = vunpack.c.l.b16 %v1379
      %v1485 = vunpack.c.l.b16 %v1380
      %v1486 = vunpack.c.l.b16 %v1381
      %v1487 = vunpack.c.l.b16 %v1382
      %v1488 = vunpack.c.l.b16 %v1383
      %v1489 = vunpack.c.l.b16 %v1384
      %v1490 = vunpack.c.l.b16 %v1385
      %v1491 = vunpack.c.l.b16 %v1386
      %v1492 = vunpack.c.l.b16 %v1387
      %v1493 = vunpack.c.l.b16 %v1388
      %v1494 = vunpack.c.l.b16 %v1389
      %v1495 = vunpack.c.l.b16 %v1390
      %v1496 = vunpack.c.l.b16 %v1391
      %v1497 = vunpack.c.l.b16 %v1392
      %v1498 = vunpack.c.l.b16 %v1393
      %v1499 = vunpack.c.l.b16 %v1394
      %v1500 = vunpack.c.l.b16 %v1395
      %v1501 = vunpack.c.l.b16 %v1396
      %v1502 = vunpack.c.l.b16 %v1397
      %v1503 = vunpack.c.l.b16 %v1398
      %v1504 = vunpack.c.l.b16 %v1399
      %v1505 = vunpack.c.l.b16 %v1400
      %v1506 = vunpack.c.l.b16 %v1401
      %v1507 = vunpack.c.l.b16 %v1402
      %v1508 = vunpack.c.l.b16 %v1403
      %v1509 = vunpack.c.l.b16 %v1404
      %v1510 = vunpack.c.l.b16 %v1405
      %v1511 = vunpack.c.l.b16 %v1406
      %v1512 = vunpack.c.l.b16 %v1407
      %v1513 = vunpack.c.l.b16 %v1408
      %v1514 = vunpack.c.l.b16 %v1409
      %v1515 = vunpack.c.l.b16 %v1410
      %v1516 = vunpack.c.l.b16 %v1411
      %v1517 = vunpack.c.l.b16 %v1412
      %v1518 = vunpack.c.l.b16 %v1413
      %v1519 = vunpack.c.l.b16 %v1414
      %v1520 = vunpack.c.l.b16 %v1415
      %v1521 = vunpack.c.l.b16 %v1416
      %v1522 = vunpack.c.l.b16 %v1417
      %v1523 = vunpack.c.l.b16 %v1418
      %v1524 = vunpack.c.l.b16 %v1419
      %v1525 = vunpack.c.l.b16 %v1420
      %v1526 = vunpack.c.l.b16 %v1421
      %v1527 = vunpack.c.l.b16 %v1422
      %v1528 = vpack.c.b16 %v1481, %v1480
      %v1529 = vpack.c.b16 %v1483, %v1482
      %v1530 = vpack.c.b16 %v1485, %v1484
      %v1531 = vpack.c.b16 %v1487, %v1486
      %v1532 = vpack.c.b16 %v1489, %v1488
      %v1533 = vpack.c.b16 %v1491, %v1490
      %v1534 = vpack.c.b16 %v1493, %v1492
      %v1535 = vpack.c.b16 %v1495, %v1494
      %v1536 = vpack.c.b16 %v1497, %v1496
      %v1537 = vpack.c.b16 %v1499, %v1498
      %v1538 = vpack.c.b16 %v1501, %v1500
      %v1539 = vpack.c.b16 %v1503, %v1502
      %v1540 = vpack.c.b16 %v1505, %v1504
      %v1541 = vpack.c.b16 %v1507, %v1506
      %v1542 = vpack.c.b16 %v1509, %v1508
      %v1543 = vpack.c.b16 %v1511, %v1510
      %v1544 = vpack.c.b16 %v1513, %v1512
      %v1545 = vpack.c.b16 %v1515, %v1514
      %v1546 = vpack.c.b16 %v1517, %v1516
      %v1547 = vpack.c.b16 %v1519, %v1518
      %v1548 = vpack.c.b16 %v1521, %v1520
      %v1549 = vpack.c.b16 %v1523, %v1522
      %v1550 = vpack.c.b16 %v1525, %v1524
      %v1551 = vpack.c.b16 %v1527, %v1526
      %1576 = vmatprep.subr.bf16.mxu0 0
      %1577 = vmatpush1.bf16.msra.mxu0 %v1535
      %1578 = vmatprep.subr.bf16.mxu0 0
      %1579 = vmatpush1.bf16.msra.mxu0 %v1534
      %1580 = vmatprep.subr.bf16.mxu0 0
      %1581 = vmatpush1.bf16.msra.mxu0 %v1533
      %1582 = vmatprep.subr.bf16.mxu0 0
      %1583 = vmatpush1.bf16.msra.mxu0 %v1532
      %1584 = vmatprep.subr.bf16.mxu0 0
      %1585 = vmatpush1.bf16.msra.mxu0 %v1531
      %1586 = vmatprep.subr.bf16.mxu0 0
      %1587 = vmatpush1.bf16.msra.mxu0 %v1530
      %1588 = vmatprep.subr.bf16.mxu0 0
      %1589 = vmatpush1.bf16.msra.mxu0 %v1529
      %1590 = vmatprep.subr.bf16.mxu0 0
      %1591 = vmatpush1.bf16.msra.mxu0 %v1528
      %1592 = vmatprep.subr.bf16.mxu0 0
      %1593 = vmatpush2.bf16.msra.mxu0 %v1543
      %1594 = vmatprep.subr.bf16.mxu0 0
      %1595 = vmatpush2.bf16.msra.mxu0 %v1542
      %1596 = vmatprep.subr.bf16.mxu0 0
      %1597 = vmatpush2.bf16.msra.mxu0 %v1541
      %1598 = vmatprep.subr.bf16.mxu0 0
      %1599 = vmatpush2.bf16.msra.mxu0 %v1540
      %1600 = vmatprep.subr.bf16.mxu0 0
      %1601 = vmatpush2.bf16.msra.mxu0 %v1539
      %1602 = vmatprep.subr.bf16.mxu0 0
      %1603 = vmatpush2.bf16.msra.mxu0 %v1538
      %1604 = vmatprep.subr.bf16.mxu0 0
      %1605 = vmatpush2.bf16.msra.mxu0 %v1537
      %1606 = vmatprep.subr.bf16.mxu0 0
      %1607 = vmatpush2.bf16.msra.mxu0 %v1536
      %1608 = vmatprep.mubr.bf16.mxu0 %v1427
      %1609 = vmatmul.mubr.bf16.gmra.mxu0 %v1426
      %v1610 = vpop.f32.mrf.mxu0
      %v1611 = vadd.f32 0.0, %v1610
      %v1612 = vpop.f32.mrf.mxu0
      %v1613 = vpop.f32.mrf.mxu0
      %v1614 = vpop.f32.mrf.mxu0
      %1615 = vdwg.mxu0
      %1616 = vmatprep.subr.bf16.mxu0 0
      %1617 = vmatpush1.bf16.msra.mxu0 %v1551
      %1618 = vmatprep.subr.bf16.mxu0 0
      %1619 = vmatpush1.bf16.msra.mxu0 %v1550
      %1620 = vmatprep.subr.bf16.mxu0 0
      %1621 = vmatpush1.bf16.msra.mxu0 %v1549
      %1622 = vmatprep.subr.bf16.mxu0 0
      %1623 = vmatpush1.bf16.msra.mxu0 %v1548
      %1624 = vmatprep.subr.bf16.mxu0 0
      %1625 = vmatpush1.bf16.msra.mxu0 %v1547
      %1626 = vmatprep.subr.bf16.mxu0 0
      %1627 = vmatpush1.bf16.msra.mxu0 %v1546
      %1628 = vmatprep.subr.bf16.mxu0 0
      %1629 = vmatpush1.bf16.msra.mxu0 %v1545
      %1630 = vmatprep.subr.bf16.mxu0 0
      %1631 = vmatpush1.bf16.msra.mxu0 %v1544
      %1632 = vmatprep.subr.bf16.mxu0 0
      %1633 = vmatpush2.bf16.msra.mxu0 0
      %1634 = vmatprep.subr.bf16.mxu0 0
      %1635 = vmatpush2.bf16.msra.mxu0 0
      %1636 = vmatprep.subr.bf16.mxu0 0
      %1637 = vmatpush2.bf16.msra.mxu0 0
      %1638 = vmatprep.subr.bf16.mxu0 0
      %1639 = vmatpush2.bf16.msra.mxu0 0
      %1640 = vmatprep.subr.bf16.mxu0 0
      %1641 = vmatpush2.bf16.msra.mxu0 0
      %1642 = vmatprep.subr.bf16.mxu0 0
      %1643 = vmatpush2.bf16.msra.mxu0 0
      %1644 = vmatprep.subr.bf16.mxu0 0
      %1645 = vmatpush2.bf16.msra.mxu0 0
      %1646 = vmatprep.subr.bf16.mxu0 0
      %1647 = vmatpush2.bf16.msra.mxu0 0
      %1648 = vmatprep.mubr.bf16.mxu0 0
      %1649 = vmatmul.mubr.bf16.gmra.mxu0 %v1428
      %v1650 = vpop.f32.mrf.mxu0
      %v1651 = vadd.f32 %v1611, %v1650
      %v1652 = vpop.f32.mrf.mxu0
      %v1653 = vpop.f32.mrf.mxu0
      %v1654 = vpop.f32.mrf.mxu0
      %1655 = vdwg.mxu0
      %v1656 = vadd.f32 %v1364, %v1651
      %vm1657 = vcmp.ge.f32.partialorder %v1656, 0.0
      %v1658 = vmul.f32 %v1656, 0.01
      %v1659 = vsel %vm1657, %v1656, %v1658
      %1660 = vst [vmem:[%s168] sm:$0xff] %v1659
      %p1661 = scmp.lt.s32.totalorder %s14, 1
      %s1662 = scalar_select %p1661, %s14, 1
      %s1663 = smul.addr %s1662, 8
      %s1664 = scalar_lea.vmem %s3, %s1663
      // Predicated region
      $region33: #{forward.6} parent=31 // pred_check
        %p1665 = pneg %p100
      $region34: #{forward.6} parent=31 // pred_check_branch
        %1667 = sbr.rel (%p1665) target = $region36
      $region35: #{forward.6} parent=31 // pred_region
        _
      $region36: #{forward.6} parent=31 // pred_fallthru
        _
    $region32: #{forward.6} parent=5 // pred_fallthru
      _
    %p1668 = scmp.le.s32.totalorder 2, %s9
    // Predicated region
    $region37: #{forward.6} parent=5 // pred_check
      %p1669 = pneg %p1668
    $region38: #{forward.6} parent=5 // pred_check_branch
      %1671 = sbr.rel (%p1669) target = $region40
    $region39: #{forward.6} parent=5 // pred_region
      %s1672 = ssub.s32 %s9, 2
      // Predicated region
      $region41: #{forward.6} parent=39 // pred_check
        %p1673 = pneg %p106
      $region42: #{forward.6} parent=39 // pred_check_branch
        %1675 = sbr.rel (%p1673) target = $region44
      $region43: #{forward.6} parent=39 // pred_region
        %p1676 = scmp.lt.s32.totalorder %s15, 1
        %s1677 = scalar_select %p1676, %s15, 1
        %s1678 = smul.addr %s1677, 8
        %s1679 = scalar_lea.vmem %s3, %s1678
      $region44: #{forward.6} parent=39 // pred_fallthru
        _
    $region40: #{forward.6} parent=5 // pred_fallthru
      _
  $region6: #{forward.6} parent=0 // loop_footer
    %s13 = sadd.s32 1, %s9
  $region7: #{forward.6} parent=0 // loop_footer_branch
    %8 = sbr.rel target = $region3
  $region8: #{forward.6} parent=0 // loop_exit
    _

// kernel: tile.28
$region0: #{tile.28}
  #allocation0 [shape = 's32[1]{0}', space=sflag, size = 0x4, scoped, tag = 'scoped memory for tile.28']
  %s0 = inlined_call_operand.vmem [shape: f32[8], index: 0, kind: input, shape index: {}]
  %s1 = inlined_call_operand.vmem [shape: f32[16,8], index: 1, kind: output, shape index: {}]
  // Predicated region
  $region2: #{tile.28} parent=0 // pred_check
    _
  $region3: #{tile.28} parent=0 // pred_check_branch
    %3 = sbr.rel (0) target = $region5
  $region4: #{tile.28} parent=0 // pred_region
    _
  $region5: #{tile.28} parent=0 // pred_fallthru
    _
  %v4 = vld [vmem:[%s0] ss:$0 sm:$0xff]
  %5 = vst [vmem:[%s1] sm:$0xff] %v4
  %s6 = scalar_lea.vmem %s1, 8
  %7 = vst [vmem:[%s6] sm:$0xff] %v4

// kernel: tile.29
$region0: #{tile.29}
  %s0 = inlined_call_operand.vmem [shape: f32[16,8], index: 0, kind: input, shape index: {}]
  %s1 = inlined_call_operand.vmem [shape: f32[1,128], index: 1, kind: output, shape index: {}]
  $region1: #{tile.29} parent=0
    #allocation0 [shape = 'u8[4096]{0}', space=vmem, size = 0x1000, scoped, tag = 'scoped mem for output reshape']
    %v2 = vld [vmem:[%s0] sm:$0x1]
    %vm3 = vcmask 64512
    %4 = vst.msk [vmem:[#allocation0] sm:$0x1] %vm3, %v2
    %s5 = scalar_lea.vmem %s0, 15
    %v6 = vld [vmem:[%s5] sm:$0x1]
    %7 = vrot.lane.b32.xlu0 %v6, 120
    %v8 = vpop.permute.xlu0 %7
    %vm9 = vcmask 1048512
    %10 = vst.msk [vmem:[#allocation0] sm:$0x1] %vm9, %v8
    %s11 = scalar_lea.vmem %s0, 14
    %v12 = vld [vmem:[%s11] sm:$0x1]
    %13 = vrot.lane.b32.xlu0 %v12, 112
    %v14 = vpop.permute.xlu0 %13
    %vm15 = vcmask 982912
    %16 = vst.msk [vmem:[#allocation0] sm:$0x1] %vm15, %v14
    %s17 = scalar_lea.vmem %s0, 13
    %v18 = vld [vmem:[%s17] sm:$0x1]
    %19 = vrot.lane.b32.xlu0 %v18, 104
    %v20 = vpop.permute.xlu0 %19
    %vm21 = vcmask 917312
    %22 = vst.msk [vmem:[#allocation0] sm:$0x1] %vm21, %v20
    %s23 = scalar_lea.vmem %s0, 12
    %v24 = vld [vmem:[%s23] sm:$0x1]
    %25 = vrot.lane.b32.xlu0 %v24, 96
    %v26 = vpop.permute.xlu0 %25
    %vm27 = vcmask 851712
    %28 = vst.msk [vmem:[#allocation0] sm:$0x1] %vm27, %v26
    %s29 = scalar_lea.vmem %s0, 11
    %v30 = vld [vmem:[%s29] sm:$0x1]
    %31 = vrot.lane.b32.xlu0 %v30, 88
    %v32 = vpop.permute.xlu0 %31
    %vm33 = vcmask 786112
    %34 = vst.msk [vmem:[#allocation0] sm:$0x1] %vm33, %v32
    %s35 = scalar_lea.vmem %s0, 10
    %v36 = vld [vmem:[%s35] sm:$0x1]
    %37 = vrot.lane.b32.xlu0 %v36, 80
    %v38 = vpop.permute.xlu0 %37
    %vm39 = vcmask 720512
    %40 = vst.msk [vmem:[#allocation0] sm:$0x1] %vm39, %v38
    %s41 = scalar_lea.vmem %s0, 9
    %v42 = vld [vmem:[%s41] sm:$0x1]
    %43 = vrot.lane.b32.xlu0 %v42, 72
    %v44 = vpop.permute.xlu0 %43
    %vm45 = vcmask 654912
    %46 = vst.msk [vmem:[#allocation0] sm:$0x1] %vm45, %v44
    %s47 = scalar_lea.vmem %s0, 8
    %v48 = vld [vmem:[%s47] sm:$0x1]
    %49 = vrot.lane.b32.xlu0 %v48, 64
    %v50 = vpop.permute.xlu0 %49
    %vm51 = vcmask 589312
    %52 = vst.msk [vmem:[#allocation0] sm:$0x1] %vm51, %v50
    %s53 = scalar_lea.vmem %s0, 7
    %v54 = vld [vmem:[%s53] sm:$0x1]
    %55 = vrot.lane.b32.xlu0 %v54, 56
    %v56 = vpop.permute.xlu0 %55
    %vm57 = vcmask 523712
    %58 = vst.msk [vmem:[#allocation0] sm:$0x1] %vm57, %v56
    %s59 = scalar_lea.vmem %s0, 6
    %v60 = vld [vmem:[%s59] sm:$0x1]
    %61 = vrot.lane.b32.xlu0 %v60, 48
    %v62 = vpop.permute.xlu0 %61
    %vm63 = vcmask 458112
    %64 = vst.msk [vmem:[#allocation0] sm:$0x1] %vm63, %v62
    %s65 = scalar_lea.vmem %s0, 5
    %v66 = vld [vmem:[%s65] sm:$0x1]
    %67 = vrot.lane.b32.xlu0 %v66, 40
    %v68 = vpop.permute.xlu0 %67
    %vm69 = vcmask 392512
    %70 = vst.msk [vmem:[#allocation0] sm:$0x1] %vm69, %v68
    %s71 = scalar_lea.vmem %s0, 4
    %v72 = vld [vmem:[%s71] sm:$0x1]
    %73 = vrot.lane.b32.xlu0 %v72, 32
    %v74 = vpop.permute.xlu0 %73
    %vm75 = vcmask 326912
    %76 = vst.msk [vmem:[#allocation0] sm:$0x1] %vm75, %v74
    %s77 = scalar_lea.vmem %s0, 3
    %v78 = vld [vmem:[%s77] sm:$0x1]
    %79 = vrot.lane.b32.xlu0 %v78, 24
    %v80 = vpop.permute.xlu0 %79
    %vm81 = vcmask 261312
    %82 = vst.msk [vmem:[#allocation0] sm:$0x1] %vm81, %v80
    %s83 = scalar_lea.vmem %s0, 2
    %v84 = vld [vmem:[%s83] sm:$0x1]
    %85 = vrot.lane.b32.xlu0 %v84, 16
    %v86 = vpop.permute.xlu0 %85
    %vm87 = vcmask 195712
    %88 = vst.msk [vmem:[#allocation0] sm:$0x1] %vm87, %v86
    %s89 = scalar_lea.vmem %s0, 1
    %v90 = vld [vmem:[%s89] sm:$0x1]
    %91 = vrot.lane.b32.xlu0 %v90, 8
    %v92 = vpop.permute.xlu0 %91
    %vm93 = vcmask 130112
    %94 = vst.msk [vmem:[#allocation0] sm:$0x1] %vm93, %v92
    %s96 = sshll.u32 1, 1
    %s97 = ssub.s32 %s96, 1
    %v99 = vld [vmem:[#allocation0] sm:%s97]
    %s100 = sshll.u32 1, 1
    %s101 = ssub.s32 %s100, 1
    %102 = vst [vmem:[%s1] sm:%s101] %v99

// kernel: forward.7
$region0: #{forward.7}
  #allocation0 [shape = 'u32[]', space=smem, size = 0x4, offset = 0x4, fixed_abs, tag = 'smem constant byte address 0x4 - core index']
  #allocation1 [shape = 'u32[144,128]{1,0:T(1,128)}', space=vmem, size = 0x12000, scoped, tag = 'internal scratch']
  %s0 = inlined_call_operand.vmem [shape: f32[2,20,320], index: 0, kind: input, shape index: {}]
  %s1 = inlined_call_operand.vmem [shape: bf16[5,320,128], index: 1, kind: input, shape index: {}]
  %s2 = inlined_call_operand.vmem [shape: f32[1,128], index: 2, kind: input, shape index: {}]
  %s3 = inlined_call_operand.vmem [shape: f32[2,16,128], index: 3, kind: output, shape index: {}]
  %s4 = sld [smem:[#allocation0]]
  $region45: #{forward.7} parent=0
    _
  %s6 = ssub.s32 1, %s4
  %s7 = scalar_select 0, %s6, %s4
  loop: start=0, step=1, limit=4
  $region2: #{forward.7} parent=0 // loop_pre_header
    _
  $region3: #{forward.7} parent=0 // loop_header
    %s9 = sphi 0, %s13
    %p10 = scmp.ge.s32.totalorder %s9, 4
    %s19 = sphi 0, %s21
    %s22 = sphi 0, %s19
    %s23 = sphi 0, %s22
    %s39 = sphi 0, %s23
    %s43 = sphi 0, %s43
    %s45 = sphi 0, %s43
    %s46 = sphi 0, %s45
    %s60 = sphi 0, %s46
    %s64 = sphi 0, %s64
    %s66 = sphi 0, %s64
    %s67 = sphi 0, %s66
    %s81 = sphi 0, %s67
    %s87 = sphi 0, %s89
    %s90 = sphi 0, %s87
    %s91 = sphi 0, %s90
    %s107 = sphi 0, %s91
  $region4: #{forward.7} parent=0 // loop_header_branch
    %12 = sbr.rel (%p10) target = $region8
  $region5: #{forward.7} parent=0 // loop_body
    %s14 = ssub.s32 %s9, 1
    %s15 = ssub.s32 %s9, 2
    %s16 = sadd.s32 %s9, 1
    %s17 = ssub.s32 %s9, %s16
    %p18 = scmp.eq.s32.totalorder %s17, 0
    %s20 = sadd.s32 %s19, 1
    %s21 = scalar_select %p18, %s19, %s20
    %p24 = pneg %p18
    %p25 = scmp.eq.s32.totalorder %s9, 1
    %p26 = por %p24, %p25
    %p27 = scmp.ne.s32.totalorder %s19, %s22
    %p28 = scmp.eq.s32.totalorder %s9, 0
    %p29 = por %p27, %p28
    %p30 = scmp.ne.s32.totalorder %s19, %s22
    %p31 = scmp.eq.s32.totalorder %s14, 1
    %p32 = por %p30, %p31
    %p33 = scmp.ne.s32.totalorder %s22, %s23
    %p34 = scmp.eq.s32.totalorder %s14, 0
    %p35 = por %p33, %p34
    %p36 = scmp.ne.s32.totalorder %s22, %s23
    %p37 = scmp.eq.s32.totalorder %s15, 1
    %p38 = por %p36, %p37
    %p40 = scmp.ne.s32.totalorder %s23, %s39
    %p41 = scmp.eq.s32.totalorder %s15, 0
    %p42 = por %p40, %p41
    %s44 = sadd.s32 %s43, 1
    %p47 = scmp.eq.s32.totalorder %s9, 1
    %p48 = scmp.ne.s32.totalorder %s43, %s45
    %p49 = scmp.eq.s32.totalorder %s9, 0
    %p50 = por %p48, %p49
    %p51 = scmp.ne.s32.totalorder %s43, %s45
    %p52 = scmp.eq.s32.totalorder %s14, 1
    %p53 = por %p51, %p52
    %p54 = scmp.ne.s32.totalorder %s45, %s46
    %p55 = scmp.eq.s32.totalorder %s14, 0
    %p56 = por %p54, %p55
    %p57 = scmp.ne.s32.totalorder %s45, %s46
    %p58 = scmp.eq.s32.totalorder %s15, 1
    %p59 = por %p57, %p58
    %p61 = scmp.ne.s32.totalorder %s46, %s60
    %p62 = scmp.eq.s32.totalorder %s15, 0
    %p63 = por %p61, %p62
    %s65 = sadd.s32 %s64, 1
    %p68 = scmp.eq.s32.totalorder %s9, 1
    %p69 = scmp.ne.s32.totalorder %s64, %s66
    %p70 = scmp.eq.s32.totalorder %s9, 0
    %p71 = por %p69, %p70
    %p72 = scmp.ne.s32.totalorder %s64, %s66
    %p73 = scmp.eq.s32.totalorder %s14, 1
    %p74 = por %p72, %p73
    %p75 = scmp.ne.s32.totalorder %s66, %s67
    %p76 = scmp.eq.s32.totalorder %s14, 0
    %p77 = por %p75, %p76
    %p78 = scmp.ne.s32.totalorder %s66, %s67
    %p79 = scmp.eq.s32.totalorder %s15, 1
    %p80 = por %p78, %p79
    %p82 = scmp.ne.s32.totalorder %s67, %s81
    %p83 = scmp.eq.s32.totalorder %s15, 0
    %p84 = por %p82, %p83
    %s85 = ssub.s32 %s9, %s16
    %p86 = scmp.eq.s32.totalorder %s85, 0
    %s88 = sadd.s32 %s87, 1
    %s89 = scalar_select %p86, %s87, %s88
    %p92 = pneg %p86
    %p93 = scmp.eq.s32.totalorder %s9, 1
    %p94 = por %p92, %p93
    %p95 = scmp.ne.s32.totalorder %s87, %s90
    %p96 = scmp.eq.s32.totalorder %s9, 0
    %p97 = por %p95, %p96
    %p98 = scmp.ne.s32.totalorder %s87, %s90
    %p99 = scmp.eq.s32.totalorder %s14, 1
    %p100 = por %p98, %p99
    %p101 = scmp.ne.s32.totalorder %s90, %s91
    %p102 = scmp.eq.s32.totalorder %s14, 0
    %p103 = por %p101, %p102
    %p104 = scmp.ne.s32.totalorder %s90, %s91
    %p105 = scmp.eq.s32.totalorder %s15, 1
    %p106 = por %p104, %p105
    %p108 = scmp.ne.s32.totalorder %s91, %s107
    %p109 = scmp.eq.s32.totalorder %s15, 0
    %p110 = por %p108, %p109
    %p111 = scmp.le.s32.totalorder 1, %s9
    %p112 = scmp.lt.s32.totalorder %s9, 3
    %p113 = pnand %p111, %p112
    %p114 = pneg %p113
    // Predicated region
    $region9: #{forward.7} parent=5 // pred_check
      _
    $region10: #{forward.7} parent=5 // pred_check_branch
      %116 = sbr.rel (%p113) target = $region12
    $region11: #{forward.7} parent=5 // pred_region
      %s117 = ssub.s32 %s9, 1
      // Predicated region
      $region13: #{forward.7} parent=11 // pred_check
        %p118 = pneg %p56
      $region14: #{forward.7} parent=11 // pred_check_branch
        %120 = sbr.rel (%p118) target = $region16
      $region15: #{forward.7} parent=11 // pred_region
        _
      $region16: #{forward.7} parent=11 // pred_fallthru
        _
      // Predicated region
      $region17: #{forward.7} parent=11 // pred_check
        %p121 = pneg %p77
      $region18: #{forward.7} parent=11 // pred_check_branch
        %123 = sbr.rel (%p121) target = $region20
      $region19: #{forward.7} parent=11 // pred_region
        _
      $region20: #{forward.7} parent=11 // pred_fallthru
        _
    $region12: #{forward.7} parent=5 // pred_fallthru
      _
    %p124 = scmp.lt.s32.totalorder %s9, 2
    // Predicated region
    $region21: #{forward.7} parent=5 // pred_check
      %p125 = pneg %p124
    $region22: #{forward.7} parent=5 // pred_check_branch
      %127 = sbr.rel (%p125) target = $region24
    $region23: #{forward.7} parent=5 // pred_region
      // Predicated region
      $region25: #{forward.7} parent=23 // pred_check
        %p128 = pneg %p29
      $region26: #{forward.7} parent=23 // pred_check_branch
        %130 = sbr.rel (%p128) target = $region28
      $region27: #{forward.7} parent=23 // pred_region
        %p131 = scmp.lt.s32.totalorder %s9, 1
        %s132 = scalar_select %p131, %s9, 1
        %s133 = smul.addr %s132, 9
        %s134 = smul.addr %s133, 8
        %s135 = scalar_lea.vmem %s0, %s134
      $region28: #{forward.7} parent=23 // pred_fallthru
        _
    $region24: #{forward.7} parent=5 // pred_fallthru
      _
    %p136 = scmp.le.s32.totalorder 1, %s9
    %p137 = scmp.lt.s32.totalorder %s9, 3
    %p138 = pnand %p136, %p137
    %p139 = pneg %p138
    // Predicated region
    $region29: #{forward.7} parent=5 // pred_check
      _
    $region30: #{forward.7} parent=5 // pred_check_branch
      %141 = sbr.rel (%p138) target = $region32
    $region31: #{forward.7} parent=5 // pred_region
      %s142 = ssub.s32 %s9, 1
      %p143 = scmp.lt.s32.totalorder %s14, 1
      %s144 = scalar_select %p143, %s14, 1
      %s145 = smul.addr %s144, 9
      %s146 = smul.addr %s145, 8
      %s147 = scalar_lea.vmem %s0, %s146
      %p148 = pneg %p35
      %p149 = pneg %p32
      %p150 = pneg %p56
      %p151 = pneg %p53
      %p152 = pneg %p77
      %p153 = pneg %p74
      %p154 = pneg %p103
      %p155 = pneg %p100
      %p156 = scmp.lt.s32.totalorder %s14, 1
      %s157 = scalar_select %p156, %s14, 1
      %s158 = smul.addr %s157, 2
      %s159 = smul.addr %s158, 8
      %s160 = scalar_lea.vmem %s3, %s159
      %p161 = scmp.lt.s32.totalorder %s14, 1
      %s162 = scalar_select %p161, %s14, 1
      %s163 = smul.addr %s162, 9
      %s164 = smul.addr %s163, 8
      %s165 = scalar_lea.vmem %s0, %s164
      %p166 = scmp.lt.s32.totalorder %s14, 1
      %s167 = scalar_select %p166, %s14, 1
      %s168 = smul.addr %s167, 2
      %s169 = smul.addr %s168, 8
      %s170 = scalar_lea.vmem %s3, %s169
      %v172 = vld [vmem:[%s2] sm:$0x1]
      %v174 = vlaneseq
      %v175 = vshrl.u32 %v174, 7
      %v176 = vsub.s32 0, %v175
      %v177 = vrot.slane %v172, %v176
      %v179 = vld [vmem:[%s165] sm:$0xff]
      %v180 = vld [vmem:[%s165 + $0x8] sm:$0xff]
      %v181 = vld [vmem:[%s165 + $0x10] sm:$0xff]
      %v182 = vld [vmem:[%s165 + $0x18] sm:$0xff]
      %v183 = vld [vmem:[%s165 + $0x20] sm:$0xff]
      %v184 = vld [vmem:[%s165 + $0x28] sm:$0xff]
      %v185 = vpack.c.bf16 %v182, %v179
      %v186 = vpack.c.bf16 %v183, %v180
      %v187 = vpack.c.bf16 %v184, %v181
      %v188 = vld [vmem:[%s1] sm:$0xf]
      %v189 = vld [vmem:[%s1 + $0x4] sm:$0xf]
      %v190 = vld [vmem:[%s1 + $0x8] sm:$0xf]
      %v191 = vld [vmem:[%s1 + $0xc] sm:$0xf]
      %v192 = vld [vmem:[%s1 + $0x10] sm:$0xf]
      %v193 = vld [vmem:[%s1 + $0x14] sm:$0xf]
      %v194 = vld [vmem:[%s1 + $0x18] sm:$0xf]
      %v195 = vld [vmem:[%s1 + $0x1c] sm:$0xf]
      %v196 = vld [vmem:[%s1 + $0x20] sm:$0xf]
      %v197 = vld [vmem:[%s1 + $0x24] sm:$0xf]
      %v198 = vld [vmem:[%s1 + $0x28] sm:$0xf]
      %v199 = vld [vmem:[%s1 + $0x2c] sm:$0xf]
      %v200 = vld [vmem:[%s1 + $0x30] sm:$0xf]
      %v201 = vld [vmem:[%s1 + $0x34] sm:$0xf]
      %v202 = vld [vmem:[%s1 + $0x38] sm:$0xf]
      %v203 = vld [vmem:[%s1 + $0x3c] sm:$0xf]
      %v204 = vld [vmem:[%s1 + $0x40] sm:$0xf]
      %v205 = vld [vmem:[%s1 + $0x44] sm:$0xf]
      %v206 = vld [vmem:[%s1 + $0x48] sm:$0xf]
      %v207 = vld [vmem:[%s1 + $0x4c] sm:$0xf]
      %v208 = vld [vmem:[%s1 + $0x50] sm:$0xf]
      %v209 = vld [vmem:[%s1 + $0x54] sm:$0xf]
      %v210 = vld [vmem:[%s1 + $0x58] sm:$0xf]
      %v211 = vld [vmem:[%s1 + $0x5c] sm:$0xf]
      %v212 = vld [vmem:[%s1 + $0x60] sm:$0xf]
      %v213 = vld [vmem:[%s1 + $0x64] sm:$0xf]
      %v214 = vld [vmem:[%s1 + $0x68] sm:$0xf]
      %v215 = vld [vmem:[%s1 + $0x6c] sm:$0xf]
      %v216 = vld [vmem:[%s1 + $0x70] sm:$0xf]
      %v217 = vld [vmem:[%s1 + $0x74] sm:$0xf]
      %v218 = vld [vmem:[%s1 + $0x78] sm:$0xf]
      %v219 = vld [vmem:[%s1 + $0x7c] sm:$0xf]
      %v220 = vld [vmem:[%s1 + $0x80] sm:$0xf]
      %v221 = vld [vmem:[%s1 + $0x84] sm:$0xf]
      %v222 = vld [vmem:[%s1 + $0x88] sm:$0xf]
      %v223 = vld [vmem:[%s1 + $0x8c] sm:$0xf]
      %v224 = vld [vmem:[%s1 + $0x90] sm:$0xf]
      %v225 = vld [vmem:[%s1 + $0x94] sm:$0xf]
      %v226 = vld [vmem:[%s1 + $0x98] sm:$0xf]
      %v227 = vld [vmem:[%s1 + $0x9c] sm:$0xf]
      %v268 = vunpack.c.l.b16 %v188
      %v269 = vunpack.c.l.b16 %v189
      %v270 = vunpack.c.l.b16 %v190
      %v271 = vunpack.c.l.b16 %v191
      %v272 = vunpack.c.l.b16 %v192
      %v273 = vunpack.c.l.b16 %v193
      %v274 = vunpack.c.l.b16 %v194
      %v275 = vunpack.c.l.b16 %v195
      %v276 = vunpack.c.l.b16 %v196
      %v277 = vunpack.c.l.b16 %v197
      %v278 = vunpack.c.l.b16 %v198
      %v279 = vunpack.c.l.b16 %v199
      %v280 = vunpack.c.l.b16 %v200
      %v281 = vunpack.c.l.b16 %v201
      %v282 = vunpack.c.l.b16 %v202
      %v283 = vunpack.c.l.b16 %v203
      %v284 = vunpack.c.l.b16 %v204
      %v285 = vunpack.c.l.b16 %v205
      %v286 = vunpack.c.l.b16 %v206
      %v287 = vunpack.c.l.b16 %v207
      %v288 = vunpack.c.l.b16 %v208
      %v289 = vunpack.c.l.b16 %v209
      %v290 = vunpack.c.l.b16 %v210
      %v291 = vunpack.c.l.b16 %v211
      %v292 = vunpack.c.l.b16 %v212
      %v293 = vunpack.c.l.b16 %v213
      %v294 = vunpack.c.l.b16 %v214
      %v295 = vunpack.c.l.b16 %v215
      %v296 = vunpack.c.l.b16 %v216
      %v297 = vunpack.c.l.b16 %v217
      %v298 = vunpack.c.l.b16 %v218
      %v299 = vunpack.c.l.b16 %v219
      %v300 = vunpack.c.l.b16 %v220
      %v301 = vunpack.c.l.b16 %v221
      %v302 = vunpack.c.l.b16 %v222
      %v303 = vunpack.c.l.b16 %v223
      %v304 = vunpack.c.l.b16 %v224
      %v305 = vunpack.c.l.b16 %v225
      %v306 = vunpack.c.l.b16 %v226
      %v307 = vunpack.c.l.b16 %v227
      %v308 = vpack.c.b16 %v269, %v268
      %v309 = vpack.c.b16 %v271, %v270
      %v310 = vpack.c.b16 %v273, %v272
      %v311 = vpack.c.b16 %v275, %v274
      %v312 = vpack.c.b16 %v277, %v276
      %v313 = vpack.c.b16 %v279, %v278
      %v314 = vpack.c.b16 %v281, %v280
      %v315 = vpack.c.b16 %v283, %v282
      %v316 = vpack.c.b16 %v285, %v284
      %v317 = vpack.c.b16 %v287, %v286
      %v318 = vpack.c.b16 %v289, %v288
      %v319 = vpack.c.b16 %v291, %v290
      %v320 = vpack.c.b16 %v293, %v292
      %v321 = vpack.c.b16 %v295, %v294
      %v322 = vpack.c.b16 %v297, %v296
      %v323 = vpack.c.b16 %v299, %v298
      %v324 = vpack.c.b16 %v301, %v300
      %v325 = vpack.c.b16 %v303, %v302
      %v326 = vpack.c.b16 %v305, %v304
      %v327 = vpack.c.b16 %v307, %v306
      %vm348 = vcmask 523264
      %v350 = vsel %vm348, %v187, 0
      %352 = vmatprep.subr.bf16.mxu0 0
      %353 = vmatpush1.bf16.msra.mxu0 %v315
      %354 = vmatprep.subr.bf16.mxu0 0
      %355 = vmatpush1.bf16.msra.mxu0 %v314
      %356 = vmatprep.subr.bf16.mxu0 0
      %357 = vmatpush1.bf16.msra.mxu0 %v313
      %358 = vmatprep.subr.bf16.mxu0 0
      %359 = vmatpush1.bf16.msra.mxu0 %v312
      %360 = vmatprep.subr.bf16.mxu0 0
      %361 = vmatpush1.bf16.msra.mxu0 %v311
      %362 = vmatprep.subr.bf16.mxu0 0
      %363 = vmatpush1.bf16.msra.mxu0 %v310
      %364 = vmatprep.subr.bf16.mxu0 0
      %365 = vmatpush1.bf16.msra.mxu0 %v309
      %366 = vmatprep.subr.bf16.mxu0 0
      %367 = vmatpush1.bf16.msra.mxu0 %v308
      %368 = vmatprep.subr.bf16.mxu0 0
      %369 = vmatpush2.bf16.msra.mxu0 %v323
      %370 = vmatprep.subr.bf16.mxu0 0
      %371 = vmatpush2.bf16.msra.mxu0 %v322
      %372 = vmatprep.subr.bf16.mxu0 0
      %373 = vmatpush2.bf16.msra.mxu0 %v321
      %374 = vmatprep.subr.bf16.mxu0 0
      %375 = vmatpush2.bf16.msra.mxu0 %v320
      %376 = vmatprep.subr.bf16.mxu0 0
      %377 = vmatpush2.bf16.msra.mxu0 %v319
      %378 = vmatprep.subr.bf16.mxu0 0
      %379 = vmatpush2.bf16.msra.mxu0 %v318
      %380 = vmatprep.subr.bf16.mxu0 0
      %381 = vmatpush2.bf16.msra.mxu0 %v317
      %382 = vmatprep.subr.bf16.mxu0 0
      %383 = vmatpush2.bf16.msra.mxu0 %v316
      %384 = vmatprep.mubr.bf16.mxu0 %v186
      %385 = vmatmul.mubr.bf16.gmra.mxu0 %v185
      %v386 = vpop.f32.mrf.mxu0
      %v387 = vadd.f32 0.0, %v386
      %v388 = vpop.f32.mrf.mxu0
      %v389 = vpop.f32.mrf.mxu0
      %v390 = vadd.f32 0.0, %v389
      %v391 = vpop.f32.mrf.mxu0
      %392 = vdwg.mxu0
      %393 = vmatprep.subr.bf16.mxu0 0
      %394 = vmatpush1.bf16.msra.mxu0 0
      %395 = vmatprep.subr.bf16.mxu0 0
      %396 = vmatpush1.bf16.msra.mxu0 0
      %397 = vmatprep.subr.bf16.mxu0 0
      %398 = vmatpush1.bf16.msra.mxu0 0
      %399 = vmatprep.subr.bf16.mxu0 0
      %400 = vmatpush1.bf16.msra.mxu0 0
      %401 = vmatprep.subr.bf16.mxu0 0
      %402 = vmatpush1.bf16.msra.mxu0 %v327
      %403 = vmatprep.subr.bf16.mxu0 0
      %404 = vmatpush1.bf16.msra.mxu0 %v326
      %405 = vmatprep.subr.bf16.mxu0 0
      %406 = vmatpush1.bf16.msra.mxu0 %v325
      %407 = vmatprep.subr.bf16.mxu0 0
      %408 = vmatpush1.bf16.msra.mxu0 %v324
      %409 = vmatprep.subr.bf16.mxu0 0
      %410 = vmatpush2.bf16.msra.mxu0 0
      %411 = vmatprep.subr.bf16.mxu0 0
      %412 = vmatpush2.bf16.msra.mxu0 0
      %413 = vmatprep.subr.bf16.mxu0 0
      %414 = vmatpush2.bf16.msra.mxu0 0
      %415 = vmatprep.subr.bf16.mxu0 0
      %416 = vmatpush2.bf16.msra.mxu0 0
      %417 = vmatprep.subr.bf16.mxu0 0
      %418 = vmatpush2.bf16.msra.mxu0 0
      %419 = vmatprep.subr.bf16.mxu0 0
      %420 = vmatpush2.bf16.msra.mxu0 0
      %421 = vmatprep.subr.bf16.mxu0 0
      %422 = vmatpush2.bf16.msra.mxu0 0
      %423 = vmatprep.subr.bf16.mxu0 0
      %424 = vmatpush2.bf16.msra.mxu0 0
      %425 = vmatprep.mubr.bf16.mxu0 0
      %426 = vmatmul.mubr.bf16.gmra.mxu0 %v350
      %v427 = vpop.f32.mrf.mxu0
      %v428 = vadd.f32 %v387, %v427
      %v429 = vpop.f32.mrf.mxu0
      %v430 = vpop.f32.mrf.mxu0
      %v431 = vadd.f32 %v390, %v430
      %v432 = vpop.f32.mrf.mxu0
      %433 = vdwg.mxu0
      %v434 = vadd.f32 %v177, %v428
      %v435 = vadd.f32 %v177, %v431
      %v436 = vld [vmem:[%s165] sm:$0xfe]
      %v437 = vld [vmem:[%s165 + $0x8] sm:$0xfe]
      %v438 = vld [vmem:[%s165 + $0x10] sm:$0xfe]
      %v439 = vld [vmem:[%s165 + $0x18] sm:$0xff]
      %v440 = vld [vmem:[%s165 + $0x20] sm:$0xff]
      %v441 = vld [vmem:[%s165 + $0x28] sm:$0xff]
      %v442 = vld [vmem:[%s165 + $0x30] sm:$0x1]
      %v443 = vld [vmem:[%s165 + $0x38] sm:$0x1]
      %v444 = vld [vmem:[%s165 + $0x40] sm:$0x1]
      %v445 = vpack.c.bf16 %v439, %v436
      %v446 = vpack.c.bf16 %v440, %v437
      %v447 = vpack.c.bf16 %v441, %v438
      %v448 = vpack.c.bf16 %v442, %v442
      %v449 = vpack.c.bf16 %v443, %v443
      %v450 = vpack.c.bf16 %v444, %v444
      %s451 = scalar_lea.vmem %s1, 160
      %v452 = vld [vmem:[%s451] sm:$0xf]
      %v453 = vld [vmem:[%s451 + $0x4] sm:$0xf]
      %v454 = vld [vmem:[%s451 + $0x8] sm:$0xf]
      %v455 = vld [vmem:[%s451 + $0xc] sm:$0xf]
      %v456 = vld [vmem:[%s451 + $0x10] sm:$0xf]
      %v457 = vld [vmem:[%s451 + $0x14] sm:$0xf]
      %v458 = vld [vmem:[%s451 + $0x18] sm:$0xf]
      %v459 = vld [vmem:[%s451 + $0x1c] sm:$0xf]
      %v460 = vld [vmem:[%s451 + $0x20] sm:$0xf]
      %v461 = vld [vmem:[%s451 + $0x24] sm:$0xf]
      %v462 = vld [vmem:[%s451 + $0x28] sm:$0xf]
      %v463 = vld [vmem:[%s451 + $0x2c] sm:$0xf]
      %v464 = vld [vmem:[%s451 + $0x30] sm:$0xf]
      %v465 = vld [vmem:[%s451 + $0x34] sm:$0xf]
      %v466 = vld [vmem:[%s451 + $0x38] sm:$0xf]
      %v467 = vld [vmem:[%s451 + $0x3c] sm:$0xf]
      %v468 = vld [vmem:[%s451 + $0x40] sm:$0xf]
      %v469 = vld [vmem:[%s451 + $0x44] sm:$0xf]
      %v470 = vld [vmem:[%s451 + $0x48] sm:$0xf]
      %v471 = vld [vmem:[%s451 + $0x4c] sm:$0xf]
      %v472 = vld [vmem:[%s451 + $0x50] sm:$0xf]
      %v473 = vld [vmem:[%s451 + $0x54] sm:$0xf]
      %v474 = vld [vmem:[%s451 + $0x58] sm:$0xf]
      %v475 = vld [vmem:[%s451 + $0x5c] sm:$0xf]
      %v476 = vld [vmem:[%s451 + $0x60] sm:$0xf]
      %v477 = vld [vmem:[%s451 + $0x64] sm:$0xf]
      %v478 = vld [vmem:[%s451 + $0x68] sm:$0xf]
      %v479 = vld [vmem:[%s451 + $0x6c] sm:$0xf]
      %v480 = vld [vmem:[%s451 + $0x70] sm:$0xf]
      %v481 = vld [vmem:[%s451 + $0x74] sm:$0xf]
      %v482 = vld [vmem:[%s451 + $0x78] sm:$0xf]
      %v483 = vld [vmem:[%s451 + $0x7c] sm:$0xf]
      %v484 = vld [vmem:[%s451 + $0x80] sm:$0xf]
      %v485 = vld [vmem:[%s451 + $0x84] sm:$0xf]
      %v486 = vld [vmem:[%s451 + $0x88] sm:$0xf]
      %v487 = vld [vmem:[%s451 + $0x8c] sm:$0xf]
      %v488 = vld [vmem:[%s451 + $0x90] sm:$0xf]
      %v489 = vld [vmem:[%s451 + $0x94] sm:$0xf]
      %v490 = vld [vmem:[%s451 + $0x98] sm:$0xf]
      %v491 = vld [vmem:[%s451 + $0x9c] sm:$0xf]
      %vm492 = vsmask.f32 7424
      %v494 = vshrl.u32 %v445, 16
      %v496 = vshll.u32 %v445, 16
      %v498 = vrot.slane %v496, 1
      %v499 = vor.u32 %v494, %v498
      %v501 = vshll.u32 %v448, 16
      %v503 = vrot.slane %v501, 1
      %v504 = vsel %vm492, %v499, %v503
      %v506 = vshrl.u32 %v446, 16
      %v508 = vshll.u32 %v446, 16
      %v510 = vrot.slane %v508, 1
      %v511 = vor.u32 %v506, %v510
      %v513 = vshll.u32 %v449, 16
      %v515 = vrot.slane %v513, 1
      %v516 = vsel %vm492, %v511, %v515
      %v518 = vshrl.u32 %v447, 16
      %v520 = vshll.u32 %v447, 16
      %v522 = vrot.slane %v520, 1
      %v523 = vor.u32 %v518, %v522
      %v525 = vshll.u32 %v450, 16
      %v527 = vrot.slane %v525, 1
      %v528 = vsel %vm492, %v523, %v527
      %v571 = vunpack.c.l.b16 %v452
      %v572 = vunpack.c.l.b16 %v453
      %v573 = vunpack.c.l.b16 %v454
      %v574 = vunpack.c.l.b16 %v455
      %v575 = vunpack.c.l.b16 %v456
      %v576 = vunpack.c.l.b16 %v457
      %v577 = vunpack.c.l.b16 %v458
      %v578 = vunpack.c.l.b16 %v459
      %v579 = vunpack.c.l.b16 %v460
      %v580 = vunpack.c.l.b16 %v461
      %v581 = vunpack.c.l.b16 %v462
      %v582 = vunpack.c.l.b16 %v463
      %v583 = vunpack.c.l.b16 %v464
      %v584 = vunpack.c.l.b16 %v465
      %v585 = vunpack.c.l.b16 %v466
      %v586 = vunpack.c.l.b16 %v467
      %v587 = vunpack.c.l.b16 %v468
      %v588 = vunpack.c.l.b16 %v469
      %v589 = vunpack.c.l.b16 %v470
      %v590 = vunpack.c.l.b16 %v471
      %v591 = vunpack.c.l.b16 %v472
      %v592 = vunpack.c.l.b16 %v473
      %v593 = vunpack.c.l.b16 %v474
      %v594 = vunpack.c.l.b16 %v475
      %v595 = vunpack.c.l.b16 %v476
      %v596 = vunpack.c.l.b16 %v477
      %v597 = vunpack.c.l.b16 %v478
      %v598 = vunpack.c.l.b16 %v479
      %v599 = vunpack.c.l.b16 %v480
      %v600 = vunpack.c.l.b16 %v481
      %v601 = vunpack.c.l.b16 %v482
      %v602 = vunpack.c.l.b16 %v483
      %v603 = vunpack.c.l.b16 %v484
      %v604 = vunpack.c.l.b16 %v485
      %v605 = vunpack.c.l.b16 %v486
      %v606 = vunpack.c.l.b16 %v487
      %v607 = vunpack.c.l.b16 %v488
      %v608 = vunpack.c.l.b16 %v489
      %v609 = vunpack.c.l.b16 %v490
      %v610 = vunpack.c.l.b16 %v491
      %v611 = vpack.c.b16 %v572, %v571
      %v612 = vpack.c.b16 %v574, %v573
      %v613 = vpack.c.b16 %v576, %v575
      %v614 = vpack.c.b16 %v578, %v577
      %v615 = vpack.c.b16 %v580, %v579
      %v616 = vpack.c.b16 %v582, %v581
      %v617 = vpack.c.b16 %v584, %v583
      %v618 = vpack.c.b16 %v586, %v585
      %v619 = vpack.c.b16 %v588, %v587
      %v620 = vpack.c.b16 %v590, %v589
      %v621 = vpack.c.b16 %v592, %v591
      %v622 = vpack.c.b16 %v594, %v593
      %v623 = vpack.c.b16 %v596, %v595
      %v624 = vpack.c.b16 %v598, %v597
      %v625 = vpack.c.b16 %v600, %v599
      %v626 = vpack.c.b16 %v602, %v601
      %v627 = vpack.c.b16 %v604, %v603
      %v628 = vpack.c.b16 %v606, %v605
      %v629 = vpack.c.b16 %v608, %v607
      %v630 = vpack.c.b16 %v610, %v609
      %v652 = vsel %vm348, %v528, 0
      %654 = vmatprep.subr.bf16.mxu0 0
      %655 = vmatpush1.bf16.msra.mxu0 %v618
      %656 = vmatprep.subr.bf16.mxu0 0
      %657 = vmatpush1.bf16.msra.mxu0 %v617
      %658 = vmatprep.subr.bf16.mxu0 0
      %659 = vmatpush1.bf16.msra.mxu0 %v616
      %660 = vmatprep.subr.bf16.mxu0 0
      %661 = vmatpush1.bf16.msra.mxu0 %v615
      %662 = vmatprep.subr.bf16.mxu0 0
      %663 = vmatpush1.bf16.msra.mxu0 %v614
      %664 = vmatprep.subr.bf16.mxu0 0
      %665 = vmatpush1.bf16.msra.mxu0 %v613
      %666 = vmatprep.subr.bf16.mxu0 0
      %667 = vmatpush1.bf16.msra.mxu0 %v612
      %668 = vmatprep.subr.bf16.mxu0 0
      %669 = vmatpush1.bf16.msra.mxu0 %v611
      %670 = vmatprep.subr.bf16.mxu0 0
      %671 = vmatpush2.bf16.msra.mxu0 %v626
      %672 = vmatprep.subr.bf16.mxu0 0
      %673 = vmatpush2.bf16.msra.mxu0 %v625
      %674 = vmatprep.subr.bf16.mxu0 0
      %675 = vmatpush2.bf16.msra.mxu0 %v624
      %676 = vmatprep.subr.bf16.mxu0 0
      %677 = vmatpush2.bf16.msra.mxu0 %v623
      %678 = vmatprep.subr.bf16.mxu0 0
      %679 = vmatpush2.bf16.msra.mxu0 %v622
      %680 = vmatprep.subr.bf16.mxu0 0
      %681 = vmatpush2.bf16.msra.mxu0 %v621
      %682 = vmatprep.subr.bf16.mxu0 0
      %683 = vmatpush2.bf16.msra.mxu0 %v620
      %684 = vmatprep.subr.bf16.mxu0 0
      %685 = vmatpush2.bf16.msra.mxu0 %v619
      %686 = vmatprep.mubr.bf16.mxu0 %v516
      %687 = vmatmul.mubr.bf16.gmra.mxu0 %v504
      %v688 = vpop.f32.mrf.mxu0
      %v689 = vadd.f32 0.0, %v688
      %v690 = vpop.f32.mrf.mxu0
      %v691 = vpop.f32.mrf.mxu0
      %v692 = vadd.f32 0.0, %v691
      %v693 = vpop.f32.mrf.mxu0
      %694 = vdwg.mxu0
      %695 = vmatprep.subr.bf16.mxu0 0
      %696 = vmatpush1.bf16.msra.mxu0 0
      %697 = vmatprep.subr.bf16.mxu0 0
      %698 = vmatpush1.bf16.msra.mxu0 0
      %699 = vmatprep.subr.bf16.mxu0 0
      %700 = vmatpush1.bf16.msra.mxu0 0
      %701 = vmatprep.subr.bf16.mxu0 0
      %702 = vmatpush1.bf16.msra.mxu0 0
      %703 = vmatprep.subr.bf16.mxu0 0
      %704 = vmatpush1.bf16.msra.mxu0 %v630
      %705 = vmatprep.subr.bf16.mxu0 0
      %706 = vmatpush1.bf16.msra.mxu0 %v629
      %707 = vmatprep.subr.bf16.mxu0 0
      %708 = vmatpush1.bf16.msra.mxu0 %v628
      %709 = vmatprep.subr.bf16.mxu0 0
      %710 = vmatpush1.bf16.msra.mxu0 %v627
      %711 = vmatprep.subr.bf16.mxu0 0
      %712 = vmatpush2.bf16.msra.mxu0 0
      %713 = vmatprep.subr.bf16.mxu0 0
      %714 = vmatpush2.bf16.msra.mxu0 0
      %715 = vmatprep.subr.bf16.mxu0 0
      %716 = vmatpush2.bf16.msra.mxu0 0
      %717 = vmatprep.subr.bf16.mxu0 0
      %718 = vmatpush2.bf16.msra.mxu0 0
      %719 = vmatprep.subr.bf16.mxu0 0
      %720 = vmatpush2.bf16.msra.mxu0 0
      %721 = vmatprep.subr.bf16.mxu0 0
      %722 = vmatpush2.bf16.msra.mxu0 0
      %723 = vmatprep.subr.bf16.mxu0 0
      %724 = vmatpush2.bf16.msra.mxu0 0
      %725 = vmatprep.subr.bf16.mxu0 0
      %726 = vmatpush2.bf16.msra.mxu0 0
      %727 = vmatprep.mubr.bf16.mxu0 0
      %728 = vmatmul.mubr.bf16.gmra.mxu0 %v652
      %v729 = vpop.f32.mrf.mxu0
      %v730 = vadd.f32 %v689, %v729
      %v731 = vpop.f32.mrf.mxu0
      %v732 = vpop.f32.mrf.mxu0
      %v733 = vadd.f32 %v692, %v732
      %v734 = vpop.f32.mrf.mxu0
      %735 = vdwg.mxu0
      %v736 = vadd.f32 %v434, %v730
      %v737 = vadd.f32 %v435, %v733
      %v738 = vld [vmem:[%s165] sm:$0xfc]
      %v739 = vld [vmem:[%s165 + $0x8] sm:$0xfc]
      %v740 = vld [vmem:[%s165 + $0x10] sm:$0xfc]
      %v741 = vld [vmem:[%s165 + $0x30] sm:$0x3]
      %v742 = vld [vmem:[%s165 + $0x38] sm:$0x3]
      %v743 = vld [vmem:[%s165 + $0x40] sm:$0x3]
      %v744 = vpack.c.bf16 %v439, %v738
      %v745 = vpack.c.bf16 %v440, %v739
      %v746 = vpack.c.bf16 %v441, %v740
      %v747 = vpack.c.bf16 %v741, %v741
      %v748 = vpack.c.bf16 %v742, %v742
      %v749 = vpack.c.bf16 %v743, %v743
      %s750 = scalar_lea.vmem %s1, 320
      %v751 = vld [vmem:[%s750] sm:$0xf]
      %v752 = vld [vmem:[%s750 + $0x4] sm:$0xf]
      %v753 = vld [vmem:[%s750 + $0x8] sm:$0xf]
      %v754 = vld [vmem:[%s750 + $0xc] sm:$0xf]
      %v755 = vld [vmem:[%s750 + $0x10] sm:$0xf]
      %v756 = vld [vmem:[%s750 + $0x14] sm:$0xf]
      %v757 = vld [vmem:[%s750 + $0x18] sm:$0xf]
      %v758 = vld [vmem:[%s750 + $0x1c] sm:$0xf]
      %v759 = vld [vmem:[%s750 + $0x20] sm:$0xf]
      %v760 = vld [vmem:[%s750 + $0x24] sm:$0xf]
      %v761 = vld [vmem:[%s750 + $0x28] sm:$0xf]
      %v762 = vld [vmem:[%s750 + $0x2c] sm:$0xf]
      %v763 = vld [vmem:[%s750 + $0x30] sm:$0xf]
      %v764 = vld [vmem:[%s750 + $0x34] sm:$0xf]
      %v765 = vld [vmem:[%s750 + $0x38] sm:$0xf]
      %v766 = vld [vmem:[%s750 + $0x3c] sm:$0xf]
      %v767 = vld [vmem:[%s750 + $0x40] sm:$0xf]
      %v768 = vld [vmem:[%s750 + $0x44] sm:$0xf]
      %v769 = vld [vmem:[%s750 + $0x48] sm:$0xf]
      %v770 = vld [vmem:[%s750 + $0x4c] sm:$0xf]
      %v771 = vld [vmem:[%s750 + $0x50] sm:$0xf]
      %v772 = vld [vmem:[%s750 + $0x54] sm:$0xf]
      %v773 = vld [vmem:[%s750 + $0x58] sm:$0xf]
      %v774 = vld [vmem:[%s750 + $0x5c] sm:$0xf]
      %v775 = vld [vmem:[%s750 + $0x60] sm:$0xf]
      %v776 = vld [vmem:[%s750 + $0x64] sm:$0xf]
      %v777 = vld [vmem:[%s750 + $0x68] sm:$0xf]
      %v778 = vld [vmem:[%s750 + $0x6c] sm:$0xf]
      %v779 = vld [vmem:[%s750 + $0x70] sm:$0xf]
      %v780 = vld [vmem:[%s750 + $0x74] sm:$0xf]
      %v781 = vld [vmem:[%s750 + $0x78] sm:$0xf]
      %v782 = vld [vmem:[%s750 + $0x7c] sm:$0xf]
      %v783 = vld [vmem:[%s750 + $0x80] sm:$0xf]
      %v784 = vld [vmem:[%s750 + $0x84] sm:$0xf]
      %v785 = vld [vmem:[%s750 + $0x88] sm:$0xf]
      %v786 = vld [vmem:[%s750 + $0x8c] sm:$0xf]
      %v787 = vld [vmem:[%s750 + $0x90] sm:$0xf]
      %v788 = vld [vmem:[%s750 + $0x94] sm:$0xf]
      %v789 = vld [vmem:[%s750 + $0x98] sm:$0xf]
      %v790 = vld [vmem:[%s750 + $0x9c] sm:$0xf]
      %vm797 = vcmask 1046528
      %v798 = vrot.slane %v744, 1
      %v799 = vrot.slane %v747, 1
      %v800 = vsel %vm797, %v798, %v799
      %v801 = vrot.slane %v745, 1
      %v802 = vrot.slane %v748, 1
      %v803 = vsel %vm797, %v801, %v802
      %v804 = vrot.slane %v746, 1
      %v805 = vrot.slane %v749, 1
      %v806 = vsel %vm797, %v804, %v805
      %v849 = vunpack.c.l.b16 %v751
      %v850 = vunpack.c.l.b16 %v752
      %v851 = vunpack.c.l.b16 %v753
      %v852 = vunpack.c.l.b16 %v754
      %v853 = vunpack.c.l.b16 %v755
      %v854 = vunpack.c.l.b16 %v756
      %v855 = vunpack.c.l.b16 %v757
      %v856 = vunpack.c.l.b16 %v758
      %v857 = vunpack.c.l.b16 %v759
      %v858 = vunpack.c.l.b16 %v760
      %v859 = vunpack.c.l.b16 %v761
      %v860 = vunpack.c.l.b16 %v762
      %v861 = vunpack.c.l.b16 %v763
      %v862 = vunpack.c.l.b16 %v764
      %v863 = vunpack.c.l.b16 %v765
      %v864 = vunpack.c.l.b16 %v766
      %v865 = vunpack.c.l.b16 %v767
      %v866 = vunpack.c.l.b16 %v768
      %v867 = vunpack.c.l.b16 %v769
      %v868 = vunpack.c.l.b16 %v770
      %v869 = vunpack.c.l.b16 %v771
      %v870 = vunpack.c.l.b16 %v772
      %v871 = vunpack.c.l.b16 %v773
      %v872 = vunpack.c.l.b16 %v774
      %v873 = vunpack.c.l.b16 %v775
      %v874 = vunpack.c.l.b16 %v776
      %v875 = vunpack.c.l.b16 %v777
      %v876 = vunpack.c.l.b16 %v778
      %v877 = vunpack.c.l.b16 %v779
      %v878 = vunpack.c.l.b16 %v780
      %v879 = vunpack.c.l.b16 %v781
      %v880 = vunpack.c.l.b16 %v782
      %v881 = vunpack.c.l.b16 %v783
      %v882 = vunpack.c.l.b16 %v784
      %v883 = vunpack.c.l.b16 %v785
      %v884 = vunpack.c.l.b16 %v786
      %v885 = vunpack.c.l.b16 %v787
      %v886 = vunpack.c.l.b16 %v788
      %v887 = vunpack.c.l.b16 %v789
      %v888 = vunpack.c.l.b16 %v790
      %v889 = vpack.c.b16 %v850, %v849
      %v890 = vpack.c.b16 %v852, %v851
      %v891 = vpack.c.b16 %v854, %v853
      %v892 = vpack.c.b16 %v856, %v855
      %v893 = vpack.c.b16 %v858, %v857
      %v894 = vpack.c.b16 %v860, %v859
      %v895 = vpack.c.b16 %v862, %v861
      %v896 = vpack.c.b16 %v864, %v863
      %v897 = vpack.c.b16 %v866, %v865
      %v898 = vpack.c.b16 %v868, %v867
      %v899 = vpack.c.b16 %v870, %v869
      %v900 = vpack.c.b16 %v872, %v871
      %v901 = vpack.c.b16 %v874, %v873
      %v902 = vpack.c.b16 %v876, %v875
      %v903 = vpack.c.b16 %v878, %v877
      %v904 = vpack.c.b16 %v880, %v879
      %v905 = vpack.c.b16 %v882, %v881
      %v906 = vpack.c.b16 %v884, %v883
      %v907 = vpack.c.b16 %v886, %v885
      %v908 = vpack.c.b16 %v888, %v887
      %v930 = vsel %vm348, %v806, 0
      %932 = vmatprep.subr.bf16.mxu0 0
      %933 = vmatpush1.bf16.msra.mxu0 %v896
      %934 = vmatprep.subr.bf16.mxu0 0
      %935 = vmatpush1.bf16.msra.mxu0 %v895
      %936 = vmatprep.subr.bf16.mxu0 0
      %937 = vmatpush1.bf16.msra.mxu0 %v894
      %938 = vmatprep.subr.bf16.mxu0 0
      %939 = vmatpush1.bf16.msra.mxu0 %v893
      %940 = vmatprep.subr.bf16.mxu0 0
      %941 = vmatpush1.bf16.msra.mxu0 %v892
      %942 = vmatprep.subr.bf16.mxu0 0
      %943 = vmatpush1.bf16.msra.mxu0 %v891
      %944 = vmatprep.subr.bf16.mxu0 0
      %945 = vmatpush1.bf16.msra.mxu0 %v890
      %946 = vmatprep.subr.bf16.mxu0 0
      %947 = vmatpush1.bf16.msra.mxu0 %v889
      %948 = vmatprep.subr.bf16.mxu0 0
      %949 = vmatpush2.bf16.msra.mxu0 %v904
      %950 = vmatprep.subr.bf16.mxu0 0
      %951 = vmatpush2.bf16.msra.mxu0 %v903
      %952 = vmatprep.subr.bf16.mxu0 0
      %953 = vmatpush2.bf16.msra.mxu0 %v902
      %954 = vmatprep.subr.bf16.mxu0 0
      %955 = vmatpush2.bf16.msra.mxu0 %v901
      %956 = vmatprep.subr.bf16.mxu0 0
      %957 = vmatpush2.bf16.msra.mxu0 %v900
      %958 = vmatprep.subr.bf16.mxu0 0
      %959 = vmatpush2.bf16.msra.mxu0 %v899
      %960 = vmatprep.subr.bf16.mxu0 0
      %961 = vmatpush2.bf16.msra.mxu0 %v898
      %962 = vmatprep.subr.bf16.mxu0 0
      %963 = vmatpush2.bf16.msra.mxu0 %v897
      %964 = vmatprep.mubr.bf16.mxu0 %v803
      %965 = vmatmul.mubr.bf16.gmra.mxu0 %v800
      %v966 = vpop.f32.mrf.mxu0
      %v967 = vadd.f32 0.0, %v966
      %v968 = vpop.f32.mrf.mxu0
      %v969 = vpop.f32.mrf.mxu0
      %v970 = vadd.f32 0.0, %v969
      %v971 = vpop.f32.mrf.mxu0
      %972 = vdwg.mxu0
      %973 = vmatprep.subr.bf16.mxu0 0
      %974 = vmatpush1.bf16.msra.mxu0 0
      %975 = vmatprep.subr.bf16.mxu0 0
      %976 = vmatpush1.bf16.msra.mxu0 0
      %977 = vmatprep.subr.bf16.mxu0 0
      %978 = vmatpush1.bf16.msra.mxu0 0
      %979 = vmatprep.subr.bf16.mxu0 0
      %980 = vmatpush1.bf16.msra.mxu0 0
      %981 = vmatprep.subr.bf16.mxu0 0
      %982 = vmatpush1.bf16.msra.mxu0 %v908
      %983 = vmatprep.subr.bf16.mxu0 0
      %984 = vmatpush1.bf16.msra.mxu0 %v907
      %985 = vmatprep.subr.bf16.mxu0 0
      %986 = vmatpush1.bf16.msra.mxu0 %v906
      %987 = vmatprep.subr.bf16.mxu0 0
      %988 = vmatpush1.bf16.msra.mxu0 %v905
      %989 = vmatprep.subr.bf16.mxu0 0
      %990 = vmatpush2.bf16.msra.mxu0 0
      %991 = vmatprep.subr.bf16.mxu0 0
      %992 = vmatpush2.bf16.msra.mxu0 0
      %993 = vmatprep.subr.bf16.mxu0 0
      %994 = vmatpush2.bf16.msra.mxu0 0
      %995 = vmatprep.subr.bf16.mxu0 0
      %996 = vmatpush2.bf16.msra.mxu0 0
      %997 = vmatprep.subr.bf16.mxu0 0
      %998 = vmatpush2.bf16.msra.mxu0 0
      %999 = vmatprep.subr.bf16.mxu0 0
      %1000 = vmatpush2.bf16.msra.mxu0 0
      %1001 = vmatprep.subr.bf16.mxu0 0
      %1002 = vmatpush2.bf16.msra.mxu0 0
      %1003 = vmatprep.subr.bf16.mxu0 0
      %1004 = vmatpush2.bf16.msra.mxu0 0
      %1005 = vmatprep.mubr.bf16.mxu0 0
      %1006 = vmatmul.mubr.bf16.gmra.mxu0 %v930
      %v1007 = vpop.f32.mrf.mxu0
      %v1008 = vadd.f32 %v967, %v1007
      %v1009 = vpop.f32.mrf.mxu0
      %v1010 = vpop.f32.mrf.mxu0
      %v1011 = vadd.f32 %v970, %v1010
      %v1012 = vpop.f32.mrf.mxu0
      %1013 = vdwg.mxu0
      %v1014 = vadd.f32 %v736, %v1008
      %v1015 = vadd.f32 %v737, %v1011
      %v1016 = vld [vmem:[%s165] sm:$0xf8]
      %v1017 = vld [vmem:[%s165 + $0x8] sm:$0xf8]
      %v1018 = vld [vmem:[%s165 + $0x10] sm:$0xf8]
      %v1019 = vld [vmem:[%s165 + $0x30] sm:$0x7]
      %v1020 = vld [vmem:[%s165 + $0x38] sm:$0x7]
      %v1021 = vld [vmem:[%s165 + $0x40] sm:$0x7]
      %v1022 = vpack.c.bf16 %v439, %v1016
      %v1023 = vpack.c.bf16 %v440, %v1017
      %v1024 = vpack.c.bf16 %v441, %v1018
      %v1025 = vpack.c.bf16 %v1019, %v1019
      %v1026 = vpack.c.bf16 %v1020, %v1020
      %v1027 = vpack.c.bf16 %v1021, %v1021
      %s1028 = scalar_lea.vmem %s1, 480
      %v1029 = vld [vmem:[%s1028] sm:$0xf]
      %v1030 = vld [vmem:[%s1028 + $0x4] sm:$0xf]
      %v1031 = vld [vmem:[%s1028 + $0x8] sm:$0xf]
      %v1032 = vld [vmem:[%s1028 + $0xc] sm:$0xf]
      %v1033 = vld [vmem:[%s1028 + $0x10] sm:$0xf]
      %v1034 = vld [vmem:[%s1028 + $0x14] sm:$0xf]
      %v1035 = vld [vmem:[%s1028 + $0x18] sm:$0xf]
      %v1036 = vld [vmem:[%s1028 + $0x1c] sm:$0xf]
      %v1037 = vld [vmem:[%s1028 + $0x20] sm:$0xf]
      %v1038 = vld [vmem:[%s1028 + $0x24] sm:$0xf]
      %v1039 = vld [vmem:[%s1028 + $0x28] sm:$0xf]
      %v1040 = vld [vmem:[%s1028 + $0x2c] sm:$0xf]
      %v1041 = vld [vmem:[%s1028 + $0x30] sm:$0xf]
      %v1042 = vld [vmem:[%s1028 + $0x34] sm:$0xf]
      %v1043 = vld [vmem:[%s1028 + $0x38] sm:$0xf]
      %v1044 = vld [vmem:[%s1028 + $0x3c] sm:$0xf]
      %v1045 = vld [vmem:[%s1028 + $0x40] sm:$0xf]
      %v1046 = vld [vmem:[%s1028 + $0x44] sm:$0xf]
      %v1047 = vld [vmem:[%s1028 + $0x48] sm:$0xf]
      %v1048 = vld [vmem:[%s1028 + $0x4c] sm:$0xf]
      %v1049 = vld [vmem:[%s1028 + $0x50] sm:$0xf]
      %v1050 = vld [vmem:[%s1028 + $0x54] sm:$0xf]
      %v1051 = vld [vmem:[%s1028 + $0x58] sm:$0xf]
      %v1052 = vld [vmem:[%s1028 + $0x5c] sm:$0xf]
      %v1053 = vld [vmem:[%s1028 + $0x60] sm:$0xf]
      %v1054 = vld [vmem:[%s1028 + $0x64] sm:$0xf]
      %v1055 = vld [vmem:[%s1028 + $0x68] sm:$0xf]
      %v1056 = vld [vmem:[%s1028 + $0x6c] sm:$0xf]
      %v1057 = vld [vmem:[%s1028 + $0x70] sm:$0xf]
      %v1058 = vld [vmem:[%s1028 + $0x74] sm:$0xf]
      %v1059 = vld [vmem:[%s1028 + $0x78] sm:$0xf]
      %v1060 = vld [vmem:[%s1028 + $0x7c] sm:$0xf]
      %v1061 = vld [vmem:[%s1028 + $0x80] sm:$0xf]
      %v1062 = vld [vmem:[%s1028 + $0x84] sm:$0xf]
      %v1063 = vld [vmem:[%s1028 + $0x88] sm:$0xf]
      %v1064 = vld [vmem:[%s1028 + $0x8c] sm:$0xf]
      %v1065 = vld [vmem:[%s1028 + $0x90] sm:$0xf]
      %v1066 = vld [vmem:[%s1028 + $0x94] sm:$0xf]
      %v1067 = vld [vmem:[%s1028 + $0x98] sm:$0xf]
      %v1068 = vld [vmem:[%s1028 + $0x9c] sm:$0xf]
      %vm1069 = vsmask.f32 6400
      %v1071 = vshrl.u32 %v1022, 16
      %v1073 = vrot.slane %v1071, 1
      %v1074 = vshll.u32 %v1022, 16
      %v1076 = vrot.slane %v1074, 2
      %v1077 = vor.u32 %v1073, %v1076
      %v1079 = vshrl.u32 %v1025, 16
      %v1081 = vrot.slane %v1079, 1
      %v1082 = vshll.u32 %v1025, 16
      %v1084 = vrot.slane %v1082, 2
      %v1085 = vor.u32 %v1081, %v1084
      %v1086 = vsel %vm1069, %v1077, %v1085
      %v1088 = vshrl.u32 %v1023, 16
      %v1090 = vrot.slane %v1088, 1
      %v1091 = vshll.u32 %v1023, 16
      %v1093 = vrot.slane %v1091, 2
      %v1094 = vor.u32 %v1090, %v1093
      %v1096 = vshrl.u32 %v1026, 16
      %v1098 = vrot.slane %v1096, 1
      %v1099 = vshll.u32 %v1026, 16
      %v1101 = vrot.slane %v1099, 2
      %v1102 = vor.u32 %v1098, %v1101
      %v1103 = vsel %vm1069, %v1094, %v1102
      %v1105 = vshrl.u32 %v1024, 16
      %v1107 = vrot.slane %v1105, 1
      %v1108 = vshll.u32 %v1024, 16
      %v1110 = vrot.slane %v1108, 2
      %v1111 = vor.u32 %v1107, %v1110
      %v1113 = vshrl.u32 %v1027, 16
      %v1115 = vrot.slane %v1113, 1
      %v1116 = vshll.u32 %v1027, 16
      %v1118 = vrot.slane %v1116, 2
      %v1119 = vor.u32 %v1115, %v1118
      %v1120 = vsel %vm1069, %v1111, %v1119
      %v1163 = vunpack.c.l.b16 %v1029
      %v1164 = vunpack.c.l.b16 %v1030
      %v1165 = vunpack.c.l.b16 %v1031
      %v1166 = vunpack.c.l.b16 %v1032
      %v1167 = vunpack.c.l.b16 %v1033
      %v1168 = vunpack.c.l.b16 %v1034
      %v1169 = vunpack.c.l.b16 %v1035
      %v1170 = vunpack.c.l.b16 %v1036
      %v1171 = vunpack.c.l.b16 %v1037
      %v1172 = vunpack.c.l.b16 %v1038
      %v1173 = vunpack.c.l.b16 %v1039
      %v1174 = vunpack.c.l.b16 %v1040
      %v1175 = vunpack.c.l.b16 %v1041
      %v1176 = vunpack.c.l.b16 %v1042
      %v1177 = vunpack.c.l.b16 %v1043
      %v1178 = vunpack.c.l.b16 %v1044
      %v1179 = vunpack.c.l.b16 %v1045
      %v1180 = vunpack.c.l.b16 %v1046
      %v1181 = vunpack.c.l.b16 %v1047
      %v1182 = vunpack.c.l.b16 %v1048
      %v1183 = vunpack.c.l.b16 %v1049
      %v1184 = vunpack.c.l.b16 %v1050
      %v1185 = vunpack.c.l.b16 %v1051
      %v1186 = vunpack.c.l.b16 %v1052
      %v1187 = vunpack.c.l.b16 %v1053
      %v1188 = vunpack.c.l.b16 %v1054
      %v1189 = vunpack.c.l.b16 %v1055
      %v1190 = vunpack.c.l.b16 %v1056
      %v1191 = vunpack.c.l.b16 %v1057
      %v1192 = vunpack.c.l.b16 %v1058
      %v1193 = vunpack.c.l.b16 %v1059
      %v1194 = vunpack.c.l.b16 %v1060
      %v1195 = vunpack.c.l.b16 %v1061
      %v1196 = vunpack.c.l.b16 %v1062
      %v1197 = vunpack.c.l.b16 %v1063
      %v1198 = vunpack.c.l.b16 %v1064
      %v1199 = vunpack.c.l.b16 %v1065
      %v1200 = vunpack.c.l.b16 %v1066
      %v1201 = vunpack.c.l.b16 %v1067
      %v1202 = vunpack.c.l.b16 %v1068
      %v1203 = vpack.c.b16 %v1164, %v1163
      %v1204 = vpack.c.b16 %v1166, %v1165
      %v1205 = vpack.c.b16 %v1168, %v1167
      %v1206 = vpack.c.b16 %v1170, %v1169
      %v1207 = vpack.c.b16 %v1172, %v1171
      %v1208 = vpack.c.b16 %v1174, %v1173
      %v1209 = vpack.c.b16 %v1176, %v1175
      %v1210 = vpack.c.b16 %v1178, %v1177
      %v1211 = vpack.c.b16 %v1180, %v1179
      %v1212 = vpack.c.b16 %v1182, %v1181
      %v1213 = vpack.c.b16 %v1184, %v1183
      %v1214 = vpack.c.b16 %v1186, %v1185
      %v1215 = vpack.c.b16 %v1188, %v1187
      %v1216 = vpack.c.b16 %v1190, %v1189
      %v1217 = vpack.c.b16 %v1192, %v1191
      %v1218 = vpack.c.b16 %v1194, %v1193
      %v1219 = vpack.c.b16 %v1196, %v1195
      %v1220 = vpack.c.b16 %v1198, %v1197
      %v1221 = vpack.c.b16 %v1200, %v1199
      %v1222 = vpack.c.b16 %v1202, %v1201
      %v1244 = vsel %vm348, %v1120, 0
      %1246 = vmatprep.subr.bf16.mxu0 0
      %1247 = vmatpush1.bf16.msra.mxu0 %v1210
      %1248 = vmatprep.subr.bf16.mxu0 0
      %1249 = vmatpush1.bf16.msra.mxu0 %v1209
      %1250 = vmatprep.subr.bf16.mxu0 0
      %1251 = vmatpush1.bf16.msra.mxu0 %v1208
      %1252 = vmatprep.subr.bf16.mxu0 0
      %1253 = vmatpush1.bf16.msra.mxu0 %v1207
      %1254 = vmatprep.subr.bf16.mxu0 0
      %1255 = vmatpush1.bf16.msra.mxu0 %v1206
      %1256 = vmatprep.subr.bf16.mxu0 0
      %1257 = vmatpush1.bf16.msra.mxu0 %v1205
      %1258 = vmatprep.subr.bf16.mxu0 0
      %1259 = vmatpush1.bf16.msra.mxu0 %v1204
      %1260 = vmatprep.subr.bf16.mxu0 0
      %1261 = vmatpush1.bf16.msra.mxu0 %v1203
      %1262 = vmatprep.subr.bf16.mxu0 0
      %1263 = vmatpush2.bf16.msra.mxu0 %v1218
      %1264 = vmatprep.subr.bf16.mxu0 0
      %1265 = vmatpush2.bf16.msra.mxu0 %v1217
      %1266 = vmatprep.subr.bf16.mxu0 0
      %1267 = vmatpush2.bf16.msra.mxu0 %v1216
      %1268 = vmatprep.subr.bf16.mxu0 0
      %1269 = vmatpush2.bf16.msra.mxu0 %v1215
      %1270 = vmatprep.subr.bf16.mxu0 0
      %1271 = vmatpush2.bf16.msra.mxu0 %v1214
      %1272 = vmatprep.subr.bf16.mxu0 0
      %1273 = vmatpush2.bf16.msra.mxu0 %v1213
      %1274 = vmatprep.subr.bf16.mxu0 0
      %1275 = vmatpush2.bf16.msra.mxu0 %v1212
      %1276 = vmatprep.subr.bf16.mxu0 0
      %1277 = vmatpush2.bf16.msra.mxu0 %v1211
      %1278 = vmatprep.mubr.bf16.mxu0 %v1103
      %1279 = vmatmul.mubr.bf16.gmra.mxu0 %v1086
      %v1280 = vpop.f32.mrf.mxu0
      %v1281 = vadd.f32 0.0, %v1280
      %v1282 = vpop.f32.mrf.mxu0
      %v1283 = vpop.f32.mrf.mxu0
      %v1284 = vadd.f32 0.0, %v1283
      %v1285 = vpop.f32.mrf.mxu0
      %1286 = vdwg.mxu0
      %1287 = vmatprep.subr.bf16.mxu0 0
      %1288 = vmatpush1.bf16.msra.mxu0 0
      %1289 = vmatprep.subr.bf16.mxu0 0
      %1290 = vmatpush1.bf16.msra.mxu0 0
      %1291 = vmatprep.subr.bf16.mxu0 0
      %1292 = vmatpush1.bf16.msra.mxu0 0
      %1293 = vmatprep.subr.bf16.mxu0 0
      %1294 = vmatpush1.bf16.msra.mxu0 0
      %1295 = vmatprep.subr.bf16.mxu0 0
      %1296 = vmatpush1.bf16.msra.mxu0 %v1222
      %1297 = vmatprep.subr.bf16.mxu0 0
      %1298 = vmatpush1.bf16.msra.mxu0 %v1221
      %1299 = vmatprep.subr.bf16.mxu0 0
      %1300 = vmatpush1.bf16.msra.mxu0 %v1220
      %1301 = vmatprep.subr.bf16.mxu0 0
      %1302 = vmatpush1.bf16.msra.mxu0 %v1219
      %1303 = vmatprep.subr.bf16.mxu0 0
      %1304 = vmatpush2.bf16.msra.mxu0 0
      %1305 = vmatprep.subr.bf16.mxu0 0
      %1306 = vmatpush2.bf16.msra.mxu0 0
      %1307 = vmatprep.subr.bf16.mxu0 0
      %1308 = vmatpush2.bf16.msra.mxu0 0
      %1309 = vmatprep.subr.bf16.mxu0 0
      %1310 = vmatpush2.bf16.msra.mxu0 0
      %1311 = vmatprep.subr.bf16.mxu0 0
      %1312 = vmatpush2.bf16.msra.mxu0 0
      %1313 = vmatprep.subr.bf16.mxu0 0
      %1314 = vmatpush2.bf16.msra.mxu0 0
      %1315 = vmatprep.subr.bf16.mxu0 0
      %1316 = vmatpush2.bf16.msra.mxu0 0
      %1317 = vmatprep.subr.bf16.mxu0 0
      %1318 = vmatpush2.bf16.msra.mxu0 0
      %1319 = vmatprep.mubr.bf16.mxu0 0
      %1320 = vmatmul.mubr.bf16.gmra.mxu0 %v1244
      %v1321 = vpop.f32.mrf.mxu0
      %v1322 = vadd.f32 %v1281, %v1321
      %v1323 = vpop.f32.mrf.mxu0
      %v1324 = vpop.f32.mrf.mxu0
      %v1325 = vadd.f32 %v1284, %v1324
      %v1326 = vpop.f32.mrf.mxu0
      %1327 = vdwg.mxu0
      %v1328 = vadd.f32 %v1014, %v1322
      %v1329 = vadd.f32 %v1015, %v1325
      %v1330 = vld [vmem:[%s165] sm:$0xf0]
      %v1331 = vld [vmem:[%s165 + $0x8] sm:$0xf0]
      %v1332 = vld [vmem:[%s165 + $0x10] sm:$0xf0]
      %v1333 = vld [vmem:[%s165 + $0x30] sm:$0xf]
      %v1334 = vld [vmem:[%s165 + $0x38] sm:$0xf]
      %v1335 = vld [vmem:[%s165 + $0x40] sm:$0xf]
      %v1336 = vpack.c.bf16 %v439, %v1330
      %v1337 = vpack.c.bf16 %v440, %v1331
      %v1338 = vpack.c.bf16 %v441, %v1332
      %v1339 = vpack.c.bf16 %v1333, %v1333
      %v1340 = vpack.c.bf16 %v1334, %v1334
      %v1341 = vpack.c.bf16 %v1335, %v1335
      %s1342 = scalar_lea.vmem %s1, 640
      %v1343 = vld [vmem:[%s1342] sm:$0xf]
      %v1344 = vld [vmem:[%s1342 + $0x4] sm:$0xf]
      %v1345 = vld [vmem:[%s1342 + $0x8] sm:$0xf]
      %v1346 = vld [vmem:[%s1342 + $0xc] sm:$0xf]
      %v1347 = vld [vmem:[%s1342 + $0x10] sm:$0xf]
      %v1348 = vld [vmem:[%s1342 + $0x14] sm:$0xf]
      %v1349 = vld [vmem:[%s1342 + $0x18] sm:$0xf]
      %v1350 = vld [vmem:[%s1342 + $0x1c] sm:$0xf]
      %v1351 = vld [vmem:[%s1342 + $0x20] sm:$0xf]
      %v1352 = vld [vmem:[%s1342 + $0x24] sm:$0xf]
      %v1353 = vld [vmem:[%s1342 + $0x28] sm:$0xf]
      %v1354 = vld [vmem:[%s1342 + $0x2c] sm:$0xf]
      %v1355 = vld [vmem:[%s1342 + $0x30] sm:$0xf]
      %v1356 = vld [vmem:[%s1342 + $0x34] sm:$0xf]
      %v1357 = vld [vmem:[%s1342 + $0x38] sm:$0xf]
      %v1358 = vld [vmem:[%s1342 + $0x3c] sm:$0xf]
      %v1359 = vld [vmem:[%s1342 + $0x40] sm:$0xf]
      %v1360 = vld [vmem:[%s1342 + $0x44] sm:$0xf]
      %v1361 = vld [vmem:[%s1342 + $0x48] sm:$0xf]
      %v1362 = vld [vmem:[%s1342 + $0x4c] sm:$0xf]
      %v1363 = vld [vmem:[%s1342 + $0x50] sm:$0xf]
      %v1364 = vld [vmem:[%s1342 + $0x54] sm:$0xf]
      %v1365 = vld [vmem:[%s1342 + $0x58] sm:$0xf]
      %v1366 = vld [vmem:[%s1342 + $0x5c] sm:$0xf]
      %v1367 = vld [vmem:[%s1342 + $0x60] sm:$0xf]
      %v1368 = vld [vmem:[%s1342 + $0x64] sm:$0xf]
      %v1369 = vld [vmem:[%s1342 + $0x68] sm:$0xf]
      %v1370 = vld [vmem:[%s1342 + $0x6c] sm:$0xf]
      %v1371 = vld [vmem:[%s1342 + $0x70] sm:$0xf]
      %v1372 = vld [vmem:[%s1342 + $0x74] sm:$0xf]
      %v1373 = vld [vmem:[%s1342 + $0x78] sm:$0xf]
      %v1374 = vld [vmem:[%s1342 + $0x7c] sm:$0xf]
      %v1375 = vld [vmem:[%s1342 + $0x80] sm:$0xf]
      %v1376 = vld [vmem:[%s1342 + $0x84] sm:$0xf]
      %v1377 = vld [vmem:[%s1342 + $0x88] sm:$0xf]
      %v1378 = vld [vmem:[%s1342 + $0x8c] sm:$0xf]
      %v1379 = vld [vmem:[%s1342 + $0x90] sm:$0xf]
      %v1380 = vld [vmem:[%s1342 + $0x94] sm:$0xf]
      %v1381 = vld [vmem:[%s1342 + $0x98] sm:$0xf]
      %v1382 = vld [vmem:[%s1342 + $0x9c] sm:$0xf]
      %vm1389 = vcmask 1045504
      %v1390 = vrot.slane %v1336, 2
      %v1391 = vrot.slane %v1339, 2
      %v1392 = vsel %vm1389, %v1390, %v1391
      %v1393 = vrot.slane %v1337, 2
      %v1394 = vrot.slane %v1340, 2
      %v1395 = vsel %vm1389, %v1393, %v1394
      %v1396 = vrot.slane %v1338, 2
      %v1397 = vrot.slane %v1341, 2
      %v1398 = vsel %vm1389, %v1396, %v1397
      %v1441 = vunpack.c.l.b16 %v1343
      %v1442 = vunpack.c.l.b16 %v1344
      %v1443 = vunpack.c.l.b16 %v1345
      %v1444 = vunpack.c.l.b16 %v1346
      %v1445 = vunpack.c.l.b16 %v1347
      %v1446 = vunpack.c.l.b16 %v1348
      %v1447 = vunpack.c.l.b16 %v1349
      %v1448 = vunpack.c.l.b16 %v1350
      %v1449 = vunpack.c.l.b16 %v1351
      %v1450 = vunpack.c.l.b16 %v1352
      %v1451 = vunpack.c.l.b16 %v1353
      %v1452 = vunpack.c.l.b16 %v1354
      %v1453 = vunpack.c.l.b16 %v1355
      %v1454 = vunpack.c.l.b16 %v1356
      %v1455 = vunpack.c.l.b16 %v1357
      %v1456 = vunpack.c.l.b16 %v1358
      %v1457 = vunpack.c.l.b16 %v1359
      %v1458 = vunpack.c.l.b16 %v1360
      %v1459 = vunpack.c.l.b16 %v1361
      %v1460 = vunpack.c.l.b16 %v1362
      %v1461 = vunpack.c.l.b16 %v1363
      %v1462 = vunpack.c.l.b16 %v1364
      %v1463 = vunpack.c.l.b16 %v1365
      %v1464 = vunpack.c.l.b16 %v1366
      %v1465 = vunpack.c.l.b16 %v1367
      %v1466 = vunpack.c.l.b16 %v1368
      %v1467 = vunpack.c.l.b16 %v1369
      %v1468 = vunpack.c.l.b16 %v1370
      %v1469 = vunpack.c.l.b16 %v1371
      %v1470 = vunpack.c.l.b16 %v1372
      %v1471 = vunpack.c.l.b16 %v1373
      %v1472 = vunpack.c.l.b16 %v1374
      %v1473 = vunpack.c.l.b16 %v1375
      %v1474 = vunpack.c.l.b16 %v1376
      %v1475 = vunpack.c.l.b16 %v1377
      %v1476 = vunpack.c.l.b16 %v1378
      %v1477 = vunpack.c.l.b16 %v1379
      %v1478 = vunpack.c.l.b16 %v1380
      %v1479 = vunpack.c.l.b16 %v1381
      %v1480 = vunpack.c.l.b16 %v1382
      %v1481 = vpack.c.b16 %v1442, %v1441
      %v1482 = vpack.c.b16 %v1444, %v1443
      %v1483 = vpack.c.b16 %v1446, %v1445
      %v1484 = vpack.c.b16 %v1448, %v1447
      %v1485 = vpack.c.b16 %v1450, %v1449
      %v1486 = vpack.c.b16 %v1452, %v1451
      %v1487 = vpack.c.b16 %v1454, %v1453
      %v1488 = vpack.c.b16 %v1456, %v1455
      %v1489 = vpack.c.b16 %v1458, %v1457
      %v1490 = vpack.c.b16 %v1460, %v1459
      %v1491 = vpack.c.b16 %v1462, %v1461
      %v1492 = vpack.c.b16 %v1464, %v1463
      %v1493 = vpack.c.b16 %v1466, %v1465
      %v1494 = vpack.c.b16 %v1468, %v1467
      %v1495 = vpack.c.b16 %v1470, %v1469
      %v1496 = vpack.c.b16 %v1472, %v1471
      %v1497 = vpack.c.b16 %v1474, %v1473
      %v1498 = vpack.c.b16 %v1476, %v1475
      %v1499 = vpack.c.b16 %v1478, %v1477
      %v1500 = vpack.c.b16 %v1480, %v1479
      %v1522 = vsel %vm348, %v1398, 0
      %1524 = vmatprep.subr.bf16.mxu0 0
      %1525 = vmatpush1.bf16.msra.mxu0 %v1488
      %1526 = vmatprep.subr.bf16.mxu0 0
      %1527 = vmatpush1.bf16.msra.mxu0 %v1487
      %1528 = vmatprep.subr.bf16.mxu0 0
      %1529 = vmatpush1.bf16.msra.mxu0 %v1486
      %1530 = vmatprep.subr.bf16.mxu0 0
      %1531 = vmatpush1.bf16.msra.mxu0 %v1485
      %1532 = vmatprep.subr.bf16.mxu0 0
      %1533 = vmatpush1.bf16.msra.mxu0 %v1484
      %1534 = vmatprep.subr.bf16.mxu0 0
      %1535 = vmatpush1.bf16.msra.mxu0 %v1483
      %1536 = vmatprep.subr.bf16.mxu0 0
      %1537 = vmatpush1.bf16.msra.mxu0 %v1482
      %1538 = vmatprep.subr.bf16.mxu0 0
      %1539 = vmatpush1.bf16.msra.mxu0 %v1481
      %1540 = vmatprep.subr.bf16.mxu0 0
      %1541 = vmatpush2.bf16.msra.mxu0 %v1496
      %1542 = vmatprep.subr.bf16.mxu0 0
      %1543 = vmatpush2.bf16.msra.mxu0 %v1495
      %1544 = vmatprep.subr.bf16.mxu0 0
      %1545 = vmatpush2.bf16.msra.mxu0 %v1494
      %1546 = vmatprep.subr.bf16.mxu0 0
      %1547 = vmatpush2.bf16.msra.mxu0 %v1493
      %1548 = vmatprep.subr.bf16.mxu0 0
      %1549 = vmatpush2.bf16.msra.mxu0 %v1492
      %1550 = vmatprep.subr.bf16.mxu0 0
      %1551 = vmatpush2.bf16.msra.mxu0 %v1491
      %1552 = vmatprep.subr.bf16.mxu0 0
      %1553 = vmatpush2.bf16.msra.mxu0 %v1490
      %1554 = vmatprep.subr.bf16.mxu0 0
      %1555 = vmatpush2.bf16.msra.mxu0 %v1489
      %1556 = vmatprep.mubr.bf16.mxu0 %v1395
      %1557 = vmatmul.mubr.bf16.gmra.mxu0 %v1392
      %v1558 = vpop.f32.mrf.mxu0
      %v1559 = vadd.f32 0.0, %v1558
      %v1560 = vpop.f32.mrf.mxu0
      %v1561 = vpop.f32.mrf.mxu0
      %v1562 = vadd.f32 0.0, %v1561
      %v1563 = vpop.f32.mrf.mxu0
      %1564 = vdwg.mxu0
      %1565 = vmatprep.subr.bf16.mxu0 0
      %1566 = vmatpush1.bf16.msra.mxu0 0
      %1567 = vmatprep.subr.bf16.mxu0 0
      %1568 = vmatpush1.bf16.msra.mxu0 0
      %1569 = vmatprep.subr.bf16.mxu0 0
      %1570 = vmatpush1.bf16.msra.mxu0 0
      %1571 = vmatprep.subr.bf16.mxu0 0
      %1572 = vmatpush1.bf16.msra.mxu0 0
      %1573 = vmatprep.subr.bf16.mxu0 0
      %1574 = vmatpush1.bf16.msra.mxu0 %v1500
      %1575 = vmatprep.subr.bf16.mxu0 0
      %1576 = vmatpush1.bf16.msra.mxu0 %v1499
      %1577 = vmatprep.subr.bf16.mxu0 0
      %1578 = vmatpush1.bf16.msra.mxu0 %v1498
      %1579 = vmatprep.subr.bf16.mxu0 0
      %1580 = vmatpush1.bf16.msra.mxu0 %v1497
      %1581 = vmatprep.subr.bf16.mxu0 0
      %1582 = vmatpush2.bf16.msra.mxu0 0
      %1583 = vmatprep.subr.bf16.mxu0 0
      %1584 = vmatpush2.bf16.msra.mxu0 0
      %1585 = vmatprep.subr.bf16.mxu0 0
      %1586 = vmatpush2.bf16.msra.mxu0 0
      %1587 = vmatprep.subr.bf16.mxu0 0
      %1588 = vmatpush2.bf16.msra.mxu0 0
      %1589 = vmatprep.subr.bf16.mxu0 0
      %1590 = vmatpush2.bf16.msra.mxu0 0
      %1591 = vmatprep.subr.bf16.mxu0 0
      %1592 = vmatpush2.bf16.msra.mxu0 0
      %1593 = vmatprep.subr.bf16.mxu0 0
      %1594 = vmatpush2.bf16.msra.mxu0 0
      %1595 = vmatprep.subr.bf16.mxu0 0
      %1596 = vmatpush2.bf16.msra.mxu0 0
      %1597 = vmatprep.mubr.bf16.mxu0 0
      %1598 = vmatmul.mubr.bf16.gmra.mxu0 %v1522
      %v1599 = vpop.f32.mrf.mxu0
      %v1600 = vadd.f32 %v1559, %v1599
      %v1601 = vpop.f32.mrf.mxu0
      %v1602 = vpop.f32.mrf.mxu0
      %v1603 = vadd.f32 %v1562, %v1602
      %v1604 = vpop.f32.mrf.mxu0
      %1605 = vdwg.mxu0
      %v1606 = vadd.f32 %v1328, %v1600
      %v1607 = vadd.f32 %v1329, %v1603
      %vm1608 = vcmp.ge.f32.partialorder %v1606, 0.0
      %vm1609 = vcmp.ge.f32.partialorder %v1607, 0.0
      %v1610 = vmul.f32 %v1606, 0.01
      %v1611 = vmul.f32 %v1607, 0.01
      %v1612 = vsel %vm1608, %v1606, %v1610
      %v1613 = vsel %vm1609, %v1607, %v1611
      %1614 = vst [vmem:[%s170] sm:$0xff] %v1612
      %1615 = vst [vmem:[%s170 + $0x8] sm:$0xff] %v1613
      %p1616 = scmp.lt.s32.totalorder %s14, 1
      %s1617 = scalar_select %p1616, %s14, 1
      %s1618 = smul.addr %s1617, 2
      %s1619 = smul.addr %s1618, 8
      %s1620 = scalar_lea.vmem %s3, %s1619
      // Predicated region
      $region33: #{forward.7} parent=31 // pred_check
        %p1621 = pneg %p100
      $region34: #{forward.7} parent=31 // pred_check_branch
        %1623 = sbr.rel (%p1621) target = $region36
      $region35: #{forward.7} parent=31 // pred_region
        _
      $region36: #{forward.7} parent=31 // pred_fallthru
        _
    $region32: #{forward.7} parent=5 // pred_fallthru
      _
    %p1624 = scmp.le.s32.totalorder 2, %s9
    // Predicated region
    $region37: #{forward.7} parent=5 // pred_check
      %p1625 = pneg %p1624
    $region38: #{forward.7} parent=5 // pred_check_branch
      %1627 = sbr.rel (%p1625) target = $region40
    $region39: #{forward.7} parent=5 // pred_region
      %s1628 = ssub.s32 %s9, 2
      // Predicated region
      $region41: #{forward.7} parent=39 // pred_check
        %p1629 = pneg %p106
      $region42: #{forward.7} parent=39 // pred_check_branch
        %1631 = sbr.rel (%p1629) target = $region44
      $region43: #{forward.7} parent=39 // pred_region
        %p1632 = scmp.lt.s32.totalorder %s15, 1
        %s1633 = scalar_select %p1632, %s15, 1
        %s1634 = smul.addr %s1633, 2
        %s1635 = smul.addr %s1634, 8
        %s1636 = scalar_lea.vmem %s3, %s1635
      $region44: #{forward.7} parent=39 // pred_fallthru
        _
    $region40: #{forward.7} parent=5 // pred_fallthru
      _
  $region6: #{forward.7} parent=0 // loop_footer
    %s13 = sadd.s32 1, %s9
  $region7: #{forward.7} parent=0 // loop_footer_branch
    %8 = sbr.rel target = $region3
  $region8: #{forward.7} parent=0 // loop_exit
    _

// kernel: tile.33
$region0: #{tile.33}
  #allocation0 [shape = 's32[1]{0}', space=sflag, size = 0x4, scoped, tag = 'scoped memory for tile.33']
  %s0 = inlined_call_operand.vmem [shape: f32[4], index: 0, kind: input, shape index: {}]
  %s1 = inlined_call_operand.vmem [shape: f32[32,4], index: 1, kind: output, shape index: {}]
  // Predicated region
  $region2: #{tile.33} parent=0 // pred_check
    _
  $region3: #{tile.33} parent=0 // pred_check_branch
    %3 = sbr.rel (0) target = $region5
  $region4: #{tile.33} parent=0 // pred_region
    _
  $region5: #{tile.33} parent=0 // pred_fallthru
    _
  %v4 = vld [vmem:[%s0] ss:$0 sm:$0xff]
  %5 = vst [vmem:[%s1] sm:$0xff] %v4
  %s6 = scalar_lea.vmem %s1, 8
  %7 = vst [vmem:[%s6] sm:$0xff] %v4
  %s8 = scalar_lea.vmem %s1, 16
  %9 = vst [vmem:[%s8] sm:$0xff] %v4
  %s10 = scalar_lea.vmem %s1, 24
  %11 = vst [vmem:[%s10] sm:$0xff] %v4

// kernel: tile.34
$region0: #{tile.34}
  %s0 = inlined_call_operand.vmem [shape: f32[32,4], index: 0, kind: input, shape index: {}]
  %s1 = inlined_call_operand.vmem [shape: f32[1,128], index: 1, kind: output, shape index: {}]
  $region1: #{tile.34} parent=0
    #allocation0 [shape = 'u8[4096]{0}', space=vmem, size = 0x1000, scoped, tag = 'scoped mem for output reshape']
    %v2 = vld [vmem:[%s0] sm:$0x1]
    %vm3 = vcmask 31744
    %4 = vst.msk [vmem:[#allocation0] sm:$0x1] %vm3, %v2
    %s5 = scalar_lea.vmem %s0, 31
    %v6 = vld [vmem:[%s5] sm:$0x1]
    %7 = vrot.lane.b32.xlu0 %v6, 124
    %v8 = vpop.permute.xlu0 %7
    %vm9 = vcmask 1048544
    %10 = vst.msk [vmem:[#allocation0] sm:$0x1] %vm9, %v8
    %s11 = scalar_lea.vmem %s0, 30
    %v12 = vld [vmem:[%s11] sm:$0x1]
    %13 = vrot.lane.b32.xlu0 %v12, 120
    %v14 = vpop.permute.xlu0 %13
    %vm15 = vcmask 1015744
    %16 = vst.msk [vmem:[#allocation0] sm:$0x1] %vm15, %v14
    %s17 = scalar_lea.vmem %s0, 29
    %v18 = vld [vmem:[%s17] sm:$0x1]
    %19 = vrot.lane.b32.xlu0 %v18, 116
    %v20 = vpop.permute.xlu0 %19
    %vm21 = vcmask 982944
    %22 = vst.msk [vmem:[#allocation0] sm:$0x1] %vm21, %v20
    %s23 = scalar_lea.vmem %s0, 28
    %v24 = vld [vmem:[%s23] sm:$0x1]
    %25 = vrot.lane.b32.xlu0 %v24, 112
    %v26 = vpop.permute.xlu0 %25
    %vm27 = vcmask 950144
    %28 = vst.msk [vmem:[#allocation0] sm:$0x1] %vm27, %v26
    %s29 = scalar_lea.vmem %s0, 27
    %v30 = vld [vmem:[%s29] sm:$0x1]
    %31 = vrot.lane.b32.xlu0 %v30, 108
    %v32 = vpop.permute.xlu0 %31
    %vm33 = vcmask 917344
    %34 = vst.msk [vmem:[#allocation0] sm:$0x1] %vm33, %v32
    %s35 = scalar_lea.vmem %s0, 26
    %v36 = vld [vmem:[%s35] sm:$0x1]
    %37 = vrot.lane.b32.xlu0 %v36, 104
    %v38 = vpop.permute.xlu0 %37
    %vm39 = vcmask 884544
    %40 = vst.msk [vmem:[#allocation0] sm:$0x1] %vm39, %v38
    %s41 = scalar_lea.vmem %s0, 25
    %v42 = vld [vmem:[%s41] sm:$0x1]
    %43 = vrot.lane.b32.xlu0 %v42, 100
    %v44 = vpop.permute.xlu0 %43
    %vm45 = vcmask 851744
    %46 = vst.msk [vmem:[#allocation0] sm:$0x1] %vm45, %v44
    %s47 = scalar_lea.vmem %s0, 24
    %v48 = vld [vmem:[%s47] sm:$0x1]
    %49 = vrot.lane.b32.xlu0 %v48, 96
    %v50 = vpop.permute.xlu0 %49
    %vm51 = vcmask 818944
    %52 = vst.msk [vmem:[#allocation0] sm:$0x1] %vm51, %v50
    %s53 = scalar_lea.vmem %s0, 23
    %v54 = vld [vmem:[%s53] sm:$0x1]
    %55 = vrot.lane.b32.xlu0 %v54, 92
    %v56 = vpop.permute.xlu0 %55
    %vm57 = vcmask 786144
    %58 = vst.msk [vmem:[#allocation0] sm:$0x1] %vm57, %v56
    %s59 = scalar_lea.vmem %s0, 22
    %v60 = vld [vmem:[%s59] sm:$0x1]
    %61 = vrot.lane.b32.xlu0 %v60, 88
    %v62 = vpop.permute.xlu0 %61
    %vm63 = vcmask 753344
    %64 = vst.msk [vmem:[#allocation0] sm:$0x1] %vm63, %v62
    %s65 = scalar_lea.vmem %s0, 21
    %v66 = vld [vmem:[%s65] sm:$0x1]
    %67 = vrot.lane.b32.xlu0 %v66, 84
    %v68 = vpop.permute.xlu0 %67
    %vm69 = vcmask 720544
    %70 = vst.msk [vmem:[#allocation0] sm:$0x1] %vm69, %v68
    %s71 = scalar_lea.vmem %s0, 20
    %v72 = vld [vmem:[%s71] sm:$0x1]
    %73 = vrot.lane.b32.xlu0 %v72, 80
    %v74 = vpop.permute.xlu0 %73
    %vm75 = vcmask 687744
    %76 = vst.msk [vmem:[#allocation0] sm:$0x1] %vm75, %v74
    %s77 = scalar_lea.vmem %s0, 19
    %v78 = vld [vmem:[%s77] sm:$0x1]
    %79 = vrot.lane.b32.xlu0 %v78, 76
    %v80 = vpop.permute.xlu0 %79
    %vm81 = vcmask 654944
    %82 = vst.msk [vmem:[#allocation0] sm:$0x1] %vm81, %v80
    %s83 = scalar_lea.vmem %s0, 18
    %v84 = vld [vmem:[%s83] sm:$0x1]
    %85 = vrot.lane.b32.xlu0 %v84, 72
    %v86 = vpop.permute.xlu0 %85
    %vm87 = vcmask 622144
    %88 = vst.msk [vmem:[#allocation0] sm:$0x1] %vm87, %v86
    %s89 = scalar_lea.vmem %s0, 17
    %v90 = vld [vmem:[%s89] sm:$0x1]
    %91 = vrot.lane.b32.xlu0 %v90, 68
    %v92 = vpop.permute.xlu0 %91
    %vm93 = vcmask 589344
    %94 = vst.msk [vmem:[#allocation0] sm:$0x1] %vm93, %v92
    %s95 = scalar_lea.vmem %s0, 16
    %v96 = vld [vmem:[%s95] sm:$0x1]
    %97 = vrot.lane.b32.xlu0 %v96, 64
    %v98 = vpop.permute.xlu0 %97
    %vm99 = vcmask 556544
    %100 = vst.msk [vmem:[#allocation0] sm:$0x1] %vm99, %v98
    %s101 = scalar_lea.vmem %s0, 15
    %v102 = vld [vmem:[%s101] sm:$0x1]
    %103 = vrot.lane.b32.xlu0 %v102, 60
    %v104 = vpop.permute.xlu0 %103
    %vm105 = vcmask 523744
    %106 = vst.msk [vmem:[#allocation0] sm:$0x1] %vm105, %v104
    %s107 = scalar_lea.vmem %s0, 14
    %v108 = vld [vmem:[%s107] sm:$0x1]
    %109 = vrot.lane.b32.xlu0 %v108, 56
    %v110 = vpop.permute.xlu0 %109
    %vm111 = vcmask 490944
    %112 = vst.msk [vmem:[#allocation0] sm:$0x1] %vm111, %v110
    %s113 = scalar_lea.vmem %s0, 13
    %v114 = vld [vmem:[%s113] sm:$0x1]
    %115 = vrot.lane.b32.xlu0 %v114, 52
    %v116 = vpop.permute.xlu0 %115
    %vm117 = vcmask 458144
    %118 = vst.msk [vmem:[#allocation0] sm:$0x1] %vm117, %v116
    %s119 = scalar_lea.vmem %s0, 12
    %v120 = vld [vmem:[%s119] sm:$0x1]
    %121 = vrot.lane.b32.xlu0 %v120, 48
    %v122 = vpop.permute.xlu0 %121
    %vm123 = vcmask 425344
    %124 = vst.msk [vmem:[#allocation0] sm:$0x1] %vm123, %v122
    %s125 = scalar_lea.vmem %s0, 11
    %v126 = vld [vmem:[%s125] sm:$0x1]
    %127 = vrot.lane.b32.xlu0 %v126, 44
    %v128 = vpop.permute.xlu0 %127
    %vm129 = vcmask 392544
    %130 = vst.msk [vmem:[#allocation0] sm:$0x1] %vm129, %v128
    %s131 = scalar_lea.vmem %s0, 10
    %v132 = vld [vmem:[%s131] sm:$0x1]
    %133 = vrot.lane.b32.xlu0 %v132, 40
    %v134 = vpop.permute.xlu0 %133
    %vm135 = vcmask 359744
    %136 = vst.msk [vmem:[#allocation0] sm:$0x1] %vm135, %v134
    %s137 = scalar_lea.vmem %s0, 9
    %v138 = vld [vmem:[%s137] sm:$0x1]
    %139 = vrot.lane.b32.xlu0 %v138, 36
    %v140 = vpop.permute.xlu0 %139
    %vm141 = vcmask 326944
    %142 = vst.msk [vmem:[#allocation0] sm:$0x1] %vm141, %v140
    %s143 = scalar_lea.vmem %s0, 8
    %v144 = vld [vmem:[%s143] sm:$0x1]
    %145 = vrot.lane.b32.xlu0 %v144, 32
    %v146 = vpop.permute.xlu0 %145
    %vm147 = vcmask 294144
    %148 = vst.msk [vmem:[#allocation0] sm:$0x1] %vm147, %v146
    %s149 = scalar_lea.vmem %s0, 7
    %v150 = vld [vmem:[%s149] sm:$0x1]
    %151 = vrot.lane.b32.xlu0 %v150, 28
    %v152 = vpop.permute.xlu0 %151
    %vm153 = vcmask 261344
    %154 = vst.msk [vmem:[#allocation0] sm:$0x1] %vm153, %v152
    %s155 = scalar_lea.vmem %s0, 6
    %v156 = vld [vmem:[%s155] sm:$0x1]
    %157 = vrot.lane.b32.xlu0 %v156, 24
    %v158 = vpop.permute.xlu0 %157
    %vm159 = vcmask 228544
    %160 = vst.msk [vmem:[#allocation0] sm:$0x1] %vm159, %v158
    %s161 = scalar_lea.vmem %s0, 5
    %v162 = vld [vmem:[%s161] sm:$0x1]
    %163 = vrot.lane.b32.xlu0 %v162, 20
    %v164 = vpop.permute.xlu0 %163
    %vm165 = vcmask 195744
    %166 = vst.msk [vmem:[#allocation0] sm:$0x1] %vm165, %v164
    %s167 = scalar_lea.vmem %s0, 4
    %v168 = vld [vmem:[%s167] sm:$0x1]
    %169 = vrot.lane.b32.xlu0 %v168, 16
    %v170 = vpop.permute.xlu0 %169
    %vm171 = vcmask 162944
    %172 = vst.msk [vmem:[#allocation0] sm:$0x1] %vm171, %v170
    %s173 = scalar_lea.vmem %s0, 3
    %v174 = vld [vmem:[%s173] sm:$0x1]
    %175 = vrot.lane.b32.xlu0 %v174, 12
    %v176 = vpop.permute.xlu0 %175
    %vm177 = vcmask 130144
    %178 = vst.msk [vmem:[#allocation0] sm:$0x1] %vm177, %v176
    %s179 = scalar_lea.vmem %s0, 2
    %v180 = vld [vmem:[%s179] sm:$0x1]
    %181 = vrot.lane.b32.xlu0 %v180, 8
    %v182 = vpop.permute.xlu0 %181
    %vm183 = vcmask 97344
    %184 = vst.msk [vmem:[#allocation0] sm:$0x1] %vm183, %v182
    %s185 = scalar_lea.vmem %s0, 1
    %v186 = vld [vmem:[%s185] sm:$0x1]
    %187 = vrot.lane.b32.xlu0 %v186, 4
    %v188 = vpop.permute.xlu0 %187
    %vm189 = vcmask 64544
    %190 = vst.msk [vmem:[#allocation0] sm:$0x1] %vm189, %v188
    %s192 = sshll.u32 1, 1
    %s193 = ssub.s32 %s192, 1
    %v195 = vld [vmem:[#allocation0] sm:%s193]
    %s196 = sshll.u32 1, 1
    %s197 = ssub.s32 %s196, 1
    %198 = vst [vmem:[%s1] sm:%s197] %v195

// kernel: forward.8
$region0: #{forward.8}
  #allocation0 [shape = 'u32[]', space=smem, size = 0x4, offset = 0x4, fixed_abs, tag = 'smem constant byte address 0x4 - core index']
  #allocation1 [shape = 'u32[144,128]{1,0:T(1,128)}', space=vmem, size = 0x12000, scoped, tag = 'internal scratch']
  %s0 = inlined_call_operand.vmem [shape: f32[2,36,288], index: 0, kind: input, shape index: {}]
  %s1 = inlined_call_operand.vmem [shape: bf16[5,288,128], index: 1, kind: input, shape index: {}]
  %s2 = inlined_call_operand.vmem [shape: f32[1,128], index: 2, kind: input, shape index: {}]
  %s3 = inlined_call_operand.vmem [shape: f32[2,32,128], index: 3, kind: output, shape index: {}]
  %s4 = sld [smem:[#allocation0]]
  $region45: #{forward.8} parent=0
    _
  %s6 = ssub.s32 1, %s4
  %s7 = scalar_select 0, %s6, %s4
  loop: start=0, step=1, limit=4
  $region2: #{forward.8} parent=0 // loop_pre_header
    _
  $region3: #{forward.8} parent=0 // loop_header
    %s9 = sphi 0, %s13
    %p10 = scmp.ge.s32.totalorder %s9, 4
    %s19 = sphi 0, %s21
    %s22 = sphi 0, %s19
    %s23 = sphi 0, %s22
    %s39 = sphi 0, %s23
    %s43 = sphi 0, %s43
    %s45 = sphi 0, %s43
    %s46 = sphi 0, %s45
    %s60 = sphi 0, %s46
    %s64 = sphi 0, %s64
    %s66 = sphi 0, %s64
    %s67 = sphi 0, %s66
    %s81 = sphi 0, %s67
    %s87 = sphi 0, %s89
    %s90 = sphi 0, %s87
    %s91 = sphi 0, %s90
    %s107 = sphi 0, %s91
  $region4: #{forward.8} parent=0 // loop_header_branch
    %12 = sbr.rel (%p10) target = $region8
  $region5: #{forward.8} parent=0 // loop_body
    %s14 = ssub.s32 %s9, 1
    %s15 = ssub.s32 %s9, 2
    %s16 = sadd.s32 %s9, 1
    %s17 = ssub.s32 %s9, %s16
    %p18 = scmp.eq.s32.totalorder %s17, 0
    %s20 = sadd.s32 %s19, 1
    %s21 = scalar_select %p18, %s19, %s20
    %p24 = pneg %p18
    %p25 = scmp.eq.s32.totalorder %s9, 1
    %p26 = por %p24, %p25
    %p27 = scmp.ne.s32.totalorder %s19, %s22
    %p28 = scmp.eq.s32.totalorder %s9, 0
    %p29 = por %p27, %p28
    %p30 = scmp.ne.s32.totalorder %s19, %s22
    %p31 = scmp.eq.s32.totalorder %s14, 1
    %p32 = por %p30, %p31
    %p33 = scmp.ne.s32.totalorder %s22, %s23
    %p34 = scmp.eq.s32.totalorder %s14, 0
    %p35 = por %p33, %p34
    %p36 = scmp.ne.s32.totalorder %s22, %s23
    %p37 = scmp.eq.s32.totalorder %s15, 1
    %p38 = por %p36, %p37
    %p40 = scmp.ne.s32.totalorder %s23, %s39
    %p41 = scmp.eq.s32.totalorder %s15, 0
    %p42 = por %p40, %p41
    %s44 = sadd.s32 %s43, 1
    %p47 = scmp.eq.s32.totalorder %s9, 1
    %p48 = scmp.ne.s32.totalorder %s43, %s45
    %p49 = scmp.eq.s32.totalorder %s9, 0
    %p50 = por %p48, %p49
    %p51 = scmp.ne.s32.totalorder %s43, %s45
    %p52 = scmp.eq.s32.totalorder %s14, 1
    %p53 = por %p51, %p52
    %p54 = scmp.ne.s32.totalorder %s45, %s46
    %p55 = scmp.eq.s32.totalorder %s14, 0
    %p56 = por %p54, %p55
    %p57 = scmp.ne.s32.totalorder %s45, %s46
    %p58 = scmp.eq.s32.totalorder %s15, 1
    %p59 = por %p57, %p58
    %p61 = scmp.ne.s32.totalorder %s46, %s60
    %p62 = scmp.eq.s32.totalorder %s15, 0
    %p63 = por %p61, %p62
    %s65 = sadd.s32 %s64, 1
    %p68 = scmp.eq.s32.totalorder %s9, 1
    %p69 = scmp.ne.s32.totalorder %s64, %s66
    %p70 = scmp.eq.s32.totalorder %s9, 0
    %p71 = por %p69, %p70
    %p72 = scmp.ne.s32.totalorder %s64, %s66
    %p73 = scmp.eq.s32.totalorder %s14, 1
    %p74 = por %p72, %p73
    %p75 = scmp.ne.s32.totalorder %s66, %s67
    %p76 = scmp.eq.s32.totalorder %s14, 0
    %p77 = por %p75, %p76
    %p78 = scmp.ne.s32.totalorder %s66, %s67
    %p79 = scmp.eq.s32.totalorder %s15, 1
    %p80 = por %p78, %p79
    %p82 = scmp.ne.s32.totalorder %s67, %s81
    %p83 = scmp.eq.s32.totalorder %s15, 0
    %p84 = por %p82, %p83
    %s85 = ssub.s32 %s9, %s16
    %p86 = scmp.eq.s32.totalorder %s85, 0
    %s88 = sadd.s32 %s87, 1
    %s89 = scalar_select %p86, %s87, %s88
    %p92 = pneg %p86
    %p93 = scmp.eq.s32.totalorder %s9, 1
    %p94 = por %p92, %p93
    %p95 = scmp.ne.s32.totalorder %s87, %s90
    %p96 = scmp.eq.s32.totalorder %s9, 0
    %p97 = por %p95, %p96
    %p98 = scmp.ne.s32.totalorder %s87, %s90
    %p99 = scmp.eq.s32.totalorder %s14, 1
    %p100 = por %p98, %p99
    %p101 = scmp.ne.s32.totalorder %s90, %s91
    %p102 = scmp.eq.s32.totalorder %s14, 0
    %p103 = por %p101, %p102
    %p104 = scmp.ne.s32.totalorder %s90, %s91
    %p105 = scmp.eq.s32.totalorder %s15, 1
    %p106 = por %p104, %p105
    %p108 = scmp.ne.s32.totalorder %s91, %s107
    %p109 = scmp.eq.s32.totalorder %s15, 0
    %p110 = por %p108, %p109
    %p111 = scmp.le.s32.totalorder 1, %s9
    %p112 = scmp.lt.s32.totalorder %s9, 3
    %p113 = pnand %p111, %p112
    %p114 = pneg %p113
    // Predicated region
    $region9: #{forward.8} parent=5 // pred_check
      _
    $region10: #{forward.8} parent=5 // pred_check_branch
      %116 = sbr.rel (%p113) target = $region12
    $region11: #{forward.8} parent=5 // pred_region
      %s117 = ssub.s32 %s9, 1
      // Predicated region
      $region13: #{forward.8} parent=11 // pred_check
        %p118 = pneg %p56
      $region14: #{forward.8} parent=11 // pred_check_branch
        %120 = sbr.rel (%p118) target = $region16
      $region15: #{forward.8} parent=11 // pred_region
        _
      $region16: #{forward.8} parent=11 // pred_fallthru
        _
      // Predicated region
      $region17: #{forward.8} parent=11 // pred_check
        %p121 = pneg %p77
      $region18: #{forward.8} parent=11 // pred_check_branch
        %123 = sbr.rel (%p121) target = $region20
      $region19: #{forward.8} parent=11 // pred_region
        _
      $region20: #{forward.8} parent=11 // pred_fallthru
        _
    $region12: #{forward.8} parent=5 // pred_fallthru
      _
    %p124 = scmp.lt.s32.totalorder %s9, 2
    // Predicated region
    $region21: #{forward.8} parent=5 // pred_check
      %p125 = pneg %p124
    $region22: #{forward.8} parent=5 // pred_check_branch
      %127 = sbr.rel (%p125) target = $region24
    $region23: #{forward.8} parent=5 // pred_region
      // Predicated region
      $region25: #{forward.8} parent=23 // pred_check
        %p128 = pneg %p29
      $region26: #{forward.8} parent=23 // pred_check_branch
        %130 = sbr.rel (%p128) target = $region28
      $region27: #{forward.8} parent=23 // pred_region
        %p131 = scmp.lt.s32.totalorder %s9, 1
        %s132 = scalar_select %p131, %s9, 1
        %s133 = smul.addr %s132, 15
        %s134 = smul.addr %s133, 8
        %s135 = scalar_lea.vmem %s0, %s134
      $region28: #{forward.8} parent=23 // pred_fallthru
        _
    $region24: #{forward.8} parent=5 // pred_fallthru
      _
    %p136 = scmp.le.s32.totalorder 1, %s9
    %p137 = scmp.lt.s32.totalorder %s9, 3
    %p138 = pnand %p136, %p137
    %p139 = pneg %p138
    // Predicated region
    $region29: #{forward.8} parent=5 // pred_check
      _
    $region30: #{forward.8} parent=5 // pred_check_branch
      %141 = sbr.rel (%p138) target = $region32
    $region31: #{forward.8} parent=5 // pred_region
      %s142 = ssub.s32 %s9, 1
      %p143 = scmp.lt.s32.totalorder %s14, 1
      %s144 = scalar_select %p143, %s14, 1
      %s145 = smul.addr %s144, 15
      %s146 = smul.addr %s145, 8
      %s147 = scalar_lea.vmem %s0, %s146
      %p148 = pneg %p35
      %p149 = pneg %p32
      %p150 = pneg %p56
      %p151 = pneg %p53
      %p152 = pneg %p77
      %p153 = pneg %p74
      %p154 = pneg %p103
      %p155 = pneg %p100
      %p156 = scmp.lt.s32.totalorder %s14, 1
      %s157 = scalar_select %p156, %s14, 1
      %s158 = smul.addr %s157, 4
      %s159 = smul.addr %s158, 8
      %s160 = scalar_lea.vmem %s3, %s159
      %p161 = scmp.lt.s32.totalorder %s14, 1
      %s162 = scalar_select %p161, %s14, 1
      %s163 = smul.addr %s162, 15
      %s164 = smul.addr %s163, 8
      %s165 = scalar_lea.vmem %s0, %s164
      %p166 = scmp.lt.s32.totalorder %s14, 1
      %s167 = scalar_select %p166, %s14, 1
      %s168 = smul.addr %s167, 4
      %s169 = smul.addr %s168, 8
      %s170 = scalar_lea.vmem %s3, %s169
      %v172 = vld [vmem:[%s2] sm:$0x1]
      %v174 = vlaneseq
      %v175 = vshrl.u32 %v174, 7
      %v176 = vsub.s32 0, %v175
      %v177 = vrot.slane %v172, %v176
      %v179 = vld [vmem:[%s165] sm:$0xff]
      %v180 = vld [vmem:[%s165 + $0x8] sm:$0xff]
      %v181 = vld [vmem:[%s165 + $0x10] sm:$0xff]
      %v182 = vld [vmem:[%s165 + $0x18] sm:$0xff]
      %v183 = vld [vmem:[%s165 + $0x20] sm:$0xff]
      %v184 = vld [vmem:[%s165 + $0x28] sm:$0xff]
      %v185 = vld [vmem:[%s165 + $0x30] sm:$0xff]
      %v186 = vld [vmem:[%s165 + $0x38] sm:$0xff]
      %v187 = vld [vmem:[%s165 + $0x40] sm:$0xff]
      %v188 = vld [vmem:[%s165 + $0x48] sm:$0xff]
      %v189 = vld [vmem:[%s165 + $0x50] sm:$0xff]
      %v190 = vld [vmem:[%s165 + $0x58] sm:$0xff]
      %v191 = vpack.c.bf16 %v182, %v179
      %v192 = vpack.c.bf16 %v183, %v180
      %v193 = vpack.c.bf16 %v184, %v181
      %v194 = vpack.c.bf16 %v188, %v185
      %v195 = vpack.c.bf16 %v189, %v186
      %v196 = vpack.c.bf16 %v190, %v187
      %v197 = vld [vmem:[%s1] sm:$0xf]
      %v198 = vld [vmem:[%s1 + $0x4] sm:$0xf]
      %v199 = vld [vmem:[%s1 + $0x8] sm:$0xf]
      %v200 = vld [vmem:[%s1 + $0xc] sm:$0xf]
      %v201 = vld [vmem:[%s1 + $0x10] sm:$0xf]
      %v202 = vld [vmem:[%s1 + $0x14] sm:$0xf]
      %v203 = vld [vmem:[%s1 + $0x18] sm:$0xf]
      %v204 = vld [vmem:[%s1 + $0x1c] sm:$0xf]
      %v205 = vld [vmem:[%s1 + $0x20] sm:$0xf]
      %v206 = vld [vmem:[%s1 + $0x24] sm:$0xf]
      %v207 = vld [vmem:[%s1 + $0x28] sm:$0xf]
      %v208 = vld [vmem:[%s1 + $0x2c] sm:$0xf]
      %v209 = vld [vmem:[%s1 + $0x30] sm:$0xf]
      %v210 = vld [vmem:[%s1 + $0x34] sm:$0xf]
      %v211 = vld [vmem:[%s1 + $0x38] sm:$0xf]
      %v212 = vld [vmem:[%s1 + $0x3c] sm:$0xf]
      %v213 = vld [vmem:[%s1 + $0x40] sm:$0xf]
      %v214 = vld [vmem:[%s1 + $0x44] sm:$0xf]
      %v215 = vld [vmem:[%s1 + $0x48] sm:$0xf]
      %v216 = vld [vmem:[%s1 + $0x4c] sm:$0xf]
      %v217 = vld [vmem:[%s1 + $0x50] sm:$0xf]
      %v218 = vld [vmem:[%s1 + $0x54] sm:$0xf]
      %v219 = vld [vmem:[%s1 + $0x58] sm:$0xf]
      %v220 = vld [vmem:[%s1 + $0x5c] sm:$0xf]
      %v221 = vld [vmem:[%s1 + $0x60] sm:$0xf]
      %v222 = vld [vmem:[%s1 + $0x64] sm:$0xf]
      %v223 = vld [vmem:[%s1 + $0x68] sm:$0xf]
      %v224 = vld [vmem:[%s1 + $0x6c] sm:$0xf]
      %v225 = vld [vmem:[%s1 + $0x70] sm:$0xf]
      %v226 = vld [vmem:[%s1 + $0x74] sm:$0xf]
      %v227 = vld [vmem:[%s1 + $0x78] sm:$0xf]
      %v228 = vld [vmem:[%s1 + $0x7c] sm:$0xf]
      %v229 = vld [vmem:[%s1 + $0x80] sm:$0xf]
      %v230 = vld [vmem:[%s1 + $0x84] sm:$0xf]
      %v231 = vld [vmem:[%s1 + $0x88] sm:$0xf]
      %v232 = vld [vmem:[%s1 + $0x8c] sm:$0xf]
      %v269 = vunpack.c.l.b16 %v197
      %v270 = vunpack.c.l.b16 %v198
      %v271 = vunpack.c.l.b16 %v199
      %v272 = vunpack.c.l.b16 %v200
      %v273 = vunpack.c.l.b16 %v201
      %v274 = vunpack.c.l.b16 %v202
      %v275 = vunpack.c.l.b16 %v203
      %v276 = vunpack.c.l.b16 %v204
      %v277 = vunpack.c.l.b16 %v205
      %v278 = vunpack.c.l.b16 %v206
      %v279 = vunpack.c.l.b16 %v207
      %v280 = vunpack.c.l.b16 %v208
      %v281 = vunpack.c.l.b16 %v209
      %v282 = vunpack.c.l.b16 %v210
      %v283 = vunpack.c.l.b16 %v211
      %v284 = vunpack.c.l.b16 %v212
      %v285 = vunpack.c.l.b16 %v213
      %v286 = vunpack.c.l.b16 %v214
      %v287 = vunpack.c.l.b16 %v215
      %v288 = vunpack.c.l.b16 %v216
      %v289 = vunpack.c.l.b16 %v217
      %v290 = vunpack.c.l.b16 %v218
      %v291 = vunpack.c.l.b16 %v219
      %v292 = vunpack.c.l.b16 %v220
      %v293 = vunpack.c.l.b16 %v221
      %v294 = vunpack.c.l.b16 %v222
      %v295 = vunpack.c.l.b16 %v223
      %v296 = vunpack.c.l.b16 %v224
      %v297 = vunpack.c.l.b16 %v225
      %v298 = vunpack.c.l.b16 %v226
      %v299 = vunpack.c.l.b16 %v227
      %v300 = vunpack.c.l.b16 %v228
      %v301 = vunpack.c.l.b16 %v229
      %v302 = vunpack.c.l.b16 %v230
      %v303 = vunpack.c.l.b16 %v231
      %v304 = vunpack.c.l.b16 %v232
      %v305 = vpack.c.b16 %v270, %v269
      %v306 = vpack.c.b16 %v272, %v271
      %v307 = vpack.c.b16 %v274, %v273
      %v308 = vpack.c.b16 %v276, %v275
      %v309 = vpack.c.b16 %v278, %v277
      %v310 = vpack.c.b16 %v280, %v279
      %v311 = vpack.c.b16 %v282, %v281
      %v312 = vpack.c.b16 %v284, %v283
      %v313 = vpack.c.b16 %v286, %v285
      %v314 = vpack.c.b16 %v288, %v287
      %v315 = vpack.c.b16 %v290, %v289
      %v316 = vpack.c.b16 %v292, %v291
      %v317 = vpack.c.b16 %v294, %v293
      %v318 = vpack.c.b16 %v296, %v295
      %v319 = vpack.c.b16 %v298, %v297
      %v320 = vpack.c.b16 %v300, %v299
      %v321 = vpack.c.b16 %v302, %v301
      %v322 = vpack.c.b16 %v304, %v303
      %vm341 = vcmask 261120
      %v343 = vsel %vm341, %v193, 0
      %v346 = vsel %vm341, %v196, 0
      %348 = vmatprep.subr.bf16.mxu0 0
      %349 = vmatpush1.bf16.msra.mxu0 %v312
      %350 = vmatprep.subr.bf16.mxu0 0
      %351 = vmatpush1.bf16.msra.mxu0 %v311
      %352 = vmatprep.subr.bf16.mxu0 0
      %353 = vmatpush1.bf16.msra.mxu0 %v310
      %354 = vmatprep.subr.bf16.mxu0 0
      %355 = vmatpush1.bf16.msra.mxu0 %v309
      %356 = vmatprep.subr.bf16.mxu0 0
      %357 = vmatpush1.bf16.msra.mxu0 %v308
      %358 = vmatprep.subr.bf16.mxu0 0
      %359 = vmatpush1.bf16.msra.mxu0 %v307
      %360 = vmatprep.subr.bf16.mxu0 0
      %361 = vmatpush1.bf16.msra.mxu0 %v306
      %362 = vmatprep.subr.bf16.mxu0 0
      %363 = vmatpush1.bf16.msra.mxu0 %v305
      %364 = vmatprep.subr.bf16.mxu0 0
      %365 = vmatpush2.bf16.msra.mxu0 %v320
      %366 = vmatprep.subr.bf16.mxu0 0
      %367 = vmatpush2.bf16.msra.mxu0 %v319
      %368 = vmatprep.subr.bf16.mxu0 0
      %369 = vmatpush2.bf16.msra.mxu0 %v318
      %370 = vmatprep.subr.bf16.mxu0 0
      %371 = vmatpush2.bf16.msra.mxu0 %v317
      %372 = vmatprep.subr.bf16.mxu0 0
      %373 = vmatpush2.bf16.msra.mxu0 %v316
      %374 = vmatprep.subr.bf16.mxu0 0
      %375 = vmatpush2.bf16.msra.mxu0 %v315
      %376 = vmatprep.subr.bf16.mxu0 0
      %377 = vmatpush2.bf16.msra.mxu0 %v314
      %378 = vmatprep.subr.bf16.mxu0 0
      %379 = vmatpush2.bf16.msra.mxu0 %v313
      %380 = vmatprep.mubr.bf16.mxu0 %v192
      %381 = vmatmul.mubr.bf16.gmra.mxu0 %v191
      %v382 = vpop.f32.mrf.mxu0
      %v383 = vadd.f32 0.0, %v382
      %v384 = vpop.f32.mrf.mxu0
      %v385 = vpop.f32.mrf.mxu0
      %v386 = vadd.f32 0.0, %v385
      %v387 = vpop.f32.mrf.mxu0
      %388 = vmatprep.mubr.bf16.mxu0 %v195
      %389 = vmatmul.mubr.bf16.gmra.mxu0 %v194
      %v390 = vpop.f32.mrf.mxu0
      %v391 = vadd.f32 0.0, %v390
      %v392 = vpop.f32.mrf.mxu0
      %v393 = vpop.f32.mrf.mxu0
      %v394 = vadd.f32 0.0, %v393
      %v395 = vpop.f32.mrf.mxu0
      %396 = vdwg.mxu0
      %397 = vmatprep.subr.bf16.mxu0 0
      %398 = vmatpush1.bf16.msra.mxu0 0
      %399 = vmatprep.subr.bf16.mxu0 0
      %400 = vmatpush1.bf16.msra.mxu0 0
      %401 = vmatprep.subr.bf16.mxu0 0
      %402 = vmatpush1.bf16.msra.mxu0 0
      %403 = vmatprep.subr.bf16.mxu0 0
      %404 = vmatpush1.bf16.msra.mxu0 0
      %405 = vmatprep.subr.bf16.mxu0 0
      %406 = vmatpush1.bf16.msra.mxu0 0
      %407 = vmatprep.subr.bf16.mxu0 0
      %408 = vmatpush1.bf16.msra.mxu0 0
      %409 = vmatprep.subr.bf16.mxu0 0
      %410 = vmatpush1.bf16.msra.mxu0 %v322
      %411 = vmatprep.subr.bf16.mxu0 0
      %412 = vmatpush1.bf16.msra.mxu0 %v321
      %413 = vmatprep.subr.bf16.mxu0 0
      %414 = vmatpush2.bf16.msra.mxu0 0
      %415 = vmatprep.subr.bf16.mxu0 0
      %416 = vmatpush2.bf16.msra.mxu0 0
      %417 = vmatprep.subr.bf16.mxu0 0
      %418 = vmatpush2.bf16.msra.mxu0 0
      %419 = vmatprep.subr.bf16.mxu0 0
      %420 = vmatpush2.bf16.msra.mxu0 0
      %421 = vmatprep.subr.bf16.mxu0 0
      %422 = vmatpush2.bf16.msra.mxu0 0
      %423 = vmatprep.subr.bf16.mxu0 0
      %424 = vmatpush2.bf16.msra.mxu0 0
      %425 = vmatprep.subr.bf16.mxu0 0
      %426 = vmatpush2.bf16.msra.mxu0 0
      %427 = vmatprep.subr.bf16.mxu0 0
      %428 = vmatpush2.bf16.msra.mxu0 0
      %429 = vmatprep.mubr.bf16.mxu0 0
      %430 = vmatmul.mubr.bf16.gmra.mxu0 %v343
      %v431 = vpop.f32.mrf.mxu0
      %v432 = vadd.f32 %v383, %v431
      %v433 = vpop.f32.mrf.mxu0
      %v434 = vpop.f32.mrf.mxu0
      %v435 = vadd.f32 %v386, %v434
      %v436 = vpop.f32.mrf.mxu0
      %437 = vmatprep.mubr.bf16.mxu0 0
      %438 = vmatmul.mubr.bf16.gmra.mxu0 %v346
      %v439 = vpop.f32.mrf.mxu0
      %v440 = vadd.f32 %v391, %v439
      %v441 = vpop.f32.mrf.mxu0
      %v442 = vpop.f32.mrf.mxu0
      %v443 = vadd.f32 %v394, %v442
      %v444 = vpop.f32.mrf.mxu0
      %445 = vdwg.mxu0
      %v446 = vadd.f32 %v177, %v432
      %v447 = vadd.f32 %v177, %v435
      %v448 = vadd.f32 %v177, %v440
      %v449 = vadd.f32 %v177, %v443
      %v450 = vld [vmem:[%s165] sm:$0xfe]
      %v451 = vld [vmem:[%s165 + $0x8] sm:$0xfe]
      %v452 = vld [vmem:[%s165 + $0x10] sm:$0xfe]
      %v453 = vld [vmem:[%s165 + $0x18] sm:$0xff]
      %v454 = vld [vmem:[%s165 + $0x20] sm:$0xff]
      %v455 = vld [vmem:[%s165 + $0x28] sm:$0xff]
      %v456 = vld [vmem:[%s165 + $0x30] sm:$0xff]
      %v457 = vld [vmem:[%s165 + $0x38] sm:$0xff]
      %v458 = vld [vmem:[%s165 + $0x40] sm:$0xff]
      %v459 = vld [vmem:[%s165 + $0x48] sm:$0xff]
      %v460 = vld [vmem:[%s165 + $0x50] sm:$0xff]
      %v461 = vld [vmem:[%s165 + $0x58] sm:$0xff]
      %v462 = vld [vmem:[%s165 + $0x60] sm:$0x1]
      %v463 = vld [vmem:[%s165 + $0x68] sm:$0x1]
      %v464 = vld [vmem:[%s165 + $0x70] sm:$0x1]
      %v465 = vpack.c.bf16 %v453, %v450
      %v466 = vpack.c.bf16 %v454, %v451
      %v467 = vpack.c.bf16 %v455, %v452
      %v468 = vpack.c.bf16 %v459, %v456
      %v469 = vpack.c.bf16 %v460, %v457
      %v470 = vpack.c.bf16 %v461, %v458
      %v471 = vpack.c.bf16 %v462, %v462
      %v472 = vpack.c.bf16 %v463, %v463
      %v473 = vpack.c.bf16 %v464, %v464
      %s474 = scalar_lea.vmem %s1, 144
      %v475 = vld [vmem:[%s474] sm:$0xf]
      %v476 = vld [vmem:[%s474 + $0x4] sm:$0xf]
      %v477 = vld [vmem:[%s474 + $0x8] sm:$0xf]
      %v478 = vld [vmem:[%s474 + $0xc] sm:$0xf]
      %v479 = vld [vmem:[%s474 + $0x10] sm:$0xf]
      %v480 = vld [vmem:[%s474 + $0x14] sm:$0xf]
      %v481 = vld [vmem:[%s474 + $0x18] sm:$0xf]
      %v482 = vld [vmem:[%s474 + $0x1c] sm:$0xf]
      %v483 = vld [vmem:[%s474 + $0x20] sm:$0xf]
      %v484 = vld [vmem:[%s474 + $0x24] sm:$0xf]
      %v485 = vld [vmem:[%s474 + $0x28] sm:$0xf]
      %v486 = vld [vmem:[%s474 + $0x2c] sm:$0xf]
      %v487 = vld [vmem:[%s474 + $0x30] sm:$0xf]
      %v488 = vld [vmem:[%s474 + $0x34] sm:$0xf]
      %v489 = vld [vmem:[%s474 + $0x38] sm:$0xf]
      %v490 = vld [vmem:[%s474 + $0x3c] sm:$0xf]
      %v491 = vld [vmem:[%s474 + $0x40] sm:$0xf]
      %v492 = vld [vmem:[%s474 + $0x44] sm:$0xf]
      %v493 = vld [vmem:[%s474 + $0x48] sm:$0xf]
      %v494 = vld [vmem:[%s474 + $0x4c] sm:$0xf]
      %v495 = vld [vmem:[%s474 + $0x50] sm:$0xf]
      %v496 = vld [vmem:[%s474 + $0x54] sm:$0xf]
      %v497 = vld [vmem:[%s474 + $0x58] sm:$0xf]
      %v498 = vld [vmem:[%s474 + $0x5c] sm:$0xf]
      %v499 = vld [vmem:[%s474 + $0x60] sm:$0xf]
      %v500 = vld [vmem:[%s474 + $0x64] sm:$0xf]
      %v501 = vld [vmem:[%s474 + $0x68] sm:$0xf]
      %v502 = vld [vmem:[%s474 + $0x6c] sm:$0xf]
      %v503 = vld [vmem:[%s474 + $0x70] sm:$0xf]
      %v504 = vld [vmem:[%s474 + $0x74] sm:$0xf]
      %v505 = vld [vmem:[%s474 + $0x78] sm:$0xf]
      %v506 = vld [vmem:[%s474 + $0x7c] sm:$0xf]
      %v507 = vld [vmem:[%s474 + $0x80] sm:$0xf]
      %v508 = vld [vmem:[%s474 + $0x84] sm:$0xf]
      %v509 = vld [vmem:[%s474 + $0x88] sm:$0xf]
      %v510 = vld [vmem:[%s474 + $0x8c] sm:$0xf]
      %vm511 = vsmask.f32 7424
      %v513 = vshrl.u32 %v465, 16
      %v515 = vshll.u32 %v465, 16
      %v517 = vrot.slane %v515, 1
      %v518 = vor.u32 %v513, %v517
      %v520 = vshll.u32 %v468, 16
      %v522 = vrot.slane %v520, 1
      %v523 = vsel %vm511, %v518, %v522
      %v525 = vshrl.u32 %v466, 16
      %v527 = vshll.u32 %v466, 16
      %v529 = vrot.slane %v527, 1
      %v530 = vor.u32 %v525, %v529
      %v532 = vshll.u32 %v469, 16
      %v534 = vrot.slane %v532, 1
      %v535 = vsel %vm511, %v530, %v534
      %v537 = vshrl.u32 %v467, 16
      %v539 = vshll.u32 %v467, 16
      %v541 = vrot.slane %v539, 1
      %v542 = vor.u32 %v537, %v541
      %v544 = vshll.u32 %v470, 16
      %v546 = vrot.slane %v544, 1
      %v547 = vsel %vm511, %v542, %v546
      %v548 = vshrl.u32 %v468, 16
      %v550 = vor.u32 %v548, %v522
      %v552 = vshll.u32 %v471, 16
      %v554 = vrot.slane %v552, 1
      %v555 = vsel %vm511, %v550, %v554
      %v556 = vshrl.u32 %v469, 16
      %v558 = vor.u32 %v556, %v534
      %v560 = vshll.u32 %v472, 16
      %v562 = vrot.slane %v560, 1
      %v563 = vsel %vm511, %v558, %v562
      %v564 = vshrl.u32 %v470, 16
      %v566 = vor.u32 %v564, %v546
      %v568 = vshll.u32 %v473, 16
      %v570 = vrot.slane %v568, 1
      %v571 = vsel %vm511, %v566, %v570
      %v612 = vunpack.c.l.b16 %v475
      %v613 = vunpack.c.l.b16 %v476
      %v614 = vunpack.c.l.b16 %v477
      %v615 = vunpack.c.l.b16 %v478
      %v616 = vunpack.c.l.b16 %v479
      %v617 = vunpack.c.l.b16 %v480
      %v618 = vunpack.c.l.b16 %v481
      %v619 = vunpack.c.l.b16 %v482
      %v620 = vunpack.c.l.b16 %v483
      %v621 = vunpack.c.l.b16 %v484
      %v622 = vunpack.c.l.b16 %v485
      %v623 = vunpack.c.l.b16 %v486
      %v624 = vunpack.c.l.b16 %v487
      %v625 = vunpack.c.l.b16 %v488
      %v626 = vunpack.c.l.b16 %v489
      %v627 = vunpack.c.l.b16 %v490
      %v628 = vunpack.c.l.b16 %v491
      %v629 = vunpack.c.l.b16 %v492
      %v630 = vunpack.c.l.b16 %v493
      %v631 = vunpack.c.l.b16 %v494
      %v632 = vunpack.c.l.b16 %v495
      %v633 = vunpack.c.l.b16 %v496
      %v634 = vunpack.c.l.b16 %v497
      %v635 = vunpack.c.l.b16 %v498
      %v636 = vunpack.c.l.b16 %v499
      %v637 = vunpack.c.l.b16 %v500
      %v638 = vunpack.c.l.b16 %v501
      %v639 = vunpack.c.l.b16 %v502
      %v640 = vunpack.c.l.b16 %v503
      %v641 = vunpack.c.l.b16 %v504
      %v642 = vunpack.c.l.b16 %v505
      %v643 = vunpack.c.l.b16 %v506
      %v644 = vunpack.c.l.b16 %v507
      %v645 = vunpack.c.l.b16 %v508
      %v646 = vunpack.c.l.b16 %v509
      %v647 = vunpack.c.l.b16 %v510
      %v648 = vpack.c.b16 %v613, %v612
      %v649 = vpack.c.b16 %v615, %v614
      %v650 = vpack.c.b16 %v617, %v616
      %v651 = vpack.c.b16 %v619, %v618
      %v652 = vpack.c.b16 %v621, %v620
      %v653 = vpack.c.b16 %v623, %v622
      %v654 = vpack.c.b16 %v625, %v624
      %v655 = vpack.c.b16 %v627, %v626
      %v656 = vpack.c.b16 %v629, %v628
      %v657 = vpack.c.b16 %v631, %v630
      %v658 = vpack.c.b16 %v633, %v632
      %v659 = vpack.c.b16 %v635, %v634
      %v660 = vpack.c.b16 %v637, %v636
      %v661 = vpack.c.b16 %v639, %v638
      %v662 = vpack.c.b16 %v641, %v640
      %v663 = vpack.c.b16 %v643, %v642
      %v664 = vpack.c.b16 %v645, %v644
      %v665 = vpack.c.b16 %v647, %v646
      %v685 = vsel %vm341, %v547, 0
      %v688 = vsel %vm341, %v571, 0
      %690 = vmatprep.subr.bf16.mxu0 0
      %691 = vmatpush1.bf16.msra.mxu0 %v655
      %692 = vmatprep.subr.bf16.mxu0 0
      %693 = vmatpush1.bf16.msra.mxu0 %v654
      %694 = vmatprep.subr.bf16.mxu0 0
      %695 = vmatpush1.bf16.msra.mxu0 %v653
      %696 = vmatprep.subr.bf16.mxu0 0
      %697 = vmatpush1.bf16.msra.mxu0 %v652
      %698 = vmatprep.subr.bf16.mxu0 0
      %699 = vmatpush1.bf16.msra.mxu0 %v651
      %700 = vmatprep.subr.bf16.mxu0 0
      %701 = vmatpush1.bf16.msra.mxu0 %v650
      %702 = vmatprep.subr.bf16.mxu0 0
      %703 = vmatpush1.bf16.msra.mxu0 %v649
      %704 = vmatprep.subr.bf16.mxu0 0
      %705 = vmatpush1.bf16.msra.mxu0 %v648
      %706 = vmatprep.subr.bf16.mxu0 0
      %707 = vmatpush2.bf16.msra.mxu0 %v663
      %708 = vmatprep.subr.bf16.mxu0 0
      %709 = vmatpush2.bf16.msra.mxu0 %v662
      %710 = vmatprep.subr.bf16.mxu0 0
      %711 = vmatpush2.bf16.msra.mxu0 %v661
      %712 = vmatprep.subr.bf16.mxu0 0
      %713 = vmatpush2.bf16.msra.mxu0 %v660
      %714 = vmatprep.subr.bf16.mxu0 0
      %715 = vmatpush2.bf16.msra.mxu0 %v659
      %716 = vmatprep.subr.bf16.mxu0 0
      %717 = vmatpush2.bf16.msra.mxu0 %v658
      %718 = vmatprep.subr.bf16.mxu0 0
      %719 = vmatpush2.bf16.msra.mxu0 %v657
      %720 = vmatprep.subr.bf16.mxu0 0
      %721 = vmatpush2.bf16.msra.mxu0 %v656
      %722 = vmatprep.mubr.bf16.mxu0 %v535
      %723 = vmatmul.mubr.bf16.gmra.mxu0 %v523
      %v724 = vpop.f32.mrf.mxu0
      %v725 = vadd.f32 0.0, %v724
      %v726 = vpop.f32.mrf.mxu0
      %v727 = vpop.f32.mrf.mxu0
      %v728 = vadd.f32 0.0, %v727
      %v729 = vpop.f32.mrf.mxu0
      %730 = vmatprep.mubr.bf16.mxu0 %v563
      %731 = vmatmul.mubr.bf16.gmra.mxu0 %v555
      %v732 = vpop.f32.mrf.mxu0
      %v733 = vadd.f32 0.0, %v732
      %v734 = vpop.f32.mrf.mxu0
      %v735 = vpop.f32.mrf.mxu0
      %v736 = vadd.f32 0.0, %v735
      %v737 = vpop.f32.mrf.mxu0
      %738 = vdwg.mxu0
      %739 = vmatprep.subr.bf16.mxu0 0
      %740 = vmatpush1.bf16.msra.mxu0 0
      %741 = vmatprep.subr.bf16.mxu0 0
      %742 = vmatpush1.bf16.msra.mxu0 0
      %743 = vmatprep.subr.bf16.mxu0 0
      %744 = vmatpush1.bf16.msra.mxu0 0
      %745 = vmatprep.subr.bf16.mxu0 0
      %746 = vmatpush1.bf16.msra.mxu0 0
      %747 = vmatprep.subr.bf16.mxu0 0
      %748 = vmatpush1.bf16.msra.mxu0 0
      %749 = vmatprep.subr.bf16.mxu0 0
      %750 = vmatpush1.bf16.msra.mxu0 0
      %751 = vmatprep.subr.bf16.mxu0 0
      %752 = vmatpush1.bf16.msra.mxu0 %v665
      %753 = vmatprep.subr.bf16.mxu0 0
      %754 = vmatpush1.bf16.msra.mxu0 %v664
      %755 = vmatprep.subr.bf16.mxu0 0
      %756 = vmatpush2.bf16.msra.mxu0 0
      %757 = vmatprep.subr.bf16.mxu0 0
      %758 = vmatpush2.bf16.msra.mxu0 0
      %759 = vmatprep.subr.bf16.mxu0 0
      %760 = vmatpush2.bf16.msra.mxu0 0
      %761 = vmatprep.subr.bf16.mxu0 0
      %762 = vmatpush2.bf16.msra.mxu0 0
      %763 = vmatprep.subr.bf16.mxu0 0
      %764 = vmatpush2.bf16.msra.mxu0 0
      %765 = vmatprep.subr.bf16.mxu0 0
      %766 = vmatpush2.bf16.msra.mxu0 0
      %767 = vmatprep.subr.bf16.mxu0 0
      %768 = vmatpush2.bf16.msra.mxu0 0
      %769 = vmatprep.subr.bf16.mxu0 0
      %770 = vmatpush2.bf16.msra.mxu0 0
      %771 = vmatprep.mubr.bf16.mxu0 0
      %772 = vmatmul.mubr.bf16.gmra.mxu0 %v685
      %v773 = vpop.f32.mrf.mxu0
      %v774 = vadd.f32 %v725, %v773
      %v775 = vpop.f32.mrf.mxu0
      %v776 = vpop.f32.mrf.mxu0
      %v777 = vadd.f32 %v728, %v776
      %v778 = vpop.f32.mrf.mxu0
      %779 = vmatprep.mubr.bf16.mxu0 0
      %780 = vmatmul.mubr.bf16.gmra.mxu0 %v688
      %v781 = vpop.f32.mrf.mxu0
      %v782 = vadd.f32 %v733, %v781
      %v783 = vpop.f32.mrf.mxu0
      %v784 = vpop.f32.mrf.mxu0
      %v785 = vadd.f32 %v736, %v784
      %v786 = vpop.f32.mrf.mxu0
      %787 = vdwg.mxu0
      %v788 = vadd.f32 %v446, %v774
      %v789 = vadd.f32 %v447, %v777
      %v790 = vadd.f32 %v448, %v782
      %v791 = vadd.f32 %v449, %v785
      %v792 = vld [vmem:[%s165] sm:$0xfc]
      %v793 = vld [vmem:[%s165 + $0x8] sm:$0xfc]
      %v794 = vld [vmem:[%s165 + $0x10] sm:$0xfc]
      %v795 = vld [vmem:[%s165 + $0x60] sm:$0x3]
      %v796 = vld [vmem:[%s165 + $0x68] sm:$0x3]
      %v797 = vld [vmem:[%s165 + $0x70] sm:$0x3]
      %v798 = vpack.c.bf16 %v453, %v792
      %v799 = vpack.c.bf16 %v454, %v793
      %v800 = vpack.c.bf16 %v455, %v794
      %v801 = vpack.c.bf16 %v795, %v795
      %v802 = vpack.c.bf16 %v796, %v796
      %v803 = vpack.c.bf16 %v797, %v797
      %s804 = scalar_lea.vmem %s1, 288
      %v805 = vld [vmem:[%s804] sm:$0xf]
      %v806 = vld [vmem:[%s804 + $0x4] sm:$0xf]
      %v807 = vld [vmem:[%s804 + $0x8] sm:$0xf]
      %v808 = vld [vmem:[%s804 + $0xc] sm:$0xf]
      %v809 = vld [vmem:[%s804 + $0x10] sm:$0xf]
      %v810 = vld [vmem:[%s804 + $0x14] sm:$0xf]
      %v811 = vld [vmem:[%s804 + $0x18] sm:$0xf]
      %v812 = vld [vmem:[%s804 + $0x1c] sm:$0xf]
      %v813 = vld [vmem:[%s804 + $0x20] sm:$0xf]
      %v814 = vld [vmem:[%s804 + $0x24] sm:$0xf]
      %v815 = vld [vmem:[%s804 + $0x28] sm:$0xf]
      %v816 = vld [vmem:[%s804 + $0x2c] sm:$0xf]
      %v817 = vld [vmem:[%s804 + $0x30] sm:$0xf]
      %v818 = vld [vmem:[%s804 + $0x34] sm:$0xf]
      %v819 = vld [vmem:[%s804 + $0x38] sm:$0xf]
      %v820 = vld [vmem:[%s804 + $0x3c] sm:$0xf]
      %v821 = vld [vmem:[%s804 + $0x40] sm:$0xf]
      %v822 = vld [vmem:[%s804 + $0x44] sm:$0xf]
      %v823 = vld [vmem:[%s804 + $0x48] sm:$0xf]
      %v824 = vld [vmem:[%s804 + $0x4c] sm:$0xf]
      %v825 = vld [vmem:[%s804 + $0x50] sm:$0xf]
      %v826 = vld [vmem:[%s804 + $0x54] sm:$0xf]
      %v827 = vld [vmem:[%s804 + $0x58] sm:$0xf]
      %v828 = vld [vmem:[%s804 + $0x5c] sm:$0xf]
      %v829 = vld [vmem:[%s804 + $0x60] sm:$0xf]
      %v830 = vld [vmem:[%s804 + $0x64] sm:$0xf]
      %v831 = vld [vmem:[%s804 + $0x68] sm:$0xf]
      %v832 = vld [vmem:[%s804 + $0x6c] sm:$0xf]
      %v833 = vld [vmem:[%s804 + $0x70] sm:$0xf]
      %v834 = vld [vmem:[%s804 + $0x74] sm:$0xf]
      %v835 = vld [vmem:[%s804 + $0x78] sm:$0xf]
      %v836 = vld [vmem:[%s804 + $0x7c] sm:$0xf]
      %v837 = vld [vmem:[%s804 + $0x80] sm:$0xf]
      %v838 = vld [vmem:[%s804 + $0x84] sm:$0xf]
      %v839 = vld [vmem:[%s804 + $0x88] sm:$0xf]
      %v840 = vld [vmem:[%s804 + $0x8c] sm:$0xf]
      %vm850 = vcmask 1046528
      %v851 = vrot.slane %v798, 1
      %v852 = vrot.slane %v468, 1
      %v853 = vsel %vm850, %v851, %v852
      %v854 = vrot.slane %v799, 1
      %v855 = vrot.slane %v469, 1
      %v856 = vsel %vm850, %v854, %v855
      %v857 = vrot.slane %v800, 1
      %v858 = vrot.slane %v470, 1
      %v859 = vsel %vm850, %v857, %v858
      %v860 = vrot.slane %v801, 1
      %v861 = vsel %vm850, %v852, %v860
      %v862 = vrot.slane %v802, 1
      %v863 = vsel %vm850, %v855, %v862
      %v864 = vrot.slane %v803, 1
      %v865 = vsel %vm850, %v858, %v864
      %v906 = vunpack.c.l.b16 %v805
      %v907 = vunpack.c.l.b16 %v806
      %v908 = vunpack.c.l.b16 %v807
      %v909 = vunpack.c.l.b16 %v808
      %v910 = vunpack.c.l.b16 %v809
      %v911 = vunpack.c.l.b16 %v810
      %v912 = vunpack.c.l.b16 %v811
      %v913 = vunpack.c.l.b16 %v812
      %v914 = vunpack.c.l.b16 %v813
      %v915 = vunpack.c.l.b16 %v814
      %v916 = vunpack.c.l.b16 %v815
      %v917 = vunpack.c.l.b16 %v816
      %v918 = vunpack.c.l.b16 %v817
      %v919 = vunpack.c.l.b16 %v818
      %v920 = vunpack.c.l.b16 %v819
      %v921 = vunpack.c.l.b16 %v820
      %v922 = vunpack.c.l.b16 %v821
      %v923 = vunpack.c.l.b16 %v822
      %v924 = vunpack.c.l.b16 %v823
      %v925 = vunpack.c.l.b16 %v824
      %v926 = vunpack.c.l.b16 %v825
      %v927 = vunpack.c.l.b16 %v826
      %v928 = vunpack.c.l.b16 %v827
      %v929 = vunpack.c.l.b16 %v828
      %v930 = vunpack.c.l.b16 %v829
      %v931 = vunpack.c.l.b16 %v830
      %v932 = vunpack.c.l.b16 %v831
      %v933 = vunpack.c.l.b16 %v832
      %v934 = vunpack.c.l.b16 %v833
      %v935 = vunpack.c.l.b16 %v834
      %v936 = vunpack.c.l.b16 %v835
      %v937 = vunpack.c.l.b16 %v836
      %v938 = vunpack.c.l.b16 %v837
      %v939 = vunpack.c.l.b16 %v838
      %v940 = vunpack.c.l.b16 %v839
      %v941 = vunpack.c.l.b16 %v840
      %v942 = vpack.c.b16 %v907, %v906
      %v943 = vpack.c.b16 %v909, %v908
      %v944 = vpack.c.b16 %v911, %v910
      %v945 = vpack.c.b16 %v913, %v912
      %v946 = vpack.c.b16 %v915, %v914
      %v947 = vpack.c.b16 %v917, %v916
      %v948 = vpack.c.b16 %v919, %v918
      %v949 = vpack.c.b16 %v921, %v920
      %v950 = vpack.c.b16 %v923, %v922
      %v951 = vpack.c.b16 %v925, %v924
      %v952 = vpack.c.b16 %v927, %v926
      %v953 = vpack.c.b16 %v929, %v928
      %v954 = vpack.c.b16 %v931, %v930
      %v955 = vpack.c.b16 %v933, %v932
      %v956 = vpack.c.b16 %v935, %v934
      %v957 = vpack.c.b16 %v937, %v936
      %v958 = vpack.c.b16 %v939, %v938
      %v959 = vpack.c.b16 %v941, %v940
      %v979 = vsel %vm341, %v859, 0
      %v982 = vsel %vm341, %v865, 0
      %984 = vmatprep.subr.bf16.mxu0 0
      %985 = vmatpush1.bf16.msra.mxu0 %v949
      %986 = vmatprep.subr.bf16.mxu0 0
      %987 = vmatpush1.bf16.msra.mxu0 %v948
      %988 = vmatprep.subr.bf16.mxu0 0
      %989 = vmatpush1.bf16.msra.mxu0 %v947
      %990 = vmatprep.subr.bf16.mxu0 0
      %991 = vmatpush1.bf16.msra.mxu0 %v946
      %992 = vmatprep.subr.bf16.mxu0 0
      %993 = vmatpush1.bf16.msra.mxu0 %v945
      %994 = vmatprep.subr.bf16.mxu0 0
      %995 = vmatpush1.bf16.msra.mxu0 %v944
      %996 = vmatprep.subr.bf16.mxu0 0
      %997 = vmatpush1.bf16.msra.mxu0 %v943
      %998 = vmatprep.subr.bf16.mxu0 0
      %999 = vmatpush1.bf16.msra.mxu0 %v942
      %1000 = vmatprep.subr.bf16.mxu0 0
      %1001 = vmatpush2.bf16.msra.mxu0 %v957
      %1002 = vmatprep.subr.bf16.mxu0 0
      %1003 = vmatpush2.bf16.msra.mxu0 %v956
      %1004 = vmatprep.subr.bf16.mxu0 0
      %1005 = vmatpush2.bf16.msra.mxu0 %v955
      %1006 = vmatprep.subr.bf16.mxu0 0
      %1007 = vmatpush2.bf16.msra.mxu0 %v954
      %1008 = vmatprep.subr.bf16.mxu0 0
      %1009 = vmatpush2.bf16.msra.mxu0 %v953
      %1010 = vmatprep.subr.bf16.mxu0 0
      %1011 = vmatpush2.bf16.msra.mxu0 %v952
      %1012 = vmatprep.subr.bf16.mxu0 0
      %1013 = vmatpush2.bf16.msra.mxu0 %v951
      %1014 = vmatprep.subr.bf16.mxu0 0
      %1015 = vmatpush2.bf16.msra.mxu0 %v950
      %1016 = vmatprep.mubr.bf16.mxu0 %v856
      %1017 = vmatmul.mubr.bf16.gmra.mxu0 %v853
      %v1018 = vpop.f32.mrf.mxu0
      %v1019 = vadd.f32 0.0, %v1018
      %v1020 = vpop.f32.mrf.mxu0
      %v1021 = vpop.f32.mrf.mxu0
      %v1022 = vadd.f32 0.0, %v1021
      %v1023 = vpop.f32.mrf.mxu0
      %1024 = vmatprep.mubr.bf16.mxu0 %v863
      %1025 = vmatmul.mubr.bf16.gmra.mxu0 %v861
      %v1026 = vpop.f32.mrf.mxu0
      %v1027 = vadd.f32 0.0, %v1026
      %v1028 = vpop.f32.mrf.mxu0
      %v1029 = vpop.f32.mrf.mxu0
      %v1030 = vadd.f32 0.0, %v1029
      %v1031 = vpop.f32.mrf.mxu0
      %1032 = vdwg.mxu0
      %1033 = vmatprep.subr.bf16.mxu0 0
      %1034 = vmatpush1.bf16.msra.mxu0 0
      %1035 = vmatprep.subr.bf16.mxu0 0
      %1036 = vmatpush1.bf16.msra.mxu0 0
      %1037 = vmatprep.subr.bf16.mxu0 0
      %1038 = vmatpush1.bf16.msra.mxu0 0
      %1039 = vmatprep.subr.bf16.mxu0 0
      %1040 = vmatpush1.bf16.msra.mxu0 0
      %1041 = vmatprep.subr.bf16.mxu0 0
      %1042 = vmatpush1.bf16.msra.mxu0 0
      %1043 = vmatprep.subr.bf16.mxu0 0
      %1044 = vmatpush1.bf16.msra.mxu0 0
      %1045 = vmatprep.subr.bf16.mxu0 0
      %1046 = vmatpush1.bf16.msra.mxu0 %v959
      %1047 = vmatprep.subr.bf16.mxu0 0
      %1048 = vmatpush1.bf16.msra.mxu0 %v958
      %1049 = vmatprep.subr.bf16.mxu0 0
      %1050 = vmatpush2.bf16.msra.mxu0 0
      %1051 = vmatprep.subr.bf16.mxu0 0
      %1052 = vmatpush2.bf16.msra.mxu0 0
      %1053 = vmatprep.subr.bf16.mxu0 0
      %1054 = vmatpush2.bf16.msra.mxu0 0
      %1055 = vmatprep.subr.bf16.mxu0 0
      %1056 = vmatpush2.bf16.msra.mxu0 0
      %1057 = vmatprep.subr.bf16.mxu0 0
      %1058 = vmatpush2.bf16.msra.mxu0 0
      %1059 = vmatprep.subr.bf16.mxu0 0
      %1060 = vmatpush2.bf16.msra.mxu0 0
      %1061 = vmatprep.subr.bf16.mxu0 0
      %1062 = vmatpush2.bf16.msra.mxu0 0
      %1063 = vmatprep.subr.bf16.mxu0 0
      %1064 = vmatpush2.bf16.msra.mxu0 0
      %1065 = vmatprep.mubr.bf16.mxu0 0
      %1066 = vmatmul.mubr.bf16.gmra.mxu0 %v979
      %v1067 = vpop.f32.mrf.mxu0
      %v1068 = vadd.f32 %v1019, %v1067
      %v1069 = vpop.f32.mrf.mxu0
      %v1070 = vpop.f32.mrf.mxu0
      %v1071 = vadd.f32 %v1022, %v1070
      %v1072 = vpop.f32.mrf.mxu0
      %1073 = vmatprep.mubr.bf16.mxu0 0
      %1074 = vmatmul.mubr.bf16.gmra.mxu0 %v982
      %v1075 = vpop.f32.mrf.mxu0
      %v1076 = vadd.f32 %v1027, %v1075
      %v1077 = vpop.f32.mrf.mxu0
      %v1078 = vpop.f32.mrf.mxu0
      %v1079 = vadd.f32 %v1030, %v1078
      %v1080 = vpop.f32.mrf.mxu0
      %1081 = vdwg.mxu0
      %v1082 = vadd.f32 %v788, %v1068
      %v1083 = vadd.f32 %v789, %v1071
      %v1084 = vadd.f32 %v790, %v1076
      %v1085 = vadd.f32 %v791, %v1079
      %v1086 = vld [vmem:[%s165] sm:$0xf8]
      %v1087 = vld [vmem:[%s165 + $0x8] sm:$0xf8]
      %v1088 = vld [vmem:[%s165 + $0x10] sm:$0xf8]
      %v1089 = vld [vmem:[%s165 + $0x60] sm:$0x7]
      %v1090 = vld [vmem:[%s165 + $0x68] sm:$0x7]
      %v1091 = vld [vmem:[%s165 + $0x70] sm:$0x7]
      %v1092 = vpack.c.bf16 %v453, %v1086
      %v1093 = vpack.c.bf16 %v454, %v1087
      %v1094 = vpack.c.bf16 %v455, %v1088
      %v1095 = vpack.c.bf16 %v1089, %v1089
      %v1096 = vpack.c.bf16 %v1090, %v1090
      %v1097 = vpack.c.bf16 %v1091, %v1091
      %s1098 = scalar_lea.vmem %s1, 432
      %v1099 = vld [vmem:[%s1098] sm:$0xf]
      %v1100 = vld [vmem:[%s1098 + $0x4] sm:$0xf]
      %v1101 = vld [vmem:[%s1098 + $0x8] sm:$0xf]
      %v1102 = vld [vmem:[%s1098 + $0xc] sm:$0xf]
      %v1103 = vld [vmem:[%s1098 + $0x10] sm:$0xf]
      %v1104 = vld [vmem:[%s1098 + $0x14] sm:$0xf]
      %v1105 = vld [vmem:[%s1098 + $0x18] sm:$0xf]
      %v1106 = vld [vmem:[%s1098 + $0x1c] sm:$0xf]
      %v1107 = vld [vmem:[%s1098 + $0x20] sm:$0xf]
      %v1108 = vld [vmem:[%s1098 + $0x24] sm:$0xf]
      %v1109 = vld [vmem:[%s1098 + $0x28] sm:$0xf]
      %v1110 = vld [vmem:[%s1098 + $0x2c] sm:$0xf]
      %v1111 = vld [vmem:[%s1098 + $0x30] sm:$0xf]
      %v1112 = vld [vmem:[%s1098 + $0x34] sm:$0xf]
      %v1113 = vld [vmem:[%s1098 + $0x38] sm:$0xf]
      %v1114 = vld [vmem:[%s1098 + $0x3c] sm:$0xf]
      %v1115 = vld [vmem:[%s1098 + $0x40] sm:$0xf]
      %v1116 = vld [vmem:[%s1098 + $0x44] sm:$0xf]
      %v1117 = vld [vmem:[%s1098 + $0x48] sm:$0xf]
      %v1118 = vld [vmem:[%s1098 + $0x4c] sm:$0xf]
      %v1119 = vld [vmem:[%s1098 + $0x50] sm:$0xf]
      %v1120 = vld [vmem:[%s1098 + $0x54] sm:$0xf]
      %v1121 = vld [vmem:[%s1098 + $0x58] sm:$0xf]
      %v1122 = vld [vmem:[%s1098 + $0x5c] sm:$0xf]
      %v1123 = vld [vmem:[%s1098 + $0x60] sm:$0xf]
      %v1124 = vld [vmem:[%s1098 + $0x64] sm:$0xf]
      %v1125 = vld [vmem:[%s1098 + $0x68] sm:$0xf]
      %v1126 = vld [vmem:[%s1098 + $0x6c] sm:$0xf]
      %v1127 = vld [vmem:[%s1098 + $0x70] sm:$0xf]
      %v1128 = vld [vmem:[%s1098 + $0x74] sm:$0xf]
      %v1129 = vld [vmem:[%s1098 + $0x78] sm:$0xf]
      %v1130 = vld [vmem:[%s1098 + $0x7c] sm:$0xf]
      %v1131 = vld [vmem:[%s1098 + $0x80] sm:$0xf]
      %v1132 = vld [vmem:[%s1098 + $0x84] sm:$0xf]
      %v1133 = vld [vmem:[%s1098 + $0x88] sm:$0xf]
      %v1134 = vld [vmem:[%s1098 + $0x8c] sm:$0xf]
      %vm1135 = vsmask.f32 6400
      %v1137 = vshrl.u32 %v1092, 16
      %v1139 = vrot.slane %v1137, 1
      %v1140 = vshll.u32 %v1092, 16
      %v1142 = vrot.slane %v1140, 2
      %v1143 = vor.u32 %v1139, %v1142
      %v1144 = vrot.slane %v548, 1
      %v1145 = vrot.slane %v520, 2
      %v1146 = vor.u32 %v1144, %v1145
      %v1147 = vsel %vm1135, %v1143, %v1146
      %v1149 = vshrl.u32 %v1093, 16
      %v1151 = vrot.slane %v1149, 1
      %v1152 = vshll.u32 %v1093, 16
      %v1154 = vrot.slane %v1152, 2
      %v1155 = vor.u32 %v1151, %v1154
      %v1156 = vrot.slane %v556, 1
      %v1157 = vrot.slane %v532, 2
      %v1158 = vor.u32 %v1156, %v1157
      %v1159 = vsel %vm1135, %v1155, %v1158
      %v1161 = vshrl.u32 %v1094, 16
      %v1163 = vrot.slane %v1161, 1
      %v1164 = vshll.u32 %v1094, 16
      %v1166 = vrot.slane %v1164, 2
      %v1167 = vor.u32 %v1163, %v1166
      %v1168 = vrot.slane %v564, 1
      %v1169 = vrot.slane %v544, 2
      %v1170 = vor.u32 %v1168, %v1169
      %v1171 = vsel %vm1135, %v1167, %v1170
      %v1173 = vshrl.u32 %v1095, 16
      %v1175 = vrot.slane %v1173, 1
      %v1176 = vshll.u32 %v1095, 16
      %v1178 = vrot.slane %v1176, 2
      %v1179 = vor.u32 %v1175, %v1178
      %v1180 = vsel %vm1135, %v1146, %v1179
      %v1182 = vshrl.u32 %v1096, 16
      %v1184 = vrot.slane %v1182, 1
      %v1185 = vshll.u32 %v1096, 16
      %v1187 = vrot.slane %v1185, 2
      %v1188 = vor.u32 %v1184, %v1187
      %v1189 = vsel %vm1135, %v1158, %v1188
      %v1191 = vshrl.u32 %v1097, 16
      %v1193 = vrot.slane %v1191, 1
      %v1194 = vshll.u32 %v1097, 16
      %v1196 = vrot.slane %v1194, 2
      %v1197 = vor.u32 %v1193, %v1196
      %v1198 = vsel %vm1135, %v1170, %v1197
      %v1239 = vunpack.c.l.b16 %v1099
      %v1240 = vunpack.c.l.b16 %v1100
      %v1241 = vunpack.c.l.b16 %v1101
      %v1242 = vunpack.c.l.b16 %v1102
      %v1243 = vunpack.c.l.b16 %v1103
      %v1244 = vunpack.c.l.b16 %v1104
      %v1245 = vunpack.c.l.b16 %v1105
      %v1246 = vunpack.c.l.b16 %v1106
      %v1247 = vunpack.c.l.b16 %v1107
      %v1248 = vunpack.c.l.b16 %v1108
      %v1249 = vunpack.c.l.b16 %v1109
      %v1250 = vunpack.c.l.b16 %v1110
      %v1251 = vunpack.c.l.b16 %v1111
      %v1252 = vunpack.c.l.b16 %v1112
      %v1253 = vunpack.c.l.b16 %v1113
      %v1254 = vunpack.c.l.b16 %v1114
      %v1255 = vunpack.c.l.b16 %v1115
      %v1256 = vunpack.c.l.b16 %v1116
      %v1257 = vunpack.c.l.b16 %v1117
      %v1258 = vunpack.c.l.b16 %v1118
      %v1259 = vunpack.c.l.b16 %v1119
      %v1260 = vunpack.c.l.b16 %v1120
      %v1261 = vunpack.c.l.b16 %v1121
      %v1262 = vunpack.c.l.b16 %v1122
      %v1263 = vunpack.c.l.b16 %v1123
      %v1264 = vunpack.c.l.b16 %v1124
      %v1265 = vunpack.c.l.b16 %v1125
      %v1266 = vunpack.c.l.b16 %v1126
      %v1267 = vunpack.c.l.b16 %v1127
      %v1268 = vunpack.c.l.b16 %v1128
      %v1269 = vunpack.c.l.b16 %v1129
      %v1270 = vunpack.c.l.b16 %v1130
      %v1271 = vunpack.c.l.b16 %v1131
      %v1272 = vunpack.c.l.b16 %v1132
      %v1273 = vunpack.c.l.b16 %v1133
      %v1274 = vunpack.c.l.b16 %v1134
      %v1275 = vpack.c.b16 %v1240, %v1239
      %v1276 = vpack.c.b16 %v1242, %v1241
      %v1277 = vpack.c.b16 %v1244, %v1243
      %v1278 = vpack.c.b16 %v1246, %v1245
      %v1279 = vpack.c.b16 %v1248, %v1247
      %v1280 = vpack.c.b16 %v1250, %v1249
      %v1281 = vpack.c.b16 %v1252, %v1251
      %v1282 = vpack.c.b16 %v1254, %v1253
      %v1283 = vpack.c.b16 %v1256, %v1255
      %v1284 = vpack.c.b16 %v1258, %v1257
      %v1285 = vpack.c.b16 %v1260, %v1259
      %v1286 = vpack.c.b16 %v1262, %v1261
      %v1287 = vpack.c.b16 %v1264, %v1263
      %v1288 = vpack.c.b16 %v1266, %v1265
      %v1289 = vpack.c.b16 %v1268, %v1267
      %v1290 = vpack.c.b16 %v1270, %v1269
      %v1291 = vpack.c.b16 %v1272, %v1271
      %v1292 = vpack.c.b16 %v1274, %v1273
      %v1312 = vsel %vm341, %v1171, 0
      %v1315 = vsel %vm341, %v1198, 0
      %1317 = vmatprep.subr.bf16.mxu0 0
      %1318 = vmatpush1.bf16.msra.mxu0 %v1282
      %1319 = vmatprep.subr.bf16.mxu0 0
      %1320 = vmatpush1.bf16.msra.mxu0 %v1281
      %1321 = vmatprep.subr.bf16.mxu0 0
      %1322 = vmatpush1.bf16.msra.mxu0 %v1280
      %1323 = vmatprep.subr.bf16.mxu0 0
      %1324 = vmatpush1.bf16.msra.mxu0 %v1279
      %1325 = vmatprep.subr.bf16.mxu0 0
      %1326 = vmatpush1.bf16.msra.mxu0 %v1278
      %1327 = vmatprep.subr.bf16.mxu0 0
      %1328 = vmatpush1.bf16.msra.mxu0 %v1277
      %1329 = vmatprep.subr.bf16.mxu0 0
      %1330 = vmatpush1.bf16.msra.mxu0 %v1276
      %1331 = vmatprep.subr.bf16.mxu0 0
      %1332 = vmatpush1.bf16.msra.mxu0 %v1275
      %1333 = vmatprep.subr.bf16.mxu0 0
      %1334 = vmatpush2.bf16.msra.mxu0 %v1290
      %1335 = vmatprep.subr.bf16.mxu0 0
      %1336 = vmatpush2.bf16.msra.mxu0 %v1289
      %1337 = vmatprep.subr.bf16.mxu0 0
      %1338 = vmatpush2.bf16.msra.mxu0 %v1288
      %1339 = vmatprep.subr.bf16.mxu0 0
      %1340 = vmatpush2.bf16.msra.mxu0 %v1287
      %1341 = vmatprep.subr.bf16.mxu0 0
      %1342 = vmatpush2.bf16.msra.mxu0 %v1286
      %1343 = vmatprep.subr.bf16.mxu0 0
      %1344 = vmatpush2.bf16.msra.mxu0 %v1285
      %1345 = vmatprep.subr.bf16.mxu0 0
      %1346 = vmatpush2.bf16.msra.mxu0 %v1284
      %1347 = vmatprep.subr.bf16.mxu0 0
      %1348 = vmatpush2.bf16.msra.mxu0 %v1283
      %1349 = vmatprep.mubr.bf16.mxu0 %v1159
      %1350 = vmatmul.mubr.bf16.gmra.mxu0 %v1147
      %v1351 = vpop.f32.mrf.mxu0
      %v1352 = vadd.f32 0.0, %v1351
      %v1353 = vpop.f32.mrf.mxu0
      %v1354 = vpop.f32.mrf.mxu0
      %v1355 = vadd.f32 0.0, %v1354
      %v1356 = vpop.f32.mrf.mxu0
      %1357 = vmatprep.mubr.bf16.mxu0 %v1189
      %1358 = vmatmul.mubr.bf16.gmra.mxu0 %v1180
      %v1359 = vpop.f32.mrf.mxu0
      %v1360 = vadd.f32 0.0, %v1359
      %v1361 = vpop.f32.mrf.mxu0
      %v1362 = vpop.f32.mrf.mxu0
      %v1363 = vadd.f32 0.0, %v1362
      %v1364 = vpop.f32.mrf.mxu0
      %1365 = vdwg.mxu0
      %1366 = vmatprep.subr.bf16.mxu0 0
      %1367 = vmatpush1.bf16.msra.mxu0 0
      %1368 = vmatprep.subr.bf16.mxu0 0
      %1369 = vmatpush1.bf16.msra.mxu0 0
      %1370 = vmatprep.subr.bf16.mxu0 0
      %1371 = vmatpush1.bf16.msra.mxu0 0
      %1372 = vmatprep.subr.bf16.mxu0 0
      %1373 = vmatpush1.bf16.msra.mxu0 0
      %1374 = vmatprep.subr.bf16.mxu0 0
      %1375 = vmatpush1.bf16.msra.mxu0 0
      %1376 = vmatprep.subr.bf16.mxu0 0
      %1377 = vmatpush1.bf16.msra.mxu0 0
      %1378 = vmatprep.subr.bf16.mxu0 0
      %1379 = vmatpush1.bf16.msra.mxu0 %v1292
      %1380 = vmatprep.subr.bf16.mxu0 0
      %1381 = vmatpush1.bf16.msra.mxu0 %v1291
      %1382 = vmatprep.subr.bf16.mxu0 0
      %1383 = vmatpush2.bf16.msra.mxu0 0
      %1384 = vmatprep.subr.bf16.mxu0 0
      %1385 = vmatpush2.bf16.msra.mxu0 0
      %1386 = vmatprep.subr.bf16.mxu0 0
      %1387 = vmatpush2.bf16.msra.mxu0 0
      %1388 = vmatprep.subr.bf16.mxu0 0
      %1389 = vmatpush2.bf16.msra.mxu0 0
      %1390 = vmatprep.subr.bf16.mxu0 0
      %1391 = vmatpush2.bf16.msra.mxu0 0
      %1392 = vmatprep.subr.bf16.mxu0 0
      %1393 = vmatpush2.bf16.msra.mxu0 0
      %1394 = vmatprep.subr.bf16.mxu0 0
      %1395 = vmatpush2.bf16.msra.mxu0 0
      %1396 = vmatprep.subr.bf16.mxu0 0
      %1397 = vmatpush2.bf16.msra.mxu0 0
      %1398 = vmatprep.mubr.bf16.mxu0 0
      %1399 = vmatmul.mubr.bf16.gmra.mxu0 %v1312
      %v1400 = vpop.f32.mrf.mxu0
      %v1401 = vadd.f32 %v1352, %v1400
      %v1402 = vpop.f32.mrf.mxu0
      %v1403 = vpop.f32.mrf.mxu0
      %v1404 = vadd.f32 %v1355, %v1403
      %v1405 = vpop.f32.mrf.mxu0
      %1406 = vmatprep.mubr.bf16.mxu0 0
      %1407 = vmatmul.mubr.bf16.gmra.mxu0 %v1315
      %v1408 = vpop.f32.mrf.mxu0
      %v1409 = vadd.f32 %v1360, %v1408
      %v1410 = vpop.f32.mrf.mxu0
      %v1411 = vpop.f32.mrf.mxu0
      %v1412 = vadd.f32 %v1363, %v1411
      %v1413 = vpop.f32.mrf.mxu0
      %1414 = vdwg.mxu0
      %v1415 = vadd.f32 %v1082, %v1401
      %v1416 = vadd.f32 %v1083, %v1404
      %v1417 = vadd.f32 %v1084, %v1409
      %v1418 = vadd.f32 %v1085, %v1412
      %v1419 = vld [vmem:[%s165] sm:$0xf0]
      %v1420 = vld [vmem:[%s165 + $0x8] sm:$0xf0]
      %v1421 = vld [vmem:[%s165 + $0x10] sm:$0xf0]
      %v1422 = vld [vmem:[%s165 + $0x60] sm:$0xf]
      %v1423 = vld [vmem:[%s165 + $0x68] sm:$0xf]
      %v1424 = vld [vmem:[%s165 + $0x70] sm:$0xf]
      %v1425 = vpack.c.bf16 %v453, %v1419
      %v1426 = vpack.c.bf16 %v454, %v1420
      %v1427 = vpack.c.bf16 %v455, %v1421
      %v1428 = vpack.c.bf16 %v1422, %v1422
      %v1429 = vpack.c.bf16 %v1423, %v1423
      %v1430 = vpack.c.bf16 %v1424, %v1424
      %s1431 = scalar_lea.vmem %s1, 576
      %v1432 = vld [vmem:[%s1431] sm:$0xf]
      %v1433 = vld [vmem:[%s1431 + $0x4] sm:$0xf]
      %v1434 = vld [vmem:[%s1431 + $0x8] sm:$0xf]
      %v1435 = vld [vmem:[%s1431 + $0xc] sm:$0xf]
      %v1436 = vld [vmem:[%s1431 + $0x10] sm:$0xf]
      %v1437 = vld [vmem:[%s1431 + $0x14] sm:$0xf]
      %v1438 = vld [vmem:[%s1431 + $0x18] sm:$0xf]
      %v1439 = vld [vmem:[%s1431 + $0x1c] sm:$0xf]
      %v1440 = vld [vmem:[%s1431 + $0x20] sm:$0xf]
      %v1441 = vld [vmem:[%s1431 + $0x24] sm:$0xf]
      %v1442 = vld [vmem:[%s1431 + $0x28] sm:$0xf]
      %v1443 = vld [vmem:[%s1431 + $0x2c] sm:$0xf]
      %v1444 = vld [vmem:[%s1431 + $0x30] sm:$0xf]
      %v1445 = vld [vmem:[%s1431 + $0x34] sm:$0xf]
      %v1446 = vld [vmem:[%s1431 + $0x38] sm:$0xf]
      %v1447 = vld [vmem:[%s1431 + $0x3c] sm:$0xf]
      %v1448 = vld [vmem:[%s1431 + $0x40] sm:$0xf]
      %v1449 = vld [vmem:[%s1431 + $0x44] sm:$0xf]
      %v1450 = vld [vmem:[%s1431 + $0x48] sm:$0xf]
      %v1451 = vld [vmem:[%s1431 + $0x4c] sm:$0xf]
      %v1452 = vld [vmem:[%s1431 + $0x50] sm:$0xf]
      %v1453 = vld [vmem:[%s1431 + $0x54] sm:$0xf]
      %v1454 = vld [vmem:[%s1431 + $0x58] sm:$0xf]
      %v1455 = vld [vmem:[%s1431 + $0x5c] sm:$0xf]
      %v1456 = vld [vmem:[%s1431 + $0x60] sm:$0xf]
      %v1457 = vld [vmem:[%s1431 + $0x64] sm:$0xf]
      %v1458 = vld [vmem:[%s1431 + $0x68] sm:$0xf]
      %v1459 = vld [vmem:[%s1431 + $0x6c] sm:$0xf]
      %v1460 = vld [vmem:[%s1431 + $0x70] sm:$0xf]
      %v1461 = vld [vmem:[%s1431 + $0x74] sm:$0xf]
      %v1462 = vld [vmem:[%s1431 + $0x78] sm:$0xf]
      %v1463 = vld [vmem:[%s1431 + $0x7c] sm:$0xf]
      %v1464 = vld [vmem:[%s1431 + $0x80] sm:$0xf]
      %v1465 = vld [vmem:[%s1431 + $0x84] sm:$0xf]
      %v1466 = vld [vmem:[%s1431 + $0x88] sm:$0xf]
      %v1467 = vld [vmem:[%s1431 + $0x8c] sm:$0xf]
      %vm1474 = vcmask 1045504
      %v1475 = vrot.slane %v1425, 2
      %v1476 = vrot.slane %v468, 2
      %v1477 = vsel %vm1474, %v1475, %v1476
      %v1478 = vrot.slane %v1426, 2
      %v1479 = vrot.slane %v469, 2
      %v1480 = vsel %vm1474, %v1478, %v1479
      %v1481 = vrot.slane %v1427, 2
      %v1482 = vrot.slane %v470, 2
      %v1483 = vsel %vm1474, %v1481, %v1482
      %v1484 = vrot.slane %v1428, 2
      %v1485 = vsel %vm1474, %v1476, %v1484
      %v1486 = vrot.slane %v1429, 2
      %v1487 = vsel %vm1474, %v1479, %v1486
      %v1488 = vrot.slane %v1430, 2
      %v1489 = vsel %vm1474, %v1482, %v1488
      %v1530 = vunpack.c.l.b16 %v1432
      %v1531 = vunpack.c.l.b16 %v1433
      %v1532 = vunpack.c.l.b16 %v1434
      %v1533 = vunpack.c.l.b16 %v1435
      %v1534 = vunpack.c.l.b16 %v1436
      %v1535 = vunpack.c.l.b16 %v1437
      %v1536 = vunpack.c.l.b16 %v1438
      %v1537 = vunpack.c.l.b16 %v1439
      %v1538 = vunpack.c.l.b16 %v1440
      %v1539 = vunpack.c.l.b16 %v1441
      %v1540 = vunpack.c.l.b16 %v1442
      %v1541 = vunpack.c.l.b16 %v1443
      %v1542 = vunpack.c.l.b16 %v1444
      %v1543 = vunpack.c.l.b16 %v1445
      %v1544 = vunpack.c.l.b16 %v1446
      %v1545 = vunpack.c.l.b16 %v1447
      %v1546 = vunpack.c.l.b16 %v1448
      %v1547 = vunpack.c.l.b16 %v1449
      %v1548 = vunpack.c.l.b16 %v1450
      %v1549 = vunpack.c.l.b16 %v1451
      %v1550 = vunpack.c.l.b16 %v1452
      %v1551 = vunpack.c.l.b16 %v1453
      %v1552 = vunpack.c.l.b16 %v1454
      %v1553 = vunpack.c.l.b16 %v1455
      %v1554 = vunpack.c.l.b16 %v1456
      %v1555 = vunpack.c.l.b16 %v1457
      %v1556 = vunpack.c.l.b16 %v1458
      %v1557 = vunpack.c.l.b16 %v1459
      %v1558 = vunpack.c.l.b16 %v1460
      %v1559 = vunpack.c.l.b16 %v1461
      %v1560 = vunpack.c.l.b16 %v1462
      %v1561 = vunpack.c.l.b16 %v1463
      %v1562 = vunpack.c.l.b16 %v1464
      %v1563 = vunpack.c.l.b16 %v1465
      %v1564 = vunpack.c.l.b16 %v1466
      %v1565 = vunpack.c.l.b16 %v1467
      %v1566 = vpack.c.b16 %v1531, %v1530
      %v1567 = vpack.c.b16 %v1533, %v1532
      %v1568 = vpack.c.b16 %v1535, %v1534
      %v1569 = vpack.c.b16 %v1537, %v1536
      %v1570 = vpack.c.b16 %v1539, %v1538
      %v1571 = vpack.c.b16 %v1541, %v1540
      %v1572 = vpack.c.b16 %v1543, %v1542
      %v1573 = vpack.c.b16 %v1545, %v1544
      %v1574 = vpack.c.b16 %v1547, %v1546
      %v1575 = vpack.c.b16 %v1549, %v1548
      %v1576 = vpack.c.b16 %v1551, %v1550
      %v1577 = vpack.c.b16 %v1553, %v1552
      %v1578 = vpack.c.b16 %v1555, %v1554
      %v1579 = vpack.c.b16 %v1557, %v1556
      %v1580 = vpack.c.b16 %v1559, %v1558
      %v1581 = vpack.c.b16 %v1561, %v1560
      %v1582 = vpack.c.b16 %v1563, %v1562
      %v1583 = vpack.c.b16 %v1565, %v1564
      %v1603 = vsel %vm341, %v1483, 0
      %v1606 = vsel %vm341, %v1489, 0
      %1608 = vmatprep.subr.bf16.mxu0 0
      %1609 = vmatpush1.bf16.msra.mxu0 %v1573
      %1610 = vmatprep.subr.bf16.mxu0 0
      %1611 = vmatpush1.bf16.msra.mxu0 %v1572
      %1612 = vmatprep.subr.bf16.mxu0 0
      %1613 = vmatpush1.bf16.msra.mxu0 %v1571
      %1614 = vmatprep.subr.bf16.mxu0 0
      %1615 = vmatpush1.bf16.msra.mxu0 %v1570
      %1616 = vmatprep.subr.bf16.mxu0 0
      %1617 = vmatpush1.bf16.msra.mxu0 %v1569
      %1618 = vmatprep.subr.bf16.mxu0 0
      %1619 = vmatpush1.bf16.msra.mxu0 %v1568
      %1620 = vmatprep.subr.bf16.mxu0 0
      %1621 = vmatpush1.bf16.msra.mxu0 %v1567
      %1622 = vmatprep.subr.bf16.mxu0 0
      %1623 = vmatpush1.bf16.msra.mxu0 %v1566
      %1624 = vmatprep.subr.bf16.mxu0 0
      %1625 = vmatpush2.bf16.msra.mxu0 %v1581
      %1626 = vmatprep.subr.bf16.mxu0 0
      %1627 = vmatpush2.bf16.msra.mxu0 %v1580
      %1628 = vmatprep.subr.bf16.mxu0 0
      %1629 = vmatpush2.bf16.msra.mxu0 %v1579
      %1630 = vmatprep.subr.bf16.mxu0 0
      %1631 = vmatpush2.bf16.msra.mxu0 %v1578
      %1632 = vmatprep.subr.bf16.mxu0 0
      %1633 = vmatpush2.bf16.msra.mxu0 %v1577
      %1634 = vmatprep.subr.bf16.mxu0 0
      %1635 = vmatpush2.bf16.msra.mxu0 %v1576
      %1636 = vmatprep.subr.bf16.mxu0 0
      %1637 = vmatpush2.bf16.msra.mxu0 %v1575
      %1638 = vmatprep.subr.bf16.mxu0 0
      %1639 = vmatpush2.bf16.msra.mxu0 %v1574
      %1640 = vmatprep.mubr.bf16.mxu0 %v1480
      %1641 = vmatmul.mubr.bf16.gmra.mxu0 %v1477
      %v1642 = vpop.f32.mrf.mxu0
      %v1643 = vadd.f32 0.0, %v1642
      %v1644 = vpop.f32.mrf.mxu0
      %v1645 = vpop.f32.mrf.mxu0
      %v1646 = vadd.f32 0.0, %v1645
      %v1647 = vpop.f32.mrf.mxu0
      %1648 = vmatprep.mubr.bf16.mxu0 %v1487
      %1649 = vmatmul.mubr.bf16.gmra.mxu0 %v1485
      %v1650 = vpop.f32.mrf.mxu0
      %v1651 = vadd.f32 0.0, %v1650
      %v1652 = vpop.f32.mrf.mxu0
      %v1653 = vpop.f32.mrf.mxu0
      %v1654 = vadd.f32 0.0, %v1653
      %v1655 = vpop.f32.mrf.mxu0
      %1656 = vdwg.mxu0
      %1657 = vmatprep.subr.bf16.mxu0 0
      %1658 = vmatpush1.bf16.msra.mxu0 0
      %1659 = vmatprep.subr.bf16.mxu0 0
      %1660 = vmatpush1.bf16.msra.mxu0 0
      %1661 = vmatprep.subr.bf16.mxu0 0
      %1662 = vmatpush1.bf16.msra.mxu0 0
      %1663 = vmatprep.subr.bf16.mxu0 0
      %1664 = vmatpush1.bf16.msra.mxu0 0
      %1665 = vmatprep.subr.bf16.mxu0 0
      %1666 = vmatpush1.bf16.msra.mxu0 0
      %1667 = vmatprep.subr.bf16.mxu0 0
      %1668 = vmatpush1.bf16.msra.mxu0 0
      %1669 = vmatprep.subr.bf16.mxu0 0
      %1670 = vmatpush1.bf16.msra.mxu0 %v1583
      %1671 = vmatprep.subr.bf16.mxu0 0
      %1672 = vmatpush1.bf16.msra.mxu0 %v1582
      %1673 = vmatprep.subr.bf16.mxu0 0
      %1674 = vmatpush2.bf16.msra.mxu0 0
      %1675 = vmatprep.subr.bf16.mxu0 0
      %1676 = vmatpush2.bf16.msra.mxu0 0
      %1677 = vmatprep.subr.bf16.mxu0 0
      %1678 = vmatpush2.bf16.msra.mxu0 0
      %1679 = vmatprep.subr.bf16.mxu0 0
      %1680 = vmatpush2.bf16.msra.mxu0 0
      %1681 = vmatprep.subr.bf16.mxu0 0
      %1682 = vmatpush2.bf16.msra.mxu0 0
      %1683 = vmatprep.subr.bf16.mxu0 0
      %1684 = vmatpush2.bf16.msra.mxu0 0
      %1685 = vmatprep.subr.bf16.mxu0 0
      %1686 = vmatpush2.bf16.msra.mxu0 0
      %1687 = vmatprep.subr.bf16.mxu0 0
      %1688 = vmatpush2.bf16.msra.mxu0 0
      %1689 = vmatprep.mubr.bf16.mxu0 0
      %1690 = vmatmul.mubr.bf16.gmra.mxu0 %v1603
      %v1691 = vpop.f32.mrf.mxu0
      %v1692 = vadd.f32 %v1643, %v1691
      %v1693 = vpop.f32.mrf.mxu0
      %v1694 = vpop.f32.mrf.mxu0
      %v1695 = vadd.f32 %v1646, %v1694
      %v1696 = vpop.f32.mrf.mxu0
      %1697 = vmatprep.mubr.bf16.mxu0 0
      %1698 = vmatmul.mubr.bf16.gmra.mxu0 %v1606
      %v1699 = vpop.f32.mrf.mxu0
      %v1700 = vadd.f32 %v1651, %v1699
      %v1701 = vpop.f32.mrf.mxu0
      %v1702 = vpop.f32.mrf.mxu0
      %v1703 = vadd.f32 %v1654, %v1702
      %v1704 = vpop.f32.mrf.mxu0
      %1705 = vdwg.mxu0
      %v1706 = vadd.f32 %v1415, %v1692
      %v1707 = vadd.f32 %v1416, %v1695
      %v1708 = vadd.f32 %v1417, %v1700
      %v1709 = vadd.f32 %v1418, %v1703
      %vm1710 = vcmp.ge.f32.partialorder %v1706, 0.0
      %vm1711 = vcmp.ge.f32.partialorder %v1707, 0.0
      %vm1712 = vcmp.ge.f32.partialorder %v1708, 0.0
      %vm1713 = vcmp.ge.f32.partialorder %v1709, 0.0
      %v1714 = vmul.f32 %v1706, 0.01
      %v1715 = vmul.f32 %v1707, 0.01
      %v1716 = vmul.f32 %v1708, 0.01
      %v1717 = vmul.f32 %v1709, 0.01
      %v1718 = vsel %vm1710, %v1706, %v1714
      %v1719 = vsel %vm1711, %v1707, %v1715
      %v1720 = vsel %vm1712, %v1708, %v1716
      %v1721 = vsel %vm1713, %v1709, %v1717
      %1722 = vst [vmem:[%s170] sm:$0xff] %v1718
      %1723 = vst [vmem:[%s170 + $0x8] sm:$0xff] %v1719
      %1724 = vst [vmem:[%s170 + $0x10] sm:$0xff] %v1720
      %1725 = vst [vmem:[%s170 + $0x18] sm:$0xff] %v1721
      %p1726 = scmp.lt.s32.totalorder %s14, 1
      %s1727 = scalar_select %p1726, %s14, 1
      %s1728 = smul.addr %s1727, 4
      %s1729 = smul.addr %s1728, 8
      %s1730 = scalar_lea.vmem %s3, %s1729
      // Predicated region
      $region33: #{forward.8} parent=31 // pred_check
        %p1731 = pneg %p100
      $region34: #{forward.8} parent=31 // pred_check_branch
        %1733 = sbr.rel (%p1731) target = $region36
      $region35: #{forward.8} parent=31 // pred_region
        _
      $region36: #{forward.8} parent=31 // pred_fallthru
        _
    $region32: #{forward.8} parent=5 // pred_fallthru
      _
    %p1734 = scmp.le.s32.totalorder 2, %s9
    // Predicated region
    $region37: #{forward.8} parent=5 // pred_check
      %p1735 = pneg %p1734
    $region38: #{forward.8} parent=5 // pred_check_branch
      %1737 = sbr.rel (%p1735) target = $region40
    $region39: #{forward.8} parent=5 // pred_region
      %s1738 = ssub.s32 %s9, 2
      // Predicated region
      $region41: #{forward.8} parent=39 // pred_check
        %p1739 = pneg %p106
      $region42: #{forward.8} parent=39 // pred_check_branch
        %1741 = sbr.rel (%p1739) target = $region44
      $region43: #{forward.8} parent=39 // pred_region
        %p1742 = scmp.lt.s32.totalorder %s15, 1
        %s1743 = scalar_select %p1742, %s15, 1
        %s1744 = smul.addr %s1743, 4
        %s1745 = smul.addr %s1744, 8
        %s1746 = scalar_lea.vmem %s3, %s1745
      $region44: #{forward.8} parent=39 // pred_fallthru
        _
    $region40: #{forward.8} parent=5 // pred_fallthru
      _
  $region6: #{forward.8} parent=0 // loop_footer
    %s13 = sadd.s32 1, %s9
  $region7: #{forward.8} parent=0 // loop_footer_branch
    %8 = sbr.rel target = $region3
  $region8: #{forward.8} parent=0 // loop_exit
    _

// kernel: forward.9
$region0: #{forward.9}
  #allocation0 [shape = 'u32[]', space=smem, size = 0x4, offset = 0x4, fixed_abs, tag = 'smem constant byte address 0x4 - core index']
  #allocation1 [shape = 'u32[144,128]{1,0:T(1,128)}', space=vmem, size = 0x12000, scoped, tag = 'internal scratch']
  %s0 = inlined_call_operand.vmem [shape: f32[2,68,272], index: 0, kind: input, shape index: {}]
  %s1 = inlined_call_operand.vmem [shape: bf16[5,272,64], index: 1, kind: input, shape index: {}]
  %s2 = inlined_call_operand.vmem [shape: f32[1,64], index: 2, kind: input, shape index: {}]
  %s3 = inlined_call_operand.vmem [shape: f32[8,64], index: 3, kind: input, shape index: {}]
  %s4 = inlined_call_operand.vmem [shape: f32[64,8], index: 4, kind: input, shape index: {}]
  %s5 = inlined_call_operand.vmem [shape: f32[2,8,8], index: 5, kind: output, shape index: {}]
  %s6 = sld [smem:[#allocation0]]
  $region53: #{forward.9} parent=0
    _
  %s8 = ssub.s32 1, %s6
  %s9 = scalar_select 0, %s8, %s6
  loop: start=0, step=1, limit=4
  $region2: #{forward.9} parent=0 // loop_pre_header
    _
  $region3: #{forward.9} parent=0 // loop_header
    %s11 = sphi 0, %s15
    %p12 = scmp.ge.s32.totalorder %s11, 4
    %s21 = sphi 0, %s23
    %s24 = sphi 0, %s21
    %s25 = sphi 0, %s24
    %s41 = sphi 0, %s25
    %s45 = sphi 0, %s45
    %s47 = sphi 0, %s45
    %s48 = sphi 0, %s47
    %s62 = sphi 0, %s48
    %s66 = sphi 0, %s66
    %s68 = sphi 0, %s66
    %s69 = sphi 0, %s68
    %s83 = sphi 0, %s69
    %s87 = sphi 0, %s87
    %s89 = sphi 0, %s87
    %s90 = sphi 0, %s89
    %s104 = sphi 0, %s90
    %s108 = sphi 0, %s108
    %s110 = sphi 0, %s108
    %s111 = sphi 0, %s110
    %s125 = sphi 0, %s111
    %s131 = sphi 0, %s133
    %s134 = sphi 0, %s131
    %s135 = sphi 0, %s134
    %s151 = sphi 0, %s135
  $region4: #{forward.9} parent=0 // loop_header_branch
    %14 = sbr.rel (%p12) target = $region8
  $region5: #{forward.9} parent=0 // loop_body
    %s16 = ssub.s32 %s11, 1
    %s17 = ssub.s32 %s11, 2
    %s18 = sadd.s32 %s11, 1
    %s19 = ssub.s32 %s11, %s18
    %p20 = scmp.eq.s32.totalorder %s19, 0
    %s22 = sadd.s32 %s21, 1
    %s23 = scalar_select %p20, %s21, %s22
    %p26 = pneg %p20
    %p27 = scmp.eq.s32.totalorder %s11, 1
    %p28 = por %p26, %p27
    %p29 = scmp.ne.s32.totalorder %s21, %s24
    %p30 = scmp.eq.s32.totalorder %s11, 0
    %p31 = por %p29, %p30
    %p32 = scmp.ne.s32.totalorder %s21, %s24
    %p33 = scmp.eq.s32.totalorder %s16, 1
    %p34 = por %p32, %p33
    %p35 = scmp.ne.s32.totalorder %s24, %s25
    %p36 = scmp.eq.s32.totalorder %s16, 0
    %p37 = por %p35, %p36
    %p38 = scmp.ne.s32.totalorder %s24, %s25
    %p39 = scmp.eq.s32.totalorder %s17, 1
    %p40 = por %p38, %p39
    %p42 = scmp.ne.s32.totalorder %s25, %s41
    %p43 = scmp.eq.s32.totalorder %s17, 0
    %p44 = por %p42, %p43
    %s46 = sadd.s32 %s45, 1
    %p49 = scmp.eq.s32.totalorder %s11, 1
    %p50 = scmp.ne.s32.totalorder %s45, %s47
    %p51 = scmp.eq.s32.totalorder %s11, 0
    %p52 = por %p50, %p51
    %p53 = scmp.ne.s32.totalorder %s45, %s47
    %p54 = scmp.eq.s32.totalorder %s16, 1
    %p55 = por %p53, %p54
    %p56 = scmp.ne.s32.totalorder %s47, %s48
    %p57 = scmp.eq.s32.totalorder %s16, 0
    %p58 = por %p56, %p57
    %p59 = scmp.ne.s32.totalorder %s47, %s48
    %p60 = scmp.eq.s32.totalorder %s17, 1
    %p61 = por %p59, %p60
    %p63 = scmp.ne.s32.totalorder %s48, %s62
    %p64 = scmp.eq.s32.totalorder %s17, 0
    %p65 = por %p63, %p64
    %s67 = sadd.s32 %s66, 1
    %p70 = scmp.eq.s32.totalorder %s11, 1
    %p71 = scmp.ne.s32.totalorder %s66, %s68
    %p72 = scmp.eq.s32.totalorder %s11, 0
    %p73 = por %p71, %p72
    %p74 = scmp.ne.s32.totalorder %s66, %s68
    %p75 = scmp.eq.s32.totalorder %s16, 1
    %p76 = por %p74, %p75
    %p77 = scmp.ne.s32.totalorder %s68, %s69
    %p78 = scmp.eq.s32.totalorder %s16, 0
    %p79 = por %p77, %p78
    %p80 = scmp.ne.s32.totalorder %s68, %s69
    %p81 = scmp.eq.s32.totalorder %s17, 1
    %p82 = por %p80, %p81
    %p84 = scmp.ne.s32.totalorder %s69, %s83
    %p85 = scmp.eq.s32.totalorder %s17, 0
    %p86 = por %p84, %p85
    %s88 = sadd.s32 %s87, 1
    %p91 = scmp.eq.s32.totalorder %s11, 1
    %p92 = scmp.ne.s32.totalorder %s87, %s89
    %p93 = scmp.eq.s32.totalorder %s11, 0
    %p94 = por %p92, %p93
    %p95 = scmp.ne.s32.totalorder %s87, %s89
    %p96 = scmp.eq.s32.totalorder %s16, 1
    %p97 = por %p95, %p96
    %p98 = scmp.ne.s32.totalorder %s89, %s90
    %p99 = scmp.eq.s32.totalorder %s16, 0
    %p100 = por %p98, %p99
    %p101 = scmp.ne.s32.totalorder %s89, %s90
    %p102 = scmp.eq.s32.totalorder %s17, 1
    %p103 = por %p101, %p102
    %p105 = scmp.ne.s32.totalorder %s90, %s104
    %p106 = scmp.eq.s32.totalorder %s17, 0
    %p107 = por %p105, %p106
    %s109 = sadd.s32 %s108, 1
    %p112 = scmp.eq.s32.totalorder %s11, 1
    %p113 = scmp.ne.s32.totalorder %s108, %s110
    %p114 = scmp.eq.s32.totalorder %s11, 0
    %p115 = por %p113, %p114
    %p116 = scmp.ne.s32.totalorder %s108, %s110
    %p117 = scmp.eq.s32.totalorder %s16, 1
    %p118 = por %p116, %p117
    %p119 = scmp.ne.s32.totalorder %s110, %s111
    %p120 = scmp.eq.s32.totalorder %s16, 0
    %p121 = por %p119, %p120
    %p122 = scmp.ne.s32.totalorder %s110, %s111
    %p123 = scmp.eq.s32.totalorder %s17, 1
    %p124 = por %p122, %p123
    %p126 = scmp.ne.s32.totalorder %s111, %s125
    %p127 = scmp.eq.s32.totalorder %s17, 0
    %p128 = por %p126, %p127
    %s129 = ssub.s32 %s11, %s18
    %p130 = scmp.eq.s32.totalorder %s129, 0
    %s132 = sadd.s32 %s131, 1
    %s133 = scalar_select %p130, %s131, %s132
    %p136 = pneg %p130
    %p137 = scmp.eq.s32.totalorder %s11, 1
    %p138 = por %p136, %p137
    %p139 = scmp.ne.s32.totalorder %s131, %s134
    %p140 = scmp.eq.s32.totalorder %s11, 0
    %p141 = por %p139, %p140
    %p142 = scmp.ne.s32.totalorder %s131, %s134
    %p143 = scmp.eq.s32.totalorder %s16, 1
    %p144 = por %p142, %p143
    %p145 = scmp.ne.s32.totalorder %s134, %s135
    %p146 = scmp.eq.s32.totalorder %s16, 0
    %p147 = por %p145, %p146
    %p148 = scmp.ne.s32.totalorder %s134, %s135
    %p149 = scmp.eq.s32.totalorder %s17, 1
    %p150 = por %p148, %p149
    %p152 = scmp.ne.s32.totalorder %s135, %s151
    %p153 = scmp.eq.s32.totalorder %s17, 0
    %p154 = por %p152, %p153
    %p155 = scmp.le.s32.totalorder 1, %s11
    %p156 = scmp.lt.s32.totalorder %s11, 3
    %p157 = pnand %p155, %p156
    %p158 = pneg %p157
    // Predicated region
    $region9: #{forward.9} parent=5 // pred_check
      _
    $region10: #{forward.9} parent=5 // pred_check_branch
      %160 = sbr.rel (%p157) target = $region12
    $region11: #{forward.9} parent=5 // pred_region
      %s161 = ssub.s32 %s11, 1
      // Predicated region
      $region13: #{forward.9} parent=11 // pred_check
        %p162 = pneg %p58
      $region14: #{forward.9} parent=11 // pred_check_branch
        %164 = sbr.rel (%p162) target = $region16
      $region15: #{forward.9} parent=11 // pred_region
        _
      $region16: #{forward.9} parent=11 // pred_fallthru
        _
      // Predicated region
      $region17: #{forward.9} parent=11 // pred_check
        %p165 = pneg %p79
      $region18: #{forward.9} parent=11 // pred_check_branch
        %167 = sbr.rel (%p165) target = $region20
      $region19: #{forward.9} parent=11 // pred_region
        _
      $region20: #{forward.9} parent=11 // pred_fallthru
        _
      // Predicated region
      $region21: #{forward.9} parent=11 // pred_check
        %p168 = pneg %p100
      $region22: #{forward.9} parent=11 // pred_check_branch
        %170 = sbr.rel (%p168) target = $region24
      $region23: #{forward.9} parent=11 // pred_region
        _
      $region24: #{forward.9} parent=11 // pred_fallthru
        _
      // Predicated region
      $region25: #{forward.9} parent=11 // pred_check
        %p171 = pneg %p121
      $region26: #{forward.9} parent=11 // pred_check_branch
        %173 = sbr.rel (%p171) target = $region28
      $region27: #{forward.9} parent=11 // pred_region
        _
      $region28: #{forward.9} parent=11 // pred_fallthru
        _
    $region12: #{forward.9} parent=5 // pred_fallthru
      _
    %p174 = scmp.lt.s32.totalorder %s11, 2
    // Predicated region
    $region29: #{forward.9} parent=5 // pred_check
      %p175 = pneg %p174
    $region30: #{forward.9} parent=5 // pred_check_branch
      %177 = sbr.rel (%p175) target = $region32
    $region31: #{forward.9} parent=5 // pred_region
      // Predicated region
      $region33: #{forward.9} parent=31 // pred_check
        %p178 = pneg %p31
      $region34: #{forward.9} parent=31 // pred_check_branch
        %180 = sbr.rel (%p178) target = $region36
      $region35: #{forward.9} parent=31 // pred_region
        %p181 = scmp.lt.s32.totalorder %s11, 1
        %s182 = scalar_select %p181, %s11, 1
        %s183 = smul.addr %s182, 27
        %s184 = smul.addr %s183, 8
        %s185 = scalar_lea.vmem %s0, %s184
      $region36: #{forward.9} parent=31 // pred_fallthru
        _
    $region32: #{forward.9} parent=5 // pred_fallthru
      _
    %p186 = scmp.le.s32.totalorder 1, %s11
    %p187 = scmp.lt.s32.totalorder %s11, 3
    %p188 = pnand %p186, %p187
    %p189 = pneg %p188
    // Predicated region
    $region37: #{forward.9} parent=5 // pred_check
      _
    $region38: #{forward.9} parent=5 // pred_check_branch
      %191 = sbr.rel (%p188) target = $region40
    $region39: #{forward.9} parent=5 // pred_region
      %s192 = ssub.s32 %s11, 1
      %p193 = scmp.lt.s32.totalorder %s16, 1
      %s194 = scalar_select %p193, %s16, 1
      %s195 = smul.addr %s194, 27
      %s196 = smul.addr %s195, 8
      %s197 = scalar_lea.vmem %s0, %s196
      %p198 = pneg %p37
      %p199 = pneg %p34
      %p200 = pneg %p58
      %p201 = pneg %p55
      %p202 = pneg %p79
      %p203 = pneg %p76
      %p204 = pneg %p100
      %p205 = pneg %p97
      %p206 = pneg %p121
      %p207 = pneg %p118
      %p208 = pneg %p147
      %p209 = pneg %p144
      %p210 = scmp.lt.s32.totalorder %s16, 1
      %s211 = scalar_select %p210, %s16, 1
      %s212 = smul.addr %s211, 8
      %s213 = scalar_lea.vmem %s5, %s212
      %p214 = scmp.lt.s32.totalorder %s16, 1
      %s215 = scalar_select %p214, %s16, 1
      %s216 = smul.addr %s215, 27
      %s217 = smul.addr %s216, 8
      %s218 = scalar_lea.vmem %s0, %s217
      %p219 = scmp.lt.s32.totalorder %s16, 1
      %s220 = scalar_select %p219, %s16, 1
      %s221 = smul.addr %s220, 8
      %s222 = scalar_lea.vmem %s5, %s221
      %v224 = vld [vmem:[%s2] sm:$0x1]
      %v226 = vlaneseq
      %v227 = vshrl.u32 %v226, 7
      %v228 = vsub.s32 0, %v227
      %v229 = vrot.slane %v224, %v228
      %v231 = vld [vmem:[%s218] sm:$0xff]
      %v232 = vld [vmem:[%s218 + $0x8] sm:$0xff]
      %v233 = vld [vmem:[%s218 + $0x10] sm:$0xff]
      %v234 = vld [vmem:[%s218 + $0x18] sm:$0xff]
      %v235 = vld [vmem:[%s218 + $0x20] sm:$0xff]
      %v236 = vld [vmem:[%s218 + $0x28] sm:$0xff]
      %v237 = vld [vmem:[%s218 + $0x30] sm:$0xff]
      %v238 = vld [vmem:[%s218 + $0x38] sm:$0xff]
      %v239 = vld [vmem:[%s218 + $0x40] sm:$0xff]
      %v240 = vld [vmem:[%s218 + $0x48] sm:$0xff]
      %v241 = vld [vmem:[%s218 + $0x50] sm:$0xff]
      %v242 = vld [vmem:[%s218 + $0x58] sm:$0xff]
      %v243 = vld [vmem:[%s218 + $0x60] sm:$0xff]
      %v244 = vld [vmem:[%s218 + $0x68] sm:$0xff]
      %v245 = vld [vmem:[%s218 + $0x70] sm:$0xff]
      %v246 = vld [vmem:[%s218 + $0x78] sm:$0xff]
      %v247 = vld [vmem:[%s218 + $0x80] sm:$0xff]
      %v248 = vld [vmem:[%s218 + $0x88] sm:$0xff]
      %v249 = vld [vmem:[%s218 + $0x90] sm:$0xff]
      %v250 = vld [vmem:[%s218 + $0x98] sm:$0xff]
      %v251 = vld [vmem:[%s218 + $0xa0] sm:$0xff]
      %v252 = vld [vmem:[%s218 + $0xa8] sm:$0xff]
      %v253 = vld [vmem:[%s218 + $0xb0] sm:$0xff]
      %v254 = vld [vmem:[%s218 + $0xb8] sm:$0xff]
      %v255 = vpack.c.bf16 %v234, %v231
      %v256 = vpack.c.bf16 %v235, %v232
      %v257 = vpack.c.bf16 %v236, %v233
      %v258 = vpack.c.bf16 %v240, %v237
      %v259 = vpack.c.bf16 %v241, %v238
      %v260 = vpack.c.bf16 %v242, %v239
      %v261 = vpack.c.bf16 %v246, %v243
      %v262 = vpack.c.bf16 %v247, %v244
      %v263 = vpack.c.bf16 %v248, %v245
      %v264 = vpack.c.bf16 %v252, %v249
      %v265 = vpack.c.bf16 %v253, %v250
      %v266 = vpack.c.bf16 %v254, %v251
      %v267 = vld [vmem:[%s1] sm:$0xf]
      %v268 = vld [vmem:[%s1 + $0x4] sm:$0xf]
      %v269 = vld [vmem:[%s1 + $0x8] sm:$0xf]
      %v270 = vld [vmem:[%s1 + $0xc] sm:$0xf]
      %v271 = vld [vmem:[%s1 + $0x10] sm:$0xf]
      %v272 = vld [vmem:[%s1 + $0x14] sm:$0xf]
      %v273 = vld [vmem:[%s1 + $0x18] sm:$0xf]
      %v274 = vld [vmem:[%s1 + $0x1c] sm:$0xf]
      %v275 = vld [vmem:[%s1 + $0x20] sm:$0xf]
      %v276 = vld [vmem:[%s1 + $0x24] sm:$0xf]
      %v277 = vld [vmem:[%s1 + $0x28] sm:$0xf]
      %v278 = vld [vmem:[%s1 + $0x2c] sm:$0xf]
      %v279 = vld [vmem:[%s1 + $0x30] sm:$0xf]
      %v280 = vld [vmem:[%s1 + $0x34] sm:$0xf]
      %v281 = vld [vmem:[%s1 + $0x38] sm:$0xf]
      %v282 = vld [vmem:[%s1 + $0x3c] sm:$0xf]
      %v283 = vld [vmem:[%s1 + $0x40] sm:$0xf]
      %v284 = vld [vmem:[%s1 + $0x44] sm:$0xf]
      %v285 = vld [vmem:[%s1 + $0x48] sm:$0xf]
      %v286 = vld [vmem:[%s1 + $0x4c] sm:$0xf]
      %v287 = vld [vmem:[%s1 + $0x50] sm:$0xf]
      %v288 = vld [vmem:[%s1 + $0x54] sm:$0xf]
      %v289 = vld [vmem:[%s1 + $0x58] sm:$0xf]
      %v290 = vld [vmem:[%s1 + $0x5c] sm:$0xf]
      %v291 = vld [vmem:[%s1 + $0x60] sm:$0xf]
      %v292 = vld [vmem:[%s1 + $0x64] sm:$0xf]
      %v293 = vld [vmem:[%s1 + $0x68] sm:$0xf]
      %v294 = vld [vmem:[%s1 + $0x6c] sm:$0xf]
      %v295 = vld [vmem:[%s1 + $0x70] sm:$0xf]
      %v296 = vld [vmem:[%s1 + $0x74] sm:$0xf]
      %v297 = vld [vmem:[%s1 + $0x78] sm:$0xf]
      %v298 = vld [vmem:[%s1 + $0x7c] sm:$0xf]
      %v299 = vld [vmem:[%s1 + $0x80] sm:$0xf]
      %v300 = vld [vmem:[%s1 + $0x84] sm:$0xf]
      %v335 = vunpack.c.l.b16 %v267
      %v336 = vunpack.c.l.b16 %v268
      %v337 = vunpack.c.l.b16 %v269
      %v338 = vunpack.c.l.b16 %v270
      %v339 = vunpack.c.l.b16 %v271
      %v340 = vunpack.c.l.b16 %v272
      %v341 = vunpack.c.l.b16 %v273
      %v342 = vunpack.c.l.b16 %v274
      %v343 = vunpack.c.l.b16 %v275
      %v344 = vunpack.c.l.b16 %v276
      %v345 = vunpack.c.l.b16 %v277
      %v346 = vunpack.c.l.b16 %v278
      %v347 = vunpack.c.l.b16 %v279
      %v348 = vunpack.c.l.b16 %v280
      %v349 = vunpack.c.l.b16 %v281
      %v350 = vunpack.c.l.b16 %v282
      %v351 = vunpack.c.l.b16 %v283
      %v352 = vunpack.c.l.b16 %v284
      %v353 = vunpack.c.l.b16 %v285
      %v354 = vunpack.c.l.b16 %v286
      %v355 = vunpack.c.l.b16 %v287
      %v356 = vunpack.c.l.b16 %v288
      %v357 = vunpack.c.l.b16 %v289
      %v358 = vunpack.c.l.b16 %v290
      %v359 = vunpack.c.l.b16 %v291
      %v360 = vunpack.c.l.b16 %v292
      %v361 = vunpack.c.l.b16 %v293
      %v362 = vunpack.c.l.b16 %v294
      %v363 = vunpack.c.l.b16 %v295
      %v364 = vunpack.c.l.b16 %v296
      %v365 = vunpack.c.l.b16 %v297
      %v366 = vunpack.c.l.b16 %v298
      %v367 = vunpack.c.l.b16 %v299
      %v368 = vunpack.c.l.b16 %v300
      %v369 = vpack.c.b16 %v336, %v335
      %v370 = vpack.c.b16 %v338, %v337
      %v371 = vpack.c.b16 %v340, %v339
      %v372 = vpack.c.b16 %v342, %v341
      %v373 = vpack.c.b16 %v344, %v343
      %v374 = vpack.c.b16 %v346, %v345
      %v375 = vpack.c.b16 %v348, %v347
      %v376 = vpack.c.b16 %v350, %v349
      %v377 = vpack.c.b16 %v352, %v351
      %v378 = vpack.c.b16 %v354, %v353
      %v379 = vpack.c.b16 %v356, %v355
      %v380 = vpack.c.b16 %v358, %v357
      %v381 = vpack.c.b16 %v360, %v359
      %v382 = vpack.c.b16 %v362, %v361
      %v383 = vpack.c.b16 %v364, %v363
      %v384 = vpack.c.b16 %v366, %v365
      %v385 = vpack.c.b16 %v368, %v367
      %vm403 = vcmask 130048
      %v405 = vsel %vm403, %v257, 0
      %v408 = vsel %vm403, %v260, 0
      %v411 = vsel %vm403, %v263, 0
      %v414 = vsel %vm403, %v266, 0
      %416 = vmatprep.subr.bf16.mxu0 0
      %417 = vmatpush1.bf16.msra.mxu0 %v376
      %418 = vmatprep.subr.bf16.mxu0 0
      %419 = vmatpush1.bf16.msra.mxu0 %v375
      %420 = vmatprep.subr.bf16.mxu0 0
      %421 = vmatpush1.bf16.msra.mxu0 %v374
      %422 = vmatprep.subr.bf16.mxu0 0
      %423 = vmatpush1.bf16.msra.mxu0 %v373
      %424 = vmatprep.subr.bf16.mxu0 0
      %425 = vmatpush1.bf16.msra.mxu0 %v372
      %426 = vmatprep.subr.bf16.mxu0 0
      %427 = vmatpush1.bf16.msra.mxu0 %v371
      %428 = vmatprep.subr.bf16.mxu0 0
      %429 = vmatpush1.bf16.msra.mxu0 %v370
      %430 = vmatprep.subr.bf16.mxu0 0
      %431 = vmatpush1.bf16.msra.mxu0 %v369
      %432 = vmatprep.subr.bf16.mxu0 0
      %433 = vmatpush2.bf16.msra.mxu0 %v384
      %434 = vmatprep.subr.bf16.mxu0 0
      %435 = vmatpush2.bf16.msra.mxu0 %v383
      %436 = vmatprep.subr.bf16.mxu0 0
      %437 = vmatpush2.bf16.msra.mxu0 %v382
      %438 = vmatprep.subr.bf16.mxu0 0
      %439 = vmatpush2.bf16.msra.mxu0 %v381
      %440 = vmatprep.subr.bf16.mxu0 0
      %441 = vmatpush2.bf16.msra.mxu0 %v380
      %442 = vmatprep.subr.bf16.mxu0 0
      %443 = vmatpush2.bf16.msra.mxu0 %v379
      %444 = vmatprep.subr.bf16.mxu0 0
      %445 = vmatpush2.bf16.msra.mxu0 %v378
      %446 = vmatprep.subr.bf16.mxu0 0
      %447 = vmatpush2.bf16.msra.mxu0 %v377
      %448 = vmatprep.mubr.bf16.mxu0 %v256
      %449 = vmatmul.mubr.bf16.gmra.mxu0 %v255
      %v450 = vpop.f32.mrf.mxu0
      %v451 = vadd.f32 0.0, %v450
      %v452 = vpop.f32.mrf.mxu0
      %v453 = vpop.f32.mrf.mxu0
      %v454 = vadd.f32 0.0, %v453
      %v455 = vpop.f32.mrf.mxu0
      %456 = vmatprep.mubr.bf16.mxu0 %v259
      %457 = vmatmul.mubr.bf16.gmra.mxu0 %v258
      %v458 = vpop.f32.mrf.mxu0
      %v459 = vadd.f32 0.0, %v458
      %v460 = vpop.f32.mrf.mxu0
      %v461 = vpop.f32.mrf.mxu0
      %v462 = vadd.f32 0.0, %v461
      %v463 = vpop.f32.mrf.mxu0
      %464 = vmatprep.mubr.bf16.mxu0 %v262
      %465 = vmatmul.mubr.bf16.gmra.mxu0 %v261
      %v466 = vpop.f32.mrf.mxu0
      %v467 = vadd.f32 0.0, %v466
      %v468 = vpop.f32.mrf.mxu0
      %v469 = vpop.f32.mrf.mxu0
      %v470 = vadd.f32 0.0, %v469
      %v471 = vpop.f32.mrf.mxu0
      %472 = vmatprep.mubr.bf16.mxu0 %v265
      %473 = vmatmul.mubr.bf16.gmra.mxu0 %v264
      %v474 = vpop.f32.mrf.mxu0
      %v475 = vadd.f32 0.0, %v474
      %v476 = vpop.f32.mrf.mxu0
      %v477 = vpop.f32.mrf.mxu0
      %v478 = vadd.f32 0.0, %v477
      %v479 = vpop.f32.mrf.mxu0
      %480 = vdwg.mxu0
      %481 = vmatprep.subr.bf16.mxu0 0
      %482 = vmatpush1.bf16.msra.mxu0 0
      %483 = vmatprep.subr.bf16.mxu0 0
      %484 = vmatpush1.bf16.msra.mxu0 0
      %485 = vmatprep.subr.bf16.mxu0 0
      %486 = vmatpush1.bf16.msra.mxu0 0
      %487 = vmatprep.subr.bf16.mxu0 0
      %488 = vmatpush1.bf16.msra.mxu0 0
      %489 = vmatprep.subr.bf16.mxu0 0
      %490 = vmatpush1.bf16.msra.mxu0 0
      %491 = vmatprep.subr.bf16.mxu0 0
      %492 = vmatpush1.bf16.msra.mxu0 0
      %493 = vmatprep.subr.bf16.mxu0 0
      %494 = vmatpush1.bf16.msra.mxu0 0
      %495 = vmatprep.subr.bf16.mxu0 0
      %496 = vmatpush1.bf16.msra.mxu0 %v385
      %497 = vmatprep.subr.bf16.mxu0 0
      %498 = vmatpush2.bf16.msra.mxu0 0
      %499 = vmatprep.subr.bf16.mxu0 0
      %500 = vmatpush2.bf16.msra.mxu0 0
      %501 = vmatprep.subr.bf16.mxu0 0
      %502 = vmatpush2.bf16.msra.mxu0 0
      %503 = vmatprep.subr.bf16.mxu0 0
      %504 = vmatpush2.bf16.msra.mxu0 0
      %505 = vmatprep.subr.bf16.mxu0 0
      %506 = vmatpush2.bf16.msra.mxu0 0
      %507 = vmatprep.subr.bf16.mxu0 0
      %508 = vmatpush2.bf16.msra.mxu0 0
      %509 = vmatprep.subr.bf16.mxu0 0
      %510 = vmatpush2.bf16.msra.mxu0 0
      %511 = vmatprep.subr.bf16.mxu0 0
      %512 = vmatpush2.bf16.msra.mxu0 0
      %513 = vmatprep.mubr.bf16.mxu0 0
      %514 = vmatmul.mubr.bf16.gmra.mxu0 %v405
      %v515 = vpop.f32.mrf.mxu0
      %v516 = vadd.f32 %v451, %v515
      %v517 = vpop.f32.mrf.mxu0
      %v518 = vpop.f32.mrf.mxu0
      %v519 = vadd.f32 %v454, %v518
      %v520 = vpop.f32.mrf.mxu0
      %521 = vmatprep.mubr.bf16.mxu0 0
      %522 = vmatmul.mubr.bf16.gmra.mxu0 %v408
      %v523 = vpop.f32.mrf.mxu0
      %v524 = vadd.f32 %v459, %v523
      %v525 = vpop.f32.mrf.mxu0
      %v526 = vpop.f32.mrf.mxu0
      %v527 = vadd.f32 %v462, %v526
      %v528 = vpop.f32.mrf.mxu0
      %529 = vmatprep.mubr.bf16.mxu0 0
      %530 = vmatmul.mubr.bf16.gmra.mxu0 %v411
      %v531 = vpop.f32.mrf.mxu0
      %v532 = vadd.f32 %v467, %v531
      %v533 = vpop.f32.mrf.mxu0
      %v534 = vpop.f32.mrf.mxu0
      %v535 = vadd.f32 %v470, %v534
      %v536 = vpop.f32.mrf.mxu0
      %537 = vmatprep.mubr.bf16.mxu0 0
      %538 = vmatmul.mubr.bf16.gmra.mxu0 %v414
      %v539 = vpop.f32.mrf.mxu0
      %v540 = vadd.f32 %v475, %v539
      %v541 = vpop.f32.mrf.mxu0
      %v542 = vpop.f32.mrf.mxu0
      %v543 = vadd.f32 %v478, %v542
      %v544 = vpop.f32.mrf.mxu0
      %545 = vdwg.mxu0
      %v546 = vadd.f32 %v229, %v516
      %v547 = vadd.f32 %v229, %v519
      %v548 = vadd.f32 %v229, %v524
      %v549 = vadd.f32 %v229, %v527
      %v550 = vadd.f32 %v229, %v532
      %v551 = vadd.f32 %v229, %v535
      %v552 = vadd.f32 %v229, %v540
      %v553 = vadd.f32 %v229, %v543
      %v554 = vld [vmem:[%s218] sm:$0xfe]
      %v555 = vld [vmem:[%s218 + $0x8] sm:$0xfe]
      %v556 = vld [vmem:[%s218 + $0x10] sm:$0xfe]
      %v557 = vld [vmem:[%s218 + $0x18] sm:$0xff]
      %v558 = vld [vmem:[%s218 + $0x20] sm:$0xff]
      %v559 = vld [vmem:[%s218 + $0x28] sm:$0xff]
      %v560 = vld [vmem:[%s218 + $0x30] sm:$0xff]
      %v561 = vld [vmem:[%s218 + $0x38] sm:$0xff]
      %v562 = vld [vmem:[%s218 + $0x40] sm:$0xff]
      %v563 = vld [vmem:[%s218 + $0x48] sm:$0xff]
      %v564 = vld [vmem:[%s218 + $0x50] sm:$0xff]
      %v565 = vld [vmem:[%s218 + $0x58] sm:$0xff]
      %v566 = vld [vmem:[%s218 + $0x60] sm:$0xff]
      %v567 = vld [vmem:[%s218 + $0x68] sm:$0xff]
      %v568 = vld [vmem:[%s218 + $0x70] sm:$0xff]
      %v569 = vld [vmem:[%s218 + $0x78] sm:$0xff]
      %v570 = vld [vmem:[%s218 + $0x80] sm:$0xff]
      %v571 = vld [vmem:[%s218 + $0x88] sm:$0xff]
      %v572 = vld [vmem:[%s218 + $0x90] sm:$0xff]
      %v573 = vld [vmem:[%s218 + $0x98] sm:$0xff]
      %v574 = vld [vmem:[%s218 + $0xa0] sm:$0xff]
      %v575 = vld [vmem:[%s218 + $0xa8] sm:$0xff]
      %v576 = vld [vmem:[%s218 + $0xb0] sm:$0xff]
      %v577 = vld [vmem:[%s218 + $0xb8] sm:$0xff]
      %v578 = vld [vmem:[%s218 + $0xc0] sm:$0x1]
      %v579 = vld [vmem:[%s218 + $0xc8] sm:$0x1]
      %v580 = vld [vmem:[%s218 + $0xd0] sm:$0x1]
      %v581 = vpack.c.bf16 %v557, %v554
      %v582 = vpack.c.bf16 %v558, %v555
      %v583 = vpack.c.bf16 %v559, %v556
      %v584 = vpack.c.bf16 %v563, %v560
      %v585 = vpack.c.bf16 %v564, %v561
      %v586 = vpack.c.bf16 %v565, %v562
      %v587 = vpack.c.bf16 %v569, %v566
      %v588 = vpack.c.bf16 %v570, %v567
      %v589 = vpack.c.bf16 %v571, %v568
      %v590 = vpack.c.bf16 %v575, %v572
      %v591 = vpack.c.bf16 %v576, %v573
      %v592 = vpack.c.bf16 %v577, %v574
      %v593 = vpack.c.bf16 %v578, %v578
      %v594 = vpack.c.bf16 %v579, %v579
      %v595 = vpack.c.bf16 %v580, %v580
      %s596 = scalar_lea.vmem %s1, 136
      %v597 = vld [vmem:[%s596] sm:$0xf]
      %v598 = vld [vmem:[%s596 + $0x4] sm:$0xf]
      %v599 = vld [vmem:[%s596 + $0x8] sm:$0xf]
      %v600 = vld [vmem:[%s596 + $0xc] sm:$0xf]
      %v601 = vld [vmem:[%s596 + $0x10] sm:$0xf]
      %v602 = vld [vmem:[%s596 + $0x14] sm:$0xf]
      %v603 = vld [vmem:[%s596 + $0x18] sm:$0xf]
      %v604 = vld [vmem:[%s596 + $0x1c] sm:$0xf]
      %v605 = vld [vmem:[%s596 + $0x20] sm:$0xf]
      %v606 = vld [vmem:[%s596 + $0x24] sm:$0xf]
      %v607 = vld [vmem:[%s596 + $0x28] sm:$0xf]
      %v608 = vld [vmem:[%s596 + $0x2c] sm:$0xf]
      %v609 = vld [vmem:[%s596 + $0x30] sm:$0xf]
      %v610 = vld [vmem:[%s596 + $0x34] sm:$0xf]
      %v611 = vld [vmem:[%s596 + $0x38] sm:$0xf]
      %v612 = vld [vmem:[%s596 + $0x3c] sm:$0xf]
      %v613 = vld [vmem:[%s596 + $0x40] sm:$0xf]
      %v614 = vld [vmem:[%s596 + $0x44] sm:$0xf]
      %v615 = vld [vmem:[%s596 + $0x48] sm:$0xf]
      %v616 = vld [vmem:[%s596 + $0x4c] sm:$0xf]
      %v617 = vld [vmem:[%s596 + $0x50] sm:$0xf]
      %v618 = vld [vmem:[%s596 + $0x54] sm:$0xf]
      %v619 = vld [vmem:[%s596 + $0x58] sm:$0xf]
      %v620 = vld [vmem:[%s596 + $0x5c] sm:$0xf]
      %v621 = vld [vmem:[%s596 + $0x60] sm:$0xf]
      %v622 = vld [vmem:[%s596 + $0x64] sm:$0xf]
      %v623 = vld [vmem:[%s596 + $0x68] sm:$0xf]
      %v624 = vld [vmem:[%s596 + $0x6c] sm:$0xf]
      %v625 = vld [vmem:[%s596 + $0x70] sm:$0xf]
      %v626 = vld [vmem:[%s596 + $0x74] sm:$0xf]
      %v627 = vld [vmem:[%s596 + $0x78] sm:$0xf]
      %v628 = vld [vmem:[%s596 + $0x7c] sm:$0xf]
      %v629 = vld [vmem:[%s596 + $0x80] sm:$0xf]
      %v630 = vld [vmem:[%s596 + $0x84] sm:$0xf]
      %vm631 = vsmask.f32 7424
      %v633 = vshrl.u32 %v581, 16
      %v635 = vshll.u32 %v581, 16
      %v637 = vrot.slane %v635, 1
      %v638 = vor.u32 %v633, %v637
      %v640 = vshll.u32 %v584, 16
      %v642 = vrot.slane %v640, 1
      %v643 = vsel %vm631, %v638, %v642
      %v645 = vshrl.u32 %v582, 16
      %v647 = vshll.u32 %v582, 16
      %v649 = vrot.slane %v647, 1
      %v650 = vor.u32 %v645, %v649
      %v652 = vshll.u32 %v585, 16
      %v654 = vrot.slane %v652, 1
      %v655 = vsel %vm631, %v650, %v654
      %v657 = vshrl.u32 %v583, 16
      %v659 = vshll.u32 %v583, 16
      %v661 = vrot.slane %v659, 1
      %v662 = vor.u32 %v657, %v661
      %v664 = vshll.u32 %v586, 16
      %v666 = vrot.slane %v664, 1
      %v667 = vsel %vm631, %v662, %v666
      %v668 = vshrl.u32 %v584, 16
      %v670 = vor.u32 %v668, %v642
      %v672 = vshll.u32 %v587, 16
      %v674 = vrot.slane %v672, 1
      %v675 = vsel %vm631, %v670, %v674
      %v676 = vshrl.u32 %v585, 16
      %v678 = vor.u32 %v676, %v654
      %v680 = vshll.u32 %v588, 16
      %v682 = vrot.slane %v680, 1
      %v683 = vsel %vm631, %v678, %v682
      %v684 = vshrl.u32 %v586, 16
      %v686 = vor.u32 %v684, %v666
      %v688 = vshll.u32 %v589, 16
      %v690 = vrot.slane %v688, 1
      %v691 = vsel %vm631, %v686, %v690
      %v692 = vshrl.u32 %v587, 16
      %v694 = vor.u32 %v692, %v674
      %v696 = vshll.u32 %v590, 16
      %v698 = vrot.slane %v696, 1
      %v699 = vsel %vm631, %v694, %v698
      %v700 = vshrl.u32 %v588, 16
      %v702 = vor.u32 %v700, %v682
      %v704 = vshll.u32 %v591, 16
      %v706 = vrot.slane %v704, 1
      %v707 = vsel %vm631, %v702, %v706
      %v708 = vshrl.u32 %v589, 16
      %v710 = vor.u32 %v708, %v690
      %v712 = vshll.u32 %v592, 16
      %v714 = vrot.slane %v712, 1
      %v715 = vsel %vm631, %v710, %v714
      %v716 = vshrl.u32 %v590, 16
      %v718 = vor.u32 %v716, %v698
      %v720 = vshll.u32 %v593, 16
      %v722 = vrot.slane %v720, 1
      %v723 = vsel %vm631, %v718, %v722
      %v724 = vshrl.u32 %v591, 16
      %v726 = vor.u32 %v724, %v706
      %v728 = vshll.u32 %v594, 16
      %v730 = vrot.slane %v728, 1
      %v731 = vsel %vm631, %v726, %v730
      %v732 = vshrl.u32 %v592, 16
      %v734 = vor.u32 %v732, %v714
      %v736 = vshll.u32 %v595, 16
      %v738 = vrot.slane %v736, 1
      %v739 = vsel %vm631, %v734, %v738
      %v782 = vunpack.c.l.b16 %v597
      %v783 = vunpack.c.l.b16 %v598
      %v784 = vunpack.c.l.b16 %v599
      %v785 = vunpack.c.l.b16 %v600
      %v786 = vunpack.c.l.b16 %v601
      %v787 = vunpack.c.l.b16 %v602
      %v788 = vunpack.c.l.b16 %v603
      %v789 = vunpack.c.l.b16 %v604
      %v790 = vunpack.c.l.b16 %v605
      %v791 = vunpack.c.l.b16 %v606
      %v792 = vunpack.c.l.b16 %v607
      %v793 = vunpack.c.l.b16 %v608
      %v794 = vunpack.c.l.b16 %v609
      %v795 = vunpack.c.l.b16 %v610
      %v796 = vunpack.c.l.b16 %v611
      %v797 = vunpack.c.l.b16 %v612
      %v798 = vunpack.c.l.b16 %v613
      %v799 = vunpack.c.l.b16 %v614
      %v800 = vunpack.c.l.b16 %v615
      %v801 = vunpack.c.l.b16 %v616
      %v802 = vunpack.c.l.b16 %v617
      %v803 = vunpack.c.l.b16 %v618
      %v804 = vunpack.c.l.b16 %v619
      %v805 = vunpack.c.l.b16 %v620
      %v806 = vunpack.c.l.b16 %v621
      %v807 = vunpack.c.l.b16 %v622
      %v808 = vunpack.c.l.b16 %v623
      %v809 = vunpack.c.l.b16 %v624
      %v810 = vunpack.c.l.b16 %v625
      %v811 = vunpack.c.l.b16 %v626
      %v812 = vunpack.c.l.b16 %v627
      %v813 = vunpack.c.l.b16 %v628
      %v814 = vunpack.c.l.b16 %v629
      %v815 = vunpack.c.l.b16 %v630
      %v816 = vpack.c.b16 %v783, %v782
      %v817 = vpack.c.b16 %v785, %v784
      %v818 = vpack.c.b16 %v787, %v786
      %v819 = vpack.c.b16 %v789, %v788
      %v820 = vpack.c.b16 %v791, %v790
      %v821 = vpack.c.b16 %v793, %v792
      %v822 = vpack.c.b16 %v795, %v794
      %v823 = vpack.c.b16 %v797, %v796
      %v824 = vpack.c.b16 %v799, %v798
      %v825 = vpack.c.b16 %v801, %v800
      %v826 = vpack.c.b16 %v803, %v802
      %v827 = vpack.c.b16 %v805, %v804
      %v828 = vpack.c.b16 %v807, %v806
      %v829 = vpack.c.b16 %v809, %v808
      %v830 = vpack.c.b16 %v811, %v810
      %v831 = vpack.c.b16 %v813, %v812
      %v832 = vpack.c.b16 %v815, %v814
      %v851 = vsel %vm403, %v667, 0
      %v854 = vsel %vm403, %v691, 0
      %v857 = vsel %vm403, %v715, 0
      %v860 = vsel %vm403, %v739, 0
      %862 = vmatprep.subr.bf16.mxu0 0
      %863 = vmatpush1.bf16.msra.mxu0 %v823
      %864 = vmatprep.subr.bf16.mxu0 0
      %865 = vmatpush1.bf16.msra.mxu0 %v822
      %866 = vmatprep.subr.bf16.mxu0 0
      %867 = vmatpush1.bf16.msra.mxu0 %v821
      %868 = vmatprep.subr.bf16.mxu0 0
      %869 = vmatpush1.bf16.msra.mxu0 %v820
      %870 = vmatprep.subr.bf16.mxu0 0
      %871 = vmatpush1.bf16.msra.mxu0 %v819
      %872 = vmatprep.subr.bf16.mxu0 0
      %873 = vmatpush1.bf16.msra.mxu0 %v818
      %874 = vmatprep.subr.bf16.mxu0 0
      %875 = vmatpush1.bf16.msra.mxu0 %v817
      %876 = vmatprep.subr.bf16.mxu0 0
      %877 = vmatpush1.bf16.msra.mxu0 %v816
      %878 = vmatprep.subr.bf16.mxu0 0
      %879 = vmatpush2.bf16.msra.mxu0 %v831
      %880 = vmatprep.subr.bf16.mxu0 0
      %881 = vmatpush2.bf16.msra.mxu0 %v830
      %882 = vmatprep.subr.bf16.mxu0 0
      %883 = vmatpush2.bf16.msra.mxu0 %v829
      %884 = vmatprep.subr.bf16.mxu0 0
      %885 = vmatpush2.bf16.msra.mxu0 %v828
      %886 = vmatprep.subr.bf16.mxu0 0
      %887 = vmatpush2.bf16.msra.mxu0 %v827
      %888 = vmatprep.subr.bf16.mxu0 0
      %889 = vmatpush2.bf16.msra.mxu0 %v826
      %890 = vmatprep.subr.bf16.mxu0 0
      %891 = vmatpush2.bf16.msra.mxu0 %v825
      %892 = vmatprep.subr.bf16.mxu0 0
      %893 = vmatpush2.bf16.msra.mxu0 %v824
      %894 = vmatprep.mubr.bf16.mxu0 %v655
      %895 = vmatmul.mubr.bf16.gmra.mxu0 %v643
      %v896 = vpop.f32.mrf.mxu0
      %v897 = vadd.f32 0.0, %v896
      %v898 = vpop.f32.mrf.mxu0
      %v899 = vpop.f32.mrf.mxu0
      %v900 = vadd.f32 0.0, %v899
      %v901 = vpop.f32.mrf.mxu0
      %902 = vmatprep.mubr.bf16.mxu0 %v683
      %903 = vmatmul.mubr.bf16.gmra.mxu0 %v675
      %v904 = vpop.f32.mrf.mxu0
      %v905 = vadd.f32 0.0, %v904
      %v906 = vpop.f32.mrf.mxu0
      %v907 = vpop.f32.mrf.mxu0
      %v908 = vadd.f32 0.0, %v907
      %v909 = vpop.f32.mrf.mxu0
      %910 = vmatprep.mubr.bf16.mxu0 %v707
      %911 = vmatmul.mubr.bf16.gmra.mxu0 %v699
      %v912 = vpop.f32.mrf.mxu0
      %v913 = vadd.f32 0.0, %v912
      %v914 = vpop.f32.mrf.mxu0
      %v915 = vpop.f32.mrf.mxu0
      %v916 = vadd.f32 0.0, %v915
      %v917 = vpop.f32.mrf.mxu0
      %918 = vmatprep.mubr.bf16.mxu0 %v731
      %919 = vmatmul.mubr.bf16.gmra.mxu0 %v723
      %v920 = vpop.f32.mrf.mxu0
      %v921 = vadd.f32 0.0, %v920
      %v922 = vpop.f32.mrf.mxu0
      %v923 = vpop.f32.mrf.mxu0
      %v924 = vadd.f32 0.0, %v923
      %v925 = vpop.f32.mrf.mxu0
      %926 = vdwg.mxu0
      %927 = vmatprep.subr.bf16.mxu0 0
      %928 = vmatpush1.bf16.msra.mxu0 0
      %929 = vmatprep.subr.bf16.mxu0 0
      %930 = vmatpush1.bf16.msra.mxu0 0
      %931 = vmatprep.subr.bf16.mxu0 0
      %932 = vmatpush1.bf16.msra.mxu0 0
      %933 = vmatprep.subr.bf16.mxu0 0
      %934 = vmatpush1.bf16.msra.mxu0 0
      %935 = vmatprep.subr.bf16.mxu0 0
      %936 = vmatpush1.bf16.msra.mxu0 0
      %937 = vmatprep.subr.bf16.mxu0 0
      %938 = vmatpush1.bf16.msra.mxu0 0
      %939 = vmatprep.subr.bf16.mxu0 0
      %940 = vmatpush1.bf16.msra.mxu0 0
      %941 = vmatprep.subr.bf16.mxu0 0
      %942 = vmatpush1.bf16.msra.mxu0 %v832
      %943 = vmatprep.subr.bf16.mxu0 0
      %944 = vmatpush2.bf16.msra.mxu0 0
      %945 = vmatprep.subr.bf16.mxu0 0
      %946 = vmatpush2.bf16.msra.mxu0 0
      %947 = vmatprep.subr.bf16.mxu0 0
      %948 = vmatpush2.bf16.msra.mxu0 0
      %949 = vmatprep.subr.bf16.mxu0 0
      %950 = vmatpush2.bf16.msra.mxu0 0
      %951 = vmatprep.subr.bf16.mxu0 0
      %952 = vmatpush2.bf16.msra.mxu0 0
      %953 = vmatprep.subr.bf16.mxu0 0
      %954 = vmatpush2.bf16.msra.mxu0 0
      %955 = vmatprep.subr.bf16.mxu0 0
      %956 = vmatpush2.bf16.msra.mxu0 0
      %957 = vmatprep.subr.bf16.mxu0 0
      %958 = vmatpush2.bf16.msra.mxu0 0
      %959 = vmatprep.mubr.bf16.mxu0 0
      %960 = vmatmul.mubr.bf16.gmra.mxu0 %v851
      %v961 = vpop.f32.mrf.mxu0
      %v962 = vadd.f32 %v897, %v961
      %v963 = vpop.f32.mrf.mxu0
      %v964 = vpop.f32.mrf.mxu0
      %v965 = vadd.f32 %v900, %v964
      %v966 = vpop.f32.mrf.mxu0
      %967 = vmatprep.mubr.bf16.mxu0 0
      %968 = vmatmul.mubr.bf16.gmra.mxu0 %v854
      %v969 = vpop.f32.mrf.mxu0
      %v970 = vadd.f32 %v905, %v969
      %v971 = vpop.f32.mrf.mxu0
      %v972 = vpop.f32.mrf.mxu0
      %v973 = vadd.f32 %v908, %v972
      %v974 = vpop.f32.mrf.mxu0
      %975 = vmatprep.mubr.bf16.mxu0 0
      %976 = vmatmul.mubr.bf16.gmra.mxu0 %v857
      %v977 = vpop.f32.mrf.mxu0
      %v978 = vadd.f32 %v913, %v977
      %v979 = vpop.f32.mrf.mxu0
      %v980 = vpop.f32.mrf.mxu0
      %v981 = vadd.f32 %v916, %v980
      %v982 = vpop.f32.mrf.mxu0
      %983 = vmatprep.mubr.bf16.mxu0 0
      %984 = vmatmul.mubr.bf16.gmra.mxu0 %v860
      %v985 = vpop.f32.mrf.mxu0
      %v986 = vadd.f32 %v921, %v985
      %v987 = vpop.f32.mrf.mxu0
      %v988 = vpop.f32.mrf.mxu0
      %v989 = vadd.f32 %v924, %v988
      %v990 = vpop.f32.mrf.mxu0
      %991 = vdwg.mxu0
      %v992 = vadd.f32 %v546, %v962
      %v993 = vadd.f32 %v547, %v965
      %v994 = vadd.f32 %v548, %v970
      %v995 = vadd.f32 %v549, %v973
      %v996 = vadd.f32 %v550, %v978
      %v997 = vadd.f32 %v551, %v981
      %v998 = vadd.f32 %v552, %v986
      %v999 = vadd.f32 %v553, %v989
      %v1000 = vld [vmem:[%s218] sm:$0xfc]
      %v1001 = vld [vmem:[%s218 + $0x8] sm:$0xfc]
      %v1002 = vld [vmem:[%s218 + $0x10] sm:$0xfc]
      %v1003 = vld [vmem:[%s218 + $0xc0] sm:$0x3]
      %v1004 = vld [vmem:[%s218 + $0xc8] sm:$0x3]
      %v1005 = vld [vmem:[%s218 + $0xd0] sm:$0x3]
      %v1006 = vpack.c.bf16 %v557, %v1000
      %v1007 = vpack.c.bf16 %v558, %v1001
      %v1008 = vpack.c.bf16 %v559, %v1002
      %v1009 = vpack.c.bf16 %v1003, %v1003
      %v1010 = vpack.c.bf16 %v1004, %v1004
      %v1011 = vpack.c.bf16 %v1005, %v1005
      %s1012 = scalar_lea.vmem %s1, 272
      %v1013 = vld [vmem:[%s1012] sm:$0xf]
      %v1014 = vld [vmem:[%s1012 + $0x4] sm:$0xf]
      %v1015 = vld [vmem:[%s1012 + $0x8] sm:$0xf]
      %v1016 = vld [vmem:[%s1012 + $0xc] sm:$0xf]
      %v1017 = vld [vmem:[%s1012 + $0x10] sm:$0xf]
      %v1018 = vld [vmem:[%s1012 + $0x14] sm:$0xf]
      %v1019 = vld [vmem:[%s1012 + $0x18] sm:$0xf]
      %v1020 = vld [vmem:[%s1012 + $0x1c] sm:$0xf]
      %v1021 = vld [vmem:[%s1012 + $0x20] sm:$0xf]
      %v1022 = vld [vmem:[%s1012 + $0x24] sm:$0xf]
      %v1023 = vld [vmem:[%s1012 + $0x28] sm:$0xf]
      %v1024 = vld [vmem:[%s1012 + $0x2c] sm:$0xf]
      %v1025 = vld [vmem:[%s1012 + $0x30] sm:$0xf]
      %v1026 = vld [vmem:[%s1012 + $0x34] sm:$0xf]
      %v1027 = vld [vmem:[%s1012 + $0x38] sm:$0xf]
      %v1028 = vld [vmem:[%s1012 + $0x3c] sm:$0xf]
      %v1029 = vld [vmem:[%s1012 + $0x40] sm:$0xf]
      %v1030 = vld [vmem:[%s1012 + $0x44] sm:$0xf]
      %v1031 = vld [vmem:[%s1012 + $0x48] sm:$0xf]
      %v1032 = vld [vmem:[%s1012 + $0x4c] sm:$0xf]
      %v1033 = vld [vmem:[%s1012 + $0x50] sm:$0xf]
      %v1034 = vld [vmem:[%s1012 + $0x54] sm:$0xf]
      %v1035 = vld [vmem:[%s1012 + $0x58] sm:$0xf]
      %v1036 = vld [vmem:[%s1012 + $0x5c] sm:$0xf]
      %v1037 = vld [vmem:[%s1012 + $0x60] sm:$0xf]
      %v1038 = vld [vmem:[%s1012 + $0x64] sm:$0xf]
      %v1039 = vld [vmem:[%s1012 + $0x68] sm:$0xf]
      %v1040 = vld [vmem:[%s1012 + $0x6c] sm:$0xf]
      %v1041 = vld [vmem:[%s1012 + $0x70] sm:$0xf]
      %v1042 = vld [vmem:[%s1012 + $0x74] sm:$0xf]
      %v1043 = vld [vmem:[%s1012 + $0x78] sm:$0xf]
      %v1044 = vld [vmem:[%s1012 + $0x7c] sm:$0xf]
      %v1045 = vld [vmem:[%s1012 + $0x80] sm:$0xf]
      %v1046 = vld [vmem:[%s1012 + $0x84] sm:$0xf]
      %vm1062 = vcmask 1046528
      %v1063 = vrot.slane %v1006, 1
      %v1064 = vrot.slane %v584, 1
      %v1065 = vsel %vm1062, %v1063, %v1064
      %v1066 = vrot.slane %v1007, 1
      %v1067 = vrot.slane %v585, 1
      %v1068 = vsel %vm1062, %v1066, %v1067
      %v1069 = vrot.slane %v1008, 1
      %v1070 = vrot.slane %v586, 1
      %v1071 = vsel %vm1062, %v1069, %v1070
      %v1072 = vrot.slane %v587, 1
      %v1073 = vsel %vm1062, %v1064, %v1072
      %v1074 = vrot.slane %v588, 1
      %v1075 = vsel %vm1062, %v1067, %v1074
      %v1076 = vrot.slane %v589, 1
      %v1077 = vsel %vm1062, %v1070, %v1076
      %v1078 = vrot.slane %v590, 1
      %v1079 = vsel %vm1062, %v1072, %v1078
      %v1080 = vrot.slane %v591, 1
      %v1081 = vsel %vm1062, %v1074, %v1080
      %v1082 = vrot.slane %v592, 1
      %v1083 = vsel %vm1062, %v1076, %v1082
      %v1084 = vrot.slane %v1009, 1
      %v1085 = vsel %vm1062, %v1078, %v1084
      %v1086 = vrot.slane %v1010, 1
      %v1087 = vsel %vm1062, %v1080, %v1086
      %v1088 = vrot.slane %v1011, 1
      %v1089 = vsel %vm1062, %v1082, %v1088
      %v1132 = vunpack.c.l.b16 %v1013
      %v1133 = vunpack.c.l.b16 %v1014
      %v1134 = vunpack.c.l.b16 %v1015
      %v1135 = vunpack.c.l.b16 %v1016
      %v1136 = vunpack.c.l.b16 %v1017
      %v1137 = vunpack.c.l.b16 %v1018
      %v1138 = vunpack.c.l.b16 %v1019
      %v1139 = vunpack.c.l.b16 %v1020
      %v1140 = vunpack.c.l.b16 %v1021
      %v1141 = vunpack.c.l.b16 %v1022
      %v1142 = vunpack.c.l.b16 %v1023
      %v1143 = vunpack.c.l.b16 %v1024
      %v1144 = vunpack.c.l.b16 %v1025
      %v1145 = vunpack.c.l.b16 %v1026
      %v1146 = vunpack.c.l.b16 %v1027
      %v1147 = vunpack.c.l.b16 %v1028
      %v1148 = vunpack.c.l.b16 %v1029
      %v1149 = vunpack.c.l.b16 %v1030
      %v1150 = vunpack.c.l.b16 %v1031
      %v1151 = vunpack.c.l.b16 %v1032
      %v1152 = vunpack.c.l.b16 %v1033
      %v1153 = vunpack.c.l.b16 %v1034
      %v1154 = vunpack.c.l.b16 %v1035
      %v1155 = vunpack.c.l.b16 %v1036
      %v1156 = vunpack.c.l.b16 %v1037
      %v1157 = vunpack.c.l.b16 %v1038
      %v1158 = vunpack.c.l.b16 %v1039
      %v1159 = vunpack.c.l.b16 %v1040
      %v1160 = vunpack.c.l.b16 %v1041
      %v1161 = vunpack.c.l.b16 %v1042
      %v1162 = vunpack.c.l.b16 %v1043
      %v1163 = vunpack.c.l.b16 %v1044
      %v1164 = vunpack.c.l.b16 %v1045
      %v1165 = vunpack.c.l.b16 %v1046
      %v1166 = vpack.c.b16 %v1133, %v1132
      %v1167 = vpack.c.b16 %v1135, %v1134
      %v1168 = vpack.c.b16 %v1137, %v1136
      %v1169 = vpack.c.b16 %v1139, %v1138
      %v1170 = vpack.c.b16 %v1141, %v1140
      %v1171 = vpack.c.b16 %v1143, %v1142
      %v1172 = vpack.c.b16 %v1145, %v1144
      %v1173 = vpack.c.b16 %v1147, %v1146
      %v1174 = vpack.c.b16 %v1149, %v1148
      %v1175 = vpack.c.b16 %v1151, %v1150
      %v1176 = vpack.c.b16 %v1153, %v1152
      %v1177 = vpack.c.b16 %v1155, %v1154
      %v1178 = vpack.c.b16 %v1157, %v1156
      %v1179 = vpack.c.b16 %v1159, %v1158
      %v1180 = vpack.c.b16 %v1161, %v1160
      %v1181 = vpack.c.b16 %v1163, %v1162
      %v1182 = vpack.c.b16 %v1165, %v1164
      %v1201 = vsel %vm403, %v1071, 0
      %v1204 = vsel %vm403, %v1077, 0
      %v1207 = vsel %vm403, %v1083, 0
      %v1210 = vsel %vm403, %v1089, 0
      %1212 = vmatprep.subr.bf16.mxu0 0
      %1213 = vmatpush1.bf16.msra.mxu0 %v1173
      %1214 = vmatprep.subr.bf16.mxu0 0
      %1215 = vmatpush1.bf16.msra.mxu0 %v1172
      %1216 = vmatprep.subr.bf16.mxu0 0
      %1217 = vmatpush1.bf16.msra.mxu0 %v1171
      %1218 = vmatprep.subr.bf16.mxu0 0
      %1219 = vmatpush1.bf16.msra.mxu0 %v1170
      %1220 = vmatprep.subr.bf16.mxu0 0
      %1221 = vmatpush1.bf16.msra.mxu0 %v1169
      %1222 = vmatprep.subr.bf16.mxu0 0
      %1223 = vmatpush1.bf16.msra.mxu0 %v1168
      %1224 = vmatprep.subr.bf16.mxu0 0
      %1225 = vmatpush1.bf16.msra.mxu0 %v1167
      %1226 = vmatprep.subr.bf16.mxu0 0
      %1227 = vmatpush1.bf16.msra.mxu0 %v1166
      %1228 = vmatprep.subr.bf16.mxu0 0
      %1229 = vmatpush2.bf16.msra.mxu0 %v1181
      %1230 = vmatprep.subr.bf16.mxu0 0
      %1231 = vmatpush2.bf16.msra.mxu0 %v1180
      %1232 = vmatprep.subr.bf16.mxu0 0
      %1233 = vmatpush2.bf16.msra.mxu0 %v1179
      %1234 = vmatprep.subr.bf16.mxu0 0
      %1235 = vmatpush2.bf16.msra.mxu0 %v1178
      %1236 = vmatprep.subr.bf16.mxu0 0
      %1237 = vmatpush2.bf16.msra.mxu0 %v1177
      %1238 = vmatprep.subr.bf16.mxu0 0
      %1239 = vmatpush2.bf16.msra.mxu0 %v1176
      %1240 = vmatprep.subr.bf16.mxu0 0
      %1241 = vmatpush2.bf16.msra.mxu0 %v1175
      %1242 = vmatprep.subr.bf16.mxu0 0
      %1243 = vmatpush2.bf16.msra.mxu0 %v1174
      %1244 = vmatprep.mubr.bf16.mxu0 %v1068
      %1245 = vmatmul.mubr.bf16.gmra.mxu0 %v1065
      %v1246 = vpop.f32.mrf.mxu0
      %v1247 = vadd.f32 0.0, %v1246
      %v1248 = vpop.f32.mrf.mxu0
      %v1249 = vpop.f32.mrf.mxu0
      %v1250 = vadd.f32 0.0, %v1249
      %v1251 = vpop.f32.mrf.mxu0
      %1252 = vmatprep.mubr.bf16.mxu0 %v1075
      %1253 = vmatmul.mubr.bf16.gmra.mxu0 %v1073
      %v1254 = vpop.f32.mrf.mxu0
      %v1255 = vadd.f32 0.0, %v1254
      %v1256 = vpop.f32.mrf.mxu0
      %v1257 = vpop.f32.mrf.mxu0
      %v1258 = vadd.f32 0.0, %v1257
      %v1259 = vpop.f32.mrf.mxu0
      %1260 = vmatprep.mubr.bf16.mxu0 %v1081
      %1261 = vmatmul.mubr.bf16.gmra.mxu0 %v1079
      %v1262 = vpop.f32.mrf.mxu0
      %v1263 = vadd.f32 0.0, %v1262
      %v1264 = vpop.f32.mrf.mxu0
      %v1265 = vpop.f32.mrf.mxu0
      %v1266 = vadd.f32 0.0, %v1265
      %v1267 = vpop.f32.mrf.mxu0
      %1268 = vmatprep.mubr.bf16.mxu0 %v1087
      %1269 = vmatmul.mubr.bf16.gmra.mxu0 %v1085
      %v1270 = vpop.f32.mrf.mxu0
      %v1271 = vadd.f32 0.0, %v1270
      %v1272 = vpop.f32.mrf.mxu0
      %v1273 = vpop.f32.mrf.mxu0
      %v1274 = vadd.f32 0.0, %v1273
      %v1275 = vpop.f32.mrf.mxu0
      %1276 = vdwg.mxu0
      %1277 = vmatprep.subr.bf16.mxu0 0
      %1278 = vmatpush1.bf16.msra.mxu0 0
      %1279 = vmatprep.subr.bf16.mxu0 0
      %1280 = vmatpush1.bf16.msra.mxu0 0
      %1281 = vmatprep.subr.bf16.mxu0 0
      %1282 = vmatpush1.bf16.msra.mxu0 0
      %1283 = vmatprep.subr.bf16.mxu0 0
      %1284 = vmatpush1.bf16.msra.mxu0 0
      %1285 = vmatprep.subr.bf16.mxu0 0
      %1286 = vmatpush1.bf16.msra.mxu0 0
      %1287 = vmatprep.subr.bf16.mxu0 0
      %1288 = vmatpush1.bf16.msra.mxu0 0
      %1289 = vmatprep.subr.bf16.mxu0 0
      %1290 = vmatpush1.bf16.msra.mxu0 0
      %1291 = vmatprep.subr.bf16.mxu0 0
      %1292 = vmatpush1.bf16.msra.mxu0 %v1182
      %1293 = vmatprep.subr.bf16.mxu0 0
      %1294 = vmatpush2.bf16.msra.mxu0 0
      %1295 = vmatprep.subr.bf16.mxu0 0
      %1296 = vmatpush2.bf16.msra.mxu0 0
      %1297 = vmatprep.subr.bf16.mxu0 0
      %1298 = vmatpush2.bf16.msra.mxu0 0
      %1299 = vmatprep.subr.bf16.mxu0 0
      %1300 = vmatpush2.bf16.msra.mxu0 0
      %1301 = vmatprep.subr.bf16.mxu0 0
      %1302 = vmatpush2.bf16.msra.mxu0 0
      %1303 = vmatprep.subr.bf16.mxu0 0
      %1304 = vmatpush2.bf16.msra.mxu0 0
      %1305 = vmatprep.subr.bf16.mxu0 0
      %1306 = vmatpush2.bf16.msra.mxu0 0
      %1307 = vmatprep.subr.bf16.mxu0 0
      %1308 = vmatpush2.bf16.msra.mxu0 0
      %1309 = vmatprep.mubr.bf16.mxu0 0
      %1310 = vmatmul.mubr.bf16.gmra.mxu0 %v1201
      %v1311 = vpop.f32.mrf.mxu0
      %v1312 = vadd.f32 %v1247, %v1311
      %v1313 = vpop.f32.mrf.mxu0
      %v1314 = vpop.f32.mrf.mxu0
      %v1315 = vadd.f32 %v1250, %v1314
      %v1316 = vpop.f32.mrf.mxu0
      %1317 = vmatprep.mubr.bf16.mxu0 0
      %1318 = vmatmul.mubr.bf16.gmra.mxu0 %v1204
      %v1319 = vpop.f32.mrf.mxu0
      %v1320 = vadd.f32 %v1255, %v1319
      %v1321 = vpop.f32.mrf.mxu0
      %v1322 = vpop.f32.mrf.mxu0
      %v1323 = vadd.f32 %v1258, %v1322
      %v1324 = vpop.f32.mrf.mxu0
      %1325 = vmatprep.mubr.bf16.mxu0 0
      %1326 = vmatmul.mubr.bf16.gmra.mxu0 %v1207
      %v1327 = vpop.f32.mrf.mxu0
      %v1328 = vadd.f32 %v1263, %v1327
      %v1329 = vpop.f32.mrf.mxu0
      %v1330 = vpop.f32.mrf.mxu0
      %v1331 = vadd.f32 %v1266, %v1330
      %v1332 = vpop.f32.mrf.mxu0
      %1333 = vmatprep.mubr.bf16.mxu0 0
      %1334 = vmatmul.mubr.bf16.gmra.mxu0 %v1210
      %v1335 = vpop.f32.mrf.mxu0
      %v1336 = vadd.f32 %v1271, %v1335
      %v1337 = vpop.f32.mrf.mxu0
      %v1338 = vpop.f32.mrf.mxu0
      %v1339 = vadd.f32 %v1274, %v1338
      %v1340 = vpop.f32.mrf.mxu0
      %1341 = vdwg.mxu0
      %v1342 = vadd.f32 %v992, %v1312
      %v1343 = vadd.f32 %v993, %v1315
      %v1344 = vadd.f32 %v994, %v1320
      %v1345 = vadd.f32 %v995, %v1323
      %v1346 = vadd.f32 %v996, %v1328
      %v1347 = vadd.f32 %v997, %v1331
      %v1348 = vadd.f32 %v998, %v1336
      %v1349 = vadd.f32 %v999, %v1339
      %v1350 = vld [vmem:[%s218] sm:$0xf8]
      %v1351 = vld [vmem:[%s218 + $0x8] sm:$0xf8]
      %v1352 = vld [vmem:[%s218 + $0x10] sm:$0xf8]
      %v1353 = vld [vmem:[%s218 + $0xc0] sm:$0x7]
      %v1354 = vld [vmem:[%s218 + $0xc8] sm:$0x7]
      %v1355 = vld [vmem:[%s218 + $0xd0] sm:$0x7]
      %v1356 = vpack.c.bf16 %v557, %v1350
      %v1357 = vpack.c.bf16 %v558, %v1351
      %v1358 = vpack.c.bf16 %v559, %v1352
      %v1359 = vpack.c.bf16 %v1353, %v1353
      %v1360 = vpack.c.bf16 %v1354, %v1354
      %v1361 = vpack.c.bf16 %v1355, %v1355
      %s1362 = scalar_lea.vmem %s1, 408
      %v1363 = vld [vmem:[%s1362] sm:$0xf]
      %v1364 = vld [vmem:[%s1362 + $0x4] sm:$0xf]
      %v1365 = vld [vmem:[%s1362 + $0x8] sm:$0xf]
      %v1366 = vld [vmem:[%s1362 + $0xc] sm:$0xf]
      %v1367 = vld [vmem:[%s1362 + $0x10] sm:$0xf]
      %v1368 = vld [vmem:[%s1362 + $0x14] sm:$0xf]
      %v1369 = vld [vmem:[%s1362 + $0x18] sm:$0xf]
      %v1370 = vld [vmem:[%s1362 + $0x1c] sm:$0xf]
      %v1371 = vld [vmem:[%s1362 + $0x20] sm:$0xf]
      %v1372 = vld [vmem:[%s1362 + $0x24] sm:$0xf]
      %v1373 = vld [vmem:[%s1362 + $0x28] sm:$0xf]
      %v1374 = vld [vmem:[%s1362 + $0x2c] sm:$0xf]
      %v1375 = vld [vmem:[%s1362 + $0x30] sm:$0xf]
      %v1376 = vld [vmem:[%s1362 + $0x34] sm:$0xf]
      %v1377 = vld [vmem:[%s1362 + $0x38] sm:$0xf]
      %v1378 = vld [vmem:[%s1362 + $0x3c] sm:$0xf]
      %v1379 = vld [vmem:[%s1362 + $0x40] sm:$0xf]
      %v1380 = vld [vmem:[%s1362 + $0x44] sm:$0xf]
      %v1381 = vld [vmem:[%s1362 + $0x48] sm:$0xf]
      %v1382 = vld [vmem:[%s1362 + $0x4c] sm:$0xf]
      %v1383 = vld [vmem:[%s1362 + $0x50] sm:$0xf]
      %v1384 = vld [vmem:[%s1362 + $0x54] sm:$0xf]
      %v1385 = vld [vmem:[%s1362 + $0x58] sm:$0xf]
      %v1386 = vld [vmem:[%s1362 + $0x5c] sm:$0xf]
      %v1387 = vld [vmem:[%s1362 + $0x60] sm:$0xf]
      %v1388 = vld [vmem:[%s1362 + $0x64] sm:$0xf]
      %v1389 = vld [vmem:[%s1362 + $0x68] sm:$0xf]
      %v1390 = vld [vmem:[%s1362 + $0x6c] sm:$0xf]
      %v1391 = vld [vmem:[%s1362 + $0x70] sm:$0xf]
      %v1392 = vld [vmem:[%s1362 + $0x74] sm:$0xf]
      %v1393 = vld [vmem:[%s1362 + $0x78] sm:$0xf]
      %v1394 = vld [vmem:[%s1362 + $0x7c] sm:$0xf]
      %v1395 = vld [vmem:[%s1362 + $0x80] sm:$0xf]
      %v1396 = vld [vmem:[%s1362 + $0x84] sm:$0xf]
      %vm1397 = vsmask.f32 6400
      %v1399 = vshrl.u32 %v1356, 16
      %v1401 = vrot.slane %v1399, 1
      %v1402 = vshll.u32 %v1356, 16
      %v1404 = vrot.slane %v1402, 2
      %v1405 = vor.u32 %v1401, %v1404
      %v1406 = vrot.slane %v668, 1
      %v1407 = vrot.slane %v640, 2
      %v1408 = vor.u32 %v1406, %v1407
      %v1409 = vsel %vm1397, %v1405, %v1408
      %v1411 = vshrl.u32 %v1357, 16
      %v1413 = vrot.slane %v1411, 1
      %v1414 = vshll.u32 %v1357, 16
      %v1416 = vrot.slane %v1414, 2
      %v1417 = vor.u32 %v1413, %v1416
      %v1418 = vrot.slane %v676, 1
      %v1419 = vrot.slane %v652, 2
      %v1420 = vor.u32 %v1418, %v1419
      %v1421 = vsel %vm1397, %v1417, %v1420
      %v1423 = vshrl.u32 %v1358, 16
      %v1425 = vrot.slane %v1423, 1
      %v1426 = vshll.u32 %v1358, 16
      %v1428 = vrot.slane %v1426, 2
      %v1429 = vor.u32 %v1425, %v1428
      %v1430 = vrot.slane %v684, 1
      %v1431 = vrot.slane %v664, 2
      %v1432 = vor.u32 %v1430, %v1431
      %v1433 = vsel %vm1397, %v1429, %v1432
      %v1434 = vrot.slane %v692, 1
      %v1435 = vrot.slane %v672, 2
      %v1436 = vor.u32 %v1434, %v1435
      %v1437 = vsel %vm1397, %v1408, %v1436
      %v1438 = vrot.slane %v700, 1
      %v1439 = vrot.slane %v680, 2
      %v1440 = vor.u32 %v1438, %v1439
      %v1441 = vsel %vm1397, %v1420, %v1440
      %v1442 = vrot.slane %v708, 1
      %v1443 = vrot.slane %v688, 2
      %v1444 = vor.u32 %v1442, %v1443
      %v1445 = vsel %vm1397, %v1432, %v1444
      %v1446 = vrot.slane %v716, 1
      %v1447 = vrot.slane %v696, 2
      %v1448 = vor.u32 %v1446, %v1447
      %v1449 = vsel %vm1397, %v1436, %v1448
      %v1450 = vrot.slane %v724, 1
      %v1451 = vrot.slane %v704, 2
      %v1452 = vor.u32 %v1450, %v1451
      %v1453 = vsel %vm1397, %v1440, %v1452
      %v1454 = vrot.slane %v732, 1
      %v1455 = vrot.slane %v712, 2
      %v1456 = vor.u32 %v1454, %v1455
      %v1457 = vsel %vm1397, %v1444, %v1456
      %v1459 = vshrl.u32 %v1359, 16
      %v1461 = vrot.slane %v1459, 1
      %v1462 = vshll.u32 %v1359, 16
      %v1464 = vrot.slane %v1462, 2
      %v1465 = vor.u32 %v1461, %v1464
      %v1466 = vsel %vm1397, %v1448, %v1465
      %v1468 = vshrl.u32 %v1360, 16
      %v1470 = vrot.slane %v1468, 1
      %v1471 = vshll.u32 %v1360, 16
      %v1473 = vrot.slane %v1471, 2
      %v1474 = vor.u32 %v1470, %v1473
      %v1475 = vsel %vm1397, %v1452, %v1474
      %v1477 = vshrl.u32 %v1361, 16
      %v1479 = vrot.slane %v1477, 1
      %v1480 = vshll.u32 %v1361, 16
      %v1482 = vrot.slane %v1480, 2
      %v1483 = vor.u32 %v1479, %v1482
      %v1484 = vsel %vm1397, %v1456, %v1483
      %v1527 = vunpack.c.l.b16 %v1363
      %v1528 = vunpack.c.l.b16 %v1364
      %v1529 = vunpack.c.l.b16 %v1365
      %v1530 = vunpack.c.l.b16 %v1366
      %v1531 = vunpack.c.l.b16 %v1367
      %v1532 = vunpack.c.l.b16 %v1368
      %v1533 = vunpack.c.l.b16 %v1369
      %v1534 = vunpack.c.l.b16 %v1370
      %v1535 = vunpack.c.l.b16 %v1371
      %v1536 = vunpack.c.l.b16 %v1372
      %v1537 = vunpack.c.l.b16 %v1373
      %v1538 = vunpack.c.l.b16 %v1374
      %v1539 = vunpack.c.l.b16 %v1375
      %v1540 = vunpack.c.l.b16 %v1376
      %v1541 = vunpack.c.l.b16 %v1377
      %v1542 = vunpack.c.l.b16 %v1378
      %v1543 = vunpack.c.l.b16 %v1379
      %v1544 = vunpack.c.l.b16 %v1380
      %v1545 = vunpack.c.l.b16 %v1381
      %v1546 = vunpack.c.l.b16 %v1382
      %v1547 = vunpack.c.l.b16 %v1383
      %v1548 = vunpack.c.l.b16 %v1384
      %v1549 = vunpack.c.l.b16 %v1385
      %v1550 = vunpack.c.l.b16 %v1386
      %v1551 = vunpack.c.l.b16 %v1387
      %v1552 = vunpack.c.l.b16 %v1388
      %v1553 = vunpack.c.l.b16 %v1389
      %v1554 = vunpack.c.l.b16 %v1390
      %v1555 = vunpack.c.l.b16 %v1391
      %v1556 = vunpack.c.l.b16 %v1392
      %v1557 = vunpack.c.l.b16 %v1393
      %v1558 = vunpack.c.l.b16 %v1394
      %v1559 = vunpack.c.l.b16 %v1395
      %v1560 = vunpack.c.l.b16 %v1396
      %v1561 = vpack.c.b16 %v1528, %v1527
      %v1562 = vpack.c.b16 %v1530, %v1529
      %v1563 = vpack.c.b16 %v1532, %v1531
      %v1564 = vpack.c.b16 %v1534, %v1533
      %v1565 = vpack.c.b16 %v1536, %v1535
      %v1566 = vpack.c.b16 %v1538, %v1537
      %v1567 = vpack.c.b16 %v1540, %v1539
      %v1568 = vpack.c.b16 %v1542, %v1541
      %v1569 = vpack.c.b16 %v1544, %v1543
      %v1570 = vpack.c.b16 %v1546, %v1545
      %v1571 = vpack.c.b16 %v1548, %v1547
      %v1572 = vpack.c.b16 %v1550, %v1549
      %v1573 = vpack.c.b16 %v1552, %v1551
      %v1574 = vpack.c.b16 %v1554, %v1553
      %v1575 = vpack.c.b16 %v1556, %v1555
      %v1576 = vpack.c.b16 %v1558, %v1557
      %v1577 = vpack.c.b16 %v1560, %v1559
      %v1596 = vsel %vm403, %v1433, 0
      %v1599 = vsel %vm403, %v1445, 0
      %v1602 = vsel %vm403, %v1457, 0
      %v1605 = vsel %vm403, %v1484, 0
      %1607 = vmatprep.subr.bf16.mxu0 0
      %1608 = vmatpush1.bf16.msra.mxu0 %v1568
      %1609 = vmatprep.subr.bf16.mxu0 0
      %1610 = vmatpush1.bf16.msra.mxu0 %v1567
      %1611 = vmatprep.subr.bf16.mxu0 0
      %1612 = vmatpush1.bf16.msra.mxu0 %v1566
      %1613 = vmatprep.subr.bf16.mxu0 0
      %1614 = vmatpush1.bf16.msra.mxu0 %v1565
      %1615 = vmatprep.subr.bf16.mxu0 0
      %1616 = vmatpush1.bf16.msra.mxu0 %v1564
      %1617 = vmatprep.subr.bf16.mxu0 0
      %1618 = vmatpush1.bf16.msra.mxu0 %v1563
      %1619 = vmatprep.subr.bf16.mxu0 0
      %1620 = vmatpush1.bf16.msra.mxu0 %v1562
      %1621 = vmatprep.subr.bf16.mxu0 0
      %1622 = vmatpush1.bf16.msra.mxu0 %v1561
      %1623 = vmatprep.subr.bf16.mxu0 0
      %1624 = vmatpush2.bf16.msra.mxu0 %v1576
      %1625 = vmatprep.subr.bf16.mxu0 0
      %1626 = vmatpush2.bf16.msra.mxu0 %v1575
      %1627 = vmatprep.subr.bf16.mxu0 0
      %1628 = vmatpush2.bf16.msra.mxu0 %v1574
      %1629 = vmatprep.subr.bf16.mxu0 0
      %1630 = vmatpush2.bf16.msra.mxu0 %v1573
      %1631 = vmatprep.subr.bf16.mxu0 0
      %1632 = vmatpush2.bf16.msra.mxu0 %v1572
      %1633 = vmatprep.subr.bf16.mxu0 0
      %1634 = vmatpush2.bf16.msra.mxu0 %v1571
      %1635 = vmatprep.subr.bf16.mxu0 0
      %1636 = vmatpush2.bf16.msra.mxu0 %v1570
      %1637 = vmatprep.subr.bf16.mxu0 0
      %1638 = vmatpush2.bf16.msra.mxu0 %v1569
      %1639 = vmatprep.mubr.bf16.mxu0 %v1421
      %1640 = vmatmul.mubr.bf16.gmra.mxu0 %v1409
      %v1641 = vpop.f32.mrf.mxu0
      %v1642 = vadd.f32 0.0, %v1641
      %v1643 = vpop.f32.mrf.mxu0
      %v1644 = vpop.f32.mrf.mxu0
      %v1645 = vadd.f32 0.0, %v1644
      %v1646 = vpop.f32.mrf.mxu0
      %1647 = vmatprep.mubr.bf16.mxu0 %v1441
      %1648 = vmatmul.mubr.bf16.gmra.mxu0 %v1437
      %v1649 = vpop.f32.mrf.mxu0
      %v1650 = vadd.f32 0.0, %v1649
      %v1651 = vpop.f32.mrf.mxu0
      %v1652 = vpop.f32.mrf.mxu0
      %v1653 = vadd.f32 0.0, %v1652
      %v1654 = vpop.f32.mrf.mxu0
      %1655 = vmatprep.mubr.bf16.mxu0 %v1453
      %1656 = vmatmul.mubr.bf16.gmra.mxu0 %v1449
      %v1657 = vpop.f32.mrf.mxu0
      %v1658 = vadd.f32 0.0, %v1657
      %v1659 = vpop.f32.mrf.mxu0
      %v1660 = vpop.f32.mrf.mxu0
      %v1661 = vadd.f32 0.0, %v1660
      %v1662 = vpop.f32.mrf.mxu0
      %1663 = vmatprep.mubr.bf16.mxu0 %v1475
      %1664 = vmatmul.mubr.bf16.gmra.mxu0 %v1466
      %v1665 = vpop.f32.mrf.mxu0
      %v1666 = vadd.f32 0.0, %v1665
      %v1667 = vpop.f32.mrf.mxu0
      %v1668 = vpop.f32.mrf.mxu0
      %v1669 = vadd.f32 0.0, %v1668
      %v1670 = vpop.f32.mrf.mxu0
      %1671 = vdwg.mxu0
      %1672 = vmatprep.subr.bf16.mxu0 0
      %1673 = vmatpush1.bf16.msra.mxu0 0
      %1674 = vmatprep.subr.bf16.mxu0 0
      %1675 = vmatpush1.bf16.msra.mxu0 0
      %1676 = vmatprep.subr.bf16.mxu0 0
      %1677 = vmatpush1.bf16.msra.mxu0 0
      %1678 = vmatprep.subr.bf16.mxu0 0
      %1679 = vmatpush1.bf16.msra.mxu0 0
      %1680 = vmatprep.subr.bf16.mxu0 0
      %1681 = vmatpush1.bf16.msra.mxu0 0
      %1682 = vmatprep.subr.bf16.mxu0 0
      %1683 = vmatpush1.bf16.msra.mxu0 0
      %1684 = vmatprep.subr.bf16.mxu0 0
      %1685 = vmatpush1.bf16.msra.mxu0 0
      %1686 = vmatprep.subr.bf16.mxu0 0
      %1687 = vmatpush1.bf16.msra.mxu0 %v1577
      %1688 = vmatprep.subr.bf16.mxu0 0
      %1689 = vmatpush2.bf16.msra.mxu0 0
      %1690 = vmatprep.subr.bf16.mxu0 0
      %1691 = vmatpush2.bf16.msra.mxu0 0
      %1692 = vmatprep.subr.bf16.mxu0 0
      %1693 = vmatpush2.bf16.msra.mxu0 0
      %1694 = vmatprep.subr.bf16.mxu0 0
      %1695 = vmatpush2.bf16.msra.mxu0 0
      %1696 = vmatprep.subr.bf16.mxu0 0
      %1697 = vmatpush2.bf16.msra.mxu0 0
      %1698 = vmatprep.subr.bf16.mxu0 0
      %1699 = vmatpush2.bf16.msra.mxu0 0
      %1700 = vmatprep.subr.bf16.mxu0 0
      %1701 = vmatpush2.bf16.msra.mxu0 0
      %1702 = vmatprep.subr.bf16.mxu0 0
      %1703 = vmatpush2.bf16.msra.mxu0 0
      %1704 = vmatprep.mubr.bf16.mxu0 0
      %1705 = vmatmul.mubr.bf16.gmra.mxu0 %v1596
      %v1706 = vpop.f32.mrf.mxu0
      %v1707 = vadd.f32 %v1642, %v1706
      %v1708 = vpop.f32.mrf.mxu0
      %v1709 = vpop.f32.mrf.mxu0
      %v1710 = vadd.f32 %v1645, %v1709
      %v1711 = vpop.f32.mrf.mxu0
      %1712 = vmatprep.mubr.bf16.mxu0 0
      %1713 = vmatmul.mubr.bf16.gmra.mxu0 %v1599
      %v1714 = vpop.f32.mrf.mxu0
      %v1715 = vadd.f32 %v1650, %v1714
      %v1716 = vpop.f32.mrf.mxu0
      %v1717 = vpop.f32.mrf.mxu0
      %v1718 = vadd.f32 %v1653, %v1717
      %v1719 = vpop.f32.mrf.mxu0
      %1720 = vmatprep.mubr.bf16.mxu0 0
      %1721 = vmatmul.mubr.bf16.gmra.mxu0 %v1602
      %v1722 = vpop.f32.mrf.mxu0
      %v1723 = vadd.f32 %v1658, %v1722
      %v1724 = vpop.f32.mrf.mxu0
      %v1725 = vpop.f32.mrf.mxu0
      %v1726 = vadd.f32 %v1661, %v1725
      %v1727 = vpop.f32.mrf.mxu0
      %1728 = vmatprep.mubr.bf16.mxu0 0
      %1729 = vmatmul.mubr.bf16.gmra.mxu0 %v1605
      %v1730 = vpop.f32.mrf.mxu0
      %v1731 = vadd.f32 %v1666, %v1730
      %v1732 = vpop.f32.mrf.mxu0
      %v1733 = vpop.f32.mrf.mxu0
      %v1734 = vadd.f32 %v1669, %v1733
      %v1735 = vpop.f32.mrf.mxu0
      %1736 = vdwg.mxu0
      %v1737 = vadd.f32 %v1342, %v1707
      %v1738 = vadd.f32 %v1343, %v1710
      %v1739 = vadd.f32 %v1344, %v1715
      %v1740 = vadd.f32 %v1345, %v1718
      %v1741 = vadd.f32 %v1346, %v1723
      %v1742 = vadd.f32 %v1347, %v1726
      %v1743 = vadd.f32 %v1348, %v1731
      %v1744 = vadd.f32 %v1349, %v1734
      %v1745 = vld [vmem:[%s218] sm:$0xf0]
      %v1746 = vld [vmem:[%s218 + $0x8] sm:$0xf0]
      %v1747 = vld [vmem:[%s218 + $0x10] sm:$0xf0]
      %v1748 = vld [vmem:[%s218 + $0xc0] sm:$0xf]
      %v1749 = vld [vmem:[%s218 + $0xc8] sm:$0xf]
      %v1750 = vld [vmem:[%s218 + $0xd0] sm:$0xf]
      %v1751 = vpack.c.bf16 %v557, %v1745
      %v1752 = vpack.c.bf16 %v558, %v1746
      %v1753 = vpack.c.bf16 %v559, %v1747
      %v1754 = vpack.c.bf16 %v1748, %v1748
      %v1755 = vpack.c.bf16 %v1749, %v1749
      %v1756 = vpack.c.bf16 %v1750, %v1750
      %s1757 = scalar_lea.vmem %s1, 544
      %v1758 = vld [vmem:[%s1757] sm:$0xf]
      %v1759 = vld [vmem:[%s1757 + $0x4] sm:$0xf]
      %v1760 = vld [vmem:[%s1757 + $0x8] sm:$0xf]
      %v1761 = vld [vmem:[%s1757 + $0xc] sm:$0xf]
      %v1762 = vld [vmem:[%s1757 + $0x10] sm:$0xf]
      %v1763 = vld [vmem:[%s1757 + $0x14] sm:$0xf]
      %v1764 = vld [vmem:[%s1757 + $0x18] sm:$0xf]
      %v1765 = vld [vmem:[%s1757 + $0x1c] sm:$0xf]
      %v1766 = vld [vmem:[%s1757 + $0x20] sm:$0xf]
      %v1767 = vld [vmem:[%s1757 + $0x24] sm:$0xf]
      %v1768 = vld [vmem:[%s1757 + $0x28] sm:$0xf]
      %v1769 = vld [vmem:[%s1757 + $0x2c] sm:$0xf]
      %v1770 = vld [vmem:[%s1757 + $0x30] sm:$0xf]
      %v1771 = vld [vmem:[%s1757 + $0x34] sm:$0xf]
      %v1772 = vld [vmem:[%s1757 + $0x38] sm:$0xf]
      %v1773 = vld [vmem:[%s1757 + $0x3c] sm:$0xf]
      %v1774 = vld [vmem:[%s1757 + $0x40] sm:$0xf]
      %v1775 = vld [vmem:[%s1757 + $0x44] sm:$0xf]
      %v1776 = vld [vmem:[%s1757 + $0x48] sm:$0xf]
      %v1777 = vld [vmem:[%s1757 + $0x4c] sm:$0xf]
      %v1778 = vld [vmem:[%s1757 + $0x50] sm:$0xf]
      %v1779 = vld [vmem:[%s1757 + $0x54] sm:$0xf]
      %v1780 = vld [vmem:[%s1757 + $0x58] sm:$0xf]
      %v1781 = vld [vmem:[%s1757 + $0x5c] sm:$0xf]
      %v1782 = vld [vmem:[%s1757 + $0x60] sm:$0xf]
      %v1783 = vld [vmem:[%s1757 + $0x64] sm:$0xf]
      %v1784 = vld [vmem:[%s1757 + $0x68] sm:$0xf]
      %v1785 = vld [vmem:[%s1757 + $0x6c] sm:$0xf]
      %v1786 = vld [vmem:[%s1757 + $0x70] sm:$0xf]
      %v1787 = vld [vmem:[%s1757 + $0x74] sm:$0xf]
      %v1788 = vld [vmem:[%s1757 + $0x78] sm:$0xf]
      %v1789 = vld [vmem:[%s1757 + $0x7c] sm:$0xf]
      %v1790 = vld [vmem:[%s1757 + $0x80] sm:$0xf]
      %v1791 = vld [vmem:[%s1757 + $0x84] sm:$0xf]
      %vm1798 = vcmask 1045504
      %v1799 = vrot.slane %v1751, 2
      %v1800 = vrot.slane %v584, 2
      %v1801 = vsel %vm1798, %v1799, %v1800
      %v1802 = vrot.slane %v1752, 2
      %v1803 = vrot.slane %v585, 2
      %v1804 = vsel %vm1798, %v1802, %v1803
      %v1805 = vrot.slane %v1753, 2
      %v1806 = vrot.slane %v586, 2
      %v1807 = vsel %vm1798, %v1805, %v1806
      %v1808 = vrot.slane %v587, 2
      %v1809 = vsel %vm1798, %v1800, %v1808
      %v1810 = vrot.slane %v588, 2
      %v1811 = vsel %vm1798, %v1803, %v1810
      %v1812 = vrot.slane %v589, 2
      %v1813 = vsel %vm1798, %v1806, %v1812
      %v1814 = vrot.slane %v590, 2
      %v1815 = vsel %vm1798, %v1808, %v1814
      %v1816 = vrot.slane %v591, 2
      %v1817 = vsel %vm1798, %v1810, %v1816
      %v1818 = vrot.slane %v592, 2
      %v1819 = vsel %vm1798, %v1812, %v1818
      %v1820 = vrot.slane %v1754, 2
      %v1821 = vsel %vm1798, %v1814, %v1820
      %v1822 = vrot.slane %v1755, 2
      %v1823 = vsel %vm1798, %v1816, %v1822
      %v1824 = vrot.slane %v1756, 2
      %v1825 = vsel %vm1798, %v1818, %v1824
      %v1868 = vunpack.c.l.b16 %v1758
      %v1869 = vunpack.c.l.b16 %v1759
      %v1870 = vunpack.c.l.b16 %v1760
      %v1871 = vunpack.c.l.b16 %v1761
      %v1872 = vunpack.c.l.b16 %v1762
      %v1873 = vunpack.c.l.b16 %v1763
      %v1874 = vunpack.c.l.b16 %v1764
      %v1875 = vunpack.c.l.b16 %v1765
      %v1876 = vunpack.c.l.b16 %v1766
      %v1877 = vunpack.c.l.b16 %v1767
      %v1878 = vunpack.c.l.b16 %v1768
      %v1879 = vunpack.c.l.b16 %v1769
      %v1880 = vunpack.c.l.b16 %v1770
      %v1881 = vunpack.c.l.b16 %v1771
      %v1882 = vunpack.c.l.b16 %v1772
      %v1883 = vunpack.c.l.b16 %v1773
      %v1884 = vunpack.c.l.b16 %v1774
      %v1885 = vunpack.c.l.b16 %v1775
      %v1886 = vunpack.c.l.b16 %v1776
      %v1887 = vunpack.c.l.b16 %v1777
      %v1888 = vunpack.c.l.b16 %v1778
      %v1889 = vunpack.c.l.b16 %v1779
      %v1890 = vunpack.c.l.b16 %v1780
      %v1891 = vunpack.c.l.b16 %v1781
      %v1892 = vunpack.c.l.b16 %v1782
      %v1893 = vunpack.c.l.b16 %v1783
      %v1894 = vunpack.c.l.b16 %v1784
      %v1895 = vunpack.c.l.b16 %v1785
      %v1896 = vunpack.c.l.b16 %v1786
      %v1897 = vunpack.c.l.b16 %v1787
      %v1898 = vunpack.c.l.b16 %v1788
      %v1899 = vunpack.c.l.b16 %v1789
      %v1900 = vunpack.c.l.b16 %v1790
      %v1901 = vunpack.c.l.b16 %v1791
      %v1902 = vpack.c.b16 %v1869, %v1868
      %v1903 = vpack.c.b16 %v1871, %v1870
      %v1904 = vpack.c.b16 %v1873, %v1872
      %v1905 = vpack.c.b16 %v1875, %v1874
      %v1906 = vpack.c.b16 %v1877, %v1876
      %v1907 = vpack.c.b16 %v1879, %v1878
      %v1908 = vpack.c.b16 %v1881, %v1880
      %v1909 = vpack.c.b16 %v1883, %v1882
      %v1910 = vpack.c.b16 %v1885, %v1884
      %v1911 = vpack.c.b16 %v1887, %v1886
      %v1912 = vpack.c.b16 %v1889, %v1888
      %v1913 = vpack.c.b16 %v1891, %v1890
      %v1914 = vpack.c.b16 %v1893, %v1892
      %v1915 = vpack.c.b16 %v1895, %v1894
      %v1916 = vpack.c.b16 %v1897, %v1896
      %v1917 = vpack.c.b16 %v1899, %v1898
      %v1918 = vpack.c.b16 %v1901, %v1900
      %v1937 = vsel %vm403, %v1807, 0
      %v1940 = vsel %vm403, %v1813, 0
      %v1943 = vsel %vm403, %v1819, 0
      %v1946 = vsel %vm403, %v1825, 0
      %1948 = vmatprep.subr.bf16.mxu0 0
      %1949 = vmatpush1.bf16.msra.mxu0 %v1909
      %1950 = vmatprep.subr.bf16.mxu0 0
      %1951 = vmatpush1.bf16.msra.mxu0 %v1908
      %1952 = vmatprep.subr.bf16.mxu0 0
      %1953 = vmatpush1.bf16.msra.mxu0 %v1907
      %1954 = vmatprep.subr.bf16.mxu0 0
      %1955 = vmatpush1.bf16.msra.mxu0 %v1906
      %1956 = vmatprep.subr.bf16.mxu0 0
      %1957 = vmatpush1.bf16.msra.mxu0 %v1905
      %1958 = vmatprep.subr.bf16.mxu0 0
      %1959 = vmatpush1.bf16.msra.mxu0 %v1904
      %1960 = vmatprep.subr.bf16.mxu0 0
      %1961 = vmatpush1.bf16.msra.mxu0 %v1903
      %1962 = vmatprep.subr.bf16.mxu0 0
      %1963 = vmatpush1.bf16.msra.mxu0 %v1902
      %1964 = vmatprep.subr.bf16.mxu0 0
      %1965 = vmatpush2.bf16.msra.mxu0 %v1917
      %1966 = vmatprep.subr.bf16.mxu0 0
      %1967 = vmatpush2.bf16.msra.mxu0 %v1916
      %1968 = vmatprep.subr.bf16.mxu0 0
      %1969 = vmatpush2.bf16.msra.mxu0 %v1915
      %1970 = vmatprep.subr.bf16.mxu0 0
      %1971 = vmatpush2.bf16.msra.mxu0 %v1914
      %1972 = vmatprep.subr.bf16.mxu0 0
      %1973 = vmatpush2.bf16.msra.mxu0 %v1913
      %1974 = vmatprep.subr.bf16.mxu0 0
      %1975 = vmatpush2.bf16.msra.mxu0 %v1912
      %1976 = vmatprep.subr.bf16.mxu0 0
      %1977 = vmatpush2.bf16.msra.mxu0 %v1911
      %1978 = vmatprep.subr.bf16.mxu0 0
      %1979 = vmatpush2.bf16.msra.mxu0 %v1910
      %1980 = vmatprep.mubr.bf16.mxu0 %v1804
      %1981 = vmatmul.mubr.bf16.gmra.mxu0 %v1801
      %v1982 = vpop.f32.mrf.mxu0
      %v1983 = vadd.f32 0.0, %v1982
      %v1984 = vpop.f32.mrf.mxu0
      %v1985 = vpop.f32.mrf.mxu0
      %v1986 = vadd.f32 0.0, %v1985
      %v1987 = vpop.f32.mrf.mxu0
      %1988 = vmatprep.mubr.bf16.mxu0 %v1811
      %1989 = vmatmul.mubr.bf16.gmra.mxu0 %v1809
      %v1990 = vpop.f32.mrf.mxu0
      %v1991 = vadd.f32 0.0, %v1990
      %v1992 = vpop.f32.mrf.mxu0
      %v1993 = vpop.f32.mrf.mxu0
      %v1994 = vadd.f32 0.0, %v1993
      %v1995 = vpop.f32.mrf.mxu0
      %1996 = vmatprep.mubr.bf16.mxu0 %v1817
      %1997 = vmatmul.mubr.bf16.gmra.mxu0 %v1815
      %v1998 = vpop.f32.mrf.mxu0
      %v1999 = vadd.f32 0.0, %v1998
      %v2000 = vpop.f32.mrf.mxu0
      %v2001 = vpop.f32.mrf.mxu0
      %v2002 = vadd.f32 0.0, %v2001
      %v2003 = vpop.f32.mrf.mxu0
      %2004 = vmatprep.mubr.bf16.mxu0 %v1823
      %2005 = vmatmul.mubr.bf16.gmra.mxu0 %v1821
      %v2006 = vpop.f32.mrf.mxu0
      %v2007 = vadd.f32 0.0, %v2006
      %v2008 = vpop.f32.mrf.mxu0
      %v2009 = vpop.f32.mrf.mxu0
      %v2010 = vadd.f32 0.0, %v2009
      %v2011 = vpop.f32.mrf.mxu0
      %2012 = vdwg.mxu0
      %2013 = vmatprep.subr.bf16.mxu0 0
      %2014 = vmatpush1.bf16.msra.mxu0 0
      %2015 = vmatprep.subr.bf16.mxu0 0
      %2016 = vmatpush1.bf16.msra.mxu0 0
      %2017 = vmatprep.subr.bf16.mxu0 0
      %2018 = vmatpush1.bf16.msra.mxu0 0
      %2019 = vmatprep.subr.bf16.mxu0 0
      %2020 = vmatpush1.bf16.msra.mxu0 0
      %2021 = vmatprep.subr.bf16.mxu0 0
      %2022 = vmatpush1.bf16.msra.mxu0 0
      %2023 = vmatprep.subr.bf16.mxu0 0
      %2024 = vmatpush1.bf16.msra.mxu0 0
      %2025 = vmatprep.subr.bf16.mxu0 0
      %2026 = vmatpush1.bf16.msra.mxu0 0
      %2027 = vmatprep.subr.bf16.mxu0 0
      %2028 = vmatpush1.bf16.msra.mxu0 %v1918
      %2029 = vmatprep.subr.bf16.mxu0 0
      %2030 = vmatpush2.bf16.msra.mxu0 0
      %2031 = vmatprep.subr.bf16.mxu0 0
      %2032 = vmatpush2.bf16.msra.mxu0 0
      %2033 = vmatprep.subr.bf16.mxu0 0
      %2034 = vmatpush2.bf16.msra.mxu0 0
      %2035 = vmatprep.subr.bf16.mxu0 0
      %2036 = vmatpush2.bf16.msra.mxu0 0
      %2037 = vmatprep.subr.bf16.mxu0 0
      %2038 = vmatpush2.bf16.msra.mxu0 0
      %2039 = vmatprep.subr.bf16.mxu0 0
      %2040 = vmatpush2.bf16.msra.mxu0 0
      %2041 = vmatprep.subr.bf16.mxu0 0
      %2042 = vmatpush2.bf16.msra.mxu0 0
      %2043 = vmatprep.subr.bf16.mxu0 0
      %2044 = vmatpush2.bf16.msra.mxu0 0
      %2045 = vmatprep.mubr.bf16.mxu0 0
      %2046 = vmatmul.mubr.bf16.gmra.mxu0 %v1937
      %v2047 = vpop.f32.mrf.mxu0
      %v2048 = vadd.f32 %v1983, %v2047
      %v2049 = vpop.f32.mrf.mxu0
      %v2050 = vpop.f32.mrf.mxu0
      %v2051 = vadd.f32 %v1986, %v2050
      %v2052 = vpop.f32.mrf.mxu0
      %2053 = vmatprep.mubr.bf16.mxu0 0
      %2054 = vmatmul.mubr.bf16.gmra.mxu0 %v1940
      %v2055 = vpop.f32.mrf.mxu0
      %v2056 = vadd.f32 %v1991, %v2055
      %v2057 = vpop.f32.mrf.mxu0
      %v2058 = vpop.f32.mrf.mxu0
      %v2059 = vadd.f32 %v1994, %v2058
      %v2060 = vpop.f32.mrf.mxu0
      %2061 = vmatprep.mubr.bf16.mxu0 0
      %2062 = vmatmul.mubr.bf16.gmra.mxu0 %v1943
      %v2063 = vpop.f32.mrf.mxu0
      %v2064 = vadd.f32 %v1999, %v2063
      %v2065 = vpop.f32.mrf.mxu0
      %v2066 = vpop.f32.mrf.mxu0
      %v2067 = vadd.f32 %v2002, %v2066
      %v2068 = vpop.f32.mrf.mxu0
      %2069 = vmatprep.mubr.bf16.mxu0 0
      %2070 = vmatmul.mubr.bf16.gmra.mxu0 %v1946
      %v2071 = vpop.f32.mrf.mxu0
      %v2072 = vadd.f32 %v2007, %v2071
      %v2073 = vpop.f32.mrf.mxu0
      %v2074 = vpop.f32.mrf.mxu0
      %v2075 = vadd.f32 %v2010, %v2074
      %v2076 = vpop.f32.mrf.mxu0
      %2077 = vdwg.mxu0
      %v2078 = vadd.f32 %v1737, %v2048
      %v2079 = vadd.f32 %v1738, %v2051
      %v2080 = vadd.f32 %v1739, %v2056
      %v2081 = vadd.f32 %v1740, %v2059
      %v2082 = vadd.f32 %v1741, %v2064
      %v2083 = vadd.f32 %v1742, %v2067
      %v2084 = vadd.f32 %v1743, %v2072
      %v2085 = vadd.f32 %v1744, %v2075
      %v2086 = vld [vmem:[%s3] sm:$0xff]
      %vm2087 = vcmask 523264
      %v2089 = vsel %vm2087, %v2086, 0
      %2091 = vmatprep.subr.mxu0 0.0
      %2092 = vmatpush1.msra.mxu0 0.0
      %2093 = vmatprep.subr.mxu0 0.0
      %2094 = vmatpush1.msra.mxu0 0.0
      %2095 = vmatprep.subr.mxu0 0.0
      %2096 = vmatpush1.msra.mxu0 0.0
      %2097 = vmatprep.subr.mxu0 0.0
      %2098 = vmatpush1.msra.mxu0 0.0
      %2099 = vmatprep.subr.mxu0 0.0
      %2100 = vmatpush1.msra.mxu0 0.0
      %2101 = vmatprep.subr.mxu0 0.0
      %2102 = vmatpush1.msra.mxu0 0.0
      %2103 = vmatprep.subr.mxu0 0.0
      %2104 = vmatpush1.msra.mxu0 0.0
      %2105 = vmatprep.subr.mxu0 0.0
      %2106 = vmatpush1.msra.mxu0 0.0
      %2107 = vmatprep.subr.mxu0 0.0
      %2108 = vmatpush1.msra.mxu0 %v2085
      %2109 = vmatprep.subr.mxu0 0.0
      %2110 = vmatpush1.msra.mxu0 %v2084
      %2111 = vmatprep.subr.mxu0 0.0
      %2112 = vmatpush1.msra.mxu0 %v2083
      %2113 = vmatprep.subr.mxu0 0.0
      %2114 = vmatpush1.msra.mxu0 %v2082
      %2115 = vmatprep.subr.mxu0 0.0
      %2116 = vmatpush1.msra.mxu0 %v2081
      %2117 = vmatprep.subr.mxu0 0.0
      %2118 = vmatpush1.msra.mxu0 %v2080
      %2119 = vmatprep.subr.mxu0 0.0
      %2120 = vmatpush1.msra.mxu0 %v2079
      %2121 = vmatprep.subr.mxu0 0.0
      %2122 = vmatpush1.msra.mxu0 %v2078
      %2123 = vmatprep.subr.mxu0 0.0
      %2124 = vmatpush2.msra.mxu0 0.0
      %2125 = vmatprep.subr.mxu0 0.0
      %2126 = vmatpush2.msra.mxu0 0.0
      %2127 = vmatprep.subr.mxu0 0.0
      %2128 = vmatpush2.msra.mxu0 0.0
      %2129 = vmatprep.subr.mxu0 0.0
      %2130 = vmatpush2.msra.mxu0 0.0
      %2131 = vmatprep.subr.mxu0 0.0
      %2132 = vmatpush2.msra.mxu0 0.0
      %2133 = vmatprep.subr.mxu0 0.0
      %2134 = vmatpush2.msra.mxu0 0.0
      %2135 = vmatprep.subr.mxu0 0.0
      %2136 = vmatpush2.msra.mxu0 0.0
      %2137 = vmatprep.subr.mxu0 0.0
      %2138 = vmatpush2.msra.mxu0 0.0
      %2139 = vmatprep.subr.mxu0 0.0
      %2140 = vmatpush2.msra.mxu0 0.0
      %2141 = vmatprep.subr.mxu0 0.0
      %2142 = vmatpush2.msra.mxu0 0.0
      %2143 = vmatprep.subr.mxu0 0.0
      %2144 = vmatpush2.msra.mxu0 0.0
      %2145 = vmatprep.subr.mxu0 0.0
      %2146 = vmatpush2.msra.mxu0 0.0
      %2147 = vmatprep.subr.mxu0 0.0
      %2148 = vmatpush2.msra.mxu0 0.0
      %2149 = vmatprep.subr.mxu0 0.0
      %2150 = vmatpush2.msra.mxu0 0.0
      %2151 = vmatprep.subr.mxu0 0.0
      %2152 = vmatpush2.msra.mxu0 0.0
      %2153 = vmatprep.subr.mxu0 0.0
      %2154 = vmatpush2.msra.mxu0 0.0
      %2155 = vmatprep.mubr.f32.mxu0 0.0
      %2156 = vmatmul.mubr.f32.gmra.mxu0 %v2089
      %v2157 = vpop.f32.mrf.mxu0
      %v2158 = vadd.f32 0.0, %v2157
      %v2159 = vpop.f32.mrf.mxu0
      %2160 = vdwg.mxu0
      %v2161 = vld [vmem:[%s4] sm:$0xff]
      %v2162 = vld [vmem:[%s4 + $0x8] sm:$0xff]
      %v2163 = vld [vmem:[%s4 + $0x10] sm:$0xff]
      %v2164 = vld [vmem:[%s4 + $0x18] sm:$0xff]
      %v2165 = vld [vmem:[%s4 + $0x20] sm:$0xff]
      %v2166 = vld [vmem:[%s4 + $0x28] sm:$0xff]
      %v2167 = vld [vmem:[%s4 + $0x30] sm:$0xff]
      %v2168 = vld [vmem:[%s4 + $0x38] sm:$0xff]
      %v2170 = vsel %vm2087, %v2158, 0
      %2172 = vmatprep.subr.mxu0 0.0
      %2173 = vmatpush1.msra.mxu0 0.0
      %2174 = vmatprep.subr.mxu0 0.0
      %2175 = vmatpush1.msra.mxu0 0.0
      %2176 = vmatprep.subr.mxu0 0.0
      %2177 = vmatpush1.msra.mxu0 0.0
      %2178 = vmatprep.subr.mxu0 0.0
      %2179 = vmatpush1.msra.mxu0 0.0
      %2180 = vmatprep.subr.mxu0 0.0
      %2181 = vmatpush1.msra.mxu0 0.0
      %2182 = vmatprep.subr.mxu0 0.0
      %2183 = vmatpush1.msra.mxu0 0.0
      %2184 = vmatprep.subr.mxu0 0.0
      %2185 = vmatpush1.msra.mxu0 0.0
      %2186 = vmatprep.subr.mxu0 0.0
      %2187 = vmatpush1.msra.mxu0 0.0
      %2188 = vmatprep.subr.mxu0 0.0
      %2189 = vmatpush1.msra.mxu0 %v2168
      %2190 = vmatprep.subr.mxu0 0.0
      %2191 = vmatpush1.msra.mxu0 %v2167
      %2192 = vmatprep.subr.mxu0 0.0
      %2193 = vmatpush1.msra.mxu0 %v2166
      %2194 = vmatprep.subr.mxu0 0.0
      %2195 = vmatpush1.msra.mxu0 %v2165
      %2196 = vmatprep.subr.mxu0 0.0
      %2197 = vmatpush1.msra.mxu0 %v2164
      %2198 = vmatprep.subr.mxu0 0.0
      %2199 = vmatpush1.msra.mxu0 %v2163
      %2200 = vmatprep.subr.mxu0 0.0
      %2201 = vmatpush1.msra.mxu0 %v2162
      %2202 = vmatprep.subr.mxu0 0.0
      %2203 = vmatpush1.msra.mxu0 %v2161
      %2204 = vmatprep.subr.mxu0 0.0
      %2205 = vmatpush2.msra.mxu0 0.0
      %2206 = vmatprep.subr.mxu0 0.0
      %2207 = vmatpush2.msra.mxu0 0.0
      %2208 = vmatprep.subr.mxu0 0.0
      %2209 = vmatpush2.msra.mxu0 0.0
      %2210 = vmatprep.subr.mxu0 0.0
      %2211 = vmatpush2.msra.mxu0 0.0
      %2212 = vmatprep.subr.mxu0 0.0
      %2213 = vmatpush2.msra.mxu0 0.0
      %2214 = vmatprep.subr.mxu0 0.0
      %2215 = vmatpush2.msra.mxu0 0.0
      %2216 = vmatprep.subr.mxu0 0.0
      %2217 = vmatpush2.msra.mxu0 0.0
      %2218 = vmatprep.subr.mxu0 0.0
      %2219 = vmatpush2.msra.mxu0 0.0
      %2220 = vmatprep.subr.mxu0 0.0
      %2221 = vmatpush2.msra.mxu0 0.0
      %2222 = vmatprep.subr.mxu0 0.0
      %2223 = vmatpush2.msra.mxu0 0.0
      %2224 = vmatprep.subr.mxu0 0.0
      %2225 = vmatpush2.msra.mxu0 0.0
      %2226 = vmatprep.subr.mxu0 0.0
      %2227 = vmatpush2.msra.mxu0 0.0
      %2228 = vmatprep.subr.mxu0 0.0
      %2229 = vmatpush2.msra.mxu0 0.0
      %2230 = vmatprep.subr.mxu0 0.0
      %2231 = vmatpush2.msra.mxu0 0.0
      %2232 = vmatprep.subr.mxu0 0.0
      %2233 = vmatpush2.msra.mxu0 0.0
      %2234 = vmatprep.subr.mxu0 0.0
      %2235 = vmatpush2.msra.mxu0 0.0
      %2236 = vmatprep.mubr.f32.mxu0 0.0
      %2237 = vmatmul.mubr.f32.gmra.mxu0 %v2170
      %v2238 = vpop.f32.mrf.mxu0
      %v2239 = vadd.f32 0.0, %v2238
      %v2240 = vpop.f32.mrf.mxu0
      %2241 = vdwg.mxu0
      %v2242 = vxor.u32 %v2239, 2147483648
      %v2243 = vmul.f32 %v2242, 1.442695
      %v2244 = vpow.pop %v2243
      %v2245 = vadd.f32 %v2244, 1.0
      %v2246 = vrcp.pop %v2245
      %v2247 = vmul.f32 1.0, %v2246
      %vm2248 = vcmask 64512
      %2249 = vst.msk [vmem:[%s222] sm:$0xff] %vm2248, %v2247
      %p2250 = scmp.lt.s32.totalorder %s16, 1
      %s2251 = scalar_select %p2250, %s16, 1
      %s2252 = smul.addr %s2251, 8
      %s2253 = scalar_lea.vmem %s5, %s2252
      // Predicated region
      $region41: #{forward.9} parent=39 // pred_check
        %p2254 = pneg %p144
      $region42: #{forward.9} parent=39 // pred_check_branch
        %2256 = sbr.rel (%p2254) target = $region44
      $region43: #{forward.9} parent=39 // pred_region
        _
      $region44: #{forward.9} parent=39 // pred_fallthru
        _
    $region40: #{forward.9} parent=5 // pred_fallthru
      _
    %p2257 = scmp.le.s32.totalorder 2, %s11
    // Predicated region
    $region45: #{forward.9} parent=5 // pred_check
      %p2258 = pneg %p2257
    $region46: #{forward.9} parent=5 // pred_check_branch
      %2260 = sbr.rel (%p2258) target = $region48
    $region47: #{forward.9} parent=5 // pred_region
      %s2261 = ssub.s32 %s11, 2
      // Predicated region
      $region49: #{forward.9} parent=47 // pred_check
        %p2262 = pneg %p150
      $region50: #{forward.9} parent=47 // pred_check_branch
        %2264 = sbr.rel (%p2262) target = $region52
      $region51: #{forward.9} parent=47 // pred_region
        %p2265 = scmp.lt.s32.totalorder %s17, 1
        %s2266 = scalar_select %p2265, %s17, 1
        %s2267 = smul.addr %s2266, 8
        %s2268 = scalar_lea.vmem %s5, %s2267
      $region52: #{forward.9} parent=47 // pred_fallthru
        _
    $region48: #{forward.9} parent=5 // pred_fallthru
      _
  $region6: #{forward.9} parent=0 // loop_footer
    %s15 = sadd.s32 1, %s11
  $region7: #{forward.9} parent=0 // loop_footer_branch
    %10 = sbr.rel target = $region3
  $region8: #{forward.9} parent=0 // loop_exit
    _

</llo_original>
